<compile_context>
chip_gen: v7x
topology: tpu7x:2x2x1
jax: 0.10.0
libtpu: 0.0.40
codegen_flags: <defaults>
</compile_context>

<pallas_src>
import functools

import numpy as np

import jax
import jax.numpy as jnp
from jax.experimental import pallas as pl
from jax.experimental.pallas import tpu as pltpu


_LANES = 128
_TILE_R = 1024                            # rows per block for the tiled (grid) paths
_FUSED_MAX_F32_BYTES = 4 * 1024 * 1024    # cap for the VMEM-resident fused weight path
_PALLAS_MIN_ELEMS = 4096                  # below this, pure JAX (launch cost dominates)
_VMEM_LIMIT_BYTES = 32 * 1024 * 1024


# ----------------------------------------------------------------------------------
# Pure-JAX references (also used as the tiny-tensor fast path).
# ----------------------------------------------------------------------------------
def _weight_quantize_ref(x, w_bits):
    if w_bits == 32:
        return x
    t = jnp.tanh(x.astype(jnp.float32))
    y = t / 2.0 / jnp.max(jnp.abs(t)) + 0.5
    scale = float(2 ** w_bits - 1)
    y = jnp.round(y * scale) / scale
    return (2.0 * y - 1.0).astype(x.dtype)


def _activation_quantize_ref(x, a_bits):
    if a_bits == 32:
        return x
    scale = float(2 ** a_bits - 1)
    y = jnp.clip(x.astype(jnp.float32) * 0.1, 0.0, 1.0)
    return (jnp.round(y * scale) / scale).astype(x.dtype)


# ----------------------------------------------------------------------------------
# Layout helpers
# ----------------------------------------------------------------------------------
def _flatten_to_slab(x):
    """Flatten to a lane-dense (rows, 128) slab; zero-pad only when required."""
    n = x.size
    flat = x.reshape(-1)
    rem = n % _LANES
    if rem:
        flat = jnp.pad(flat, (0, _LANES - rem))
    return flat.reshape(flat.size // _LANES, _LANES), n


def _pad_rows(x2d, multiple):
    rem = x2d.shape[0] % multiple
    if rem:
        x2d = jnp.pad(x2d, ((0, multiple - rem), (0, 0)))
    return x2d


# ----------------------------------------------------------------------------------
# Pallas kernels
# ----------------------------------------------------------------------------------
def _wq_fused_kernel(x_ref, o_ref, *, scale):
    """Whole weight slab resident in VMEM: reduce, then quantize, in one pass."""
    x = x_ref[...].astype(jnp.float32)
    # tanh is monotone -> tanh(max|x|) == max|tanh(x)|; one transcendental on a scalar.
    t_max = jnp.tanh(jnp.max(jnp.abs(x)))
    inv_2max = 0.5 / t_max                      # single exact scalar divide
    t = jnp.tanh(x)
    y = t * inv_2max + 0.5
    q = jnp.round(y * scale)
    o_ref[...] = (q * (2.0 / scale) - 1.0).astype(o_ref.dtype)


def _absmax_partial_kernel(x_ref, pmax_ref):
    """Pass 1 (fallback): per-block max(|x|) — no transcendentals, fully parallel."""
    m = jnp.max(jnp.abs(x_ref[...].astype(jnp.float32)))
    pmax_ref[...] = jnp.broadcast_to(m, pmax_ref.shape)


def _wq_quantize_kernel(tmax_ref, x_ref, o_ref, *, scale):
    """Pass 2 (fallback): element-wise quantization with hoisted scalar math."""
    inv_2max = 0.5 / tmax_ref[0, 0]             # one scalar divide per block
    t = jnp.tanh(x_ref[...].astype(jnp.float32))
    y = t * inv_2max + 0.5
    q = jnp.round(y * scale)
    o_ref[...] = (q * (2.0 / scale) - 1.0).astype(o_ref.dtype)


def _aq_kernel(x_ref, o_ref, *, scale):
    """Activation quantizer: clamp(x*0.1, 0, 1) -> round to 2**a_bits-1 levels."""
    x = x_ref[...].astype(jnp.float32)
    y = jnp.clip(x * 0.1, 0.0, 1.0)
    o_ref[...] = (jnp.round(y * scale) * (1.0 / scale)).astype(o_ref.dtype)


# ----------------------------------------------------------------------------------
# pallas_call wrappers
# ----------------------------------------------------------------------------------
def _weight_quantize_fused(x2d, scale):
    rows, cols = x2d.shape
    return pl.pallas_call(
        functools.partial(_wq_fused_kernel, scale=scale),
        out_shape=jax.ShapeDtypeStruct((rows, cols), x2d.dtype),
        grid=(1,),
        in_specs=[pl.BlockSpec((rows, cols), lambda i: (0, 0))],
        out_specs=pl.BlockSpec((rows, cols), lambda i: (0, 0)),
        compiler_params=pltpu.CompilerParams(
            dimension_semantics=("arbitrary",),
            vmem_limit_bytes=_VMEM_LIMIT_BYTES,
        ),
    )(x2d)


def _weight_quantize_two_pass(x2d, scale):
    x2d = _pad_rows(x2d, _TILE_R)               # zero pad: |0| never affects the max
    rows = x2d.shape[0]
    nblk = rows // _TILE_R

    # Pass 1: per-block partial abs-max (parallel across blocks / cores).
    partial = pl.pallas_call(
        _absmax_partial_kernel,
        out_shape=jax.ShapeDtypeStruct((nblk * 8, _LANES), jnp.float32),
        grid=(nblk,),
        in_specs=[pl.BlockSpec((_TILE_R, _LANES), lambda i: (i, 0))],
        out_specs=pl.BlockSpec((8, _LANES), lambda i: (i, 0)),
        compiler_params=pltpu.CompilerParams(dimension_semantics=("parallel",)),
    )(x2d)

    # Final reduction + single scalar tanh in the wrapper (tiny).
    tmax = jnp.tanh(jnp.max(partial)).reshape(1, 1).astype(jnp.float32)

    # Pass 2: element-wise quantization with the scalar in SMEM.
    return pl.pallas_call(
        functools.partial(_wq_quantize_kernel, scale=scale),
        out_shape=jax.ShapeDtypeStruct((rows, _LANES), x2d.dtype),
        grid=(nblk,),
        in_specs=[
            pl.BlockSpec(memory_space=pltpu.SMEM),            # (1,1) tanh(max|x|) scalar
            pl.BlockSpec((_TILE_R, _LANES), lambda i: (i, 0)),
        ],
        out_specs=pl.BlockSpec((_TILE_R, _LANES), lambda i: (i, 0)),
        compiler_params=pltpu.CompilerParams(dimension_semantics=("parallel",)),
    )(tmax, x2d)


@functools.partial(jax.jit, static_argnames=("w_bits", "force_two_pass"))
def weight_quantize(x, w_bits, force_two_pass=False):
    """JAX/Pallas equivalent of the PyTorch `weight_quantize` forward."""
    if w_bits == 32:
        return x
    assert w_bits != 1, "w_bits == 1 is disallowed by the reference module"
    if x.size < _PALLAS_MIN_ELEMS:
        # Tiny weights: two kernel launches cost more than the data; let XLA fuse it.
        return _weight_quantize_ref(x, w_bits)

    scale = float(2 ** w_bits - 1)
    x2d, n = _flatten_to_slab(x)
    if (x2d.size * 4 <= _FUSED_MAX_F32_BYTES) and not force_two_pass:
        out2d = _weight_quantize_fused(x2d, scale)
    else:
        out2d = _weight_quantize_two_pass(x2d, scale)
    return out2d.reshape(-1)[:n].reshape(x.shape)


@functools.partial(jax.jit, static_argnames=("a_bits",))
def activation_quantize(x, a_bits):
    """JAX/Pallas equivalent of the PyTorch `activation_quantize` forward."""
    if a_bits == 32:
        return x
    assert a_bits != 1, "a_bits == 1 is disallowed by the reference module"
    if x.size < _PALLAS_MIN_ELEMS:
        return _activation_quantize_ref(x, a_bits)

    scale = float(2 ** a_bits - 1)
    x2d, n = _flatten_to_slab(x)
    rows = x2d.shape[0]
    if rows <= _TILE_R:
        block_r, grid = rows, (1,)              # one full-array block (no padding needed)
    else:
        x2d = _pad_rows(x2d, _TILE_R)
        rows = x2d.shape[0]
        block_r, grid = _TILE_R, (rows // _TILE_R,)

    out2d = pl.pallas_call(
        functools.partial(_aq_kernel, scale=scale),
        out_shape=jax.ShapeDtypeStruct((rows, _LANES), x2d.dtype),
        grid=grid,
        in_specs=[pl.BlockSpec((block_r, _LANES), lambda i: (i, 0))],
        out_specs=pl.BlockSpec((block_r, _LANES), lambda i: (i, 0)),
        compiler_params=pltpu.CompilerParams(dimension_semantics=("parallel",)),
    )(x2d)
    return out2d.reshape(-1)[:n].reshape(x.shape)


# ----------------------------------------------------------------------------------
# Full QuanConv2d forward (bn_fold=0, eval-mode BatchNorm)
# ----------------------------------------------------------------------------------
# TODO(synk): the convolution itself uses XLA's conv_general_dilated (a general grouped
# conv has no clean small Pallas equivalent here); BatchNorm is eval-mode only — the
# training-time running-stat updates and the bn_fold=1 BN-folding path are not modeled.
def _conv_bn(x_q, w_q, bias, gamma, beta, mean, var, stride, padding, groups, eps, last_relu):
    out = jax.lax.conv_general_dilated(
        x_q, w_q,
        window_strides=(stride, stride),
        padding=((padding, padding), (padding, padding)),
        dimension_numbers=("NCHW", "OIHW", "NCHW"),
        feature_group_count=groups,
    )
    if bias is not None:
        out = out + bias.reshape(1, -1, 1, 1)
    inv_std = gamma / jnp.sqrt(var + eps)
    out = (out - mean.reshape(1, -1, 1, 1)) * inv_std.reshape(1, -1, 1, 1) \
          + beta.reshape(1, -1, 1, 1)
    if last_relu:
        out = jax.nn.relu(out)
    return out


def quan_conv2d_forward(x, weight, bias, gamma, beta, running_mean, running_var, *,
                        stride=1, padding=1, groups=1, a_bits=8, w_bits=8, eps=1e-5,
                        first_layer=0, last_relu=0, channel_shuffle_flag=0,
                        shuffle_groups=1):
    if not first_layer:
        x = jax.nn.relu(x)
    if channel_shuffle_flag:
        b_, c, h, w_ = x.shape
        x = x.reshape(b_, shuffle_groups, c // shuffle_groups, h, w_)
        x = jnp.swapaxes(x, 1, 2).reshape(b_, c, h, w_)
    q_input = activation_quantize(x, a_bits=a_bits) if not first_layer else x
    q_weight = weight_quantize(weight, w_bits=w_bits)
    return _conv_bn(q_input, q_weight, bias, gamma, beta, running_mean, running_var,
                    stride, padding, groups, eps, last_relu)


def _quan_conv2d_ref(x, weight, bias, gamma, beta, running_mean, running_var, *,
                     stride=1, padding=1, groups=1, a_bits=8, w_bits=8, eps=1e-5,
                     last_relu=0):
    x = jax.nn.relu(x)
    q_input = _activation_quantize_ref(x, a_bits)
    q_weight = _weight_quantize_ref(weight, w_bits)
    return _conv_bn(q_input, q_weight, bias, gamma, beta, running_mean, running_var,
                    stride, padding, groups, eps, last_relu)


# ----------------------------------------------------------------------------------
# Checks
# ----------------------------------------------------------------------------------
def _check_quantized(name, out, ref, step, min_exact=0.995):
    """Quantizer check tolerant of rounding-boundary bin flips (±1 level at most)."""
    out = np.asarray(out)
    ref = np.asarray(ref)
    assert out.shape == ref.shape and out.dtype == ref.dtype, name
    diff = np.abs(out - ref)
    assert diff.max() <= step + 1e-4, f"{name}: max diff {float(diff.max()):.6f} > one level"
    frac = float((diff <= 1e-5).mean())
    assert frac >= min_exact, f"{name}: only {frac:.5f} of elements match the reference"


if __name__ == "__main__":
    key = jax.random.PRNGKey(0)
    k1, k2, k3, k4, k5, k6, k7 = jax.random.split(key, 7)

    w_bits = 8
    a_bits = 8
    w_step = 2.0 / float(2 ** w_bits - 1)
    a_step = 1.0 / float(2 ** a_bits - 1)

    # 1) weight quantizer — fused VMEM-resident Pallas path
    w_big = jax.random.normal(k1, (512, 128, 3, 3), dtype=jnp.float32)
    ref_w = _weight_quantize_ref(w_big, w_bits)
    out_fused = jax.block_until_ready(weight_quantize(w_big, w_bits=w_bits))
    _check_quantized("weight/fused", out_fused, ref_w, w_step)

    # 2) weight quantizer — big-tile two-pass fallback path (forced)
    out_tiled = jax.block_until_ready(
        weight_quantize(w_big, w_bits=w_bits, force_two_pass=True))
    _check_quantized("weight/two-pass", out_tiled, ref_w, w_step)

    # 3) w_bits == 32 identity
    assert bool(jnp.array_equal(weight_quantize(w_big, w_bits=32), w_big))

    # 4) activation quantizer — tiled Pallas path
    a_big = jax.random.normal(k2, (2, 64, 64, 64), dtype=jnp.float32) * 5.0
    out_act = jax.block_until_ready(activation_quantize(a_big, a_bits=a_bits))
    _check_quantized("activation", out_act, _activation_quantize_ref(a_big, a_bits),
                     a_step, min_exact=0.999)

    # 5) full QuanConv2d forward: relu -> act-quant -> conv(q weights)+bias -> BN (eval)
    x = jax.random.normal(k3, (2, 64, 16, 16), dtype=jnp.float32)
    w = jax.random.normal(k4, (64, 64, 3, 3), dtype=jnp.float32) * 0.1
    b = 0.1 * jax.random.normal(k5, (64,), dtype=jnp.float32)
    gamma = jax.random.uniform(k6, (64,), minval=0.5, maxval=1.5, dtype=jnp.float32)
    beta = 0.1 * jax.random.normal(k7, (64,), dtype=jnp.float32)
    mean = jnp.zeros((64,), jnp.float32)
    var = jnp.ones((64,), jnp.float32)

    y = jax.block_until_ready(
        quan_conv2d_forward(x, w, b, gamma, beta, mean, var,
                            stride=1, padding=1, a_bits=a_bits, w_bits=w_bits))
    y_ref = _quan_conv2d_ref(x, w, b, gamma, beta, mean, var,
                             stride=1, padding=1, a_bits=a_bits, w_bits=w_bits)
    assert y.shape == (2, 64, 16, 16)
    assert bool(jnp.all(jnp.isfinite(y)))
    assert bool(jnp.allclose(y, y_ref, atol=0.3)), "QuanConv2d forward mismatch"

    print("KERNEL_OK")
</pallas_src>

<mosaic_0001>
module attributes {stable_mosaic.version = 11 : i64} {
  func.func @_wq_fused_kernel(%arg0: i32, %arg1: memref<4608x128xf32, #tpu.memory_space<vmem>>, %arg2: memref<4608x128xf32, #tpu.memory_space<vmem>>) attributes {dimension_semantics = [#tpu.dimension_semantics<arbitrary>], iteration_bounds = array<i64: 1>, scalar_prefetch = 0 : i64, scratch_operands = 0 : i64, tpu.core_type = #tpu.core_type<tc>, window_params = [{pipeline_mode = #tpu.pipeline_mode<synchronous>, transform_indices = @transform_0, window_bounds = array<i64: 4608, 128>}, {pipeline_mode = #tpu.pipeline_mode<synchronous>, transform_indices = @transform_1, window_bounds = array<i64: 4608, 128>}]} {
    %c0 = arith.constant 0 : index
    %c0_0 = arith.constant 0 : index
    %0 = vector.load %arg1[%c0, %c0_0] : memref<4608x128xf32, #tpu.memory_space<vmem>>, vector<4608x128xf32>
    %1 = math.absf %0 : vector<4608x128xf32>
    %2 = vector.shape_cast %1 : vector<4608x128xf32> to vector<1x4608x128xf32>
    %cst = arith.constant dense<0xFF800000> : vector<1xf32>
    %3 = vector.multi_reduction <maximumf>, %2, %cst [1, 2] : vector<1x4608x128xf32> to vector<1xf32>
    %4 = vector.shape_cast %3 : vector<1xf32> to vector<1x1x1xf32>
    %5 = vector.extract %4[0, 0, 0] : f32 from vector<1x1x1xf32>
    %6 = math.tanh %5 : f32
    %cst_1 = arith.constant 5.000000e-01 : f32
    %7 = arith.divf %cst_1, %6 : f32
    %8 = math.tanh %0 : vector<4608x128xf32>
    %9 = vector.broadcast %7 : f32 to vector<4608x128xf32>
    %10 = arith.mulf %8, %9 : vector<4608x128xf32>
    %cst_2 = arith.constant 5.000000e-01 : f32
    %11 = vector.broadcast %cst_2 : f32 to vector<4608x128xf32>
    %12 = arith.addf %10, %11 : vector<4608x128xf32>
    %cst_3 = arith.constant 2.550000e+02 : f32
    %13 = vector.broadcast %cst_3 : f32 to vector<4608x128xf32>
    %14 = arith.mulf %12, %13 : vector<4608x128xf32>
    %15 = math.roundeven %14 : vector<4608x128xf32>
    %cst_4 = arith.constant 0.00784313772 : f32
    %16 = vector.broadcast %cst_4 : f32 to vector<4608x128xf32>
    %17 = arith.mulf %15, %16 : vector<4608x128xf32>
    %cst_5 = arith.constant 1.000000e+00 : f32
    %18 = vector.broadcast %cst_5 : f32 to vector<4608x128xf32>
    %19 = arith.subf %17, %18 : vector<4608x128xf32>
    %c0_6 = arith.constant 0 : index
    %c0_7 = arith.constant 0 : index
    %20 = vector.load %arg2[%c0_6, %c0_7] : memref<4608x128xf32, #tpu.memory_space<vmem>>, vector<4608x128xf32>
    tpu.vector_store %arg2[%c0_6, %c0_7], %19 {strides = array<i32>} : memref<4608x128xf32, #tpu.memory_space<vmem>>, vector<4608x128xf32>,
    return
  }
  func.func @transform_0(%arg0: i32) -> (i32, i32) {
    %c0_i32 = arith.constant 0 : i32
    %c0_i32_0 = arith.constant 0 : i32
    %c0_i32_1 = arith.constant 0 : i32
    return %c0_i32, %c0_i32_0 : i32, i32
  }
  func.func @transform_1(%arg0: i32) -> (i32, i32) {
    %c0_i32 = arith.constant 0 : i32
    %c0_i32_0 = arith.constant 0 : i32
    %c0_i32_1 = arith.constant 0 : i32
    return %c0_i32, %c0_i32_0 : i32, i32
  }
}

</mosaic_0001>

<llo_original>
// kernel: weight_quantize.1
$region0: #{weight_quantize.1}
  #allocation0 [shape = 'u32[]', space=smem, size = 0x4, offset = 0x4, fixed_abs, tag = 'smem constant byte address 0x4 - core index']
  #allocation1 [shape = 'u32[144,128]{1,0:T(1,128)}', space=vmem, size = 0x12000, scoped, tag = 'internal scratch']
  %s0 = inlined_call_operand.vmem [shape: f32[4608,128], index: 0, kind: input, shape index: {}]
  %s1 = inlined_call_operand.vmem [shape: f32[4608,128], index: 1, kind: output, shape index: {}]
  %s2 = sld [smem:[#allocation0]]
  $region14: #{weight_quantize.1} parent=0
    _
  %s4 = ssub.s32 1, %s2
  %s5 = scalar_select 0, %s4, %s2
  // Predicated region
  $region2: #{weight_quantize.1} parent=0 // pred_check
    _
  $region3: #{weight_quantize.1} parent=0 // pred_check_branch
    %7 = sbr.rel (0) target = $region5
  $region4: #{weight_quantize.1} parent=0 // pred_region
    _
  $region5: #{weight_quantize.1} parent=0 // pred_fallthru
    _
  %v8 = vld [vmem:[%s0] sm:$0xff]
  %v9 = vld [vmem:[%s0 + $0x8] sm:$0xff]
  %v10 = vld [vmem:[%s0 + $0x10] sm:$0xff]
  %v11 = vld [vmem:[%s0 + $0x18] sm:$0xff]
  %v12 = vld [vmem:[%s0 + $0x20] sm:$0xff]
  %v13 = vld [vmem:[%s0 + $0x28] sm:$0xff]
  %v14 = vld [vmem:[%s0 + $0x30] sm:$0xff]
  %v15 = vld [vmem:[%s0 + $0x38] sm:$0xff]
  %v16 = vld [vmem:[%s0 + $0x40] sm:$0xff]
  %v17 = vld [vmem:[%s0 + $0x48] sm:$0xff]
  %v18 = vld [vmem:[%s0 + $0x50] sm:$0xff]
  %v19 = vld [vmem:[%s0 + $0x58] sm:$0xff]
  %v20 = vld [vmem:[%s0 + $0x60] sm:$0xff]
  %v21 = vld [vmem:[%s0 + $0x68] sm:$0xff]
  %v22 = vld [vmem:[%s0 + $0x70] sm:$0xff]
  %v23 = vld [vmem:[%s0 + $0x78] sm:$0xff]
  %v24 = vld [vmem:[%s0 + $0x80] sm:$0xff]
  %v25 = vld [vmem:[%s0 + $0x88] sm:$0xff]
  %v26 = vld [vmem:[%s0 + $0x90] sm:$0xff]
  %v27 = vld [vmem:[%s0 + $0x98] sm:$0xff]
  %v28 = vld [vmem:[%s0 + $0xa0] sm:$0xff]
  %v29 = vld [vmem:[%s0 + $0xa8] sm:$0xff]
  %v30 = vld [vmem:[%s0 + $0xb0] sm:$0xff]
  %v31 = vld [vmem:[%s0 + $0xb8] sm:$0xff]
  %v32 = vld [vmem:[%s0 + $0xc0] sm:$0xff]
  %v33 = vld [vmem:[%s0 + $0xc8] sm:$0xff]
  %v34 = vld [vmem:[%s0 + $0xd0] sm:$0xff]
  %v35 = vld [vmem:[%s0 + $0xd8] sm:$0xff]
  %v36 = vld [vmem:[%s0 + $0xe0] sm:$0xff]
  %v37 = vld [vmem:[%s0 + $0xe8] sm:$0xff]
  %v38 = vld [vmem:[%s0 + $0xf0] sm:$0xff]
  %v39 = vld [vmem:[%s0 + $0xf8] sm:$0xff]
  %v40 = vld [vmem:[%s0 + $0x100] sm:$0xff]
  %v41 = vld [vmem:[%s0 + $0x108] sm:$0xff]
  %v42 = vld [vmem:[%s0 + $0x110] sm:$0xff]
  %v43 = vld [vmem:[%s0 + $0x118] sm:$0xff]
  %v44 = vld [vmem:[%s0 + $0x120] sm:$0xff]
  %v45 = vld [vmem:[%s0 + $0x128] sm:$0xff]
  %v46 = vld [vmem:[%s0 + $0x130] sm:$0xff]
  %v47 = vld [vmem:[%s0 + $0x138] sm:$0xff]
  %v48 = vld [vmem:[%s0 + $0x140] sm:$0xff]
  %v49 = vld [vmem:[%s0 + $0x148] sm:$0xff]
  %v50 = vld [vmem:[%s0 + $0x150] sm:$0xff]
  %v51 = vld [vmem:[%s0 + $0x158] sm:$0xff]
  %v52 = vld [vmem:[%s0 + $0x160] sm:$0xff]
  %v53 = vld [vmem:[%s0 + $0x168] sm:$0xff]
  %v54 = vld [vmem:[%s0 + $0x170] sm:$0xff]
  %v55 = vld [vmem:[%s0 + $0x178] sm:$0xff]
  %v56 = vld [vmem:[%s0 + $0x180] sm:$0xff]
  %v57 = vld [vmem:[%s0 + $0x188] sm:$0xff]
  %v58 = vld [vmem:[%s0 + $0x190] sm:$0xff]
  %v59 = vld [vmem:[%s0 + $0x198] sm:$0xff]
  %v60 = vld [vmem:[%s0 + $0x1a0] sm:$0xff]
  %v61 = vld [vmem:[%s0 + $0x1a8] sm:$0xff]
  %v62 = vld [vmem:[%s0 + $0x1b0] sm:$0xff]
  %v63 = vld [vmem:[%s0 + $0x1b8] sm:$0xff]
  %v64 = vld [vmem:[%s0 + $0x1c0] sm:$0xff]
  %v65 = vld [vmem:[%s0 + $0x1c8] sm:$0xff]
  %v66 = vld [vmem:[%s0 + $0x1d0] sm:$0xff]
  %v67 = vld [vmem:[%s0 + $0x1d8] sm:$0xff]
  %v68 = vld [vmem:[%s0 + $0x1e0] sm:$0xff]
  %v69 = vld [vmem:[%s0 + $0x1e8] sm:$0xff]
  %v70 = vld [vmem:[%s0 + $0x1f0] sm:$0xff]
  %v71 = vld [vmem:[%s0 + $0x1f8] sm:$0xff]
  %v72 = vld [vmem:[%s0 + $0x200] sm:$0xff]
  %v73 = vld [vmem:[%s0 + $0x208] sm:$0xff]
  %v74 = vld [vmem:[%s0 + $0x210] sm:$0xff]
  %v75 = vld [vmem:[%s0 + $0x218] sm:$0xff]
  %v76 = vld [vmem:[%s0 + $0x220] sm:$0xff]
  %v77 = vld [vmem:[%s0 + $0x228] sm:$0xff]
  %v78 = vld [vmem:[%s0 + $0x230] sm:$0xff]
  %v79 = vld [vmem:[%s0 + $0x238] sm:$0xff]
  %v80 = vld [vmem:[%s0 + $0x240] sm:$0xff]
  %v81 = vld [vmem:[%s0 + $0x248] sm:$0xff]
  %v82 = vld [vmem:[%s0 + $0x250] sm:$0xff]
  %v83 = vld [vmem:[%s0 + $0x258] sm:$0xff]
  %v84 = vld [vmem:[%s0 + $0x260] sm:$0xff]
  %v85 = vld [vmem:[%s0 + $0x268] sm:$0xff]
  %v86 = vld [vmem:[%s0 + $0x270] sm:$0xff]
  %v87 = vld [vmem:[%s0 + $0x278] sm:$0xff]
  %v88 = vld [vmem:[%s0 + $0x280] sm:$0xff]
  %v89 = vld [vmem:[%s0 + $0x288] sm:$0xff]
  %v90 = vld [vmem:[%s0 + $0x290] sm:$0xff]
  %v91 = vld [vmem:[%s0 + $0x298] sm:$0xff]
  %v92 = vld [vmem:[%s0 + $0x2a0] sm:$0xff]
  %v93 = vld [vmem:[%s0 + $0x2a8] sm:$0xff]
  %v94 = vld [vmem:[%s0 + $0x2b0] sm:$0xff]
  %v95 = vld [vmem:[%s0 + $0x2b8] sm:$0xff]
  %v96 = vld [vmem:[%s0 + $0x2c0] sm:$0xff]
  %v97 = vld [vmem:[%s0 + $0x2c8] sm:$0xff]
  %v98 = vld [vmem:[%s0 + $0x2d0] sm:$0xff]
  %v99 = vld [vmem:[%s0 + $0x2d8] sm:$0xff]
  %v100 = vld [vmem:[%s0 + $0x2e0] sm:$0xff]
  %v101 = vld [vmem:[%s0 + $0x2e8] sm:$0xff]
  %v102 = vld [vmem:[%s0 + $0x2f0] sm:$0xff]
  %v103 = vld [vmem:[%s0 + $0x2f8] sm:$0xff]
  %v104 = vld [vmem:[%s0 + $0x300] sm:$0xff]
  %v105 = vld [vmem:[%s0 + $0x308] sm:$0xff]
  %v106 = vld [vmem:[%s0 + $0x310] sm:$0xff]
  %v107 = vld [vmem:[%s0 + $0x318] sm:$0xff]
  %v108 = vld [vmem:[%s0 + $0x320] sm:$0xff]
  %v109 = vld [vmem:[%s0 + $0x328] sm:$0xff]
  %v110 = vld [vmem:[%s0 + $0x330] sm:$0xff]
  %v111 = vld [vmem:[%s0 + $0x338] sm:$0xff]
  %v112 = vld [vmem:[%s0 + $0x340] sm:$0xff]
  %v113 = vld [vmem:[%s0 + $0x348] sm:$0xff]
  %v114 = vld [vmem:[%s0 + $0x350] sm:$0xff]
  %v115 = vld [vmem:[%s0 + $0x358] sm:$0xff]
  %v116 = vld [vmem:[%s0 + $0x360] sm:$0xff]
  %v117 = vld [vmem:[%s0 + $0x368] sm:$0xff]
  %v118 = vld [vmem:[%s0 + $0x370] sm:$0xff]
  %v119 = vld [vmem:[%s0 + $0x378] sm:$0xff]
  %v120 = vld [vmem:[%s0 + $0x380] sm:$0xff]
  %v121 = vld [vmem:[%s0 + $0x388] sm:$0xff]
  %v122 = vld [vmem:[%s0 + $0x390] sm:$0xff]
  %v123 = vld [vmem:[%s0 + $0x398] sm:$0xff]
  %v124 = vld [vmem:[%s0 + $0x3a0] sm:$0xff]
  %v125 = vld [vmem:[%s0 + $0x3a8] sm:$0xff]
  %v126 = vld [vmem:[%s0 + $0x3b0] sm:$0xff]
  %v127 = vld [vmem:[%s0 + $0x3b8] sm:$0xff]
  %v128 = vld [vmem:[%s0 + $0x3c0] sm:$0xff]
  %v129 = vld [vmem:[%s0 + $0x3c8] sm:$0xff]
  %v130 = vld [vmem:[%s0 + $0x3d0] sm:$0xff]
  %v131 = vld [vmem:[%s0 + $0x3d8] sm:$0xff]
  %v132 = vld [vmem:[%s0 + $0x3e0] sm:$0xff]
  %v133 = vld [vmem:[%s0 + $0x3e8] sm:$0xff]
  %v134 = vld [vmem:[%s0 + $0x3f0] sm:$0xff]
  %v135 = vld [vmem:[%s0 + $0x3f8] sm:$0xff]
  %v136 = vld [vmem:[%s0 + $0x400] sm:$0xff]
  %v137 = vld [vmem:[%s0 + $0x408] sm:$0xff]
  %v138 = vld [vmem:[%s0 + $0x410] sm:$0xff]
  %v139 = vld [vmem:[%s0 + $0x418] sm:$0xff]
  %v140 = vld [vmem:[%s0 + $0x420] sm:$0xff]
  %v141 = vld [vmem:[%s0 + $0x428] sm:$0xff]
  %v142 = vld [vmem:[%s0 + $0x430] sm:$0xff]
  %v143 = vld [vmem:[%s0 + $0x438] sm:$0xff]
  %v144 = vld [vmem:[%s0 + $0x440] sm:$0xff]
  %v145 = vld [vmem:[%s0 + $0x448] sm:$0xff]
  %v146 = vld [vmem:[%s0 + $0x450] sm:$0xff]
  %v147 = vld [vmem:[%s0 + $0x458] sm:$0xff]
  %v148 = vld [vmem:[%s0 + $0x460] sm:$0xff]
  %v149 = vld [vmem:[%s0 + $0x468] sm:$0xff]
  %v150 = vld [vmem:[%s0 + $0x470] sm:$0xff]
  %v151 = vld [vmem:[%s0 + $0x478] sm:$0xff]
  %v152 = vld [vmem:[%s0 + $0x480] sm:$0xff]
  %v153 = vld [vmem:[%s0 + $0x488] sm:$0xff]
  %v154 = vld [vmem:[%s0 + $0x490] sm:$0xff]
  %v155 = vld [vmem:[%s0 + $0x498] sm:$0xff]
  %v156 = vld [vmem:[%s0 + $0x4a0] sm:$0xff]
  %v157 = vld [vmem:[%s0 + $0x4a8] sm:$0xff]
  %v158 = vld [vmem:[%s0 + $0x4b0] sm:$0xff]
  %v159 = vld [vmem:[%s0 + $0x4b8] sm:$0xff]
  %v160 = vld [vmem:[%s0 + $0x4c0] sm:$0xff]
  %v161 = vld [vmem:[%s0 + $0x4c8] sm:$0xff]
  %v162 = vld [vmem:[%s0 + $0x4d0] sm:$0xff]
  %v163 = vld [vmem:[%s0 + $0x4d8] sm:$0xff]
  %v164 = vld [vmem:[%s0 + $0x4e0] sm:$0xff]
  %v165 = vld [vmem:[%s0 + $0x4e8] sm:$0xff]
  %v166 = vld [vmem:[%s0 + $0x4f0] sm:$0xff]
  %v167 = vld [vmem:[%s0 + $0x4f8] sm:$0xff]
  %v168 = vld [vmem:[%s0 + $0x500] sm:$0xff]
  %v169 = vld [vmem:[%s0 + $0x508] sm:$0xff]
  %v170 = vld [vmem:[%s0 + $0x510] sm:$0xff]
  %v171 = vld [vmem:[%s0 + $0x518] sm:$0xff]
  %v172 = vld [vmem:[%s0 + $0x520] sm:$0xff]
  %v173 = vld [vmem:[%s0 + $0x528] sm:$0xff]
  %v174 = vld [vmem:[%s0 + $0x530] sm:$0xff]
  %v175 = vld [vmem:[%s0 + $0x538] sm:$0xff]
  %v176 = vld [vmem:[%s0 + $0x540] sm:$0xff]
  %v177 = vld [vmem:[%s0 + $0x548] sm:$0xff]
  %v178 = vld [vmem:[%s0 + $0x550] sm:$0xff]
  %v179 = vld [vmem:[%s0 + $0x558] sm:$0xff]
  %v180 = vld [vmem:[%s0 + $0x560] sm:$0xff]
  %v181 = vld [vmem:[%s0 + $0x568] sm:$0xff]
  %v182 = vld [vmem:[%s0 + $0x570] sm:$0xff]
  %v183 = vld [vmem:[%s0 + $0x578] sm:$0xff]
  %v184 = vld [vmem:[%s0 + $0x580] sm:$0xff]
  %v185 = vld [vmem:[%s0 + $0x588] sm:$0xff]
  %v186 = vld [vmem:[%s0 + $0x590] sm:$0xff]
  %v187 = vld [vmem:[%s0 + $0x598] sm:$0xff]
  %v188 = vld [vmem:[%s0 + $0x5a0] sm:$0xff]
  %v189 = vld [vmem:[%s0 + $0x5a8] sm:$0xff]
  %v190 = vld [vmem:[%s0 + $0x5b0] sm:$0xff]
  %v191 = vld [vmem:[%s0 + $0x5b8] sm:$0xff]
  %v192 = vld [vmem:[%s0 + $0x5c0] sm:$0xff]
  %v193 = vld [vmem:[%s0 + $0x5c8] sm:$0xff]
  %v194 = vld [vmem:[%s0 + $0x5d0] sm:$0xff]
  %v195 = vld [vmem:[%s0 + $0x5d8] sm:$0xff]
  %v196 = vld [vmem:[%s0 + $0x5e0] sm:$0xff]
  %v197 = vld [vmem:[%s0 + $0x5e8] sm:$0xff]
  %v198 = vld [vmem:[%s0 + $0x5f0] sm:$0xff]
  %v199 = vld [vmem:[%s0 + $0x5f8] sm:$0xff]
  %v200 = vld [vmem:[%s0 + $0x600] sm:$0xff]
  %v201 = vld [vmem:[%s0 + $0x608] sm:$0xff]
  %v202 = vld [vmem:[%s0 + $0x610] sm:$0xff]
  %v203 = vld [vmem:[%s0 + $0x618] sm:$0xff]
  %v204 = vld [vmem:[%s0 + $0x620] sm:$0xff]
  %v205 = vld [vmem:[%s0 + $0x628] sm:$0xff]
  %v206 = vld [vmem:[%s0 + $0x630] sm:$0xff]
  %v207 = vld [vmem:[%s0 + $0x638] sm:$0xff]
  %v208 = vld [vmem:[%s0 + $0x640] sm:$0xff]
  %v209 = vld [vmem:[%s0 + $0x648] sm:$0xff]
  %v210 = vld [vmem:[%s0 + $0x650] sm:$0xff]
  %v211 = vld [vmem:[%s0 + $0x658] sm:$0xff]
  %v212 = vld [vmem:[%s0 + $0x660] sm:$0xff]
  %v213 = vld [vmem:[%s0 + $0x668] sm:$0xff]
  %v214 = vld [vmem:[%s0 + $0x670] sm:$0xff]
  %v215 = vld [vmem:[%s0 + $0x678] sm:$0xff]
  %v216 = vld [vmem:[%s0 + $0x680] sm:$0xff]
  %v217 = vld [vmem:[%s0 + $0x688] sm:$0xff]
  %v218 = vld [vmem:[%s0 + $0x690] sm:$0xff]
  %v219 = vld [vmem:[%s0 + $0x698] sm:$0xff]
  %v220 = vld [vmem:[%s0 + $0x6a0] sm:$0xff]
  %v221 = vld [vmem:[%s0 + $0x6a8] sm:$0xff]
  %v222 = vld [vmem:[%s0 + $0x6b0] sm:$0xff]
  %v223 = vld [vmem:[%s0 + $0x6b8] sm:$0xff]
  %v224 = vld [vmem:[%s0 + $0x6c0] sm:$0xff]
  %v225 = vld [vmem:[%s0 + $0x6c8] sm:$0xff]
  %v226 = vld [vmem:[%s0 + $0x6d0] sm:$0xff]
  %v227 = vld [vmem:[%s0 + $0x6d8] sm:$0xff]
  %v228 = vld [vmem:[%s0 + $0x6e0] sm:$0xff]
  %v229 = vld [vmem:[%s0 + $0x6e8] sm:$0xff]
  %v230 = vld [vmem:[%s0 + $0x6f0] sm:$0xff]
  %v231 = vld [vmem:[%s0 + $0x6f8] sm:$0xff]
  %v232 = vld [vmem:[%s0 + $0x700] sm:$0xff]
  %v233 = vld [vmem:[%s0 + $0x708] sm:$0xff]
  %v234 = vld [vmem:[%s0 + $0x710] sm:$0xff]
  %v235 = vld [vmem:[%s0 + $0x718] sm:$0xff]
  %v236 = vld [vmem:[%s0 + $0x720] sm:$0xff]
  %v237 = vld [vmem:[%s0 + $0x728] sm:$0xff]
  %v238 = vld [vmem:[%s0 + $0x730] sm:$0xff]
  %v239 = vld [vmem:[%s0 + $0x738] sm:$0xff]
  %v240 = vld [vmem:[%s0 + $0x740] sm:$0xff]
  %v241 = vld [vmem:[%s0 + $0x748] sm:$0xff]
  %v242 = vld [vmem:[%s0 + $0x750] sm:$0xff]
  %v243 = vld [vmem:[%s0 + $0x758] sm:$0xff]
  %v244 = vld [vmem:[%s0 + $0x760] sm:$0xff]
  %v245 = vld [vmem:[%s0 + $0x768] sm:$0xff]
  %v246 = vld [vmem:[%s0 + $0x770] sm:$0xff]
  %v247 = vld [vmem:[%s0 + $0x778] sm:$0xff]
  %v248 = vld [vmem:[%s0 + $0x780] sm:$0xff]
  %v249 = vld [vmem:[%s0 + $0x788] sm:$0xff]
  %v250 = vld [vmem:[%s0 + $0x790] sm:$0xff]
  %v251 = vld [vmem:[%s0 + $0x798] sm:$0xff]
  %v252 = vld [vmem:[%s0 + $0x7a0] sm:$0xff]
  %v253 = vld [vmem:[%s0 + $0x7a8] sm:$0xff]
  %v254 = vld [vmem:[%s0 + $0x7b0] sm:$0xff]
  %v255 = vld [vmem:[%s0 + $0x7b8] sm:$0xff]
  %v256 = vld [vmem:[%s0 + $0x7c0] sm:$0xff]
  %v257 = vld [vmem:[%s0 + $0x7c8] sm:$0xff]
  %v258 = vld [vmem:[%s0 + $0x7d0] sm:$0xff]
  %v259 = vld [vmem:[%s0 + $0x7d8] sm:$0xff]
  %v260 = vld [vmem:[%s0 + $0x7e0] sm:$0xff]
  %v261 = vld [vmem:[%s0 + $0x7e8] sm:$0xff]
  %v262 = vld [vmem:[%s0 + $0x7f0] sm:$0xff]
  %v263 = vld [vmem:[%s0 + $0x7f8] sm:$0xff]
  %v264 = vld [vmem:[%s0 + $0x800] sm:$0xff]
  %v265 = vld [vmem:[%s0 + $0x808] sm:$0xff]
  %v266 = vld [vmem:[%s0 + $0x810] sm:$0xff]
  %v267 = vld [vmem:[%s0 + $0x818] sm:$0xff]
  %v268 = vld [vmem:[%s0 + $0x820] sm:$0xff]
  %v269 = vld [vmem:[%s0 + $0x828] sm:$0xff]
  %v270 = vld [vmem:[%s0 + $0x830] sm:$0xff]
  %v271 = vld [vmem:[%s0 + $0x838] sm:$0xff]
  %v272 = vld [vmem:[%s0 + $0x840] sm:$0xff]
  %v273 = vld [vmem:[%s0 + $0x848] sm:$0xff]
  %v274 = vld [vmem:[%s0 + $0x850] sm:$0xff]
  %v275 = vld [vmem:[%s0 + $0x858] sm:$0xff]
  %v276 = vld [vmem:[%s0 + $0x860] sm:$0xff]
  %v277 = vld [vmem:[%s0 + $0x868] sm:$0xff]
  %v278 = vld [vmem:[%s0 + $0x870] sm:$0xff]
  %v279 = vld [vmem:[%s0 + $0x878] sm:$0xff]
  %v280 = vld [vmem:[%s0 + $0x880] sm:$0xff]
  %v281 = vld [vmem:[%s0 + $0x888] sm:$0xff]
  %v282 = vld [vmem:[%s0 + $0x890] sm:$0xff]
  %v283 = vld [vmem:[%s0 + $0x898] sm:$0xff]
  %v284 = vld [vmem:[%s0 + $0x8a0] sm:$0xff]
  %v285 = vld [vmem:[%s0 + $0x8a8] sm:$0xff]
  %v286 = vld [vmem:[%s0 + $0x8b0] sm:$0xff]
  %v287 = vld [vmem:[%s0 + $0x8b8] sm:$0xff]
  %v288 = vld [vmem:[%s0 + $0x8c0] sm:$0xff]
  %v289 = vld [vmem:[%s0 + $0x8c8] sm:$0xff]
  %v290 = vld [vmem:[%s0 + $0x8d0] sm:$0xff]
  %v291 = vld [vmem:[%s0 + $0x8d8] sm:$0xff]
  %v292 = vld [vmem:[%s0 + $0x8e0] sm:$0xff]
  %v293 = vld [vmem:[%s0 + $0x8e8] sm:$0xff]
  %v294 = vld [vmem:[%s0 + $0x8f0] sm:$0xff]
  %v295 = vld [vmem:[%s0 + $0x8f8] sm:$0xff]
  %v296 = vld [vmem:[%s0 + $0x900] sm:$0xff]
  %v297 = vld [vmem:[%s0 + $0x908] sm:$0xff]
  %v298 = vld [vmem:[%s0 + $0x910] sm:$0xff]
  %v299 = vld [vmem:[%s0 + $0x918] sm:$0xff]
  %v300 = vld [vmem:[%s0 + $0x920] sm:$0xff]
  %v301 = vld [vmem:[%s0 + $0x928] sm:$0xff]
  %v302 = vld [vmem:[%s0 + $0x930] sm:$0xff]
  %v303 = vld [vmem:[%s0 + $0x938] sm:$0xff]
  %v304 = vld [vmem:[%s0 + $0x940] sm:$0xff]
  %v305 = vld [vmem:[%s0 + $0x948] sm:$0xff]
  %v306 = vld [vmem:[%s0 + $0x950] sm:$0xff]
  %v307 = vld [vmem:[%s0 + $0x958] sm:$0xff]
  %v308 = vld [vmem:[%s0 + $0x960] sm:$0xff]
  %v309 = vld [vmem:[%s0 + $0x968] sm:$0xff]
  %v310 = vld [vmem:[%s0 + $0x970] sm:$0xff]
  %v311 = vld [vmem:[%s0 + $0x978] sm:$0xff]
  %v312 = vld [vmem:[%s0 + $0x980] sm:$0xff]
  %v313 = vld [vmem:[%s0 + $0x988] sm:$0xff]
  %v314 = vld [vmem:[%s0 + $0x990] sm:$0xff]
  %v315 = vld [vmem:[%s0 + $0x998] sm:$0xff]
  %v316 = vld [vmem:[%s0 + $0x9a0] sm:$0xff]
  %v317 = vld [vmem:[%s0 + $0x9a8] sm:$0xff]
  %v318 = vld [vmem:[%s0 + $0x9b0] sm:$0xff]
  %v319 = vld [vmem:[%s0 + $0x9b8] sm:$0xff]
  %v320 = vld [vmem:[%s0 + $0x9c0] sm:$0xff]
  %v321 = vld [vmem:[%s0 + $0x9c8] sm:$0xff]
  %v322 = vld [vmem:[%s0 + $0x9d0] sm:$0xff]
  %v323 = vld [vmem:[%s0 + $0x9d8] sm:$0xff]
  %v324 = vld [vmem:[%s0 + $0x9e0] sm:$0xff]
  %v325 = vld [vmem:[%s0 + $0x9e8] sm:$0xff]
  %v326 = vld [vmem:[%s0 + $0x9f0] sm:$0xff]
  %v327 = vld [vmem:[%s0 + $0x9f8] sm:$0xff]
  %v328 = vld [vmem:[%s0 + $0xa00] sm:$0xff]
  %v329 = vld [vmem:[%s0 + $0xa08] sm:$0xff]
  %v330 = vld [vmem:[%s0 + $0xa10] sm:$0xff]
  %v331 = vld [vmem:[%s0 + $0xa18] sm:$0xff]
  %v332 = vld [vmem:[%s0 + $0xa20] sm:$0xff]
  %v333 = vld [vmem:[%s0 + $0xa28] sm:$0xff]
  %v334 = vld [vmem:[%s0 + $0xa30] sm:$0xff]
  %v335 = vld [vmem:[%s0 + $0xa38] sm:$0xff]
  %v336 = vld [vmem:[%s0 + $0xa40] sm:$0xff]
  %v337 = vld [vmem:[%s0 + $0xa48] sm:$0xff]
  %v338 = vld [vmem:[%s0 + $0xa50] sm:$0xff]
  %v339 = vld [vmem:[%s0 + $0xa58] sm:$0xff]
  %v340 = vld [vmem:[%s0 + $0xa60] sm:$0xff]
  %v341 = vld [vmem:[%s0 + $0xa68] sm:$0xff]
  %v342 = vld [vmem:[%s0 + $0xa70] sm:$0xff]
  %v343 = vld [vmem:[%s0 + $0xa78] sm:$0xff]
  %v344 = vld [vmem:[%s0 + $0xa80] sm:$0xff]
  %v345 = vld [vmem:[%s0 + $0xa88] sm:$0xff]
  %v346 = vld [vmem:[%s0 + $0xa90] sm:$0xff]
  %v347 = vld [vmem:[%s0 + $0xa98] sm:$0xff]
  %v348 = vld [vmem:[%s0 + $0xaa0] sm:$0xff]
  %v349 = vld [vmem:[%s0 + $0xaa8] sm:$0xff]
  %v350 = vld [vmem:[%s0 + $0xab0] sm:$0xff]
  %v351 = vld [vmem:[%s0 + $0xab8] sm:$0xff]
  %v352 = vld [vmem:[%s0 + $0xac0] sm:$0xff]
  %v353 = vld [vmem:[%s0 + $0xac8] sm:$0xff]
  %v354 = vld [vmem:[%s0 + $0xad0] sm:$0xff]
  %v355 = vld [vmem:[%s0 + $0xad8] sm:$0xff]
  %v356 = vld [vmem:[%s0 + $0xae0] sm:$0xff]
  %v357 = vld [vmem:[%s0 + $0xae8] sm:$0xff]
  %v358 = vld [vmem:[%s0 + $0xaf0] sm:$0xff]
  %v359 = vld [vmem:[%s0 + $0xaf8] sm:$0xff]
  %v360 = vld [vmem:[%s0 + $0xb00] sm:$0xff]
  %v361 = vld [vmem:[%s0 + $0xb08] sm:$0xff]
  %v362 = vld [vmem:[%s0 + $0xb10] sm:$0xff]
  %v363 = vld [vmem:[%s0 + $0xb18] sm:$0xff]
  %v364 = vld [vmem:[%s0 + $0xb20] sm:$0xff]
  %v365 = vld [vmem:[%s0 + $0xb28] sm:$0xff]
  %v366 = vld [vmem:[%s0 + $0xb30] sm:$0xff]
  %v367 = vld [vmem:[%s0 + $0xb38] sm:$0xff]
  %v368 = vld [vmem:[%s0 + $0xb40] sm:$0xff]
  %v369 = vld [vmem:[%s0 + $0xb48] sm:$0xff]
  %v370 = vld [vmem:[%s0 + $0xb50] sm:$0xff]
  %v371 = vld [vmem:[%s0 + $0xb58] sm:$0xff]
  %v372 = vld [vmem:[%s0 + $0xb60] sm:$0xff]
  %v373 = vld [vmem:[%s0 + $0xb68] sm:$0xff]
  %v374 = vld [vmem:[%s0 + $0xb70] sm:$0xff]
  %v375 = vld [vmem:[%s0 + $0xb78] sm:$0xff]
  %v376 = vld [vmem:[%s0 + $0xb80] sm:$0xff]
  %v377 = vld [vmem:[%s0 + $0xb88] sm:$0xff]
  %v378 = vld [vmem:[%s0 + $0xb90] sm:$0xff]
  %v379 = vld [vmem:[%s0 + $0xb98] sm:$0xff]
  %v380 = vld [vmem:[%s0 + $0xba0] sm:$0xff]
  %v381 = vld [vmem:[%s0 + $0xba8] sm:$0xff]
  %v382 = vld [vmem:[%s0 + $0xbb0] sm:$0xff]
  %v383 = vld [vmem:[%s0 + $0xbb8] sm:$0xff]
  %v384 = vld [vmem:[%s0 + $0xbc0] sm:$0xff]
  %v385 = vld [vmem:[%s0 + $0xbc8] sm:$0xff]
  %v386 = vld [vmem:[%s0 + $0xbd0] sm:$0xff]
  %v387 = vld [vmem:[%s0 + $0xbd8] sm:$0xff]
  %v388 = vld [vmem:[%s0 + $0xbe0] sm:$0xff]
  %v389 = vld [vmem:[%s0 + $0xbe8] sm:$0xff]
  %v390 = vld [vmem:[%s0 + $0xbf0] sm:$0xff]
  %v391 = vld [vmem:[%s0 + $0xbf8] sm:$0xff]
  %v392 = vld [vmem:[%s0 + $0xc00] sm:$0xff]
  %v393 = vld [vmem:[%s0 + $0xc08] sm:$0xff]
  %v394 = vld [vmem:[%s0 + $0xc10] sm:$0xff]
  %v395 = vld [vmem:[%s0 + $0xc18] sm:$0xff]
  %v396 = vld [vmem:[%s0 + $0xc20] sm:$0xff]
  %v397 = vld [vmem:[%s0 + $0xc28] sm:$0xff]
  %v398 = vld [vmem:[%s0 + $0xc30] sm:$0xff]
  %v399 = vld [vmem:[%s0 + $0xc38] sm:$0xff]
  %v400 = vld [vmem:[%s0 + $0xc40] sm:$0xff]
  %v401 = vld [vmem:[%s0 + $0xc48] sm:$0xff]
  %v402 = vld [vmem:[%s0 + $0xc50] sm:$0xff]
  %v403 = vld [vmem:[%s0 + $0xc58] sm:$0xff]
  %v404 = vld [vmem:[%s0 + $0xc60] sm:$0xff]
  %v405 = vld [vmem:[%s0 + $0xc68] sm:$0xff]
  %v406 = vld [vmem:[%s0 + $0xc70] sm:$0xff]
  %v407 = vld [vmem:[%s0 + $0xc78] sm:$0xff]
  %v408 = vld [vmem:[%s0 + $0xc80] sm:$0xff]
  %v409 = vld [vmem:[%s0 + $0xc88] sm:$0xff]
  %v410 = vld [vmem:[%s0 + $0xc90] sm:$0xff]
  %v411 = vld [vmem:[%s0 + $0xc98] sm:$0xff]
  %v412 = vld [vmem:[%s0 + $0xca0] sm:$0xff]
  %v413 = vld [vmem:[%s0 + $0xca8] sm:$0xff]
  %v414 = vld [vmem:[%s0 + $0xcb0] sm:$0xff]
  %v415 = vld [vmem:[%s0 + $0xcb8] sm:$0xff]
  %v416 = vld [vmem:[%s0 + $0xcc0] sm:$0xff]
  %v417 = vld [vmem:[%s0 + $0xcc8] sm:$0xff]
  %v418 = vld [vmem:[%s0 + $0xcd0] sm:$0xff]
  %v419 = vld [vmem:[%s0 + $0xcd8] sm:$0xff]
  %v420 = vld [vmem:[%s0 + $0xce0] sm:$0xff]
  %v421 = vld [vmem:[%s0 + $0xce8] sm:$0xff]
  %v422 = vld [vmem:[%s0 + $0xcf0] sm:$0xff]
  %v423 = vld [vmem:[%s0 + $0xcf8] sm:$0xff]
  %v424 = vld [vmem:[%s0 + $0xd00] sm:$0xff]
  %v425 = vld [vmem:[%s0 + $0xd08] sm:$0xff]
  %v426 = vld [vmem:[%s0 + $0xd10] sm:$0xff]
  %v427 = vld [vmem:[%s0 + $0xd18] sm:$0xff]
  %v428 = vld [vmem:[%s0 + $0xd20] sm:$0xff]
  %v429 = vld [vmem:[%s0 + $0xd28] sm:$0xff]
  %v430 = vld [vmem:[%s0 + $0xd30] sm:$0xff]
  %v431 = vld [vmem:[%s0 + $0xd38] sm:$0xff]
  %v432 = vld [vmem:[%s0 + $0xd40] sm:$0xff]
  %v433 = vld [vmem:[%s0 + $0xd48] sm:$0xff]
  %v434 = vld [vmem:[%s0 + $0xd50] sm:$0xff]
  %v435 = vld [vmem:[%s0 + $0xd58] sm:$0xff]
  %v436 = vld [vmem:[%s0 + $0xd60] sm:$0xff]
  %v437 = vld [vmem:[%s0 + $0xd68] sm:$0xff]
  %v438 = vld [vmem:[%s0 + $0xd70] sm:$0xff]
  %v439 = vld [vmem:[%s0 + $0xd78] sm:$0xff]
  %v440 = vld [vmem:[%s0 + $0xd80] sm:$0xff]
  %v441 = vld [vmem:[%s0 + $0xd88] sm:$0xff]
  %v442 = vld [vmem:[%s0 + $0xd90] sm:$0xff]
  %v443 = vld [vmem:[%s0 + $0xd98] sm:$0xff]
  %v444 = vld [vmem:[%s0 + $0xda0] sm:$0xff]
  %v445 = vld [vmem:[%s0 + $0xda8] sm:$0xff]
  %v446 = vld [vmem:[%s0 + $0xdb0] sm:$0xff]
  %v447 = vld [vmem:[%s0 + $0xdb8] sm:$0xff]
  %v448 = vld [vmem:[%s0 + $0xdc0] sm:$0xff]
  %v449 = vld [vmem:[%s0 + $0xdc8] sm:$0xff]
  %v450 = vld [vmem:[%s0 + $0xdd0] sm:$0xff]
  %v451 = vld [vmem:[%s0 + $0xdd8] sm:$0xff]
  %v452 = vld [vmem:[%s0 + $0xde0] sm:$0xff]
  %v453 = vld [vmem:[%s0 + $0xde8] sm:$0xff]
  %v454 = vld [vmem:[%s0 + $0xdf0] sm:$0xff]
  %v455 = vld [vmem:[%s0 + $0xdf8] sm:$0xff]
  %v456 = vld [vmem:[%s0 + $0xe00] sm:$0xff]
  %v457 = vld [vmem:[%s0 + $0xe08] sm:$0xff]
  %v458 = vld [vmem:[%s0 + $0xe10] sm:$0xff]
  %v459 = vld [vmem:[%s0 + $0xe18] sm:$0xff]
  %v460 = vld [vmem:[%s0 + $0xe20] sm:$0xff]
  %v461 = vld [vmem:[%s0 + $0xe28] sm:$0xff]
  %v462 = vld [vmem:[%s0 + $0xe30] sm:$0xff]
  %v463 = vld [vmem:[%s0 + $0xe38] sm:$0xff]
  %v464 = vld [vmem:[%s0 + $0xe40] sm:$0xff]
  %v465 = vld [vmem:[%s0 + $0xe48] sm:$0xff]
  %v466 = vld [vmem:[%s0 + $0xe50] sm:$0xff]
  %v467 = vld [vmem:[%s0 + $0xe58] sm:$0xff]
  %v468 = vld [vmem:[%s0 + $0xe60] sm:$0xff]
  %v469 = vld [vmem:[%s0 + $0xe68] sm:$0xff]
  %v470 = vld [vmem:[%s0 + $0xe70] sm:$0xff]
  %v471 = vld [vmem:[%s0 + $0xe78] sm:$0xff]
  %v472 = vld [vmem:[%s0 + $0xe80] sm:$0xff]
  %v473 = vld [vmem:[%s0 + $0xe88] sm:$0xff]
  %v474 = vld [vmem:[%s0 + $0xe90] sm:$0xff]
  %v475 = vld [vmem:[%s0 + $0xe98] sm:$0xff]
  %v476 = vld [vmem:[%s0 + $0xea0] sm:$0xff]
  %v477 = vld [vmem:[%s0 + $0xea8] sm:$0xff]
  %v478 = vld [vmem:[%s0 + $0xeb0] sm:$0xff]
  %v479 = vld [vmem:[%s0 + $0xeb8] sm:$0xff]
  %v480 = vld [vmem:[%s0 + $0xec0] sm:$0xff]
  %v481 = vld [vmem:[%s0 + $0xec8] sm:$0xff]
  %v482 = vld [vmem:[%s0 + $0xed0] sm:$0xff]
  %v483 = vld [vmem:[%s0 + $0xed8] sm:$0xff]
  %v484 = vld [vmem:[%s0 + $0xee0] sm:$0xff]
  %v485 = vld [vmem:[%s0 + $0xee8] sm:$0xff]
  %v486 = vld [vmem:[%s0 + $0xef0] sm:$0xff]
  %v487 = vld [vmem:[%s0 + $0xef8] sm:$0xff]
  %v488 = vld [vmem:[%s0 + $0xf00] sm:$0xff]
  %v489 = vld [vmem:[%s0 + $0xf08] sm:$0xff]
  %v490 = vld [vmem:[%s0 + $0xf10] sm:$0xff]
  %v491 = vld [vmem:[%s0 + $0xf18] sm:$0xff]
  %v492 = vld [vmem:[%s0 + $0xf20] sm:$0xff]
  %v493 = vld [vmem:[%s0 + $0xf28] sm:$0xff]
  %v494 = vld [vmem:[%s0 + $0xf30] sm:$0xff]
  %v495 = vld [vmem:[%s0 + $0xf38] sm:$0xff]
  %v496 = vld [vmem:[%s0 + $0xf40] sm:$0xff]
  %v497 = vld [vmem:[%s0 + $0xf48] sm:$0xff]
  %v498 = vld [vmem:[%s0 + $0xf50] sm:$0xff]
  %v499 = vld [vmem:[%s0 + $0xf58] sm:$0xff]
  %v500 = vld [vmem:[%s0 + $0xf60] sm:$0xff]
  %v501 = vld [vmem:[%s0 + $0xf68] sm:$0xff]
  %v502 = vld [vmem:[%s0 + $0xf70] sm:$0xff]
  %v503 = vld [vmem:[%s0 + $0xf78] sm:$0xff]
  %v504 = vld [vmem:[%s0 + $0xf80] sm:$0xff]
  %v505 = vld [vmem:[%s0 + $0xf88] sm:$0xff]
  %v506 = vld [vmem:[%s0 + $0xf90] sm:$0xff]
  %v507 = vld [vmem:[%s0 + $0xf98] sm:$0xff]
  %v508 = vld [vmem:[%s0 + $0xfa0] sm:$0xff]
  %v509 = vld [vmem:[%s0 + $0xfa8] sm:$0xff]
  %v510 = vld [vmem:[%s0 + $0xfb0] sm:$0xff]
  %v511 = vld [vmem:[%s0 + $0xfb8] sm:$0xff]
  %v512 = vld [vmem:[%s0 + $0xfc0] sm:$0xff]
  %v513 = vld [vmem:[%s0 + $0xfc8] sm:$0xff]
  %v514 = vld [vmem:[%s0 + $0xfd0] sm:$0xff]
  %v515 = vld [vmem:[%s0 + $0xfd8] sm:$0xff]
  %v516 = vld [vmem:[%s0 + $0xfe0] sm:$0xff]
  %v517 = vld [vmem:[%s0 + $0xfe8] sm:$0xff]
  %v518 = vld [vmem:[%s0 + $0xff0] sm:$0xff]
  %v519 = vld [vmem:[%s0 + $0xff8] sm:$0xff]
  %v520 = vld [vmem:[%s0 + $0x1000] sm:$0xff]
  %v521 = vld [vmem:[%s0 + $0x1008] sm:$0xff]
  %v522 = vld [vmem:[%s0 + $0x1010] sm:$0xff]
  %v523 = vld [vmem:[%s0 + $0x1018] sm:$0xff]
  %v524 = vld [vmem:[%s0 + $0x1020] sm:$0xff]
  %v525 = vld [vmem:[%s0 + $0x1028] sm:$0xff]
  %v526 = vld [vmem:[%s0 + $0x1030] sm:$0xff]
  %v527 = vld [vmem:[%s0 + $0x1038] sm:$0xff]
  %v528 = vld [vmem:[%s0 + $0x1040] sm:$0xff]
  %v529 = vld [vmem:[%s0 + $0x1048] sm:$0xff]
  %v530 = vld [vmem:[%s0 + $0x1050] sm:$0xff]
  %v531 = vld [vmem:[%s0 + $0x1058] sm:$0xff]
  %v532 = vld [vmem:[%s0 + $0x1060] sm:$0xff]
  %v533 = vld [vmem:[%s0 + $0x1068] sm:$0xff]
  %v534 = vld [vmem:[%s0 + $0x1070] sm:$0xff]
  %v535 = vld [vmem:[%s0 + $0x1078] sm:$0xff]
  %v536 = vld [vmem:[%s0 + $0x1080] sm:$0xff]
  %v537 = vld [vmem:[%s0 + $0x1088] sm:$0xff]
  %v538 = vld [vmem:[%s0 + $0x1090] sm:$0xff]
  %v539 = vld [vmem:[%s0 + $0x1098] sm:$0xff]
  %v540 = vld [vmem:[%s0 + $0x10a0] sm:$0xff]
  %v541 = vld [vmem:[%s0 + $0x10a8] sm:$0xff]
  %v542 = vld [vmem:[%s0 + $0x10b0] sm:$0xff]
  %v543 = vld [vmem:[%s0 + $0x10b8] sm:$0xff]
  %v544 = vld [vmem:[%s0 + $0x10c0] sm:$0xff]
  %v545 = vld [vmem:[%s0 + $0x10c8] sm:$0xff]
  %v546 = vld [vmem:[%s0 + $0x10d0] sm:$0xff]
  %v547 = vld [vmem:[%s0 + $0x10d8] sm:$0xff]
  %v548 = vld [vmem:[%s0 + $0x10e0] sm:$0xff]
  %v549 = vld [vmem:[%s0 + $0x10e8] sm:$0xff]
  %v550 = vld [vmem:[%s0 + $0x10f0] sm:$0xff]
  %v551 = vld [vmem:[%s0 + $0x10f8] sm:$0xff]
  %v552 = vld [vmem:[%s0 + $0x1100] sm:$0xff]
  %v553 = vld [vmem:[%s0 + $0x1108] sm:$0xff]
  %v554 = vld [vmem:[%s0 + $0x1110] sm:$0xff]
  %v555 = vld [vmem:[%s0 + $0x1118] sm:$0xff]
  %v556 = vld [vmem:[%s0 + $0x1120] sm:$0xff]
  %v557 = vld [vmem:[%s0 + $0x1128] sm:$0xff]
  %v558 = vld [vmem:[%s0 + $0x1130] sm:$0xff]
  %v559 = vld [vmem:[%s0 + $0x1138] sm:$0xff]
  %v560 = vld [vmem:[%s0 + $0x1140] sm:$0xff]
  %v561 = vld [vmem:[%s0 + $0x1148] sm:$0xff]
  %v562 = vld [vmem:[%s0 + $0x1150] sm:$0xff]
  %v563 = vld [vmem:[%s0 + $0x1158] sm:$0xff]
  %v564 = vld [vmem:[%s0 + $0x1160] sm:$0xff]
  %v565 = vld [vmem:[%s0 + $0x1168] sm:$0xff]
  %v566 = vld [vmem:[%s0 + $0x1170] sm:$0xff]
  %v567 = vld [vmem:[%s0 + $0x1178] sm:$0xff]
  %v568 = vld [vmem:[%s0 + $0x1180] sm:$0xff]
  %v569 = vld [vmem:[%s0 + $0x1188] sm:$0xff]
  %v570 = vld [vmem:[%s0 + $0x1190] sm:$0xff]
  %v571 = vld [vmem:[%s0 + $0x1198] sm:$0xff]
  %v572 = vld [vmem:[%s0 + $0x11a0] sm:$0xff]
  %v573 = vld [vmem:[%s0 + $0x11a8] sm:$0xff]
  %v574 = vld [vmem:[%s0 + $0x11b0] sm:$0xff]
  %v575 = vld [vmem:[%s0 + $0x11b8] sm:$0xff]
  %v576 = vld [vmem:[%s0 + $0x11c0] sm:$0xff]
  %v577 = vld [vmem:[%s0 + $0x11c8] sm:$0xff]
  %v578 = vld [vmem:[%s0 + $0x11d0] sm:$0xff]
  %v579 = vld [vmem:[%s0 + $0x11d8] sm:$0xff]
  %v580 = vld [vmem:[%s0 + $0x11e0] sm:$0xff]
  %v581 = vld [vmem:[%s0 + $0x11e8] sm:$0xff]
  %v582 = vld [vmem:[%s0 + $0x11f0] sm:$0xff]
  %v583 = vld [vmem:[%s0 + $0x11f8] sm:$0xff]
  %v584 = vand.u32 2147483647, %v8
  %v585 = vand.u32 2147483647, %v9
  %v586 = vand.u32 2147483647, %v10
  %v587 = vand.u32 2147483647, %v11
  %v588 = vand.u32 2147483647, %v12
  %v589 = vand.u32 2147483647, %v13
  %v590 = vand.u32 2147483647, %v14
  %v591 = vand.u32 2147483647, %v15
  %v592 = vand.u32 2147483647, %v16
  %v593 = vand.u32 2147483647, %v17
  %v594 = vand.u32 2147483647, %v18
  %v595 = vand.u32 2147483647, %v19
  %v596 = vand.u32 2147483647, %v20
  %v597 = vand.u32 2147483647, %v21
  %v598 = vand.u32 2147483647, %v22
  %v599 = vand.u32 2147483647, %v23
  %v600 = vand.u32 2147483647, %v24
  %v601 = vand.u32 2147483647, %v25
  %v602 = vand.u32 2147483647, %v26
  %v603 = vand.u32 2147483647, %v27
  %v604 = vand.u32 2147483647, %v28
  %v605 = vand.u32 2147483647, %v29
  %v606 = vand.u32 2147483647, %v30
  %v607 = vand.u32 2147483647, %v31
  %v608 = vand.u32 2147483647, %v32
  %v609 = vand.u32 2147483647, %v33
  %v610 = vand.u32 2147483647, %v34
  %v611 = vand.u32 2147483647, %v35
  %v612 = vand.u32 2147483647, %v36
  %v613 = vand.u32 2147483647, %v37
  %v614 = vand.u32 2147483647, %v38
  %v615 = vand.u32 2147483647, %v39
  %v616 = vand.u32 2147483647, %v40
  %v617 = vand.u32 2147483647, %v41
  %v618 = vand.u32 2147483647, %v42
  %v619 = vand.u32 2147483647, %v43
  %v620 = vand.u32 2147483647, %v44
  %v621 = vand.u32 2147483647, %v45
  %v622 = vand.u32 2147483647, %v46
  %v623 = vand.u32 2147483647, %v47
  %v624 = vand.u32 2147483647, %v48
  %v625 = vand.u32 2147483647, %v49
  %v626 = vand.u32 2147483647, %v50
  %v627 = vand.u32 2147483647, %v51
  %v628 = vand.u32 2147483647, %v52
  %v629 = vand.u32 2147483647, %v53
  %v630 = vand.u32 2147483647, %v54
  %v631 = vand.u32 2147483647, %v55
  %v632 = vand.u32 2147483647, %v56
  %v633 = vand.u32 2147483647, %v57
  %v634 = vand.u32 2147483647, %v58
  %v635 = vand.u32 2147483647, %v59
  %v636 = vand.u32 2147483647, %v60
  %v637 = vand.u32 2147483647, %v61
  %v638 = vand.u32 2147483647, %v62
  %v639 = vand.u32 2147483647, %v63
  %v640 = vand.u32 2147483647, %v64
  %v641 = vand.u32 2147483647, %v65
  %v642 = vand.u32 2147483647, %v66
  %v643 = vand.u32 2147483647, %v67
  %v644 = vand.u32 2147483647, %v68
  %v645 = vand.u32 2147483647, %v69
  %v646 = vand.u32 2147483647, %v70
  %v647 = vand.u32 2147483647, %v71
  %v648 = vand.u32 2147483647, %v72
  %v649 = vand.u32 2147483647, %v73
  %v650 = vand.u32 2147483647, %v74
  %v651 = vand.u32 2147483647, %v75
  %v652 = vand.u32 2147483647, %v76
  %v653 = vand.u32 2147483647, %v77
  %v654 = vand.u32 2147483647, %v78
  %v655 = vand.u32 2147483647, %v79
  %v656 = vand.u32 2147483647, %v80
  %v657 = vand.u32 2147483647, %v81
  %v658 = vand.u32 2147483647, %v82
  %v659 = vand.u32 2147483647, %v83
  %v660 = vand.u32 2147483647, %v84
  %v661 = vand.u32 2147483647, %v85
  %v662 = vand.u32 2147483647, %v86
  %v663 = vand.u32 2147483647, %v87
  %v664 = vand.u32 2147483647, %v88
  %v665 = vand.u32 2147483647, %v89
  %v666 = vand.u32 2147483647, %v90
  %v667 = vand.u32 2147483647, %v91
  %v668 = vand.u32 2147483647, %v92
  %v669 = vand.u32 2147483647, %v93
  %v670 = vand.u32 2147483647, %v94
  %v671 = vand.u32 2147483647, %v95
  %v672 = vand.u32 2147483647, %v96
  %v673 = vand.u32 2147483647, %v97
  %v674 = vand.u32 2147483647, %v98
  %v675 = vand.u32 2147483647, %v99
  %v676 = vand.u32 2147483647, %v100
  %v677 = vand.u32 2147483647, %v101
  %v678 = vand.u32 2147483647, %v102
  %v679 = vand.u32 2147483647, %v103
  %v680 = vand.u32 2147483647, %v104
  %v681 = vand.u32 2147483647, %v105
  %v682 = vand.u32 2147483647, %v106
  %v683 = vand.u32 2147483647, %v107
  %v684 = vand.u32 2147483647, %v108
  %v685 = vand.u32 2147483647, %v109
  %v686 = vand.u32 2147483647, %v110
  %v687 = vand.u32 2147483647, %v111
  %v688 = vand.u32 2147483647, %v112
  %v689 = vand.u32 2147483647, %v113
  %v690 = vand.u32 2147483647, %v114
  %v691 = vand.u32 2147483647, %v115
  %v692 = vand.u32 2147483647, %v116
  %v693 = vand.u32 2147483647, %v117
  %v694 = vand.u32 2147483647, %v118
  %v695 = vand.u32 2147483647, %v119
  %v696 = vand.u32 2147483647, %v120
  %v697 = vand.u32 2147483647, %v121
  %v698 = vand.u32 2147483647, %v122
  %v699 = vand.u32 2147483647, %v123
  %v700 = vand.u32 2147483647, %v124
  %v701 = vand.u32 2147483647, %v125
  %v702 = vand.u32 2147483647, %v126
  %v703 = vand.u32 2147483647, %v127
  %v704 = vand.u32 2147483647, %v128
  %v705 = vand.u32 2147483647, %v129
  %v706 = vand.u32 2147483647, %v130
  %v707 = vand.u32 2147483647, %v131
  %v708 = vand.u32 2147483647, %v132
  %v709 = vand.u32 2147483647, %v133
  %v710 = vand.u32 2147483647, %v134
  %v711 = vand.u32 2147483647, %v135
  %v712 = vand.u32 2147483647, %v136
  %v713 = vand.u32 2147483647, %v137
  %v714 = vand.u32 2147483647, %v138
  %v715 = vand.u32 2147483647, %v139
  %v716 = vand.u32 2147483647, %v140
  %v717 = vand.u32 2147483647, %v141
  %v718 = vand.u32 2147483647, %v142
  %v719 = vand.u32 2147483647, %v143
  %v720 = vand.u32 2147483647, %v144
  %v721 = vand.u32 2147483647, %v145
  %v722 = vand.u32 2147483647, %v146
  %v723 = vand.u32 2147483647, %v147
  %v724 = vand.u32 2147483647, %v148
  %v725 = vand.u32 2147483647, %v149
  %v726 = vand.u32 2147483647, %v150
  %v727 = vand.u32 2147483647, %v151
  %v728 = vand.u32 2147483647, %v152
  %v729 = vand.u32 2147483647, %v153
  %v730 = vand.u32 2147483647, %v154
  %v731 = vand.u32 2147483647, %v155
  %v732 = vand.u32 2147483647, %v156
  %v733 = vand.u32 2147483647, %v157
  %v734 = vand.u32 2147483647, %v158
  %v735 = vand.u32 2147483647, %v159
  %v736 = vand.u32 2147483647, %v160
  %v737 = vand.u32 2147483647, %v161
  %v738 = vand.u32 2147483647, %v162
  %v739 = vand.u32 2147483647, %v163
  %v740 = vand.u32 2147483647, %v164
  %v741 = vand.u32 2147483647, %v165
  %v742 = vand.u32 2147483647, %v166
  %v743 = vand.u32 2147483647, %v167
  %v744 = vand.u32 2147483647, %v168
  %v745 = vand.u32 2147483647, %v169
  %v746 = vand.u32 2147483647, %v170
  %v747 = vand.u32 2147483647, %v171
  %v748 = vand.u32 2147483647, %v172
  %v749 = vand.u32 2147483647, %v173
  %v750 = vand.u32 2147483647, %v174
  %v751 = vand.u32 2147483647, %v175
  %v752 = vand.u32 2147483647, %v176
  %v753 = vand.u32 2147483647, %v177
  %v754 = vand.u32 2147483647, %v178
  %v755 = vand.u32 2147483647, %v179
  %v756 = vand.u32 2147483647, %v180
  %v757 = vand.u32 2147483647, %v181
  %v758 = vand.u32 2147483647, %v182
  %v759 = vand.u32 2147483647, %v183
  %v760 = vand.u32 2147483647, %v184
  %v761 = vand.u32 2147483647, %v185
  %v762 = vand.u32 2147483647, %v186
  %v763 = vand.u32 2147483647, %v187
  %v764 = vand.u32 2147483647, %v188
  %v765 = vand.u32 2147483647, %v189
  %v766 = vand.u32 2147483647, %v190
  %v767 = vand.u32 2147483647, %v191
  %v768 = vand.u32 2147483647, %v192
  %v769 = vand.u32 2147483647, %v193
  %v770 = vand.u32 2147483647, %v194
  %v771 = vand.u32 2147483647, %v195
  %v772 = vand.u32 2147483647, %v196
  %v773 = vand.u32 2147483647, %v197
  %v774 = vand.u32 2147483647, %v198
  %v775 = vand.u32 2147483647, %v199
  %v776 = vand.u32 2147483647, %v200
  %v777 = vand.u32 2147483647, %v201
  %v778 = vand.u32 2147483647, %v202
  %v779 = vand.u32 2147483647, %v203
  %v780 = vand.u32 2147483647, %v204
  %v781 = vand.u32 2147483647, %v205
  %v782 = vand.u32 2147483647, %v206
  %v783 = vand.u32 2147483647, %v207
  %v784 = vand.u32 2147483647, %v208
  %v785 = vand.u32 2147483647, %v209
  %v786 = vand.u32 2147483647, %v210
  %v787 = vand.u32 2147483647, %v211
  %v788 = vand.u32 2147483647, %v212
  %v789 = vand.u32 2147483647, %v213
  %v790 = vand.u32 2147483647, %v214
  %v791 = vand.u32 2147483647, %v215
  %v792 = vand.u32 2147483647, %v216
  %v793 = vand.u32 2147483647, %v217
  %v794 = vand.u32 2147483647, %v218
  %v795 = vand.u32 2147483647, %v219
  %v796 = vand.u32 2147483647, %v220
  %v797 = vand.u32 2147483647, %v221
  %v798 = vand.u32 2147483647, %v222
  %v799 = vand.u32 2147483647, %v223
  %v800 = vand.u32 2147483647, %v224
  %v801 = vand.u32 2147483647, %v225
  %v802 = vand.u32 2147483647, %v226
  %v803 = vand.u32 2147483647, %v227
  %v804 = vand.u32 2147483647, %v228
  %v805 = vand.u32 2147483647, %v229
  %v806 = vand.u32 2147483647, %v230
  %v807 = vand.u32 2147483647, %v231
  %v808 = vand.u32 2147483647, %v232
  %v809 = vand.u32 2147483647, %v233
  %v810 = vand.u32 2147483647, %v234
  %v811 = vand.u32 2147483647, %v235
  %v812 = vand.u32 2147483647, %v236
  %v813 = vand.u32 2147483647, %v237
  %v814 = vand.u32 2147483647, %v238
  %v815 = vand.u32 2147483647, %v239
  %v816 = vand.u32 2147483647, %v240
  %v817 = vand.u32 2147483647, %v241
  %v818 = vand.u32 2147483647, %v242
  %v819 = vand.u32 2147483647, %v243
  %v820 = vand.u32 2147483647, %v244
  %v821 = vand.u32 2147483647, %v245
  %v822 = vand.u32 2147483647, %v246
  %v823 = vand.u32 2147483647, %v247
  %v824 = vand.u32 2147483647, %v248
  %v825 = vand.u32 2147483647, %v249
  %v826 = vand.u32 2147483647, %v250
  %v827 = vand.u32 2147483647, %v251
  %v828 = vand.u32 2147483647, %v252
  %v829 = vand.u32 2147483647, %v253
  %v830 = vand.u32 2147483647, %v254
  %v831 = vand.u32 2147483647, %v255
  %v832 = vand.u32 2147483647, %v256
  %v833 = vand.u32 2147483647, %v257
  %v834 = vand.u32 2147483647, %v258
  %v835 = vand.u32 2147483647, %v259
  %v836 = vand.u32 2147483647, %v260
  %v837 = vand.u32 2147483647, %v261
  %v838 = vand.u32 2147483647, %v262
  %v839 = vand.u32 2147483647, %v263
  %v840 = vand.u32 2147483647, %v264
  %v841 = vand.u32 2147483647, %v265
  %v842 = vand.u32 2147483647, %v266
  %v843 = vand.u32 2147483647, %v267
  %v844 = vand.u32 2147483647, %v268
  %v845 = vand.u32 2147483647, %v269
  %v846 = vand.u32 2147483647, %v270
  %v847 = vand.u32 2147483647, %v271
  %v848 = vand.u32 2147483647, %v272
  %v849 = vand.u32 2147483647, %v273
  %v850 = vand.u32 2147483647, %v274
  %v851 = vand.u32 2147483647, %v275
  %v852 = vand.u32 2147483647, %v276
  %v853 = vand.u32 2147483647, %v277
  %v854 = vand.u32 2147483647, %v278
  %v855 = vand.u32 2147483647, %v279
  %v856 = vand.u32 2147483647, %v280
  %v857 = vand.u32 2147483647, %v281
  %v858 = vand.u32 2147483647, %v282
  %v859 = vand.u32 2147483647, %v283
  %v860 = vand.u32 2147483647, %v284
  %v861 = vand.u32 2147483647, %v285
  %v862 = vand.u32 2147483647, %v286
  %v863 = vand.u32 2147483647, %v287
  %v864 = vand.u32 2147483647, %v288
  %v865 = vand.u32 2147483647, %v289
  %v866 = vand.u32 2147483647, %v290
  %v867 = vand.u32 2147483647, %v291
  %v868 = vand.u32 2147483647, %v292
  %v869 = vand.u32 2147483647, %v293
  %v870 = vand.u32 2147483647, %v294
  %v871 = vand.u32 2147483647, %v295
  %v872 = vand.u32 2147483647, %v296
  %v873 = vand.u32 2147483647, %v297
  %v874 = vand.u32 2147483647, %v298
  %v875 = vand.u32 2147483647, %v299
  %v876 = vand.u32 2147483647, %v300
  %v877 = vand.u32 2147483647, %v301
  %v878 = vand.u32 2147483647, %v302
  %v879 = vand.u32 2147483647, %v303
  %v880 = vand.u32 2147483647, %v304
  %v881 = vand.u32 2147483647, %v305
  %v882 = vand.u32 2147483647, %v306
  %v883 = vand.u32 2147483647, %v307
  %v884 = vand.u32 2147483647, %v308
  %v885 = vand.u32 2147483647, %v309
  %v886 = vand.u32 2147483647, %v310
  %v887 = vand.u32 2147483647, %v311
  %v888 = vand.u32 2147483647, %v312
  %v889 = vand.u32 2147483647, %v313
  %v890 = vand.u32 2147483647, %v314
  %v891 = vand.u32 2147483647, %v315
  %v892 = vand.u32 2147483647, %v316
  %v893 = vand.u32 2147483647, %v317
  %v894 = vand.u32 2147483647, %v318
  %v895 = vand.u32 2147483647, %v319
  %v896 = vand.u32 2147483647, %v320
  %v897 = vand.u32 2147483647, %v321
  %v898 = vand.u32 2147483647, %v322
  %v899 = vand.u32 2147483647, %v323
  %v900 = vand.u32 2147483647, %v324
  %v901 = vand.u32 2147483647, %v325
  %v902 = vand.u32 2147483647, %v326
  %v903 = vand.u32 2147483647, %v327
  %v904 = vand.u32 2147483647, %v328
  %v905 = vand.u32 2147483647, %v329
  %v906 = vand.u32 2147483647, %v330
  %v907 = vand.u32 2147483647, %v331
  %v908 = vand.u32 2147483647, %v332
  %v909 = vand.u32 2147483647, %v333
  %v910 = vand.u32 2147483647, %v334
  %v911 = vand.u32 2147483647, %v335
  %v912 = vand.u32 2147483647, %v336
  %v913 = vand.u32 2147483647, %v337
  %v914 = vand.u32 2147483647, %v338
  %v915 = vand.u32 2147483647, %v339
  %v916 = vand.u32 2147483647, %v340
  %v917 = vand.u32 2147483647, %v341
  %v918 = vand.u32 2147483647, %v342
  %v919 = vand.u32 2147483647, %v343
  %v920 = vand.u32 2147483647, %v344
  %v921 = vand.u32 2147483647, %v345
  %v922 = vand.u32 2147483647, %v346
  %v923 = vand.u32 2147483647, %v347
  %v924 = vand.u32 2147483647, %v348
  %v925 = vand.u32 2147483647, %v349
  %v926 = vand.u32 2147483647, %v350
  %v927 = vand.u32 2147483647, %v351
  %v928 = vand.u32 2147483647, %v352
  %v929 = vand.u32 2147483647, %v353
  %v930 = vand.u32 2147483647, %v354
  %v931 = vand.u32 2147483647, %v355
  %v932 = vand.u32 2147483647, %v356
  %v933 = vand.u32 2147483647, %v357
  %v934 = vand.u32 2147483647, %v358
  %v935 = vand.u32 2147483647, %v359
  %v936 = vand.u32 2147483647, %v360
  %v937 = vand.u32 2147483647, %v361
  %v938 = vand.u32 2147483647, %v362
  %v939 = vand.u32 2147483647, %v363
  %v940 = vand.u32 2147483647, %v364
  %v941 = vand.u32 2147483647, %v365
  %v942 = vand.u32 2147483647, %v366
  %v943 = vand.u32 2147483647, %v367
  %v944 = vand.u32 2147483647, %v368
  %v945 = vand.u32 2147483647, %v369
  %v946 = vand.u32 2147483647, %v370
  %v947 = vand.u32 2147483647, %v371
  %v948 = vand.u32 2147483647, %v372
  %v949 = vand.u32 2147483647, %v373
  %v950 = vand.u32 2147483647, %v374
  %v951 = vand.u32 2147483647, %v375
  %v952 = vand.u32 2147483647, %v376
  %v953 = vand.u32 2147483647, %v377
  %v954 = vand.u32 2147483647, %v378
  %v955 = vand.u32 2147483647, %v379
  %v956 = vand.u32 2147483647, %v380
  %v957 = vand.u32 2147483647, %v381
  %v958 = vand.u32 2147483647, %v382
  %v959 = vand.u32 2147483647, %v383
  %v960 = vand.u32 2147483647, %v384
  %v961 = vand.u32 2147483647, %v385
  %v962 = vand.u32 2147483647, %v386
  %v963 = vand.u32 2147483647, %v387
  %v964 = vand.u32 2147483647, %v388
  %v965 = vand.u32 2147483647, %v389
  %v966 = vand.u32 2147483647, %v390
  %v967 = vand.u32 2147483647, %v391
  %v968 = vand.u32 2147483647, %v392
  %v969 = vand.u32 2147483647, %v393
  %v970 = vand.u32 2147483647, %v394
  %v971 = vand.u32 2147483647, %v395
  %v972 = vand.u32 2147483647, %v396
  %v973 = vand.u32 2147483647, %v397
  %v974 = vand.u32 2147483647, %v398
  %v975 = vand.u32 2147483647, %v399
  %v976 = vand.u32 2147483647, %v400
  %v977 = vand.u32 2147483647, %v401
  %v978 = vand.u32 2147483647, %v402
  %v979 = vand.u32 2147483647, %v403
  %v980 = vand.u32 2147483647, %v404
  %v981 = vand.u32 2147483647, %v405
  %v982 = vand.u32 2147483647, %v406
  %v983 = vand.u32 2147483647, %v407
  %v984 = vand.u32 2147483647, %v408
  %v985 = vand.u32 2147483647, %v409
  %v986 = vand.u32 2147483647, %v410
  %v987 = vand.u32 2147483647, %v411
  %v988 = vand.u32 2147483647, %v412
  %v989 = vand.u32 2147483647, %v413
  %v990 = vand.u32 2147483647, %v414
  %v991 = vand.u32 2147483647, %v415
  %v992 = vand.u32 2147483647, %v416
  %v993 = vand.u32 2147483647, %v417
  %v994 = vand.u32 2147483647, %v418
  %v995 = vand.u32 2147483647, %v419
  %v996 = vand.u32 2147483647, %v420
  %v997 = vand.u32 2147483647, %v421
  %v998 = vand.u32 2147483647, %v422
  %v999 = vand.u32 2147483647, %v423
  %v1000 = vand.u32 2147483647, %v424
  %v1001 = vand.u32 2147483647, %v425
  %v1002 = vand.u32 2147483647, %v426
  %v1003 = vand.u32 2147483647, %v427
  %v1004 = vand.u32 2147483647, %v428
  %v1005 = vand.u32 2147483647, %v429
  %v1006 = vand.u32 2147483647, %v430
  %v1007 = vand.u32 2147483647, %v431
  %v1008 = vand.u32 2147483647, %v432
  %v1009 = vand.u32 2147483647, %v433
  %v1010 = vand.u32 2147483647, %v434
  %v1011 = vand.u32 2147483647, %v435
  %v1012 = vand.u32 2147483647, %v436
  %v1013 = vand.u32 2147483647, %v437
  %v1014 = vand.u32 2147483647, %v438
  %v1015 = vand.u32 2147483647, %v439
  %v1016 = vand.u32 2147483647, %v440
  %v1017 = vand.u32 2147483647, %v441
  %v1018 = vand.u32 2147483647, %v442
  %v1019 = vand.u32 2147483647, %v443
  %v1020 = vand.u32 2147483647, %v444
  %v1021 = vand.u32 2147483647, %v445
  %v1022 = vand.u32 2147483647, %v446
  %v1023 = vand.u32 2147483647, %v447
  %v1024 = vand.u32 2147483647, %v448
  %v1025 = vand.u32 2147483647, %v449
  %v1026 = vand.u32 2147483647, %v450
  %v1027 = vand.u32 2147483647, %v451
  %v1028 = vand.u32 2147483647, %v452
  %v1029 = vand.u32 2147483647, %v453
  %v1030 = vand.u32 2147483647, %v454
  %v1031 = vand.u32 2147483647, %v455
  %v1032 = vand.u32 2147483647, %v456
  %v1033 = vand.u32 2147483647, %v457
  %v1034 = vand.u32 2147483647, %v458
  %v1035 = vand.u32 2147483647, %v459
  %v1036 = vand.u32 2147483647, %v460
  %v1037 = vand.u32 2147483647, %v461
  %v1038 = vand.u32 2147483647, %v462
  %v1039 = vand.u32 2147483647, %v463
  %v1040 = vand.u32 2147483647, %v464
  %v1041 = vand.u32 2147483647, %v465
  %v1042 = vand.u32 2147483647, %v466
  %v1043 = vand.u32 2147483647, %v467
  %v1044 = vand.u32 2147483647, %v468
  %v1045 = vand.u32 2147483647, %v469
  %v1046 = vand.u32 2147483647, %v470
  %v1047 = vand.u32 2147483647, %v471
  %v1048 = vand.u32 2147483647, %v472
  %v1049 = vand.u32 2147483647, %v473
  %v1050 = vand.u32 2147483647, %v474
  %v1051 = vand.u32 2147483647, %v475
  %v1052 = vand.u32 2147483647, %v476
  %v1053 = vand.u32 2147483647, %v477
  %v1054 = vand.u32 2147483647, %v478
  %v1055 = vand.u32 2147483647, %v479
  %v1056 = vand.u32 2147483647, %v480
  %v1057 = vand.u32 2147483647, %v481
  %v1058 = vand.u32 2147483647, %v482
  %v1059 = vand.u32 2147483647, %v483
  %v1060 = vand.u32 2147483647, %v484
  %v1061 = vand.u32 2147483647, %v485
  %v1062 = vand.u32 2147483647, %v486
  %v1063 = vand.u32 2147483647, %v487
  %v1064 = vand.u32 2147483647, %v488
  %v1065 = vand.u32 2147483647, %v489
  %v1066 = vand.u32 2147483647, %v490
  %v1067 = vand.u32 2147483647, %v491
  %v1068 = vand.u32 2147483647, %v492
  %v1069 = vand.u32 2147483647, %v493
  %v1070 = vand.u32 2147483647, %v494
  %v1071 = vand.u32 2147483647, %v495
  %v1072 = vand.u32 2147483647, %v496
  %v1073 = vand.u32 2147483647, %v497
  %v1074 = vand.u32 2147483647, %v498
  %v1075 = vand.u32 2147483647, %v499
  %v1076 = vand.u32 2147483647, %v500
  %v1077 = vand.u32 2147483647, %v501
  %v1078 = vand.u32 2147483647, %v502
  %v1079 = vand.u32 2147483647, %v503
  %v1080 = vand.u32 2147483647, %v504
  %v1081 = vand.u32 2147483647, %v505
  %v1082 = vand.u32 2147483647, %v506
  %v1083 = vand.u32 2147483647, %v507
  %v1084 = vand.u32 2147483647, %v508
  %v1085 = vand.u32 2147483647, %v509
  %v1086 = vand.u32 2147483647, %v510
  %v1087 = vand.u32 2147483647, %v511
  %v1088 = vand.u32 2147483647, %v512
  %v1089 = vand.u32 2147483647, %v513
  %v1090 = vand.u32 2147483647, %v514
  %v1091 = vand.u32 2147483647, %v515
  %v1092 = vand.u32 2147483647, %v516
  %v1093 = vand.u32 2147483647, %v517
  %v1094 = vand.u32 2147483647, %v518
  %v1095 = vand.u32 2147483647, %v519
  %v1096 = vand.u32 2147483647, %v520
  %v1097 = vand.u32 2147483647, %v521
  %v1098 = vand.u32 2147483647, %v522
  %v1099 = vand.u32 2147483647, %v523
  %v1100 = vand.u32 2147483647, %v524
  %v1101 = vand.u32 2147483647, %v525
  %v1102 = vand.u32 2147483647, %v526
  %v1103 = vand.u32 2147483647, %v527
  %v1104 = vand.u32 2147483647, %v528
  %v1105 = vand.u32 2147483647, %v529
  %v1106 = vand.u32 2147483647, %v530
  %v1107 = vand.u32 2147483647, %v531
  %v1108 = vand.u32 2147483647, %v532
  %v1109 = vand.u32 2147483647, %v533
  %v1110 = vand.u32 2147483647, %v534
  %v1111 = vand.u32 2147483647, %v535
  %v1112 = vand.u32 2147483647, %v536
  %v1113 = vand.u32 2147483647, %v537
  %v1114 = vand.u32 2147483647, %v538
  %v1115 = vand.u32 2147483647, %v539
  %v1116 = vand.u32 2147483647, %v540
  %v1117 = vand.u32 2147483647, %v541
  %v1118 = vand.u32 2147483647, %v542
  %v1119 = vand.u32 2147483647, %v543
  %v1120 = vand.u32 2147483647, %v544
  %v1121 = vand.u32 2147483647, %v545
  %v1122 = vand.u32 2147483647, %v546
  %v1123 = vand.u32 2147483647, %v547
  %v1124 = vand.u32 2147483647, %v548
  %v1125 = vand.u32 2147483647, %v549
  %v1126 = vand.u32 2147483647, %v550
  %v1127 = vand.u32 2147483647, %v551
  %v1128 = vand.u32 2147483647, %v552
  %v1129 = vand.u32 2147483647, %v553
  %v1130 = vand.u32 2147483647, %v554
  %v1131 = vand.u32 2147483647, %v555
  %v1132 = vand.u32 2147483647, %v556
  %v1133 = vand.u32 2147483647, %v557
  %v1134 = vand.u32 2147483647, %v558
  %v1135 = vand.u32 2147483647, %v559
  %v1136 = vand.u32 2147483647, %v560
  %v1137 = vand.u32 2147483647, %v561
  %v1138 = vand.u32 2147483647, %v562
  %v1139 = vand.u32 2147483647, %v563
  %v1140 = vand.u32 2147483647, %v564
  %v1141 = vand.u32 2147483647, %v565
  %v1142 = vand.u32 2147483647, %v566
  %v1143 = vand.u32 2147483647, %v567
  %v1144 = vand.u32 2147483647, %v568
  %v1145 = vand.u32 2147483647, %v569
  %v1146 = vand.u32 2147483647, %v570
  %v1147 = vand.u32 2147483647, %v571
  %v1148 = vand.u32 2147483647, %v572
  %v1149 = vand.u32 2147483647, %v573
  %v1150 = vand.u32 2147483647, %v574
  %v1151 = vand.u32 2147483647, %v575
  %v1152 = vand.u32 2147483647, %v576
  %v1153 = vand.u32 2147483647, %v577
  %v1154 = vand.u32 2147483647, %v578
  %v1155 = vand.u32 2147483647, %v579
  %v1156 = vand.u32 2147483647, %v580
  %v1157 = vand.u32 2147483647, %v581
  %v1158 = vand.u32 2147483647, %v582
  %v1159 = vand.u32 2147483647, %v583
  %v1160 = vmax.f32 %v584, %v588
  %v1161 = vmax.f32 %v585, %v589
  %v1162 = vmax.f32 %v586, %v590
  %v1163 = vmax.f32 %v587, %v591
  %v1164 = vmax.f32 %v1160, %v592
  %v1165 = vmax.f32 %v1161, %v593
  %v1166 = vmax.f32 %v1162, %v594
  %v1167 = vmax.f32 %v1163, %v595
  %v1168 = vmax.f32 %v1164, %v596
  %v1169 = vmax.f32 %v1165, %v597
  %v1170 = vmax.f32 %v1166, %v598
  %v1171 = vmax.f32 %v1167, %v599
  %v1172 = vmax.f32 %v1168, %v600
  %v1173 = vmax.f32 %v1169, %v601
  %v1174 = vmax.f32 %v1170, %v602
  %v1175 = vmax.f32 %v1171, %v603
  %v1176 = vmax.f32 %v1172, %v604
  %v1177 = vmax.f32 %v1173, %v605
  %v1178 = vmax.f32 %v1174, %v606
  %v1179 = vmax.f32 %v1175, %v607
  %v1180 = vmax.f32 %v1176, %v608
  %v1181 = vmax.f32 %v1177, %v609
  %v1182 = vmax.f32 %v1178, %v610
  %v1183 = vmax.f32 %v1179, %v611
  %v1184 = vmax.f32 %v1180, %v612
  %v1185 = vmax.f32 %v1181, %v613
  %v1186 = vmax.f32 %v1182, %v614
  %v1187 = vmax.f32 %v1183, %v615
  %v1188 = vmax.f32 %v1184, %v616
  %v1189 = vmax.f32 %v1185, %v617
  %v1190 = vmax.f32 %v1186, %v618
  %v1191 = vmax.f32 %v1187, %v619
  %v1192 = vmax.f32 %v1188, %v620
  %v1193 = vmax.f32 %v1189, %v621
  %v1194 = vmax.f32 %v1190, %v622
  %v1195 = vmax.f32 %v1191, %v623
  %v1196 = vmax.f32 %v1192, %v624
  %v1197 = vmax.f32 %v1193, %v625
  %v1198 = vmax.f32 %v1194, %v626
  %v1199 = vmax.f32 %v1195, %v627
  %v1200 = vmax.f32 %v1196, %v628
  %v1201 = vmax.f32 %v1197, %v629
  %v1202 = vmax.f32 %v1198, %v630
  %v1203 = vmax.f32 %v1199, %v631
  %v1204 = vmax.f32 %v1200, %v632
  %v1205 = vmax.f32 %v1201, %v633
  %v1206 = vmax.f32 %v1202, %v634
  %v1207 = vmax.f32 %v1203, %v635
  %v1208 = vmax.f32 %v1204, %v636
  %v1209 = vmax.f32 %v1205, %v637
  %v1210 = vmax.f32 %v1206, %v638
  %v1211 = vmax.f32 %v1207, %v639
  %v1212 = vmax.f32 %v1208, %v640
  %v1213 = vmax.f32 %v1209, %v641
  %v1214 = vmax.f32 %v1210, %v642
  %v1215 = vmax.f32 %v1211, %v643
  %v1216 = vmax.f32 %v1212, %v644
  %v1217 = vmax.f32 %v1213, %v645
  %v1218 = vmax.f32 %v1214, %v646
  %v1219 = vmax.f32 %v1215, %v647
  %v1220 = vmax.f32 %v1216, %v648
  %v1221 = vmax.f32 %v1217, %v649
  %v1222 = vmax.f32 %v1218, %v650
  %v1223 = vmax.f32 %v1219, %v651
  %v1224 = vmax.f32 %v1220, %v652
  %v1225 = vmax.f32 %v1221, %v653
  %v1226 = vmax.f32 %v1222, %v654
  %v1227 = vmax.f32 %v1223, %v655
  %v1228 = vmax.f32 %v1224, %v656
  %v1229 = vmax.f32 %v1225, %v657
  %v1230 = vmax.f32 %v1226, %v658
  %v1231 = vmax.f32 %v1227, %v659
  %v1232 = vmax.f32 %v1228, %v660
  %v1233 = vmax.f32 %v1229, %v661
  %v1234 = vmax.f32 %v1230, %v662
  %v1235 = vmax.f32 %v1231, %v663
  %v1236 = vmax.f32 %v1232, %v664
  %v1237 = vmax.f32 %v1233, %v665
  %v1238 = vmax.f32 %v1234, %v666
  %v1239 = vmax.f32 %v1235, %v667
  %v1240 = vmax.f32 %v1236, %v668
  %v1241 = vmax.f32 %v1237, %v669
  %v1242 = vmax.f32 %v1238, %v670
  %v1243 = vmax.f32 %v1239, %v671
  %v1244 = vmax.f32 %v1240, %v672
  %v1245 = vmax.f32 %v1241, %v673
  %v1246 = vmax.f32 %v1242, %v674
  %v1247 = vmax.f32 %v1243, %v675
  %v1248 = vmax.f32 %v1244, %v676
  %v1249 = vmax.f32 %v1245, %v677
  %v1250 = vmax.f32 %v1246, %v678
  %v1251 = vmax.f32 %v1247, %v679
  %v1252 = vmax.f32 %v1248, %v680
  %v1253 = vmax.f32 %v1249, %v681
  %v1254 = vmax.f32 %v1250, %v682
  %v1255 = vmax.f32 %v1251, %v683
  %v1256 = vmax.f32 %v1252, %v684
  %v1257 = vmax.f32 %v1253, %v685
  %v1258 = vmax.f32 %v1254, %v686
  %v1259 = vmax.f32 %v1255, %v687
  %v1260 = vmax.f32 %v1256, %v688
  %v1261 = vmax.f32 %v1257, %v689
  %v1262 = vmax.f32 %v1258, %v690
  %v1263 = vmax.f32 %v1259, %v691
  %v1264 = vmax.f32 %v1260, %v692
  %v1265 = vmax.f32 %v1261, %v693
  %v1266 = vmax.f32 %v1262, %v694
  %v1267 = vmax.f32 %v1263, %v695
  %v1268 = vmax.f32 %v1264, %v696
  %v1269 = vmax.f32 %v1265, %v697
  %v1270 = vmax.f32 %v1266, %v698
  %v1271 = vmax.f32 %v1267, %v699
  %v1272 = vmax.f32 %v1268, %v700
  %v1273 = vmax.f32 %v1269, %v701
  %v1274 = vmax.f32 %v1270, %v702
  %v1275 = vmax.f32 %v1271, %v703
  %v1276 = vmax.f32 %v1272, %v704
  %v1277 = vmax.f32 %v1273, %v705
  %v1278 = vmax.f32 %v1274, %v706
  %v1279 = vmax.f32 %v1275, %v707
  %v1280 = vmax.f32 %v1276, %v708
  %v1281 = vmax.f32 %v1277, %v709
  %v1282 = vmax.f32 %v1278, %v710
  %v1283 = vmax.f32 %v1279, %v711
  %v1284 = vmax.f32 %v1280, %v712
  %v1285 = vmax.f32 %v1281, %v713
  %v1286 = vmax.f32 %v1282, %v714
  %v1287 = vmax.f32 %v1283, %v715
  %v1288 = vmax.f32 %v1284, %v716
  %v1289 = vmax.f32 %v1285, %v717
  %v1290 = vmax.f32 %v1286, %v718
  %v1291 = vmax.f32 %v1287, %v719
  %v1292 = vmax.f32 %v1288, %v720
  %v1293 = vmax.f32 %v1289, %v721
  %v1294 = vmax.f32 %v1290, %v722
  %v1295 = vmax.f32 %v1291, %v723
  %v1296 = vmax.f32 %v1292, %v724
  %v1297 = vmax.f32 %v1293, %v725
  %v1298 = vmax.f32 %v1294, %v726
  %v1299 = vmax.f32 %v1295, %v727
  %v1300 = vmax.f32 %v1296, %v728
  %v1301 = vmax.f32 %v1297, %v729
  %v1302 = vmax.f32 %v1298, %v730
  %v1303 = vmax.f32 %v1299, %v731
  %v1304 = vmax.f32 %v1300, %v732
  %v1305 = vmax.f32 %v1301, %v733
  %v1306 = vmax.f32 %v1302, %v734
  %v1307 = vmax.f32 %v1303, %v735
  %v1308 = vmax.f32 %v1304, %v736
  %v1309 = vmax.f32 %v1305, %v737
  %v1310 = vmax.f32 %v1306, %v738
  %v1311 = vmax.f32 %v1307, %v739
  %v1312 = vmax.f32 %v1308, %v740
  %v1313 = vmax.f32 %v1309, %v741
  %v1314 = vmax.f32 %v1310, %v742
  %v1315 = vmax.f32 %v1311, %v743
  %v1316 = vmax.f32 %v1312, %v744
  %v1317 = vmax.f32 %v1313, %v745
  %v1318 = vmax.f32 %v1314, %v746
  %v1319 = vmax.f32 %v1315, %v747
  %v1320 = vmax.f32 %v1316, %v748
  %v1321 = vmax.f32 %v1317, %v749
  %v1322 = vmax.f32 %v1318, %v750
  %v1323 = vmax.f32 %v1319, %v751
  %v1324 = vmax.f32 %v1320, %v752
  %v1325 = vmax.f32 %v1321, %v753
  %v1326 = vmax.f32 %v1322, %v754
  %v1327 = vmax.f32 %v1323, %v755
  %v1328 = vmax.f32 %v1324, %v756
  %v1329 = vmax.f32 %v1325, %v757
  %v1330 = vmax.f32 %v1326, %v758
  %v1331 = vmax.f32 %v1327, %v759
  %v1332 = vmax.f32 %v1328, %v760
  %v1333 = vmax.f32 %v1329, %v761
  %v1334 = vmax.f32 %v1330, %v762
  %v1335 = vmax.f32 %v1331, %v763
  %v1336 = vmax.f32 %v1332, %v764
  %v1337 = vmax.f32 %v1333, %v765
  %v1338 = vmax.f32 %v1334, %v766
  %v1339 = vmax.f32 %v1335, %v767
  %v1340 = vmax.f32 %v1336, %v768
  %v1341 = vmax.f32 %v1337, %v769
  %v1342 = vmax.f32 %v1338, %v770
  %v1343 = vmax.f32 %v1339, %v771
  %v1344 = vmax.f32 %v1340, %v772
  %v1345 = vmax.f32 %v1341, %v773
  %v1346 = vmax.f32 %v1342, %v774
  %v1347 = vmax.f32 %v1343, %v775
  %v1348 = vmax.f32 %v1344, %v776
  %v1349 = vmax.f32 %v1345, %v777
  %v1350 = vmax.f32 %v1346, %v778
  %v1351 = vmax.f32 %v1347, %v779
  %v1352 = vmax.f32 %v1348, %v780
  %v1353 = vmax.f32 %v1349, %v781
  %v1354 = vmax.f32 %v1350, %v782
  %v1355 = vmax.f32 %v1351, %v783
  %v1356 = vmax.f32 %v1352, %v784
  %v1357 = vmax.f32 %v1353, %v785
  %v1358 = vmax.f32 %v1354, %v786
  %v1359 = vmax.f32 %v1355, %v787
  %v1360 = vmax.f32 %v1356, %v788
  %v1361 = vmax.f32 %v1357, %v789
  %v1362 = vmax.f32 %v1358, %v790
  %v1363 = vmax.f32 %v1359, %v791
  %v1364 = vmax.f32 %v1360, %v792
  %v1365 = vmax.f32 %v1361, %v793
  %v1366 = vmax.f32 %v1362, %v794
  %v1367 = vmax.f32 %v1363, %v795
  %v1368 = vmax.f32 %v1364, %v796
  %v1369 = vmax.f32 %v1365, %v797
  %v1370 = vmax.f32 %v1366, %v798
  %v1371 = vmax.f32 %v1367, %v799
  %v1372 = vmax.f32 %v1368, %v800
  %v1373 = vmax.f32 %v1369, %v801
  %v1374 = vmax.f32 %v1370, %v802
  %v1375 = vmax.f32 %v1371, %v803
  %v1376 = vmax.f32 %v1372, %v804
  %v1377 = vmax.f32 %v1373, %v805
  %v1378 = vmax.f32 %v1374, %v806
  %v1379 = vmax.f32 %v1375, %v807
  %v1380 = vmax.f32 %v1376, %v808
  %v1381 = vmax.f32 %v1377, %v809
  %v1382 = vmax.f32 %v1378, %v810
  %v1383 = vmax.f32 %v1379, %v811
  %v1384 = vmax.f32 %v1380, %v812
  %v1385 = vmax.f32 %v1381, %v813
  %v1386 = vmax.f32 %v1382, %v814
  %v1387 = vmax.f32 %v1383, %v815
  %v1388 = vmax.f32 %v1384, %v816
  %v1389 = vmax.f32 %v1385, %v817
  %v1390 = vmax.f32 %v1386, %v818
  %v1391 = vmax.f32 %v1387, %v819
  %v1392 = vmax.f32 %v1388, %v820
  %v1393 = vmax.f32 %v1389, %v821
  %v1394 = vmax.f32 %v1390, %v822
  %v1395 = vmax.f32 %v1391, %v823
  %v1396 = vmax.f32 %v1392, %v824
  %v1397 = vmax.f32 %v1393, %v825
  %v1398 = vmax.f32 %v1394, %v826
  %v1399 = vmax.f32 %v1395, %v827
  %v1400 = vmax.f32 %v1396, %v828
  %v1401 = vmax.f32 %v1397, %v829
  %v1402 = vmax.f32 %v1398, %v830
  %v1403 = vmax.f32 %v1399, %v831
  %v1404 = vmax.f32 %v1400, %v832
  %v1405 = vmax.f32 %v1401, %v833
  %v1406 = vmax.f32 %v1402, %v834
  %v1407 = vmax.f32 %v1403, %v835
  %v1408 = vmax.f32 %v1404, %v836
  %v1409 = vmax.f32 %v1405, %v837
  %v1410 = vmax.f32 %v1406, %v838
  %v1411 = vmax.f32 %v1407, %v839
  %v1412 = vmax.f32 %v1408, %v840
  %v1413 = vmax.f32 %v1409, %v841
  %v1414 = vmax.f32 %v1410, %v842
  %v1415 = vmax.f32 %v1411, %v843
  %v1416 = vmax.f32 %v1412, %v844
  %v1417 = vmax.f32 %v1413, %v845
  %v1418 = vmax.f32 %v1414, %v846
  %v1419 = vmax.f32 %v1415, %v847
  %v1420 = vmax.f32 %v1416, %v848
  %v1421 = vmax.f32 %v1417, %v849
  %v1422 = vmax.f32 %v1418, %v850
  %v1423 = vmax.f32 %v1419, %v851
  %v1424 = vmax.f32 %v1420, %v852
  %v1425 = vmax.f32 %v1421, %v853
  %v1426 = vmax.f32 %v1422, %v854
  %v1427 = vmax.f32 %v1423, %v855
  %v1428 = vmax.f32 %v1424, %v856
  %v1429 = vmax.f32 %v1425, %v857
  %v1430 = vmax.f32 %v1426, %v858
  %v1431 = vmax.f32 %v1427, %v859
  %v1432 = vmax.f32 %v1428, %v860
  %v1433 = vmax.f32 %v1429, %v861
  %v1434 = vmax.f32 %v1430, %v862
  %v1435 = vmax.f32 %v1431, %v863
  %v1436 = vmax.f32 %v1432, %v864
  %v1437 = vmax.f32 %v1433, %v865
  %v1438 = vmax.f32 %v1434, %v866
  %v1439 = vmax.f32 %v1435, %v867
  %v1440 = vmax.f32 %v1436, %v868
  %v1441 = vmax.f32 %v1437, %v869
  %v1442 = vmax.f32 %v1438, %v870
  %v1443 = vmax.f32 %v1439, %v871
  %v1444 = vmax.f32 %v1440, %v872
  %v1445 = vmax.f32 %v1441, %v873
  %v1446 = vmax.f32 %v1442, %v874
  %v1447 = vmax.f32 %v1443, %v875
  %v1448 = vmax.f32 %v1444, %v876
  %v1449 = vmax.f32 %v1445, %v877
  %v1450 = vmax.f32 %v1446, %v878
  %v1451 = vmax.f32 %v1447, %v879
  %v1452 = vmax.f32 %v1448, %v880
  %v1453 = vmax.f32 %v1449, %v881
  %v1454 = vmax.f32 %v1450, %v882
  %v1455 = vmax.f32 %v1451, %v883
  %v1456 = vmax.f32 %v1452, %v884
  %v1457 = vmax.f32 %v1453, %v885
  %v1458 = vmax.f32 %v1454, %v886
  %v1459 = vmax.f32 %v1455, %v887
  %v1460 = vmax.f32 %v1456, %v888
  %v1461 = vmax.f32 %v1457, %v889
  %v1462 = vmax.f32 %v1458, %v890
  %v1463 = vmax.f32 %v1459, %v891
  %v1464 = vmax.f32 %v1460, %v892
  %v1465 = vmax.f32 %v1461, %v893
  %v1466 = vmax.f32 %v1462, %v894
  %v1467 = vmax.f32 %v1463, %v895
  %v1468 = vmax.f32 %v1464, %v896
  %v1469 = vmax.f32 %v1465, %v897
  %v1470 = vmax.f32 %v1466, %v898
  %v1471 = vmax.f32 %v1467, %v899
  %v1472 = vmax.f32 %v1468, %v900
  %v1473 = vmax.f32 %v1469, %v901
  %v1474 = vmax.f32 %v1470, %v902
  %v1475 = vmax.f32 %v1471, %v903
  %v1476 = vmax.f32 %v1472, %v904
  %v1477 = vmax.f32 %v1473, %v905
  %v1478 = vmax.f32 %v1474, %v906
  %v1479 = vmax.f32 %v1475, %v907
  %v1480 = vmax.f32 %v1476, %v908
  %v1481 = vmax.f32 %v1477, %v909
  %v1482 = vmax.f32 %v1478, %v910
  %v1483 = vmax.f32 %v1479, %v911
  %v1484 = vmax.f32 %v1480, %v912
  %v1485 = vmax.f32 %v1481, %v913
  %v1486 = vmax.f32 %v1482, %v914
  %v1487 = vmax.f32 %v1483, %v915
  %v1488 = vmax.f32 %v1484, %v916
  %v1489 = vmax.f32 %v1485, %v917
  %v1490 = vmax.f32 %v1486, %v918
  %v1491 = vmax.f32 %v1487, %v919
  %v1492 = vmax.f32 %v1488, %v920
  %v1493 = vmax.f32 %v1489, %v921
  %v1494 = vmax.f32 %v1490, %v922
  %v1495 = vmax.f32 %v1491, %v923
  %v1496 = vmax.f32 %v1492, %v924
  %v1497 = vmax.f32 %v1493, %v925
  %v1498 = vmax.f32 %v1494, %v926
  %v1499 = vmax.f32 %v1495, %v927
  %v1500 = vmax.f32 %v1496, %v928
  %v1501 = vmax.f32 %v1497, %v929
  %v1502 = vmax.f32 %v1498, %v930
  %v1503 = vmax.f32 %v1499, %v931
  %v1504 = vmax.f32 %v1500, %v932
  %v1505 = vmax.f32 %v1501, %v933
  %v1506 = vmax.f32 %v1502, %v934
  %v1507 = vmax.f32 %v1503, %v935
  %v1508 = vmax.f32 %v1504, %v936
  %v1509 = vmax.f32 %v1505, %v937
  %v1510 = vmax.f32 %v1506, %v938
  %v1511 = vmax.f32 %v1507, %v939
  %v1512 = vmax.f32 %v1508, %v940
  %v1513 = vmax.f32 %v1509, %v941
  %v1514 = vmax.f32 %v1510, %v942
  %v1515 = vmax.f32 %v1511, %v943
  %v1516 = vmax.f32 %v1512, %v944
  %v1517 = vmax.f32 %v1513, %v945
  %v1518 = vmax.f32 %v1514, %v946
  %v1519 = vmax.f32 %v1515, %v947
  %v1520 = vmax.f32 %v1516, %v948
  %v1521 = vmax.f32 %v1517, %v949
  %v1522 = vmax.f32 %v1518, %v950
  %v1523 = vmax.f32 %v1519, %v951
  %v1524 = vmax.f32 %v1520, %v952
  %v1525 = vmax.f32 %v1521, %v953
  %v1526 = vmax.f32 %v1522, %v954
  %v1527 = vmax.f32 %v1523, %v955
  %v1528 = vmax.f32 %v1524, %v956
  %v1529 = vmax.f32 %v1525, %v957
  %v1530 = vmax.f32 %v1526, %v958
  %v1531 = vmax.f32 %v1527, %v959
  %v1532 = vmax.f32 %v1528, %v960
  %v1533 = vmax.f32 %v1529, %v961
  %v1534 = vmax.f32 %v1530, %v962
  %v1535 = vmax.f32 %v1531, %v963
  %v1536 = vmax.f32 %v1532, %v964
  %v1537 = vmax.f32 %v1533, %v965
  %v1538 = vmax.f32 %v1534, %v966
  %v1539 = vmax.f32 %v1535, %v967
  %v1540 = vmax.f32 %v1536, %v968
  %v1541 = vmax.f32 %v1537, %v969
  %v1542 = vmax.f32 %v1538, %v970
  %v1543 = vmax.f32 %v1539, %v971
  %v1544 = vmax.f32 %v1540, %v972
  %v1545 = vmax.f32 %v1541, %v973
  %v1546 = vmax.f32 %v1542, %v974
  %v1547 = vmax.f32 %v1543, %v975
  %v1548 = vmax.f32 %v1544, %v976
  %v1549 = vmax.f32 %v1545, %v977
  %v1550 = vmax.f32 %v1546, %v978
  %v1551 = vmax.f32 %v1547, %v979
  %v1552 = vmax.f32 %v1548, %v980
  %v1553 = vmax.f32 %v1549, %v981
  %v1554 = vmax.f32 %v1550, %v982
  %v1555 = vmax.f32 %v1551, %v983
  %v1556 = vmax.f32 %v1552, %v984
  %v1557 = vmax.f32 %v1553, %v985
  %v1558 = vmax.f32 %v1554, %v986
  %v1559 = vmax.f32 %v1555, %v987
  %v1560 = vmax.f32 %v1556, %v988
  %v1561 = vmax.f32 %v1557, %v989
  %v1562 = vmax.f32 %v1558, %v990
  %v1563 = vmax.f32 %v1559, %v991
  %v1564 = vmax.f32 %v1560, %v992
  %v1565 = vmax.f32 %v1561, %v993
  %v1566 = vmax.f32 %v1562, %v994
  %v1567 = vmax.f32 %v1563, %v995
  %v1568 = vmax.f32 %v1564, %v996
  %v1569 = vmax.f32 %v1565, %v997
  %v1570 = vmax.f32 %v1566, %v998
  %v1571 = vmax.f32 %v1567, %v999
  %v1572 = vmax.f32 %v1568, %v1000
  %v1573 = vmax.f32 %v1569, %v1001
  %v1574 = vmax.f32 %v1570, %v1002
  %v1575 = vmax.f32 %v1571, %v1003
  %v1576 = vmax.f32 %v1572, %v1004
  %v1577 = vmax.f32 %v1573, %v1005
  %v1578 = vmax.f32 %v1574, %v1006
  %v1579 = vmax.f32 %v1575, %v1007
  %v1580 = vmax.f32 %v1576, %v1008
  %v1581 = vmax.f32 %v1577, %v1009
  %v1582 = vmax.f32 %v1578, %v1010
  %v1583 = vmax.f32 %v1579, %v1011
  %v1584 = vmax.f32 %v1580, %v1012
  %v1585 = vmax.f32 %v1581, %v1013
  %v1586 = vmax.f32 %v1582, %v1014
  %v1587 = vmax.f32 %v1583, %v1015
  %v1588 = vmax.f32 %v1584, %v1016
  %v1589 = vmax.f32 %v1585, %v1017
  %v1590 = vmax.f32 %v1586, %v1018
  %v1591 = vmax.f32 %v1587, %v1019
  %v1592 = vmax.f32 %v1588, %v1020
  %v1593 = vmax.f32 %v1589, %v1021
  %v1594 = vmax.f32 %v1590, %v1022
  %v1595 = vmax.f32 %v1591, %v1023
  %v1596 = vmax.f32 %v1592, %v1024
  %v1597 = vmax.f32 %v1593, %v1025
  %v1598 = vmax.f32 %v1594, %v1026
  %v1599 = vmax.f32 %v1595, %v1027
  %v1600 = vmax.f32 %v1596, %v1028
  %v1601 = vmax.f32 %v1597, %v1029
  %v1602 = vmax.f32 %v1598, %v1030
  %v1603 = vmax.f32 %v1599, %v1031
  %v1604 = vmax.f32 %v1600, %v1032
  %v1605 = vmax.f32 %v1601, %v1033
  %v1606 = vmax.f32 %v1602, %v1034
  %v1607 = vmax.f32 %v1603, %v1035
  %v1608 = vmax.f32 %v1604, %v1036
  %v1609 = vmax.f32 %v1605, %v1037
  %v1610 = vmax.f32 %v1606, %v1038
  %v1611 = vmax.f32 %v1607, %v1039
  %v1612 = vmax.f32 %v1608, %v1040
  %v1613 = vmax.f32 %v1609, %v1041
  %v1614 = vmax.f32 %v1610, %v1042
  %v1615 = vmax.f32 %v1611, %v1043
  %v1616 = vmax.f32 %v1612, %v1044
  %v1617 = vmax.f32 %v1613, %v1045
  %v1618 = vmax.f32 %v1614, %v1046
  %v1619 = vmax.f32 %v1615, %v1047
  %v1620 = vmax.f32 %v1616, %v1048
  %v1621 = vmax.f32 %v1617, %v1049
  %v1622 = vmax.f32 %v1618, %v1050
  %v1623 = vmax.f32 %v1619, %v1051
  %v1624 = vmax.f32 %v1620, %v1052
  %v1625 = vmax.f32 %v1621, %v1053
  %v1626 = vmax.f32 %v1622, %v1054
  %v1627 = vmax.f32 %v1623, %v1055
  %v1628 = vmax.f32 %v1624, %v1056
  %v1629 = vmax.f32 %v1625, %v1057
  %v1630 = vmax.f32 %v1626, %v1058
  %v1631 = vmax.f32 %v1627, %v1059
  %v1632 = vmax.f32 %v1628, %v1060
  %v1633 = vmax.f32 %v1629, %v1061
  %v1634 = vmax.f32 %v1630, %v1062
  %v1635 = vmax.f32 %v1631, %v1063
  %v1636 = vmax.f32 %v1632, %v1064
  %v1637 = vmax.f32 %v1633, %v1065
  %v1638 = vmax.f32 %v1634, %v1066
  %v1639 = vmax.f32 %v1635, %v1067
  %v1640 = vmax.f32 %v1636, %v1068
  %v1641 = vmax.f32 %v1637, %v1069
  %v1642 = vmax.f32 %v1638, %v1070
  %v1643 = vmax.f32 %v1639, %v1071
  %v1644 = vmax.f32 %v1640, %v1072
  %v1645 = vmax.f32 %v1641, %v1073
  %v1646 = vmax.f32 %v1642, %v1074
  %v1647 = vmax.f32 %v1643, %v1075
  %v1648 = vmax.f32 %v1644, %v1076
  %v1649 = vmax.f32 %v1645, %v1077
  %v1650 = vmax.f32 %v1646, %v1078
  %v1651 = vmax.f32 %v1647, %v1079
  %v1652 = vmax.f32 %v1648, %v1080
  %v1653 = vmax.f32 %v1649, %v1081
  %v1654 = vmax.f32 %v1650, %v1082
  %v1655 = vmax.f32 %v1651, %v1083
  %v1656 = vmax.f32 %v1652, %v1084
  %v1657 = vmax.f32 %v1653, %v1085
  %v1658 = vmax.f32 %v1654, %v1086
  %v1659 = vmax.f32 %v1655, %v1087
  %v1660 = vmax.f32 %v1656, %v1088
  %v1661 = vmax.f32 %v1657, %v1089
  %v1662 = vmax.f32 %v1658, %v1090
  %v1663 = vmax.f32 %v1659, %v1091
  %v1664 = vmax.f32 %v1660, %v1092
  %v1665 = vmax.f32 %v1661, %v1093
  %v1666 = vmax.f32 %v1662, %v1094
  %v1667 = vmax.f32 %v1663, %v1095
  %v1668 = vmax.f32 %v1664, %v1096
  %v1669 = vmax.f32 %v1665, %v1097
  %v1670 = vmax.f32 %v1666, %v1098
  %v1671 = vmax.f32 %v1667, %v1099
  %v1672 = vmax.f32 %v1668, %v1100
  %v1673 = vmax.f32 %v1669, %v1101
  %v1674 = vmax.f32 %v1670, %v1102
  %v1675 = vmax.f32 %v1671, %v1103
  %v1676 = vmax.f32 %v1672, %v1104
  %v1677 = vmax.f32 %v1673, %v1105
  %v1678 = vmax.f32 %v1674, %v1106
  %v1679 = vmax.f32 %v1675, %v1107
  %v1680 = vmax.f32 %v1676, %v1108
  %v1681 = vmax.f32 %v1677, %v1109
  %v1682 = vmax.f32 %v1678, %v1110
  %v1683 = vmax.f32 %v1679, %v1111
  %v1684 = vmax.f32 %v1680, %v1112
  %v1685 = vmax.f32 %v1681, %v1113
  %v1686 = vmax.f32 %v1682, %v1114
  %v1687 = vmax.f32 %v1683, %v1115
  %v1688 = vmax.f32 %v1684, %v1116
  %v1689 = vmax.f32 %v1685, %v1117
  %v1690 = vmax.f32 %v1686, %v1118
  %v1691 = vmax.f32 %v1687, %v1119
  %v1692 = vmax.f32 %v1688, %v1120
  %v1693 = vmax.f32 %v1689, %v1121
  %v1694 = vmax.f32 %v1690, %v1122
  %v1695 = vmax.f32 %v1691, %v1123
  %v1696 = vmax.f32 %v1692, %v1124
  %v1697 = vmax.f32 %v1693, %v1125
  %v1698 = vmax.f32 %v1694, %v1126
  %v1699 = vmax.f32 %v1695, %v1127
  %v1700 = vmax.f32 %v1696, %v1128
  %v1701 = vmax.f32 %v1697, %v1129
  %v1702 = vmax.f32 %v1698, %v1130
  %v1703 = vmax.f32 %v1699, %v1131
  %v1704 = vmax.f32 %v1700, %v1132
  %v1705 = vmax.f32 %v1701, %v1133
  %v1706 = vmax.f32 %v1702, %v1134
  %v1707 = vmax.f32 %v1703, %v1135
  %v1708 = vmax.f32 %v1704, %v1136
  %v1709 = vmax.f32 %v1705, %v1137
  %v1710 = vmax.f32 %v1706, %v1138
  %v1711 = vmax.f32 %v1707, %v1139
  %v1712 = vmax.f32 %v1708, %v1140
  %v1713 = vmax.f32 %v1709, %v1141
  %v1714 = vmax.f32 %v1710, %v1142
  %v1715 = vmax.f32 %v1711, %v1143
  %v1716 = vmax.f32 %v1712, %v1144
  %v1717 = vmax.f32 %v1713, %v1145
  %v1718 = vmax.f32 %v1714, %v1146
  %v1719 = vmax.f32 %v1715, %v1147
  %v1720 = vmax.f32 %v1716, %v1148
  %v1721 = vmax.f32 %v1717, %v1149
  %v1722 = vmax.f32 %v1718, %v1150
  %v1723 = vmax.f32 %v1719, %v1151
  %v1724 = vmax.f32 %v1720, %v1152
  %v1725 = vmax.f32 %v1721, %v1153
  %v1726 = vmax.f32 %v1722, %v1154
  %v1727 = vmax.f32 %v1723, %v1155
  %v1728 = vmax.f32 %v1724, %v1156
  %v1729 = vmax.f32 %v1725, %v1157
  %v1730 = vmax.f32 %v1726, %v1158
  %v1731 = vmax.f32 %v1727, %v1159
  %v1732 = vmax.f32 %v1728, %v1729
  %v1733 = vmax.f32 %v1730, %v1731
  %v1734 = vmax.f32 %v1732, %v1733
  %1735 = vmax.xlane.f32.xlu0 %v1734
  %v1736 = vpop.xlane.xlu0 %1735
  %v1737 = vrot.slane %v1736, 4
  %v1738 = vmax.f32 %v1736, %v1737
  %v1739 = vrot.slane %v1738, 2
  %v1740 = vmax.f32 %v1738, %v1739
  %v1741 = vrot.slane %v1740, 1
  %v1742 = vmax.f32 %v1740, %v1741
  %s1743 = vtos %v1742
  %v1744 = vstv %s1743
  %v1745 = vtanh.pop %v1744
  %s1746 = vtos %v1745
  %v1747 = vstv %s1746
  %v1748 = vrcp.pop %v1747
  %s1749 = vtos %v1748
  %s1750 = smul.f32 0.5, %s1749
  %v1751 = vtanh.pop %v8
  %v1752 = vtanh.pop %v9
  %v1753 = vtanh.pop %v10
  %v1754 = vtanh.pop %v11
  %v1755 = vtanh.pop %v12
  %v1756 = vtanh.pop %v13
  %v1757 = vtanh.pop %v14
  %v1758 = vtanh.pop %v15
  %v1759 = vtanh.pop %v16
  %v1760 = vtanh.pop %v17
  %v1761 = vtanh.pop %v18
  %v1762 = vtanh.pop %v19
  %v1763 = vtanh.pop %v20
  %v1764 = vtanh.pop %v21
  %v1765 = vtanh.pop %v22
  %v1766 = vtanh.pop %v23
  %v1767 = vtanh.pop %v24
  %v1768 = vtanh.pop %v25
  %v1769 = vtanh.pop %v26
  %v1770 = vtanh.pop %v27
  %v1771 = vtanh.pop %v28
  %v1772 = vtanh.pop %v29
  %v1773 = vtanh.pop %v30
  %v1774 = vtanh.pop %v31
  %v1775 = vtanh.pop %v32
  %v1776 = vtanh.pop %v33
  %v1777 = vtanh.pop %v34
  %v1778 = vtanh.pop %v35
  %v1779 = vtanh.pop %v36
  %v1780 = vtanh.pop %v37
  %v1781 = vtanh.pop %v38
  %v1782 = vtanh.pop %v39
  %v1783 = vtanh.pop %v40
  %v1784 = vtanh.pop %v41
  %v1785 = vtanh.pop %v42
  %v1786 = vtanh.pop %v43
  %v1787 = vtanh.pop %v44
  %v1788 = vtanh.pop %v45
  %v1789 = vtanh.pop %v46
  %v1790 = vtanh.pop %v47
  %v1791 = vtanh.pop %v48
  %v1792 = vtanh.pop %v49
  %v1793 = vtanh.pop %v50
  %v1794 = vtanh.pop %v51
  %v1795 = vtanh.pop %v52
  %v1796 = vtanh.pop %v53
  %v1797 = vtanh.pop %v54
  %v1798 = vtanh.pop %v55
  %v1799 = vtanh.pop %v56
  %v1800 = vtanh.pop %v57
  %v1801 = vtanh.pop %v58
  %v1802 = vtanh.pop %v59
  %v1803 = vtanh.pop %v60
  %v1804 = vtanh.pop %v61
  %v1805 = vtanh.pop %v62
  %v1806 = vtanh.pop %v63
  %v1807 = vtanh.pop %v64
  %v1808 = vtanh.pop %v65
  %v1809 = vtanh.pop %v66
  %v1810 = vtanh.pop %v67
  %v1811 = vtanh.pop %v68
  %v1812 = vtanh.pop %v69
  %v1813 = vtanh.pop %v70
  %v1814 = vtanh.pop %v71
  %v1815 = vtanh.pop %v72
  %v1816 = vtanh.pop %v73
  %v1817 = vtanh.pop %v74
  %v1818 = vtanh.pop %v75
  %v1819 = vtanh.pop %v76
  %v1820 = vtanh.pop %v77
  %v1821 = vtanh.pop %v78
  %v1822 = vtanh.pop %v79
  %v1823 = vtanh.pop %v80
  %v1824 = vtanh.pop %v81
  %v1825 = vtanh.pop %v82
  %v1826 = vtanh.pop %v83
  %v1827 = vtanh.pop %v84
  %v1828 = vtanh.pop %v85
  %v1829 = vtanh.pop %v86
  %v1830 = vtanh.pop %v87
  %v1831 = vtanh.pop %v88
  %v1832 = vtanh.pop %v89
  %v1833 = vtanh.pop %v90
  %v1834 = vtanh.pop %v91
  %v1835 = vtanh.pop %v92
  %v1836 = vtanh.pop %v93
  %v1837 = vtanh.pop %v94
  %v1838 = vtanh.pop %v95
  %v1839 = vtanh.pop %v96
  %v1840 = vtanh.pop %v97
  %v1841 = vtanh.pop %v98
  %v1842 = vtanh.pop %v99
  %v1843 = vtanh.pop %v100
  %v1844 = vtanh.pop %v101
  %v1845 = vtanh.pop %v102
  %v1846 = vtanh.pop %v103
  %v1847 = vtanh.pop %v104
  %v1848 = vtanh.pop %v105
  %v1849 = vtanh.pop %v106
  %v1850 = vtanh.pop %v107
  %v1851 = vtanh.pop %v108
  %v1852 = vtanh.pop %v109
  %v1853 = vtanh.pop %v110
  %v1854 = vtanh.pop %v111
  %v1855 = vtanh.pop %v112
  %v1856 = vtanh.pop %v113
  %v1857 = vtanh.pop %v114
  %v1858 = vtanh.pop %v115
  %v1859 = vtanh.pop %v116
  %v1860 = vtanh.pop %v117
  %v1861 = vtanh.pop %v118
  %v1862 = vtanh.pop %v119
  %v1863 = vtanh.pop %v120
  %v1864 = vtanh.pop %v121
  %v1865 = vtanh.pop %v122
  %v1866 = vtanh.pop %v123
  %v1867 = vtanh.pop %v124
  %v1868 = vtanh.pop %v125
  %v1869 = vtanh.pop %v126
  %v1870 = vtanh.pop %v127
  %v1871 = vtanh.pop %v128
  %v1872 = vtanh.pop %v129
  %v1873 = vtanh.pop %v130
  %v1874 = vtanh.pop %v131
  %v1875 = vtanh.pop %v132
  %v1876 = vtanh.pop %v133
  %v1877 = vtanh.pop %v134
  %v1878 = vtanh.pop %v135
  %v1879 = vtanh.pop %v136
  %v1880 = vtanh.pop %v137
  %v1881 = vtanh.pop %v138
  %v1882 = vtanh.pop %v139
  %v1883 = vtanh.pop %v140
  %v1884 = vtanh.pop %v141
  %v1885 = vtanh.pop %v142
  %v1886 = vtanh.pop %v143
  %v1887 = vtanh.pop %v144
  %v1888 = vtanh.pop %v145
  %v1889 = vtanh.pop %v146
  %v1890 = vtanh.pop %v147
  %v1891 = vtanh.pop %v148
  %v1892 = vtanh.pop %v149
  %v1893 = vtanh.pop %v150
  %v1894 = vtanh.pop %v151
  %v1895 = vtanh.pop %v152
  %v1896 = vtanh.pop %v153
  %v1897 = vtanh.pop %v154
  %v1898 = vtanh.pop %v155
  %v1899 = vtanh.pop %v156
  %v1900 = vtanh.pop %v157
  %v1901 = vtanh.pop %v158
  %v1902 = vtanh.pop %v159
  %v1903 = vtanh.pop %v160
  %v1904 = vtanh.pop %v161
  %v1905 = vtanh.pop %v162
  %v1906 = vtanh.pop %v163
  %v1907 = vtanh.pop %v164
  %v1908 = vtanh.pop %v165
  %v1909 = vtanh.pop %v166
  %v1910 = vtanh.pop %v167
  %v1911 = vtanh.pop %v168
  %v1912 = vtanh.pop %v169
  %v1913 = vtanh.pop %v170
  %v1914 = vtanh.pop %v171
  %v1915 = vtanh.pop %v172
  %v1916 = vtanh.pop %v173
  %v1917 = vtanh.pop %v174
  %v1918 = vtanh.pop %v175
  %v1919 = vtanh.pop %v176
  %v1920 = vtanh.pop %v177
  %v1921 = vtanh.pop %v178
  %v1922 = vtanh.pop %v179
  %v1923 = vtanh.pop %v180
  %v1924 = vtanh.pop %v181
  %v1925 = vtanh.pop %v182
  %v1926 = vtanh.pop %v183
  %v1927 = vtanh.pop %v184
  %v1928 = vtanh.pop %v185
  %v1929 = vtanh.pop %v186
  %v1930 = vtanh.pop %v187
  %v1931 = vtanh.pop %v188
  %v1932 = vtanh.pop %v189
  %v1933 = vtanh.pop %v190
  %v1934 = vtanh.pop %v191
  %v1935 = vtanh.pop %v192
  %v1936 = vtanh.pop %v193
  %v1937 = vtanh.pop %v194
  %v1938 = vtanh.pop %v195
  %v1939 = vtanh.pop %v196
  %v1940 = vtanh.pop %v197
  %v1941 = vtanh.pop %v198
  %v1942 = vtanh.pop %v199
  %v1943 = vtanh.pop %v200
  %v1944 = vtanh.pop %v201
  %v1945 = vtanh.pop %v202
  %v1946 = vtanh.pop %v203
  %v1947 = vtanh.pop %v204
  %v1948 = vtanh.pop %v205
  %v1949 = vtanh.pop %v206
  %v1950 = vtanh.pop %v207
  %v1951 = vtanh.pop %v208
  %v1952 = vtanh.pop %v209
  %v1953 = vtanh.pop %v210
  %v1954 = vtanh.pop %v211
  %v1955 = vtanh.pop %v212
  %v1956 = vtanh.pop %v213
  %v1957 = vtanh.pop %v214
  %v1958 = vtanh.pop %v215
  %v1959 = vtanh.pop %v216
  %v1960 = vtanh.pop %v217
  %v1961 = vtanh.pop %v218
  %v1962 = vtanh.pop %v219
  %v1963 = vtanh.pop %v220
  %v1964 = vtanh.pop %v221
  %v1965 = vtanh.pop %v222
  %v1966 = vtanh.pop %v223
  %v1967 = vtanh.pop %v224
  %v1968 = vtanh.pop %v225
  %v1969 = vtanh.pop %v226
  %v1970 = vtanh.pop %v227
  %v1971 = vtanh.pop %v228
  %v1972 = vtanh.pop %v229
  %v1973 = vtanh.pop %v230
  %v1974 = vtanh.pop %v231
  %v1975 = vtanh.pop %v232
  %v1976 = vtanh.pop %v233
  %v1977 = vtanh.pop %v234
  %v1978 = vtanh.pop %v235
  %v1979 = vtanh.pop %v236
  %v1980 = vtanh.pop %v237
  %v1981 = vtanh.pop %v238
  %v1982 = vtanh.pop %v239
  %v1983 = vtanh.pop %v240
  %v1984 = vtanh.pop %v241
  %v1985 = vtanh.pop %v242
  %v1986 = vtanh.pop %v243
  %v1987 = vtanh.pop %v244
  %v1988 = vtanh.pop %v245
  %v1989 = vtanh.pop %v246
  %v1990 = vtanh.pop %v247
  %v1991 = vtanh.pop %v248
  %v1992 = vtanh.pop %v249
  %v1993 = vtanh.pop %v250
  %v1994 = vtanh.pop %v251
  %v1995 = vtanh.pop %v252
  %v1996 = vtanh.pop %v253
  %v1997 = vtanh.pop %v254
  %v1998 = vtanh.pop %v255
  %v1999 = vtanh.pop %v256
  %v2000 = vtanh.pop %v257
  %v2001 = vtanh.pop %v258
  %v2002 = vtanh.pop %v259
  %v2003 = vtanh.pop %v260
  %v2004 = vtanh.pop %v261
  %v2005 = vtanh.pop %v262
  %v2006 = vtanh.pop %v263
  %v2007 = vtanh.pop %v264
  %v2008 = vtanh.pop %v265
  %v2009 = vtanh.pop %v266
  %v2010 = vtanh.pop %v267
  %v2011 = vtanh.pop %v268
  %v2012 = vtanh.pop %v269
  %v2013 = vtanh.pop %v270
  %v2014 = vtanh.pop %v271
  %v2015 = vtanh.pop %v272
  %v2016 = vtanh.pop %v273
  %v2017 = vtanh.pop %v274
  %v2018 = vtanh.pop %v275
  %v2019 = vtanh.pop %v276
  %v2020 = vtanh.pop %v277
  %v2021 = vtanh.pop %v278
  %v2022 = vtanh.pop %v279
  %v2023 = vtanh.pop %v280
  %v2024 = vtanh.pop %v281
  %v2025 = vtanh.pop %v282
  %v2026 = vtanh.pop %v283
  %v2027 = vtanh.pop %v284
  %v2028 = vtanh.pop %v285
  %v2029 = vtanh.pop %v286
  %v2030 = vtanh.pop %v287
  %v2031 = vtanh.pop %v288
  %v2032 = vtanh.pop %v289
  %v2033 = vtanh.pop %v290
  %v2034 = vtanh.pop %v291
  %v2035 = vtanh.pop %v292
  %v2036 = vtanh.pop %v293
  %v2037 = vtanh.pop %v294
  %v2038 = vtanh.pop %v295
  %v2039 = vtanh.pop %v296
  %v2040 = vtanh.pop %v297
  %v2041 = vtanh.pop %v298
  %v2042 = vtanh.pop %v299
  %v2043 = vtanh.pop %v300
  %v2044 = vtanh.pop %v301
  %v2045 = vtanh.pop %v302
  %v2046 = vtanh.pop %v303
  %v2047 = vtanh.pop %v304
  %v2048 = vtanh.pop %v305
  %v2049 = vtanh.pop %v306
  %v2050 = vtanh.pop %v307
  %v2051 = vtanh.pop %v308
  %v2052 = vtanh.pop %v309
  %v2053 = vtanh.pop %v310
  %v2054 = vtanh.pop %v311
  %v2055 = vtanh.pop %v312
  %v2056 = vtanh.pop %v313
  %v2057 = vtanh.pop %v314
  %v2058 = vtanh.pop %v315
  %v2059 = vtanh.pop %v316
  %v2060 = vtanh.pop %v317
  %v2061 = vtanh.pop %v318
  %v2062 = vtanh.pop %v319
  %v2063 = vtanh.pop %v320
  %v2064 = vtanh.pop %v321
  %v2065 = vtanh.pop %v322
  %v2066 = vtanh.pop %v323
  %v2067 = vtanh.pop %v324
  %v2068 = vtanh.pop %v325
  %v2069 = vtanh.pop %v326
  %v2070 = vtanh.pop %v327
  %v2071 = vtanh.pop %v328
  %v2072 = vtanh.pop %v329
  %v2073 = vtanh.pop %v330
  %v2074 = vtanh.pop %v331
  %v2075 = vtanh.pop %v332
  %v2076 = vtanh.pop %v333
  %v2077 = vtanh.pop %v334
  %v2078 = vtanh.pop %v335
  %v2079 = vtanh.pop %v336
  %v2080 = vtanh.pop %v337
  %v2081 = vtanh.pop %v338
  %v2082 = vtanh.pop %v339
  %v2083 = vtanh.pop %v340
  %v2084 = vtanh.pop %v341
  %v2085 = vtanh.pop %v342
  %v2086 = vtanh.pop %v343
  %v2087 = vtanh.pop %v344
  %v2088 = vtanh.pop %v345
  %v2089 = vtanh.pop %v346
  %v2090 = vtanh.pop %v347
  %v2091 = vtanh.pop %v348
  %v2092 = vtanh.pop %v349
  %v2093 = vtanh.pop %v350
  %v2094 = vtanh.pop %v351
  %v2095 = vtanh.pop %v352
  %v2096 = vtanh.pop %v353
  %v2097 = vtanh.pop %v354
  %v2098 = vtanh.pop %v355
  %v2099 = vtanh.pop %v356
  %v2100 = vtanh.pop %v357
  %v2101 = vtanh.pop %v358
  %v2102 = vtanh.pop %v359
  %v2103 = vtanh.pop %v360
  %v2104 = vtanh.pop %v361
  %v2105 = vtanh.pop %v362
  %v2106 = vtanh.pop %v363
  %v2107 = vtanh.pop %v364
  %v2108 = vtanh.pop %v365
  %v2109 = vtanh.pop %v366
  %v2110 = vtanh.pop %v367
  %v2111 = vtanh.pop %v368
  %v2112 = vtanh.pop %v369
  %v2113 = vtanh.pop %v370
  %v2114 = vtanh.pop %v371
  %v2115 = vtanh.pop %v372
  %v2116 = vtanh.pop %v373
  %v2117 = vtanh.pop %v374
  %v2118 = vtanh.pop %v375
  %v2119 = vtanh.pop %v376
  %v2120 = vtanh.pop %v377
  %v2121 = vtanh.pop %v378
  %v2122 = vtanh.pop %v379
  %v2123 = vtanh.pop %v380
  %v2124 = vtanh.pop %v381
  %v2125 = vtanh.pop %v382
  %v2126 = vtanh.pop %v383
  %v2127 = vtanh.pop %v384
  %v2128 = vtanh.pop %v385
  %v2129 = vtanh.pop %v386
  %v2130 = vtanh.pop %v387
  %v2131 = vtanh.pop %v388
  %v2132 = vtanh.pop %v389
  %v2133 = vtanh.pop %v390
  %v2134 = vtanh.pop %v391
  %v2135 = vtanh.pop %v392
  %v2136 = vtanh.pop %v393
  %v2137 = vtanh.pop %v394
  %v2138 = vtanh.pop %v395
  %v2139 = vtanh.pop %v396
  %v2140 = vtanh.pop %v397
  %v2141 = vtanh.pop %v398
  %v2142 = vtanh.pop %v399
  %v2143 = vtanh.pop %v400
  %v2144 = vtanh.pop %v401
  %v2145 = vtanh.pop %v402
  %v2146 = vtanh.pop %v403
  %v2147 = vtanh.pop %v404
  %v2148 = vtanh.pop %v405
  %v2149 = vtanh.pop %v406
  %v2150 = vtanh.pop %v407
  %v2151 = vtanh.pop %v408
  %v2152 = vtanh.pop %v409
  %v2153 = vtanh.pop %v410
  %v2154 = vtanh.pop %v411
  %v2155 = vtanh.pop %v412
  %v2156 = vtanh.pop %v413
  %v2157 = vtanh.pop %v414
  %v2158 = vtanh.pop %v415
  %v2159 = vtanh.pop %v416
  %v2160 = vtanh.pop %v417
  %v2161 = vtanh.pop %v418
  %v2162 = vtanh.pop %v419
  %v2163 = vtanh.pop %v420
  %v2164 = vtanh.pop %v421
  %v2165 = vtanh.pop %v422
  %v2166 = vtanh.pop %v423
  %v2167 = vtanh.pop %v424
  %v2168 = vtanh.pop %v425
  %v2169 = vtanh.pop %v426
  %v2170 = vtanh.pop %v427
  %v2171 = vtanh.pop %v428
  %v2172 = vtanh.pop %v429
  %v2173 = vtanh.pop %v430
  %v2174 = vtanh.pop %v431
  %v2175 = vtanh.pop %v432
  %v2176 = vtanh.pop %v433
  %v2177 = vtanh.pop %v434
  %v2178 = vtanh.pop %v435
  %v2179 = vtanh.pop %v436
  %v2180 = vtanh.pop %v437
  %v2181 = vtanh.pop %v438
  %v2182 = vtanh.pop %v439
  %v2183 = vtanh.pop %v440
  %v2184 = vtanh.pop %v441
  %v2185 = vtanh.pop %v442
  %v2186 = vtanh.pop %v443
  %v2187 = vtanh.pop %v444
  %v2188 = vtanh.pop %v445
  %v2189 = vtanh.pop %v446
  %v2190 = vtanh.pop %v447
  %v2191 = vtanh.pop %v448
  %v2192 = vtanh.pop %v449
  %v2193 = vtanh.pop %v450
  %v2194 = vtanh.pop %v451
  %v2195 = vtanh.pop %v452
  %v2196 = vtanh.pop %v453
  %v2197 = vtanh.pop %v454
  %v2198 = vtanh.pop %v455
  %v2199 = vtanh.pop %v456
  %v2200 = vtanh.pop %v457
  %v2201 = vtanh.pop %v458
  %v2202 = vtanh.pop %v459
  %v2203 = vtanh.pop %v460
  %v2204 = vtanh.pop %v461
  %v2205 = vtanh.pop %v462
  %v2206 = vtanh.pop %v463
  %v2207 = vtanh.pop %v464
  %v2208 = vtanh.pop %v465
  %v2209 = vtanh.pop %v466
  %v2210 = vtanh.pop %v467
  %v2211 = vtanh.pop %v468
  %v2212 = vtanh.pop %v469
  %v2213 = vtanh.pop %v470
  %v2214 = vtanh.pop %v471
  %v2215 = vtanh.pop %v472
  %v2216 = vtanh.pop %v473
  %v2217 = vtanh.pop %v474
  %v2218 = vtanh.pop %v475
  %v2219 = vtanh.pop %v476
  %v2220 = vtanh.pop %v477
  %v2221 = vtanh.pop %v478
  %v2222 = vtanh.pop %v479
  %v2223 = vtanh.pop %v480
  %v2224 = vtanh.pop %v481
  %v2225 = vtanh.pop %v482
  %v2226 = vtanh.pop %v483
  %v2227 = vtanh.pop %v484
  %v2228 = vtanh.pop %v485
  %v2229 = vtanh.pop %v486
  %v2230 = vtanh.pop %v487
  %v2231 = vtanh.pop %v488
  %v2232 = vtanh.pop %v489
  %v2233 = vtanh.pop %v490
  %v2234 = vtanh.pop %v491
  %v2235 = vtanh.pop %v492
  %v2236 = vtanh.pop %v493
  %v2237 = vtanh.pop %v494
  %v2238 = vtanh.pop %v495
  %v2239 = vtanh.pop %v496
  %v2240 = vtanh.pop %v497
  %v2241 = vtanh.pop %v498
  %v2242 = vtanh.pop %v499
  %v2243 = vtanh.pop %v500
  %v2244 = vtanh.pop %v501
  %v2245 = vtanh.pop %v502
  %v2246 = vtanh.pop %v503
  %v2247 = vtanh.pop %v504
  %v2248 = vtanh.pop %v505
  %v2249 = vtanh.pop %v506
  %v2250 = vtanh.pop %v507
  %v2251 = vtanh.pop %v508
  %v2252 = vtanh.pop %v509
  %v2253 = vtanh.pop %v510
  %v2254 = vtanh.pop %v511
  %v2255 = vtanh.pop %v512
  %v2256 = vtanh.pop %v513
  %v2257 = vtanh.pop %v514
  %v2258 = vtanh.pop %v515
  %v2259 = vtanh.pop %v516
  %v2260 = vtanh.pop %v517
  %v2261 = vtanh.pop %v518
  %v2262 = vtanh.pop %v519
  %v2263 = vtanh.pop %v520
  %v2264 = vtanh.pop %v521
  %v2265 = vtanh.pop %v522
  %v2266 = vtanh.pop %v523
  %v2267 = vtanh.pop %v524
  %v2268 = vtanh.pop %v525
  %v2269 = vtanh.pop %v526
  %v2270 = vtanh.pop %v527
  %v2271 = vtanh.pop %v528
  %v2272 = vtanh.pop %v529
  %v2273 = vtanh.pop %v530
  %v2274 = vtanh.pop %v531
  %v2275 = vtanh.pop %v532
  %v2276 = vtanh.pop %v533
  %v2277 = vtanh.pop %v534
  %v2278 = vtanh.pop %v535
  %v2279 = vtanh.pop %v536
  %v2280 = vtanh.pop %v537
  %v2281 = vtanh.pop %v538
  %v2282 = vtanh.pop %v539
  %v2283 = vtanh.pop %v540
  %v2284 = vtanh.pop %v541
  %v2285 = vtanh.pop %v542
  %v2286 = vtanh.pop %v543
  %v2287 = vtanh.pop %v544
  %v2288 = vtanh.pop %v545
  %v2289 = vtanh.pop %v546
  %v2290 = vtanh.pop %v547
  %v2291 = vtanh.pop %v548
  %v2292 = vtanh.pop %v549
  %v2293 = vtanh.pop %v550
  %v2294 = vtanh.pop %v551
  %v2295 = vtanh.pop %v552
  %v2296 = vtanh.pop %v553
  %v2297 = vtanh.pop %v554
  %v2298 = vtanh.pop %v555
  %v2299 = vtanh.pop %v556
  %v2300 = vtanh.pop %v557
  %v2301 = vtanh.pop %v558
  %v2302 = vtanh.pop %v559
  %v2303 = vtanh.pop %v560
  %v2304 = vtanh.pop %v561
  %v2305 = vtanh.pop %v562
  %v2306 = vtanh.pop %v563
  %v2307 = vtanh.pop %v564
  %v2308 = vtanh.pop %v565
  %v2309 = vtanh.pop %v566
  %v2310 = vtanh.pop %v567
  %v2311 = vtanh.pop %v568
  %v2312 = vtanh.pop %v569
  %v2313 = vtanh.pop %v570
  %v2314 = vtanh.pop %v571
  %v2315 = vtanh.pop %v572
  %v2316 = vtanh.pop %v573
  %v2317 = vtanh.pop %v574
  %v2318 = vtanh.pop %v575
  %v2319 = vtanh.pop %v576
  %v2320 = vtanh.pop %v577
  %v2321 = vtanh.pop %v578
  %v2322 = vtanh.pop %v579
  %v2323 = vtanh.pop %v580
  %v2324 = vtanh.pop %v581
  %v2325 = vtanh.pop %v582
  %v2326 = vtanh.pop %v583
  %v2327 = vstv %s1750
  %v2328 = vmul.f32 %v1751, %v2327
  %v2329 = vmul.f32 %v1752, %v2327
  %v2330 = vmul.f32 %v1753, %v2327
  %v2331 = vmul.f32 %v1754, %v2327
  %v2332 = vmul.f32 %v1755, %v2327
  %v2333 = vmul.f32 %v1756, %v2327
  %v2334 = vmul.f32 %v1757, %v2327
  %v2335 = vmul.f32 %v1758, %v2327
  %v2336 = vmul.f32 %v1759, %v2327
  %v2337 = vmul.f32 %v1760, %v2327
  %v2338 = vmul.f32 %v1761, %v2327
  %v2339 = vmul.f32 %v1762, %v2327
  %v2340 = vmul.f32 %v1763, %v2327
  %v2341 = vmul.f32 %v1764, %v2327
  %v2342 = vmul.f32 %v1765, %v2327
  %v2343 = vmul.f32 %v1766, %v2327
  %v2344 = vmul.f32 %v1767, %v2327
  %v2345 = vmul.f32 %v1768, %v2327
  %v2346 = vmul.f32 %v1769, %v2327
  %v2347 = vmul.f32 %v1770, %v2327
  %v2348 = vmul.f32 %v1771, %v2327
  %v2349 = vmul.f32 %v1772, %v2327
  %v2350 = vmul.f32 %v1773, %v2327
  %v2351 = vmul.f32 %v1774, %v2327
  %v2352 = vmul.f32 %v1775, %v2327
  %v2353 = vmul.f32 %v1776, %v2327
  %v2354 = vmul.f32 %v1777, %v2327
  %v2355 = vmul.f32 %v1778, %v2327
  %v2356 = vmul.f32 %v1779, %v2327
  %v2357 = vmul.f32 %v1780, %v2327
  %v2358 = vmul.f32 %v1781, %v2327
  %v2359 = vmul.f32 %v1782, %v2327
  %v2360 = vmul.f32 %v1783, %v2327
  %v2361 = vmul.f32 %v1784, %v2327
  %v2362 = vmul.f32 %v1785, %v2327
  %v2363 = vmul.f32 %v1786, %v2327
  %v2364 = vmul.f32 %v1787, %v2327
  %v2365 = vmul.f32 %v1788, %v2327
  %v2366 = vmul.f32 %v1789, %v2327
  %v2367 = vmul.f32 %v1790, %v2327
  %v2368 = vmul.f32 %v1791, %v2327
  %v2369 = vmul.f32 %v1792, %v2327
  %v2370 = vmul.f32 %v1793, %v2327
  %v2371 = vmul.f32 %v1794, %v2327
  %v2372 = vmul.f32 %v1795, %v2327
  %v2373 = vmul.f32 %v1796, %v2327
  %v2374 = vmul.f32 %v1797, %v2327
  %v2375 = vmul.f32 %v1798, %v2327
  %v2376 = vmul.f32 %v1799, %v2327
  %v2377 = vmul.f32 %v1800, %v2327
  %v2378 = vmul.f32 %v1801, %v2327
  %v2379 = vmul.f32 %v1802, %v2327
  %v2380 = vmul.f32 %v1803, %v2327
  %v2381 = vmul.f32 %v1804, %v2327
  %v2382 = vmul.f32 %v1805, %v2327
  %v2383 = vmul.f32 %v1806, %v2327
  %v2384 = vmul.f32 %v1807, %v2327
  %v2385 = vmul.f32 %v1808, %v2327
  %v2386 = vmul.f32 %v1809, %v2327
  %v2387 = vmul.f32 %v1810, %v2327
  %v2388 = vmul.f32 %v1811, %v2327
  %v2389 = vmul.f32 %v1812, %v2327
  %v2390 = vmul.f32 %v1813, %v2327
  %v2391 = vmul.f32 %v1814, %v2327
  %v2392 = vmul.f32 %v1815, %v2327
  %v2393 = vmul.f32 %v1816, %v2327
  %v2394 = vmul.f32 %v1817, %v2327
  %v2395 = vmul.f32 %v1818, %v2327
  %v2396 = vmul.f32 %v1819, %v2327
  %v2397 = vmul.f32 %v1820, %v2327
  %v2398 = vmul.f32 %v1821, %v2327
  %v2399 = vmul.f32 %v1822, %v2327
  %v2400 = vmul.f32 %v1823, %v2327
  %v2401 = vmul.f32 %v1824, %v2327
  %v2402 = vmul.f32 %v1825, %v2327
  %v2403 = vmul.f32 %v1826, %v2327
  %v2404 = vmul.f32 %v1827, %v2327
  %v2405 = vmul.f32 %v1828, %v2327
  %v2406 = vmul.f32 %v1829, %v2327
  %v2407 = vmul.f32 %v1830, %v2327
  %v2408 = vmul.f32 %v1831, %v2327
  %v2409 = vmul.f32 %v1832, %v2327
  %v2410 = vmul.f32 %v1833, %v2327
  %v2411 = vmul.f32 %v1834, %v2327
  %v2412 = vmul.f32 %v1835, %v2327
  %v2413 = vmul.f32 %v1836, %v2327
  %v2414 = vmul.f32 %v1837, %v2327
  %v2415 = vmul.f32 %v1838, %v2327
  %v2416 = vmul.f32 %v1839, %v2327
  %v2417 = vmul.f32 %v1840, %v2327
  %v2418 = vmul.f32 %v1841, %v2327
  %v2419 = vmul.f32 %v1842, %v2327
  %v2420 = vmul.f32 %v1843, %v2327
  %v2421 = vmul.f32 %v1844, %v2327
  %v2422 = vmul.f32 %v1845, %v2327
  %v2423 = vmul.f32 %v1846, %v2327
  %v2424 = vmul.f32 %v1847, %v2327
  %v2425 = vmul.f32 %v1848, %v2327
  %v2426 = vmul.f32 %v1849, %v2327
  %v2427 = vmul.f32 %v1850, %v2327
  %v2428 = vmul.f32 %v1851, %v2327
  %v2429 = vmul.f32 %v1852, %v2327
  %v2430 = vmul.f32 %v1853, %v2327
  %v2431 = vmul.f32 %v1854, %v2327
  %v2432 = vmul.f32 %v1855, %v2327
  %v2433 = vmul.f32 %v1856, %v2327
  %v2434 = vmul.f32 %v1857, %v2327
  %v2435 = vmul.f32 %v1858, %v2327
  %v2436 = vmul.f32 %v1859, %v2327
  %v2437 = vmul.f32 %v1860, %v2327
  %v2438 = vmul.f32 %v1861, %v2327
  %v2439 = vmul.f32 %v1862, %v2327
  %v2440 = vmul.f32 %v1863, %v2327
  %v2441 = vmul.f32 %v1864, %v2327
  %v2442 = vmul.f32 %v1865, %v2327
  %v2443 = vmul.f32 %v1866, %v2327
  %v2444 = vmul.f32 %v1867, %v2327
  %v2445 = vmul.f32 %v1868, %v2327
  %v2446 = vmul.f32 %v1869, %v2327
  %v2447 = vmul.f32 %v1870, %v2327
  %v2448 = vmul.f32 %v1871, %v2327
  %v2449 = vmul.f32 %v1872, %v2327
  %v2450 = vmul.f32 %v1873, %v2327
  %v2451 = vmul.f32 %v1874, %v2327
  %v2452 = vmul.f32 %v1875, %v2327
  %v2453 = vmul.f32 %v1876, %v2327
  %v2454 = vmul.f32 %v1877, %v2327
  %v2455 = vmul.f32 %v1878, %v2327
  %v2456 = vmul.f32 %v1879, %v2327
  %v2457 = vmul.f32 %v1880, %v2327
  %v2458 = vmul.f32 %v1881, %v2327
  %v2459 = vmul.f32 %v1882, %v2327
  %v2460 = vmul.f32 %v1883, %v2327
  %v2461 = vmul.f32 %v1884, %v2327
  %v2462 = vmul.f32 %v1885, %v2327
  %v2463 = vmul.f32 %v1886, %v2327
  %v2464 = vmul.f32 %v1887, %v2327
  %v2465 = vmul.f32 %v1888, %v2327
  %v2466 = vmul.f32 %v1889, %v2327
  %v2467 = vmul.f32 %v1890, %v2327
  %v2468 = vmul.f32 %v1891, %v2327
  %v2469 = vmul.f32 %v1892, %v2327
  %v2470 = vmul.f32 %v1893, %v2327
  %v2471 = vmul.f32 %v1894, %v2327
  %v2472 = vmul.f32 %v1895, %v2327
  %v2473 = vmul.f32 %v1896, %v2327
  %v2474 = vmul.f32 %v1897, %v2327
  %v2475 = vmul.f32 %v1898, %v2327
  %v2476 = vmul.f32 %v1899, %v2327
  %v2477 = vmul.f32 %v1900, %v2327
  %v2478 = vmul.f32 %v1901, %v2327
  %v2479 = vmul.f32 %v1902, %v2327
  %v2480 = vmul.f32 %v1903, %v2327
  %v2481 = vmul.f32 %v1904, %v2327
  %v2482 = vmul.f32 %v1905, %v2327
  %v2483 = vmul.f32 %v1906, %v2327
  %v2484 = vmul.f32 %v1907, %v2327
  %v2485 = vmul.f32 %v1908, %v2327
  %v2486 = vmul.f32 %v1909, %v2327
  %v2487 = vmul.f32 %v1910, %v2327
  %v2488 = vmul.f32 %v1911, %v2327
  %v2489 = vmul.f32 %v1912, %v2327
  %v2490 = vmul.f32 %v1913, %v2327
  %v2491 = vmul.f32 %v1914, %v2327
  %v2492 = vmul.f32 %v1915, %v2327
  %v2493 = vmul.f32 %v1916, %v2327
  %v2494 = vmul.f32 %v1917, %v2327
  %v2495 = vmul.f32 %v1918, %v2327
  %v2496 = vmul.f32 %v1919, %v2327
  %v2497 = vmul.f32 %v1920, %v2327
  %v2498 = vmul.f32 %v1921, %v2327
  %v2499 = vmul.f32 %v1922, %v2327
  %v2500 = vmul.f32 %v1923, %v2327
  %v2501 = vmul.f32 %v1924, %v2327
  %v2502 = vmul.f32 %v1925, %v2327
  %v2503 = vmul.f32 %v1926, %v2327
  %v2504 = vmul.f32 %v1927, %v2327
  %v2505 = vmul.f32 %v1928, %v2327
  %v2506 = vmul.f32 %v1929, %v2327
  %v2507 = vmul.f32 %v1930, %v2327
  %v2508 = vmul.f32 %v1931, %v2327
  %v2509 = vmul.f32 %v1932, %v2327
  %v2510 = vmul.f32 %v1933, %v2327
  %v2511 = vmul.f32 %v1934, %v2327
  %v2512 = vmul.f32 %v1935, %v2327
  %v2513 = vmul.f32 %v1936, %v2327
  %v2514 = vmul.f32 %v1937, %v2327
  %v2515 = vmul.f32 %v1938, %v2327
  %v2516 = vmul.f32 %v1939, %v2327
  %v2517 = vmul.f32 %v1940, %v2327
  %v2518 = vmul.f32 %v1941, %v2327
  %v2519 = vmul.f32 %v1942, %v2327
  %v2520 = vmul.f32 %v1943, %v2327
  %v2521 = vmul.f32 %v1944, %v2327
  %v2522 = vmul.f32 %v1945, %v2327
  %v2523 = vmul.f32 %v1946, %v2327
  %v2524 = vmul.f32 %v1947, %v2327
  %v2525 = vmul.f32 %v1948, %v2327
  %v2526 = vmul.f32 %v1949, %v2327
  %v2527 = vmul.f32 %v1950, %v2327
  %v2528 = vmul.f32 %v1951, %v2327
  %v2529 = vmul.f32 %v1952, %v2327
  %v2530 = vmul.f32 %v1953, %v2327
  %v2531 = vmul.f32 %v1954, %v2327
  %v2532 = vmul.f32 %v1955, %v2327
  %v2533 = vmul.f32 %v1956, %v2327
  %v2534 = vmul.f32 %v1957, %v2327
  %v2535 = vmul.f32 %v1958, %v2327
  %v2536 = vmul.f32 %v1959, %v2327
  %v2537 = vmul.f32 %v1960, %v2327
  %v2538 = vmul.f32 %v1961, %v2327
  %v2539 = vmul.f32 %v1962, %v2327
  %v2540 = vmul.f32 %v1963, %v2327
  %v2541 = vmul.f32 %v1964, %v2327
  %v2542 = vmul.f32 %v1965, %v2327
  %v2543 = vmul.f32 %v1966, %v2327
  %v2544 = vmul.f32 %v1967, %v2327
  %v2545 = vmul.f32 %v1968, %v2327
  %v2546 = vmul.f32 %v1969, %v2327
  %v2547 = vmul.f32 %v1970, %v2327
  %v2548 = vmul.f32 %v1971, %v2327
  %v2549 = vmul.f32 %v1972, %v2327
  %v2550 = vmul.f32 %v1973, %v2327
  %v2551 = vmul.f32 %v1974, %v2327
  %v2552 = vmul.f32 %v1975, %v2327
  %v2553 = vmul.f32 %v1976, %v2327
  %v2554 = vmul.f32 %v1977, %v2327
  %v2555 = vmul.f32 %v1978, %v2327
  %v2556 = vmul.f32 %v1979, %v2327
  %v2557 = vmul.f32 %v1980, %v2327
  %v2558 = vmul.f32 %v1981, %v2327
  %v2559 = vmul.f32 %v1982, %v2327
  %v2560 = vmul.f32 %v1983, %v2327
  %v2561 = vmul.f32 %v1984, %v2327
  %v2562 = vmul.f32 %v1985, %v2327
  %v2563 = vmul.f32 %v1986, %v2327
  %v2564 = vmul.f32 %v1987, %v2327
  %v2565 = vmul.f32 %v1988, %v2327
  %v2566 = vmul.f32 %v1989, %v2327
  %v2567 = vmul.f32 %v1990, %v2327
  %v2568 = vmul.f32 %v1991, %v2327
  %v2569 = vmul.f32 %v1992, %v2327
  %v2570 = vmul.f32 %v1993, %v2327
  %v2571 = vmul.f32 %v1994, %v2327
  %v2572 = vmul.f32 %v1995, %v2327
  %v2573 = vmul.f32 %v1996, %v2327
  %v2574 = vmul.f32 %v1997, %v2327
  %v2575 = vmul.f32 %v1998, %v2327
  %v2576 = vmul.f32 %v1999, %v2327
  %v2577 = vmul.f32 %v2000, %v2327
  %v2578 = vmul.f32 %v2001, %v2327
  %v2579 = vmul.f32 %v2002, %v2327
  %v2580 = vmul.f32 %v2003, %v2327
  %v2581 = vmul.f32 %v2004, %v2327
  %v2582 = vmul.f32 %v2005, %v2327
  %v2583 = vmul.f32 %v2006, %v2327
  %v2584 = vmul.f32 %v2007, %v2327
  %v2585 = vmul.f32 %v2008, %v2327
  %v2586 = vmul.f32 %v2009, %v2327
  %v2587 = vmul.f32 %v2010, %v2327
  %v2588 = vmul.f32 %v2011, %v2327
  %v2589 = vmul.f32 %v2012, %v2327
  %v2590 = vmul.f32 %v2013, %v2327
  %v2591 = vmul.f32 %v2014, %v2327
  %v2592 = vmul.f32 %v2015, %v2327
  %v2593 = vmul.f32 %v2016, %v2327
  %v2594 = vmul.f32 %v2017, %v2327
  %v2595 = vmul.f32 %v2018, %v2327
  %v2596 = vmul.f32 %v2019, %v2327
  %v2597 = vmul.f32 %v2020, %v2327
  %v2598 = vmul.f32 %v2021, %v2327
  %v2599 = vmul.f32 %v2022, %v2327
  %v2600 = vmul.f32 %v2023, %v2327
  %v2601 = vmul.f32 %v2024, %v2327
  %v2602 = vmul.f32 %v2025, %v2327
  %v2603 = vmul.f32 %v2026, %v2327
  %v2604 = vmul.f32 %v2027, %v2327
  %v2605 = vmul.f32 %v2028, %v2327
  %v2606 = vmul.f32 %v2029, %v2327
  %v2607 = vmul.f32 %v2030, %v2327
  %v2608 = vmul.f32 %v2031, %v2327
  %v2609 = vmul.f32 %v2032, %v2327
  %v2610 = vmul.f32 %v2033, %v2327
  %v2611 = vmul.f32 %v2034, %v2327
  %v2612 = vmul.f32 %v2035, %v2327
  %v2613 = vmul.f32 %v2036, %v2327
  %v2614 = vmul.f32 %v2037, %v2327
  %v2615 = vmul.f32 %v2038, %v2327
  %v2616 = vmul.f32 %v2039, %v2327
  %v2617 = vmul.f32 %v2040, %v2327
  %v2618 = vmul.f32 %v2041, %v2327
  %v2619 = vmul.f32 %v2042, %v2327
  %v2620 = vmul.f32 %v2043, %v2327
  %v2621 = vmul.f32 %v2044, %v2327
  %v2622 = vmul.f32 %v2045, %v2327
  %v2623 = vmul.f32 %v2046, %v2327
  %v2624 = vmul.f32 %v2047, %v2327
  %v2625 = vmul.f32 %v2048, %v2327
  %v2626 = vmul.f32 %v2049, %v2327
  %v2627 = vmul.f32 %v2050, %v2327
  %v2628 = vmul.f32 %v2051, %v2327
  %v2629 = vmul.f32 %v2052, %v2327
  %v2630 = vmul.f32 %v2053, %v2327
  %v2631 = vmul.f32 %v2054, %v2327
  %v2632 = vmul.f32 %v2055, %v2327
  %v2633 = vmul.f32 %v2056, %v2327
  %v2634 = vmul.f32 %v2057, %v2327
  %v2635 = vmul.f32 %v2058, %v2327
  %v2636 = vmul.f32 %v2059, %v2327
  %v2637 = vmul.f32 %v2060, %v2327
  %v2638 = vmul.f32 %v2061, %v2327
  %v2639 = vmul.f32 %v2062, %v2327
  %v2640 = vmul.f32 %v2063, %v2327
  %v2641 = vmul.f32 %v2064, %v2327
  %v2642 = vmul.f32 %v2065, %v2327
  %v2643 = vmul.f32 %v2066, %v2327
  %v2644 = vmul.f32 %v2067, %v2327
  %v2645 = vmul.f32 %v2068, %v2327
  %v2646 = vmul.f32 %v2069, %v2327
  %v2647 = vmul.f32 %v2070, %v2327
  %v2648 = vmul.f32 %v2071, %v2327
  %v2649 = vmul.f32 %v2072, %v2327
  %v2650 = vmul.f32 %v2073, %v2327
  %v2651 = vmul.f32 %v2074, %v2327
  %v2652 = vmul.f32 %v2075, %v2327
  %v2653 = vmul.f32 %v2076, %v2327
  %v2654 = vmul.f32 %v2077, %v2327
  %v2655 = vmul.f32 %v2078, %v2327
  %v2656 = vmul.f32 %v2079, %v2327
  %v2657 = vmul.f32 %v2080, %v2327
  %v2658 = vmul.f32 %v2081, %v2327
  %v2659 = vmul.f32 %v2082, %v2327
  %v2660 = vmul.f32 %v2083, %v2327
  %v2661 = vmul.f32 %v2084, %v2327
  %v2662 = vmul.f32 %v2085, %v2327
  %v2663 = vmul.f32 %v2086, %v2327
  %v2664 = vmul.f32 %v2087, %v2327
  %v2665 = vmul.f32 %v2088, %v2327
  %v2666 = vmul.f32 %v2089, %v2327
  %v2667 = vmul.f32 %v2090, %v2327
  %v2668 = vmul.f32 %v2091, %v2327
  %v2669 = vmul.f32 %v2092, %v2327
  %v2670 = vmul.f32 %v2093, %v2327
  %v2671 = vmul.f32 %v2094, %v2327
  %v2672 = vmul.f32 %v2095, %v2327
  %v2673 = vmul.f32 %v2096, %v2327
  %v2674 = vmul.f32 %v2097, %v2327
  %v2675 = vmul.f32 %v2098, %v2327
  %v2676 = vmul.f32 %v2099, %v2327
  %v2677 = vmul.f32 %v2100, %v2327
  %v2678 = vmul.f32 %v2101, %v2327
  %v2679 = vmul.f32 %v2102, %v2327
  %v2680 = vmul.f32 %v2103, %v2327
  %v2681 = vmul.f32 %v2104, %v2327
  %v2682 = vmul.f32 %v2105, %v2327
  %v2683 = vmul.f32 %v2106, %v2327
  %v2684 = vmul.f32 %v2107, %v2327
  %v2685 = vmul.f32 %v2108, %v2327
  %v2686 = vmul.f32 %v2109, %v2327
  %v2687 = vmul.f32 %v2110, %v2327
  %v2688 = vmul.f32 %v2111, %v2327
  %v2689 = vmul.f32 %v2112, %v2327
  %v2690 = vmul.f32 %v2113, %v2327
  %v2691 = vmul.f32 %v2114, %v2327
  %v2692 = vmul.f32 %v2115, %v2327
  %v2693 = vmul.f32 %v2116, %v2327
  %v2694 = vmul.f32 %v2117, %v2327
  %v2695 = vmul.f32 %v2118, %v2327
  %v2696 = vmul.f32 %v2119, %v2327
  %v2697 = vmul.f32 %v2120, %v2327
  %v2698 = vmul.f32 %v2121, %v2327
  %v2699 = vmul.f32 %v2122, %v2327
  %v2700 = vmul.f32 %v2123, %v2327
  %v2701 = vmul.f32 %v2124, %v2327
  %v2702 = vmul.f32 %v2125, %v2327
  %v2703 = vmul.f32 %v2126, %v2327
  %v2704 = vmul.f32 %v2127, %v2327
  %v2705 = vmul.f32 %v2128, %v2327
  %v2706 = vmul.f32 %v2129, %v2327
  %v2707 = vmul.f32 %v2130, %v2327
  %v2708 = vmul.f32 %v2131, %v2327
  %v2709 = vmul.f32 %v2132, %v2327
  %v2710 = vmul.f32 %v2133, %v2327
  %v2711 = vmul.f32 %v2134, %v2327
  %v2712 = vmul.f32 %v2135, %v2327
  %v2713 = vmul.f32 %v2136, %v2327
  %v2714 = vmul.f32 %v2137, %v2327
  %v2715 = vmul.f32 %v2138, %v2327
  %v2716 = vmul.f32 %v2139, %v2327
  %v2717 = vmul.f32 %v2140, %v2327
  %v2718 = vmul.f32 %v2141, %v2327
  %v2719 = vmul.f32 %v2142, %v2327
  %v2720 = vmul.f32 %v2143, %v2327
  %v2721 = vmul.f32 %v2144, %v2327
  %v2722 = vmul.f32 %v2145, %v2327
  %v2723 = vmul.f32 %v2146, %v2327
  %v2724 = vmul.f32 %v2147, %v2327
  %v2725 = vmul.f32 %v2148, %v2327
  %v2726 = vmul.f32 %v2149, %v2327
  %v2727 = vmul.f32 %v2150, %v2327
  %v2728 = vmul.f32 %v2151, %v2327
  %v2729 = vmul.f32 %v2152, %v2327
  %v2730 = vmul.f32 %v2153, %v2327
  %v2731 = vmul.f32 %v2154, %v2327
  %v2732 = vmul.f32 %v2155, %v2327
  %v2733 = vmul.f32 %v2156, %v2327
  %v2734 = vmul.f32 %v2157, %v2327
  %v2735 = vmul.f32 %v2158, %v2327
  %v2736 = vmul.f32 %v2159, %v2327
  %v2737 = vmul.f32 %v2160, %v2327
  %v2738 = vmul.f32 %v2161, %v2327
  %v2739 = vmul.f32 %v2162, %v2327
  %v2740 = vmul.f32 %v2163, %v2327
  %v2741 = vmul.f32 %v2164, %v2327
  %v2742 = vmul.f32 %v2165, %v2327
  %v2743 = vmul.f32 %v2166, %v2327
  %v2744 = vmul.f32 %v2167, %v2327
  %v2745 = vmul.f32 %v2168, %v2327
  %v2746 = vmul.f32 %v2169, %v2327
  %v2747 = vmul.f32 %v2170, %v2327
  %v2748 = vmul.f32 %v2171, %v2327
  %v2749 = vmul.f32 %v2172, %v2327
  %v2750 = vmul.f32 %v2173, %v2327
  %v2751 = vmul.f32 %v2174, %v2327
  %v2752 = vmul.f32 %v2175, %v2327
  %v2753 = vmul.f32 %v2176, %v2327
  %v2754 = vmul.f32 %v2177, %v2327
  %v2755 = vmul.f32 %v2178, %v2327
  %v2756 = vmul.f32 %v2179, %v2327
  %v2757 = vmul.f32 %v2180, %v2327
  %v2758 = vmul.f32 %v2181, %v2327
  %v2759 = vmul.f32 %v2182, %v2327
  %v2760 = vmul.f32 %v2183, %v2327
  %v2761 = vmul.f32 %v2184, %v2327
  %v2762 = vmul.f32 %v2185, %v2327
  %v2763 = vmul.f32 %v2186, %v2327
  %v2764 = vmul.f32 %v2187, %v2327
  %v2765 = vmul.f32 %v2188, %v2327
  %v2766 = vmul.f32 %v2189, %v2327
  %v2767 = vmul.f32 %v2190, %v2327
  %v2768 = vmul.f32 %v2191, %v2327
  %v2769 = vmul.f32 %v2192, %v2327
  %v2770 = vmul.f32 %v2193, %v2327
  %v2771 = vmul.f32 %v2194, %v2327
  %v2772 = vmul.f32 %v2195, %v2327
  %v2773 = vmul.f32 %v2196, %v2327
  %v2774 = vmul.f32 %v2197, %v2327
  %v2775 = vmul.f32 %v2198, %v2327
  %v2776 = vmul.f32 %v2199, %v2327
  %v2777 = vmul.f32 %v2200, %v2327
  %v2778 = vmul.f32 %v2201, %v2327
  %v2779 = vmul.f32 %v2202, %v2327
  %v2780 = vmul.f32 %v2203, %v2327
  %v2781 = vmul.f32 %v2204, %v2327
  %v2782 = vmul.f32 %v2205, %v2327
  %v2783 = vmul.f32 %v2206, %v2327
  %v2784 = vmul.f32 %v2207, %v2327
  %v2785 = vmul.f32 %v2208, %v2327
  %v2786 = vmul.f32 %v2209, %v2327
  %v2787 = vmul.f32 %v2210, %v2327
  %v2788 = vmul.f32 %v2211, %v2327
  %v2789 = vmul.f32 %v2212, %v2327
  %v2790 = vmul.f32 %v2213, %v2327
  %v2791 = vmul.f32 %v2214, %v2327
  %v2792 = vmul.f32 %v2215, %v2327
  %v2793 = vmul.f32 %v2216, %v2327
  %v2794 = vmul.f32 %v2217, %v2327
  %v2795 = vmul.f32 %v2218, %v2327
  %v2796 = vmul.f32 %v2219, %v2327
  %v2797 = vmul.f32 %v2220, %v2327
  %v2798 = vmul.f32 %v2221, %v2327
  %v2799 = vmul.f32 %v2222, %v2327
  %v2800 = vmul.f32 %v2223, %v2327
  %v2801 = vmul.f32 %v2224, %v2327
  %v2802 = vmul.f32 %v2225, %v2327
  %v2803 = vmul.f32 %v2226, %v2327
  %v2804 = vmul.f32 %v2227, %v2327
  %v2805 = vmul.f32 %v2228, %v2327
  %v2806 = vmul.f32 %v2229, %v2327
  %v2807 = vmul.f32 %v2230, %v2327
  %v2808 = vmul.f32 %v2231, %v2327
  %v2809 = vmul.f32 %v2232, %v2327
  %v2810 = vmul.f32 %v2233, %v2327
  %v2811 = vmul.f32 %v2234, %v2327
  %v2812 = vmul.f32 %v2235, %v2327
  %v2813 = vmul.f32 %v2236, %v2327
  %v2814 = vmul.f32 %v2237, %v2327
  %v2815 = vmul.f32 %v2238, %v2327
  %v2816 = vmul.f32 %v2239, %v2327
  %v2817 = vmul.f32 %v2240, %v2327
  %v2818 = vmul.f32 %v2241, %v2327
  %v2819 = vmul.f32 %v2242, %v2327
  %v2820 = vmul.f32 %v2243, %v2327
  %v2821 = vmul.f32 %v2244, %v2327
  %v2822 = vmul.f32 %v2245, %v2327
  %v2823 = vmul.f32 %v2246, %v2327
  %v2824 = vmul.f32 %v2247, %v2327
  %v2825 = vmul.f32 %v2248, %v2327
  %v2826 = vmul.f32 %v2249, %v2327
  %v2827 = vmul.f32 %v2250, %v2327
  %v2828 = vmul.f32 %v2251, %v2327
  %v2829 = vmul.f32 %v2252, %v2327
  %v2830 = vmul.f32 %v2253, %v2327
  %v2831 = vmul.f32 %v2254, %v2327
  %v2832 = vmul.f32 %v2255, %v2327
  %v2833 = vmul.f32 %v2256, %v2327
  %v2834 = vmul.f32 %v2257, %v2327
  %v2835 = vmul.f32 %v2258, %v2327
  %v2836 = vmul.f32 %v2259, %v2327
  %v2837 = vmul.f32 %v2260, %v2327
  %v2838 = vmul.f32 %v2261, %v2327
  %v2839 = vmul.f32 %v2262, %v2327
  %v2840 = vmul.f32 %v2263, %v2327
  %v2841 = vmul.f32 %v2264, %v2327
  %v2842 = vmul.f32 %v2265, %v2327
  %v2843 = vmul.f32 %v2266, %v2327
  %v2844 = vmul.f32 %v2267, %v2327
  %v2845 = vmul.f32 %v2268, %v2327
  %v2846 = vmul.f32 %v2269, %v2327
  %v2847 = vmul.f32 %v2270, %v2327
  %v2848 = vmul.f32 %v2271, %v2327
  %v2849 = vmul.f32 %v2272, %v2327
  %v2850 = vmul.f32 %v2273, %v2327
  %v2851 = vmul.f32 %v2274, %v2327
  %v2852 = vmul.f32 %v2275, %v2327
  %v2853 = vmul.f32 %v2276, %v2327
  %v2854 = vmul.f32 %v2277, %v2327
  %v2855 = vmul.f32 %v2278, %v2327
  %v2856 = vmul.f32 %v2279, %v2327
  %v2857 = vmul.f32 %v2280, %v2327
  %v2858 = vmul.f32 %v2281, %v2327
  %v2859 = vmul.f32 %v2282, %v2327
  %v2860 = vmul.f32 %v2283, %v2327
  %v2861 = vmul.f32 %v2284, %v2327
  %v2862 = vmul.f32 %v2285, %v2327
  %v2863 = vmul.f32 %v2286, %v2327
  %v2864 = vmul.f32 %v2287, %v2327
  %v2865 = vmul.f32 %v2288, %v2327
  %v2866 = vmul.f32 %v2289, %v2327
  %v2867 = vmul.f32 %v2290, %v2327
  %v2868 = vmul.f32 %v2291, %v2327
  %v2869 = vmul.f32 %v2292, %v2327
  %v2870 = vmul.f32 %v2293, %v2327
  %v2871 = vmul.f32 %v2294, %v2327
  %v2872 = vmul.f32 %v2295, %v2327
  %v2873 = vmul.f32 %v2296, %v2327
  %v2874 = vmul.f32 %v2297, %v2327
  %v2875 = vmul.f32 %v2298, %v2327
  %v2876 = vmul.f32 %v2299, %v2327
  %v2877 = vmul.f32 %v2300, %v2327
  %v2878 = vmul.f32 %v2301, %v2327
  %v2879 = vmul.f32 %v2302, %v2327
  %v2880 = vmul.f32 %v2303, %v2327
  %v2881 = vmul.f32 %v2304, %v2327
  %v2882 = vmul.f32 %v2305, %v2327
  %v2883 = vmul.f32 %v2306, %v2327
  %v2884 = vmul.f32 %v2307, %v2327
  %v2885 = vmul.f32 %v2308, %v2327
  %v2886 = vmul.f32 %v2309, %v2327
  %v2887 = vmul.f32 %v2310, %v2327
  %v2888 = vmul.f32 %v2311, %v2327
  %v2889 = vmul.f32 %v2312, %v2327
  %v2890 = vmul.f32 %v2313, %v2327
  %v2891 = vmul.f32 %v2314, %v2327
  %v2892 = vmul.f32 %v2315, %v2327
  %v2893 = vmul.f32 %v2316, %v2327
  %v2894 = vmul.f32 %v2317, %v2327
  %v2895 = vmul.f32 %v2318, %v2327
  %v2896 = vmul.f32 %v2319, %v2327
  %v2897 = vmul.f32 %v2320, %v2327
  %v2898 = vmul.f32 %v2321, %v2327
  %v2899 = vmul.f32 %v2322, %v2327
  %v2900 = vmul.f32 %v2323, %v2327
  %v2901 = vmul.f32 %v2324, %v2327
  %v2902 = vmul.f32 %v2325, %v2327
  %v2903 = vmul.f32 %v2326, %v2327
  %v2904 = vadd.f32 %v2328, 0.5
  %v2905 = vadd.f32 %v2329, 0.5
  %v2906 = vadd.f32 %v2330, 0.5
  %v2907 = vadd.f32 %v2331, 0.5
  %v2908 = vadd.f32 %v2332, 0.5
  %v2909 = vadd.f32 %v2333, 0.5
  %v2910 = vadd.f32 %v2334, 0.5
  %v2911 = vadd.f32 %v2335, 0.5
  %v2912 = vadd.f32 %v2336, 0.5
  %v2913 = vadd.f32 %v2337, 0.5
  %v2914 = vadd.f32 %v2338, 0.5
  %v2915 = vadd.f32 %v2339, 0.5
  %v2916 = vadd.f32 %v2340, 0.5
  %v2917 = vadd.f32 %v2341, 0.5
  %v2918 = vadd.f32 %v2342, 0.5
  %v2919 = vadd.f32 %v2343, 0.5
  %v2920 = vadd.f32 %v2344, 0.5
  %v2921 = vadd.f32 %v2345, 0.5
  %v2922 = vadd.f32 %v2346, 0.5
  %v2923 = vadd.f32 %v2347, 0.5
  %v2924 = vadd.f32 %v2348, 0.5
  %v2925 = vadd.f32 %v2349, 0.5
  %v2926 = vadd.f32 %v2350, 0.5
  %v2927 = vadd.f32 %v2351, 0.5
  %v2928 = vadd.f32 %v2352, 0.5
  %v2929 = vadd.f32 %v2353, 0.5
  %v2930 = vadd.f32 %v2354, 0.5
  %v2931 = vadd.f32 %v2355, 0.5
  %v2932 = vadd.f32 %v2356, 0.5
  %v2933 = vadd.f32 %v2357, 0.5
  %v2934 = vadd.f32 %v2358, 0.5
  %v2935 = vadd.f32 %v2359, 0.5
  %v2936 = vadd.f32 %v2360, 0.5
  %v2937 = vadd.f32 %v2361, 0.5
  %v2938 = vadd.f32 %v2362, 0.5
  %v2939 = vadd.f32 %v2363, 0.5
  %v2940 = vadd.f32 %v2364, 0.5
  %v2941 = vadd.f32 %v2365, 0.5
  %v2942 = vadd.f32 %v2366, 0.5
  %v2943 = vadd.f32 %v2367, 0.5
  %v2944 = vadd.f32 %v2368, 0.5
  %v2945 = vadd.f32 %v2369, 0.5
  %v2946 = vadd.f32 %v2370, 0.5
  %v2947 = vadd.f32 %v2371, 0.5
  %v2948 = vadd.f32 %v2372, 0.5
  %v2949 = vadd.f32 %v2373, 0.5
  %v2950 = vadd.f32 %v2374, 0.5
  %v2951 = vadd.f32 %v2375, 0.5
  %v2952 = vadd.f32 %v2376, 0.5
  %v2953 = vadd.f32 %v2377, 0.5
  %v2954 = vadd.f32 %v2378, 0.5
  %v2955 = vadd.f32 %v2379, 0.5
  %v2956 = vadd.f32 %v2380, 0.5
  %v2957 = vadd.f32 %v2381, 0.5
  %v2958 = vadd.f32 %v2382, 0.5
  %v2959 = vadd.f32 %v2383, 0.5
  %v2960 = vadd.f32 %v2384, 0.5
  %v2961 = vadd.f32 %v2385, 0.5
  %v2962 = vadd.f32 %v2386, 0.5
  %v2963 = vadd.f32 %v2387, 0.5
  %v2964 = vadd.f32 %v2388, 0.5
  %v2965 = vadd.f32 %v2389, 0.5
  %v2966 = vadd.f32 %v2390, 0.5
  %v2967 = vadd.f32 %v2391, 0.5
  %v2968 = vadd.f32 %v2392, 0.5
  %v2969 = vadd.f32 %v2393, 0.5
  %v2970 = vadd.f32 %v2394, 0.5
  %v2971 = vadd.f32 %v2395, 0.5
  %v2972 = vadd.f32 %v2396, 0.5
  %v2973 = vadd.f32 %v2397, 0.5
  %v2974 = vadd.f32 %v2398, 0.5
  %v2975 = vadd.f32 %v2399, 0.5
  %v2976 = vadd.f32 %v2400, 0.5
  %v2977 = vadd.f32 %v2401, 0.5
  %v2978 = vadd.f32 %v2402, 0.5
  %v2979 = vadd.f32 %v2403, 0.5
  %v2980 = vadd.f32 %v2404, 0.5
  %v2981 = vadd.f32 %v2405, 0.5
  %v2982 = vadd.f32 %v2406, 0.5
  %v2983 = vadd.f32 %v2407, 0.5
  %v2984 = vadd.f32 %v2408, 0.5
  %v2985 = vadd.f32 %v2409, 0.5
  %v2986 = vadd.f32 %v2410, 0.5
  %v2987 = vadd.f32 %v2411, 0.5
  %v2988 = vadd.f32 %v2412, 0.5
  %v2989 = vadd.f32 %v2413, 0.5
  %v2990 = vadd.f32 %v2414, 0.5
  %v2991 = vadd.f32 %v2415, 0.5
  %v2992 = vadd.f32 %v2416, 0.5
  %v2993 = vadd.f32 %v2417, 0.5
  %v2994 = vadd.f32 %v2418, 0.5
  %v2995 = vadd.f32 %v2419, 0.5
  %v2996 = vadd.f32 %v2420, 0.5
  %v2997 = vadd.f32 %v2421, 0.5
  %v2998 = vadd.f32 %v2422, 0.5
  %v2999 = vadd.f32 %v2423, 0.5
  %v3000 = vadd.f32 %v2424, 0.5
  %v3001 = vadd.f32 %v2425, 0.5
  %v3002 = vadd.f32 %v2426, 0.5
  %v3003 = vadd.f32 %v2427, 0.5
  %v3004 = vadd.f32 %v2428, 0.5
  %v3005 = vadd.f32 %v2429, 0.5
  %v3006 = vadd.f32 %v2430, 0.5
  %v3007 = vadd.f32 %v2431, 0.5
  %v3008 = vadd.f32 %v2432, 0.5
  %v3009 = vadd.f32 %v2433, 0.5
  %v3010 = vadd.f32 %v2434, 0.5
  %v3011 = vadd.f32 %v2435, 0.5
  %v3012 = vadd.f32 %v2436, 0.5
  %v3013 = vadd.f32 %v2437, 0.5
  %v3014 = vadd.f32 %v2438, 0.5
  %v3015 = vadd.f32 %v2439, 0.5
  %v3016 = vadd.f32 %v2440, 0.5
  %v3017 = vadd.f32 %v2441, 0.5
  %v3018 = vadd.f32 %v2442, 0.5
  %v3019 = vadd.f32 %v2443, 0.5
  %v3020 = vadd.f32 %v2444, 0.5
  %v3021 = vadd.f32 %v2445, 0.5
  %v3022 = vadd.f32 %v2446, 0.5
  %v3023 = vadd.f32 %v2447, 0.5
  %v3024 = vadd.f32 %v2448, 0.5
  %v3025 = vadd.f32 %v2449, 0.5
  %v3026 = vadd.f32 %v2450, 0.5
  %v3027 = vadd.f32 %v2451, 0.5
  %v3028 = vadd.f32 %v2452, 0.5
  %v3029 = vadd.f32 %v2453, 0.5
  %v3030 = vadd.f32 %v2454, 0.5
  %v3031 = vadd.f32 %v2455, 0.5
  %v3032 = vadd.f32 %v2456, 0.5
  %v3033 = vadd.f32 %v2457, 0.5
  %v3034 = vadd.f32 %v2458, 0.5
  %v3035 = vadd.f32 %v2459, 0.5
  %v3036 = vadd.f32 %v2460, 0.5
  %v3037 = vadd.f32 %v2461, 0.5
  %v3038 = vadd.f32 %v2462, 0.5
  %v3039 = vadd.f32 %v2463, 0.5
  %v3040 = vadd.f32 %v2464, 0.5
  %v3041 = vadd.f32 %v2465, 0.5
  %v3042 = vadd.f32 %v2466, 0.5
  %v3043 = vadd.f32 %v2467, 0.5
  %v3044 = vadd.f32 %v2468, 0.5
  %v3045 = vadd.f32 %v2469, 0.5
  %v3046 = vadd.f32 %v2470, 0.5
  %v3047 = vadd.f32 %v2471, 0.5
  %v3048 = vadd.f32 %v2472, 0.5
  %v3049 = vadd.f32 %v2473, 0.5
  %v3050 = vadd.f32 %v2474, 0.5
  %v3051 = vadd.f32 %v2475, 0.5
  %v3052 = vadd.f32 %v2476, 0.5
  %v3053 = vadd.f32 %v2477, 0.5
  %v3054 = vadd.f32 %v2478, 0.5
  %v3055 = vadd.f32 %v2479, 0.5
  %v3056 = vadd.f32 %v2480, 0.5
  %v3057 = vadd.f32 %v2481, 0.5
  %v3058 = vadd.f32 %v2482, 0.5
  %v3059 = vadd.f32 %v2483, 0.5
  %v3060 = vadd.f32 %v2484, 0.5
  %v3061 = vadd.f32 %v2485, 0.5
  %v3062 = vadd.f32 %v2486, 0.5
  %v3063 = vadd.f32 %v2487, 0.5
  %v3064 = vadd.f32 %v2488, 0.5
  %v3065 = vadd.f32 %v2489, 0.5
  %v3066 = vadd.f32 %v2490, 0.5
  %v3067 = vadd.f32 %v2491, 0.5
  %v3068 = vadd.f32 %v2492, 0.5
  %v3069 = vadd.f32 %v2493, 0.5
  %v3070 = vadd.f32 %v2494, 0.5
  %v3071 = vadd.f32 %v2495, 0.5
  %v3072 = vadd.f32 %v2496, 0.5
  %v3073 = vadd.f32 %v2497, 0.5
  %v3074 = vadd.f32 %v2498, 0.5
  %v3075 = vadd.f32 %v2499, 0.5
  %v3076 = vadd.f32 %v2500, 0.5
  %v3077 = vadd.f32 %v2501, 0.5
  %v3078 = vadd.f32 %v2502, 0.5
  %v3079 = vadd.f32 %v2503, 0.5
  %v3080 = vadd.f32 %v2504, 0.5
  %v3081 = vadd.f32 %v2505, 0.5
  %v3082 = vadd.f32 %v2506, 0.5
  %v3083 = vadd.f32 %v2507, 0.5
  %v3084 = vadd.f32 %v2508, 0.5
  %v3085 = vadd.f32 %v2509, 0.5
  %v3086 = vadd.f32 %v2510, 0.5
  %v3087 = vadd.f32 %v2511, 0.5
  %v3088 = vadd.f32 %v2512, 0.5
  %v3089 = vadd.f32 %v2513, 0.5
  %v3090 = vadd.f32 %v2514, 0.5
  %v3091 = vadd.f32 %v2515, 0.5
  %v3092 = vadd.f32 %v2516, 0.5
  %v3093 = vadd.f32 %v2517, 0.5
  %v3094 = vadd.f32 %v2518, 0.5
  %v3095 = vadd.f32 %v2519, 0.5
  %v3096 = vadd.f32 %v2520, 0.5
  %v3097 = vadd.f32 %v2521, 0.5
  %v3098 = vadd.f32 %v2522, 0.5
  %v3099 = vadd.f32 %v2523, 0.5
  %v3100 = vadd.f32 %v2524, 0.5
  %v3101 = vadd.f32 %v2525, 0.5
  %v3102 = vadd.f32 %v2526, 0.5
  %v3103 = vadd.f32 %v2527, 0.5
  %v3104 = vadd.f32 %v2528, 0.5
  %v3105 = vadd.f32 %v2529, 0.5
  %v3106 = vadd.f32 %v2530, 0.5
  %v3107 = vadd.f32 %v2531, 0.5
  %v3108 = vadd.f32 %v2532, 0.5
  %v3109 = vadd.f32 %v2533, 0.5
  %v3110 = vadd.f32 %v2534, 0.5
  %v3111 = vadd.f32 %v2535, 0.5
  %v3112 = vadd.f32 %v2536, 0.5
  %v3113 = vadd.f32 %v2537, 0.5
  %v3114 = vadd.f32 %v2538, 0.5
  %v3115 = vadd.f32 %v2539, 0.5
  %v3116 = vadd.f32 %v2540, 0.5
  %v3117 = vadd.f32 %v2541, 0.5
  %v3118 = vadd.f32 %v2542, 0.5
  %v3119 = vadd.f32 %v2543, 0.5
  %v3120 = vadd.f32 %v2544, 0.5
  %v3121 = vadd.f32 %v2545, 0.5
  %v3122 = vadd.f32 %v2546, 0.5
  %v3123 = vadd.f32 %v2547, 0.5
  %v3124 = vadd.f32 %v2548, 0.5
  %v3125 = vadd.f32 %v2549, 0.5
  %v3126 = vadd.f32 %v2550, 0.5
  %v3127 = vadd.f32 %v2551, 0.5
  %v3128 = vadd.f32 %v2552, 0.5
  %v3129 = vadd.f32 %v2553, 0.5
  %v3130 = vadd.f32 %v2554, 0.5
  %v3131 = vadd.f32 %v2555, 0.5
  %v3132 = vadd.f32 %v2556, 0.5
  %v3133 = vadd.f32 %v2557, 0.5
  %v3134 = vadd.f32 %v2558, 0.5
  %v3135 = vadd.f32 %v2559, 0.5
  %v3136 = vadd.f32 %v2560, 0.5
  %v3137 = vadd.f32 %v2561, 0.5
  %v3138 = vadd.f32 %v2562, 0.5
  %v3139 = vadd.f32 %v2563, 0.5
  %v3140 = vadd.f32 %v2564, 0.5
  %v3141 = vadd.f32 %v2565, 0.5
  %v3142 = vadd.f32 %v2566, 0.5
  %v3143 = vadd.f32 %v2567, 0.5
  %v3144 = vadd.f32 %v2568, 0.5
  %v3145 = vadd.f32 %v2569, 0.5
  %v3146 = vadd.f32 %v2570, 0.5
  %v3147 = vadd.f32 %v2571, 0.5
  %v3148 = vadd.f32 %v2572, 0.5
  %v3149 = vadd.f32 %v2573, 0.5
  %v3150 = vadd.f32 %v2574, 0.5
  %v3151 = vadd.f32 %v2575, 0.5
  %v3152 = vadd.f32 %v2576, 0.5
  %v3153 = vadd.f32 %v2577, 0.5
  %v3154 = vadd.f32 %v2578, 0.5
  %v3155 = vadd.f32 %v2579, 0.5
  %v3156 = vadd.f32 %v2580, 0.5
  %v3157 = vadd.f32 %v2581, 0.5
  %v3158 = vadd.f32 %v2582, 0.5
  %v3159 = vadd.f32 %v2583, 0.5
  %v3160 = vadd.f32 %v2584, 0.5
  %v3161 = vadd.f32 %v2585, 0.5
  %v3162 = vadd.f32 %v2586, 0.5
  %v3163 = vadd.f32 %v2587, 0.5
  %v3164 = vadd.f32 %v2588, 0.5
  %v3165 = vadd.f32 %v2589, 0.5
  %v3166 = vadd.f32 %v2590, 0.5
  %v3167 = vadd.f32 %v2591, 0.5
  %v3168 = vadd.f32 %v2592, 0.5
  %v3169 = vadd.f32 %v2593, 0.5
  %v3170 = vadd.f32 %v2594, 0.5
  %v3171 = vadd.f32 %v2595, 0.5
  %v3172 = vadd.f32 %v2596, 0.5
  %v3173 = vadd.f32 %v2597, 0.5
  %v3174 = vadd.f32 %v2598, 0.5
  %v3175 = vadd.f32 %v2599, 0.5
  %v3176 = vadd.f32 %v2600, 0.5
  %v3177 = vadd.f32 %v2601, 0.5
  %v3178 = vadd.f32 %v2602, 0.5
  %v3179 = vadd.f32 %v2603, 0.5
  %v3180 = vadd.f32 %v2604, 0.5
  %v3181 = vadd.f32 %v2605, 0.5
  %v3182 = vadd.f32 %v2606, 0.5
  %v3183 = vadd.f32 %v2607, 0.5
  %v3184 = vadd.f32 %v2608, 0.5
  %v3185 = vadd.f32 %v2609, 0.5
  %v3186 = vadd.f32 %v2610, 0.5
  %v3187 = vadd.f32 %v2611, 0.5
  %v3188 = vadd.f32 %v2612, 0.5
  %v3189 = vadd.f32 %v2613, 0.5
  %v3190 = vadd.f32 %v2614, 0.5
  %v3191 = vadd.f32 %v2615, 0.5
  %v3192 = vadd.f32 %v2616, 0.5
  %v3193 = vadd.f32 %v2617, 0.5
  %v3194 = vadd.f32 %v2618, 0.5
  %v3195 = vadd.f32 %v2619, 0.5
  %v3196 = vadd.f32 %v2620, 0.5
  %v3197 = vadd.f32 %v2621, 0.5
  %v3198 = vadd.f32 %v2622, 0.5
  %v3199 = vadd.f32 %v2623, 0.5
  %v3200 = vadd.f32 %v2624, 0.5
  %v3201 = vadd.f32 %v2625, 0.5
  %v3202 = vadd.f32 %v2626, 0.5
  %v3203 = vadd.f32 %v2627, 0.5
  %v3204 = vadd.f32 %v2628, 0.5
  %v3205 = vadd.f32 %v2629, 0.5
  %v3206 = vadd.f32 %v2630, 0.5
  %v3207 = vadd.f32 %v2631, 0.5
  %v3208 = vadd.f32 %v2632, 0.5
  %v3209 = vadd.f32 %v2633, 0.5
  %v3210 = vadd.f32 %v2634, 0.5
  %v3211 = vadd.f32 %v2635, 0.5
  %v3212 = vadd.f32 %v2636, 0.5
  %v3213 = vadd.f32 %v2637, 0.5
  %v3214 = vadd.f32 %v2638, 0.5
  %v3215 = vadd.f32 %v2639, 0.5
  %v3216 = vadd.f32 %v2640, 0.5
  %v3217 = vadd.f32 %v2641, 0.5
  %v3218 = vadd.f32 %v2642, 0.5
  %v3219 = vadd.f32 %v2643, 0.5
  %v3220 = vadd.f32 %v2644, 0.5
  %v3221 = vadd.f32 %v2645, 0.5
  %v3222 = vadd.f32 %v2646, 0.5
  %v3223 = vadd.f32 %v2647, 0.5
  %v3224 = vadd.f32 %v2648, 0.5
  %v3225 = vadd.f32 %v2649, 0.5
  %v3226 = vadd.f32 %v2650, 0.5
  %v3227 = vadd.f32 %v2651, 0.5
  %v3228 = vadd.f32 %v2652, 0.5
  %v3229 = vadd.f32 %v2653, 0.5
  %v3230 = vadd.f32 %v2654, 0.5
  %v3231 = vadd.f32 %v2655, 0.5
  %v3232 = vadd.f32 %v2656, 0.5
  %v3233 = vadd.f32 %v2657, 0.5
  %v3234 = vadd.f32 %v2658, 0.5
  %v3235 = vadd.f32 %v2659, 0.5
  %v3236 = vadd.f32 %v2660, 0.5
  %v3237 = vadd.f32 %v2661, 0.5
  %v3238 = vadd.f32 %v2662, 0.5
  %v3239 = vadd.f32 %v2663, 0.5
  %v3240 = vadd.f32 %v2664, 0.5
  %v3241 = vadd.f32 %v2665, 0.5
  %v3242 = vadd.f32 %v2666, 0.5
  %v3243 = vadd.f32 %v2667, 0.5
  %v3244 = vadd.f32 %v2668, 0.5
  %v3245 = vadd.f32 %v2669, 0.5
  %v3246 = vadd.f32 %v2670, 0.5
  %v3247 = vadd.f32 %v2671, 0.5
  %v3248 = vadd.f32 %v2672, 0.5
  %v3249 = vadd.f32 %v2673, 0.5
  %v3250 = vadd.f32 %v2674, 0.5
  %v3251 = vadd.f32 %v2675, 0.5
  %v3252 = vadd.f32 %v2676, 0.5
  %v3253 = vadd.f32 %v2677, 0.5
  %v3254 = vadd.f32 %v2678, 0.5
  %v3255 = vadd.f32 %v2679, 0.5
  %v3256 = vadd.f32 %v2680, 0.5
  %v3257 = vadd.f32 %v2681, 0.5
  %v3258 = vadd.f32 %v2682, 0.5
  %v3259 = vadd.f32 %v2683, 0.5
  %v3260 = vadd.f32 %v2684, 0.5
  %v3261 = vadd.f32 %v2685, 0.5
  %v3262 = vadd.f32 %v2686, 0.5
  %v3263 = vadd.f32 %v2687, 0.5
  %v3264 = vadd.f32 %v2688, 0.5
  %v3265 = vadd.f32 %v2689, 0.5
  %v3266 = vadd.f32 %v2690, 0.5
  %v3267 = vadd.f32 %v2691, 0.5
  %v3268 = vadd.f32 %v2692, 0.5
  %v3269 = vadd.f32 %v2693, 0.5
  %v3270 = vadd.f32 %v2694, 0.5
  %v3271 = vadd.f32 %v2695, 0.5
  %v3272 = vadd.f32 %v2696, 0.5
  %v3273 = vadd.f32 %v2697, 0.5
  %v3274 = vadd.f32 %v2698, 0.5
  %v3275 = vadd.f32 %v2699, 0.5
  %v3276 = vadd.f32 %v2700, 0.5
  %v3277 = vadd.f32 %v2701, 0.5
  %v3278 = vadd.f32 %v2702, 0.5
  %v3279 = vadd.f32 %v2703, 0.5
  %v3280 = vadd.f32 %v2704, 0.5
  %v3281 = vadd.f32 %v2705, 0.5
  %v3282 = vadd.f32 %v2706, 0.5
  %v3283 = vadd.f32 %v2707, 0.5
  %v3284 = vadd.f32 %v2708, 0.5
  %v3285 = vadd.f32 %v2709, 0.5
  %v3286 = vadd.f32 %v2710, 0.5
  %v3287 = vadd.f32 %v2711, 0.5
  %v3288 = vadd.f32 %v2712, 0.5
  %v3289 = vadd.f32 %v2713, 0.5
  %v3290 = vadd.f32 %v2714, 0.5
  %v3291 = vadd.f32 %v2715, 0.5
  %v3292 = vadd.f32 %v2716, 0.5
  %v3293 = vadd.f32 %v2717, 0.5
  %v3294 = vadd.f32 %v2718, 0.5
  %v3295 = vadd.f32 %v2719, 0.5
  %v3296 = vadd.f32 %v2720, 0.5
  %v3297 = vadd.f32 %v2721, 0.5
  %v3298 = vadd.f32 %v2722, 0.5
  %v3299 = vadd.f32 %v2723, 0.5
  %v3300 = vadd.f32 %v2724, 0.5
  %v3301 = vadd.f32 %v2725, 0.5
  %v3302 = vadd.f32 %v2726, 0.5
  %v3303 = vadd.f32 %v2727, 0.5
  %v3304 = vadd.f32 %v2728, 0.5
  %v3305 = vadd.f32 %v2729, 0.5
  %v3306 = vadd.f32 %v2730, 0.5
  %v3307 = vadd.f32 %v2731, 0.5
  %v3308 = vadd.f32 %v2732, 0.5
  %v3309 = vadd.f32 %v2733, 0.5
  %v3310 = vadd.f32 %v2734, 0.5
  %v3311 = vadd.f32 %v2735, 0.5
  %v3312 = vadd.f32 %v2736, 0.5
  %v3313 = vadd.f32 %v2737, 0.5
  %v3314 = vadd.f32 %v2738, 0.5
  %v3315 = vadd.f32 %v2739, 0.5
  %v3316 = vadd.f32 %v2740, 0.5
  %v3317 = vadd.f32 %v2741, 0.5
  %v3318 = vadd.f32 %v2742, 0.5
  %v3319 = vadd.f32 %v2743, 0.5
  %v3320 = vadd.f32 %v2744, 0.5
  %v3321 = vadd.f32 %v2745, 0.5
  %v3322 = vadd.f32 %v2746, 0.5
  %v3323 = vadd.f32 %v2747, 0.5
  %v3324 = vadd.f32 %v2748, 0.5
  %v3325 = vadd.f32 %v2749, 0.5
  %v3326 = vadd.f32 %v2750, 0.5
  %v3327 = vadd.f32 %v2751, 0.5
  %v3328 = vadd.f32 %v2752, 0.5
  %v3329 = vadd.f32 %v2753, 0.5
  %v3330 = vadd.f32 %v2754, 0.5
  %v3331 = vadd.f32 %v2755, 0.5
  %v3332 = vadd.f32 %v2756, 0.5
  %v3333 = vadd.f32 %v2757, 0.5
  %v3334 = vadd.f32 %v2758, 0.5
  %v3335 = vadd.f32 %v2759, 0.5
  %v3336 = vadd.f32 %v2760, 0.5
  %v3337 = vadd.f32 %v2761, 0.5
  %v3338 = vadd.f32 %v2762, 0.5
  %v3339 = vadd.f32 %v2763, 0.5
  %v3340 = vadd.f32 %v2764, 0.5
  %v3341 = vadd.f32 %v2765, 0.5
  %v3342 = vadd.f32 %v2766, 0.5
  %v3343 = vadd.f32 %v2767, 0.5
  %v3344 = vadd.f32 %v2768, 0.5
  %v3345 = vadd.f32 %v2769, 0.5
  %v3346 = vadd.f32 %v2770, 0.5
  %v3347 = vadd.f32 %v2771, 0.5
  %v3348 = vadd.f32 %v2772, 0.5
  %v3349 = vadd.f32 %v2773, 0.5
  %v3350 = vadd.f32 %v2774, 0.5
  %v3351 = vadd.f32 %v2775, 0.5
  %v3352 = vadd.f32 %v2776, 0.5
  %v3353 = vadd.f32 %v2777, 0.5
  %v3354 = vadd.f32 %v2778, 0.5
  %v3355 = vadd.f32 %v2779, 0.5
  %v3356 = vadd.f32 %v2780, 0.5
  %v3357 = vadd.f32 %v2781, 0.5
  %v3358 = vadd.f32 %v2782, 0.5
  %v3359 = vadd.f32 %v2783, 0.5
  %v3360 = vadd.f32 %v2784, 0.5
  %v3361 = vadd.f32 %v2785, 0.5
  %v3362 = vadd.f32 %v2786, 0.5
  %v3363 = vadd.f32 %v2787, 0.5
  %v3364 = vadd.f32 %v2788, 0.5
  %v3365 = vadd.f32 %v2789, 0.5
  %v3366 = vadd.f32 %v2790, 0.5
  %v3367 = vadd.f32 %v2791, 0.5
  %v3368 = vadd.f32 %v2792, 0.5
  %v3369 = vadd.f32 %v2793, 0.5
  %v3370 = vadd.f32 %v2794, 0.5
  %v3371 = vadd.f32 %v2795, 0.5
  %v3372 = vadd.f32 %v2796, 0.5
  %v3373 = vadd.f32 %v2797, 0.5
  %v3374 = vadd.f32 %v2798, 0.5
  %v3375 = vadd.f32 %v2799, 0.5
  %v3376 = vadd.f32 %v2800, 0.5
  %v3377 = vadd.f32 %v2801, 0.5
  %v3378 = vadd.f32 %v2802, 0.5
  %v3379 = vadd.f32 %v2803, 0.5
  %v3380 = vadd.f32 %v2804, 0.5
  %v3381 = vadd.f32 %v2805, 0.5
  %v3382 = vadd.f32 %v2806, 0.5
  %v3383 = vadd.f32 %v2807, 0.5
  %v3384 = vadd.f32 %v2808, 0.5
  %v3385 = vadd.f32 %v2809, 0.5
  %v3386 = vadd.f32 %v2810, 0.5
  %v3387 = vadd.f32 %v2811, 0.5
  %v3388 = vadd.f32 %v2812, 0.5
  %v3389 = vadd.f32 %v2813, 0.5
  %v3390 = vadd.f32 %v2814, 0.5
  %v3391 = vadd.f32 %v2815, 0.5
  %v3392 = vadd.f32 %v2816, 0.5
  %v3393 = vadd.f32 %v2817, 0.5
  %v3394 = vadd.f32 %v2818, 0.5
  %v3395 = vadd.f32 %v2819, 0.5
  %v3396 = vadd.f32 %v2820, 0.5
  %v3397 = vadd.f32 %v2821, 0.5
  %v3398 = vadd.f32 %v2822, 0.5
  %v3399 = vadd.f32 %v2823, 0.5
  %v3400 = vadd.f32 %v2824, 0.5
  %v3401 = vadd.f32 %v2825, 0.5
  %v3402 = vadd.f32 %v2826, 0.5
  %v3403 = vadd.f32 %v2827, 0.5
  %v3404 = vadd.f32 %v2828, 0.5
  %v3405 = vadd.f32 %v2829, 0.5
  %v3406 = vadd.f32 %v2830, 0.5
  %v3407 = vadd.f32 %v2831, 0.5
  %v3408 = vadd.f32 %v2832, 0.5
  %v3409 = vadd.f32 %v2833, 0.5
  %v3410 = vadd.f32 %v2834, 0.5
  %v3411 = vadd.f32 %v2835, 0.5
  %v3412 = vadd.f32 %v2836, 0.5
  %v3413 = vadd.f32 %v2837, 0.5
  %v3414 = vadd.f32 %v2838, 0.5
  %v3415 = vadd.f32 %v2839, 0.5
  %v3416 = vadd.f32 %v2840, 0.5
  %v3417 = vadd.f32 %v2841, 0.5
  %v3418 = vadd.f32 %v2842, 0.5
  %v3419 = vadd.f32 %v2843, 0.5
  %v3420 = vadd.f32 %v2844, 0.5
  %v3421 = vadd.f32 %v2845, 0.5
  %v3422 = vadd.f32 %v2846, 0.5
  %v3423 = vadd.f32 %v2847, 0.5
  %v3424 = vadd.f32 %v2848, 0.5
  %v3425 = vadd.f32 %v2849, 0.5
  %v3426 = vadd.f32 %v2850, 0.5
  %v3427 = vadd.f32 %v2851, 0.5
  %v3428 = vadd.f32 %v2852, 0.5
  %v3429 = vadd.f32 %v2853, 0.5
  %v3430 = vadd.f32 %v2854, 0.5
  %v3431 = vadd.f32 %v2855, 0.5
  %v3432 = vadd.f32 %v2856, 0.5
  %v3433 = vadd.f32 %v2857, 0.5
  %v3434 = vadd.f32 %v2858, 0.5
  %v3435 = vadd.f32 %v2859, 0.5
  %v3436 = vadd.f32 %v2860, 0.5
  %v3437 = vadd.f32 %v2861, 0.5
  %v3438 = vadd.f32 %v2862, 0.5
  %v3439 = vadd.f32 %v2863, 0.5
  %v3440 = vadd.f32 %v2864, 0.5
  %v3441 = vadd.f32 %v2865, 0.5
  %v3442 = vadd.f32 %v2866, 0.5
  %v3443 = vadd.f32 %v2867, 0.5
  %v3444 = vadd.f32 %v2868, 0.5
  %v3445 = vadd.f32 %v2869, 0.5
  %v3446 = vadd.f32 %v2870, 0.5
  %v3447 = vadd.f32 %v2871, 0.5
  %v3448 = vadd.f32 %v2872, 0.5
  %v3449 = vadd.f32 %v2873, 0.5
  %v3450 = vadd.f32 %v2874, 0.5
  %v3451 = vadd.f32 %v2875, 0.5
  %v3452 = vadd.f32 %v2876, 0.5
  %v3453 = vadd.f32 %v2877, 0.5
  %v3454 = vadd.f32 %v2878, 0.5
  %v3455 = vadd.f32 %v2879, 0.5
  %v3456 = vadd.f32 %v2880, 0.5
  %v3457 = vadd.f32 %v2881, 0.5
  %v3458 = vadd.f32 %v2882, 0.5
  %v3459 = vadd.f32 %v2883, 0.5
  %v3460 = vadd.f32 %v2884, 0.5
  %v3461 = vadd.f32 %v2885, 0.5
  %v3462 = vadd.f32 %v2886, 0.5
  %v3463 = vadd.f32 %v2887, 0.5
  %v3464 = vadd.f32 %v2888, 0.5
  %v3465 = vadd.f32 %v2889, 0.5
  %v3466 = vadd.f32 %v2890, 0.5
  %v3467 = vadd.f32 %v2891, 0.5
  %v3468 = vadd.f32 %v2892, 0.5
  %v3469 = vadd.f32 %v2893, 0.5
  %v3470 = vadd.f32 %v2894, 0.5
  %v3471 = vadd.f32 %v2895, 0.5
  %v3472 = vadd.f32 %v2896, 0.5
  %v3473 = vadd.f32 %v2897, 0.5
  %v3474 = vadd.f32 %v2898, 0.5
  %v3475 = vadd.f32 %v2899, 0.5
  %v3476 = vadd.f32 %v2900, 0.5
  %v3477 = vadd.f32 %v2901, 0.5
  %v3478 = vadd.f32 %v2902, 0.5
  %v3479 = vadd.f32 %v2903, 0.5
  %v3480 = vmul.f32 %v2904, 255.0
  %v3481 = vmul.f32 %v2905, 255.0
  %v3482 = vmul.f32 %v2906, 255.0
  %v3483 = vmul.f32 %v2907, 255.0
  %v3484 = vmul.f32 %v2908, 255.0
  %v3485 = vmul.f32 %v2909, 255.0
  %v3486 = vmul.f32 %v2910, 255.0
  %v3487 = vmul.f32 %v2911, 255.0
  %v3488 = vmul.f32 %v2912, 255.0
  %v3489 = vmul.f32 %v2913, 255.0
  %v3490 = vmul.f32 %v2914, 255.0
  %v3491 = vmul.f32 %v2915, 255.0
  %v3492 = vmul.f32 %v2916, 255.0
  %v3493 = vmul.f32 %v2917, 255.0
  %v3494 = vmul.f32 %v2918, 255.0
  %v3495 = vmul.f32 %v2919, 255.0
  %v3496 = vmul.f32 %v2920, 255.0
  %v3497 = vmul.f32 %v2921, 255.0
  %v3498 = vmul.f32 %v2922, 255.0
  %v3499 = vmul.f32 %v2923, 255.0
  %v3500 = vmul.f32 %v2924, 255.0
  %v3501 = vmul.f32 %v2925, 255.0
  %v3502 = vmul.f32 %v2926, 255.0
  %v3503 = vmul.f32 %v2927, 255.0
  %v3504 = vmul.f32 %v2928, 255.0
  %v3505 = vmul.f32 %v2929, 255.0
  %v3506 = vmul.f32 %v2930, 255.0
  %v3507 = vmul.f32 %v2931, 255.0
  %v3508 = vmul.f32 %v2932, 255.0
  %v3509 = vmul.f32 %v2933, 255.0
  %v3510 = vmul.f32 %v2934, 255.0
  %v3511 = vmul.f32 %v2935, 255.0
  %v3512 = vmul.f32 %v2936, 255.0
  %v3513 = vmul.f32 %v2937, 255.0
  %v3514 = vmul.f32 %v2938, 255.0
  %v3515 = vmul.f32 %v2939, 255.0
  %v3516 = vmul.f32 %v2940, 255.0
  %v3517 = vmul.f32 %v2941, 255.0
  %v3518 = vmul.f32 %v2942, 255.0
  %v3519 = vmul.f32 %v2943, 255.0
  %v3520 = vmul.f32 %v2944, 255.0
  %v3521 = vmul.f32 %v2945, 255.0
  %v3522 = vmul.f32 %v2946, 255.0
  %v3523 = vmul.f32 %v2947, 255.0
  %v3524 = vmul.f32 %v2948, 255.0
  %v3525 = vmul.f32 %v2949, 255.0
  %v3526 = vmul.f32 %v2950, 255.0
  %v3527 = vmul.f32 %v2951, 255.0
  %v3528 = vmul.f32 %v2952, 255.0
  %v3529 = vmul.f32 %v2953, 255.0
  %v3530 = vmul.f32 %v2954, 255.0
  %v3531 = vmul.f32 %v2955, 255.0
  %v3532 = vmul.f32 %v2956, 255.0
  %v3533 = vmul.f32 %v2957, 255.0
  %v3534 = vmul.f32 %v2958, 255.0
  %v3535 = vmul.f32 %v2959, 255.0
  %v3536 = vmul.f32 %v2960, 255.0
  %v3537 = vmul.f32 %v2961, 255.0
  %v3538 = vmul.f32 %v2962, 255.0
  %v3539 = vmul.f32 %v2963, 255.0
  %v3540 = vmul.f32 %v2964, 255.0
  %v3541 = vmul.f32 %v2965, 255.0
  %v3542 = vmul.f32 %v2966, 255.0
  %v3543 = vmul.f32 %v2967, 255.0
  %v3544 = vmul.f32 %v2968, 255.0
  %v3545 = vmul.f32 %v2969, 255.0
  %v3546 = vmul.f32 %v2970, 255.0
  %v3547 = vmul.f32 %v2971, 255.0
  %v3548 = vmul.f32 %v2972, 255.0
  %v3549 = vmul.f32 %v2973, 255.0
  %v3550 = vmul.f32 %v2974, 255.0
  %v3551 = vmul.f32 %v2975, 255.0
  %v3552 = vmul.f32 %v2976, 255.0
  %v3553 = vmul.f32 %v2977, 255.0
  %v3554 = vmul.f32 %v2978, 255.0
  %v3555 = vmul.f32 %v2979, 255.0
  %v3556 = vmul.f32 %v2980, 255.0
  %v3557 = vmul.f32 %v2981, 255.0
  %v3558 = vmul.f32 %v2982, 255.0
  %v3559 = vmul.f32 %v2983, 255.0
  %v3560 = vmul.f32 %v2984, 255.0
  %v3561 = vmul.f32 %v2985, 255.0
  %v3562 = vmul.f32 %v2986, 255.0
  %v3563 = vmul.f32 %v2987, 255.0
  %v3564 = vmul.f32 %v2988, 255.0
  %v3565 = vmul.f32 %v2989, 255.0
  %v3566 = vmul.f32 %v2990, 255.0
  %v3567 = vmul.f32 %v2991, 255.0
  %v3568 = vmul.f32 %v2992, 255.0
  %v3569 = vmul.f32 %v2993, 255.0
  %v3570 = vmul.f32 %v2994, 255.0
  %v3571 = vmul.f32 %v2995, 255.0
  %v3572 = vmul.f32 %v2996, 255.0
  %v3573 = vmul.f32 %v2997, 255.0
  %v3574 = vmul.f32 %v2998, 255.0
  %v3575 = vmul.f32 %v2999, 255.0
  %v3576 = vmul.f32 %v3000, 255.0
  %v3577 = vmul.f32 %v3001, 255.0
  %v3578 = vmul.f32 %v3002, 255.0
  %v3579 = vmul.f32 %v3003, 255.0
  %v3580 = vmul.f32 %v3004, 255.0
  %v3581 = vmul.f32 %v3005, 255.0
  %v3582 = vmul.f32 %v3006, 255.0
  %v3583 = vmul.f32 %v3007, 255.0
  %v3584 = vmul.f32 %v3008, 255.0
  %v3585 = vmul.f32 %v3009, 255.0
  %v3586 = vmul.f32 %v3010, 255.0
  %v3587 = vmul.f32 %v3011, 255.0
  %v3588 = vmul.f32 %v3012, 255.0
  %v3589 = vmul.f32 %v3013, 255.0
  %v3590 = vmul.f32 %v3014, 255.0
  %v3591 = vmul.f32 %v3015, 255.0
  %v3592 = vmul.f32 %v3016, 255.0
  %v3593 = vmul.f32 %v3017, 255.0
  %v3594 = vmul.f32 %v3018, 255.0
  %v3595 = vmul.f32 %v3019, 255.0
  %v3596 = vmul.f32 %v3020, 255.0
  %v3597 = vmul.f32 %v3021, 255.0
  %v3598 = vmul.f32 %v3022, 255.0
  %v3599 = vmul.f32 %v3023, 255.0
  %v3600 = vmul.f32 %v3024, 255.0
  %v3601 = vmul.f32 %v3025, 255.0
  %v3602 = vmul.f32 %v3026, 255.0
  %v3603 = vmul.f32 %v3027, 255.0
  %v3604 = vmul.f32 %v3028, 255.0
  %v3605 = vmul.f32 %v3029, 255.0
  %v3606 = vmul.f32 %v3030, 255.0
  %v3607 = vmul.f32 %v3031, 255.0
  %v3608 = vmul.f32 %v3032, 255.0
  %v3609 = vmul.f32 %v3033, 255.0
  %v3610 = vmul.f32 %v3034, 255.0
  %v3611 = vmul.f32 %v3035, 255.0
  %v3612 = vmul.f32 %v3036, 255.0
  %v3613 = vmul.f32 %v3037, 255.0
  %v3614 = vmul.f32 %v3038, 255.0
  %v3615 = vmul.f32 %v3039, 255.0
  %v3616 = vmul.f32 %v3040, 255.0
  %v3617 = vmul.f32 %v3041, 255.0
  %v3618 = vmul.f32 %v3042, 255.0
  %v3619 = vmul.f32 %v3043, 255.0
  %v3620 = vmul.f32 %v3044, 255.0
  %v3621 = vmul.f32 %v3045, 255.0
  %v3622 = vmul.f32 %v3046, 255.0
  %v3623 = vmul.f32 %v3047, 255.0
  %v3624 = vmul.f32 %v3048, 255.0
  %v3625 = vmul.f32 %v3049, 255.0
  %v3626 = vmul.f32 %v3050, 255.0
  %v3627 = vmul.f32 %v3051, 255.0
  %v3628 = vmul.f32 %v3052, 255.0
  %v3629 = vmul.f32 %v3053, 255.0
  %v3630 = vmul.f32 %v3054, 255.0
  %v3631 = vmul.f32 %v3055, 255.0
  %v3632 = vmul.f32 %v3056, 255.0
  %v3633 = vmul.f32 %v3057, 255.0
  %v3634 = vmul.f32 %v3058, 255.0
  %v3635 = vmul.f32 %v3059, 255.0
  %v3636 = vmul.f32 %v3060, 255.0
  %v3637 = vmul.f32 %v3061, 255.0
  %v3638 = vmul.f32 %v3062, 255.0
  %v3639 = vmul.f32 %v3063, 255.0
  %v3640 = vmul.f32 %v3064, 255.0
  %v3641 = vmul.f32 %v3065, 255.0
  %v3642 = vmul.f32 %v3066, 255.0
  %v3643 = vmul.f32 %v3067, 255.0
  %v3644 = vmul.f32 %v3068, 255.0
  %v3645 = vmul.f32 %v3069, 255.0
  %v3646 = vmul.f32 %v3070, 255.0
  %v3647 = vmul.f32 %v3071, 255.0
  %v3648 = vmul.f32 %v3072, 255.0
  %v3649 = vmul.f32 %v3073, 255.0
  %v3650 = vmul.f32 %v3074, 255.0
  %v3651 = vmul.f32 %v3075, 255.0
  %v3652 = vmul.f32 %v3076, 255.0
  %v3653 = vmul.f32 %v3077, 255.0
  %v3654 = vmul.f32 %v3078, 255.0
  %v3655 = vmul.f32 %v3079, 255.0
  %v3656 = vmul.f32 %v3080, 255.0
  %v3657 = vmul.f32 %v3081, 255.0
  %v3658 = vmul.f32 %v3082, 255.0
  %v3659 = vmul.f32 %v3083, 255.0
  %v3660 = vmul.f32 %v3084, 255.0
  %v3661 = vmul.f32 %v3085, 255.0
  %v3662 = vmul.f32 %v3086, 255.0
  %v3663 = vmul.f32 %v3087, 255.0
  %v3664 = vmul.f32 %v3088, 255.0
  %v3665 = vmul.f32 %v3089, 255.0
  %v3666 = vmul.f32 %v3090, 255.0
  %v3667 = vmul.f32 %v3091, 255.0
  %v3668 = vmul.f32 %v3092, 255.0
  %v3669 = vmul.f32 %v3093, 255.0
  %v3670 = vmul.f32 %v3094, 255.0
  %v3671 = vmul.f32 %v3095, 255.0
  %v3672 = vmul.f32 %v3096, 255.0
  %v3673 = vmul.f32 %v3097, 255.0
  %v3674 = vmul.f32 %v3098, 255.0
  %v3675 = vmul.f32 %v3099, 255.0
  %v3676 = vmul.f32 %v3100, 255.0
  %v3677 = vmul.f32 %v3101, 255.0
  %v3678 = vmul.f32 %v3102, 255.0
  %v3679 = vmul.f32 %v3103, 255.0
  %v3680 = vmul.f32 %v3104, 255.0
  %v3681 = vmul.f32 %v3105, 255.0
  %v3682 = vmul.f32 %v3106, 255.0
  %v3683 = vmul.f32 %v3107, 255.0
  %v3684 = vmul.f32 %v3108, 255.0
  %v3685 = vmul.f32 %v3109, 255.0
  %v3686 = vmul.f32 %v3110, 255.0
  %v3687 = vmul.f32 %v3111, 255.0
  %v3688 = vmul.f32 %v3112, 255.0
  %v3689 = vmul.f32 %v3113, 255.0
  %v3690 = vmul.f32 %v3114, 255.0
  %v3691 = vmul.f32 %v3115, 255.0
  %v3692 = vmul.f32 %v3116, 255.0
  %v3693 = vmul.f32 %v3117, 255.0
  %v3694 = vmul.f32 %v3118, 255.0
  %v3695 = vmul.f32 %v3119, 255.0
  %v3696 = vmul.f32 %v3120, 255.0
  %v3697 = vmul.f32 %v3121, 255.0
  %v3698 = vmul.f32 %v3122, 255.0
  %v3699 = vmul.f32 %v3123, 255.0
  %v3700 = vmul.f32 %v3124, 255.0
  %v3701 = vmul.f32 %v3125, 255.0
  %v3702 = vmul.f32 %v3126, 255.0
  %v3703 = vmul.f32 %v3127, 255.0
  %v3704 = vmul.f32 %v3128, 255.0
  %v3705 = vmul.f32 %v3129, 255.0
  %v3706 = vmul.f32 %v3130, 255.0
  %v3707 = vmul.f32 %v3131, 255.0
  %v3708 = vmul.f32 %v3132, 255.0
  %v3709 = vmul.f32 %v3133, 255.0
  %v3710 = vmul.f32 %v3134, 255.0
  %v3711 = vmul.f32 %v3135, 255.0
  %v3712 = vmul.f32 %v3136, 255.0
  %v3713 = vmul.f32 %v3137, 255.0
  %v3714 = vmul.f32 %v3138, 255.0
  %v3715 = vmul.f32 %v3139, 255.0
  %v3716 = vmul.f32 %v3140, 255.0
  %v3717 = vmul.f32 %v3141, 255.0
  %v3718 = vmul.f32 %v3142, 255.0
  %v3719 = vmul.f32 %v3143, 255.0
  %v3720 = vmul.f32 %v3144, 255.0
  %v3721 = vmul.f32 %v3145, 255.0
  %v3722 = vmul.f32 %v3146, 255.0
  %v3723 = vmul.f32 %v3147, 255.0
  %v3724 = vmul.f32 %v3148, 255.0
  %v3725 = vmul.f32 %v3149, 255.0
  %v3726 = vmul.f32 %v3150, 255.0
  %v3727 = vmul.f32 %v3151, 255.0
  %v3728 = vmul.f32 %v3152, 255.0
  %v3729 = vmul.f32 %v3153, 255.0
  %v3730 = vmul.f32 %v3154, 255.0
  %v3731 = vmul.f32 %v3155, 255.0
  %v3732 = vmul.f32 %v3156, 255.0
  %v3733 = vmul.f32 %v3157, 255.0
  %v3734 = vmul.f32 %v3158, 255.0
  %v3735 = vmul.f32 %v3159, 255.0
  %v3736 = vmul.f32 %v3160, 255.0
  %v3737 = vmul.f32 %v3161, 255.0
  %v3738 = vmul.f32 %v3162, 255.0
  %v3739 = vmul.f32 %v3163, 255.0
  %v3740 = vmul.f32 %v3164, 255.0
  %v3741 = vmul.f32 %v3165, 255.0
  %v3742 = vmul.f32 %v3166, 255.0
  %v3743 = vmul.f32 %v3167, 255.0
  %v3744 = vmul.f32 %v3168, 255.0
  %v3745 = vmul.f32 %v3169, 255.0
  %v3746 = vmul.f32 %v3170, 255.0
  %v3747 = vmul.f32 %v3171, 255.0
  %v3748 = vmul.f32 %v3172, 255.0
  %v3749 = vmul.f32 %v3173, 255.0
  %v3750 = vmul.f32 %v3174, 255.0
  %v3751 = vmul.f32 %v3175, 255.0
  %v3752 = vmul.f32 %v3176, 255.0
  %v3753 = vmul.f32 %v3177, 255.0
  %v3754 = vmul.f32 %v3178, 255.0
  %v3755 = vmul.f32 %v3179, 255.0
  %v3756 = vmul.f32 %v3180, 255.0
  %v3757 = vmul.f32 %v3181, 255.0
  %v3758 = vmul.f32 %v3182, 255.0
  %v3759 = vmul.f32 %v3183, 255.0
  %v3760 = vmul.f32 %v3184, 255.0
  %v3761 = vmul.f32 %v3185, 255.0
  %v3762 = vmul.f32 %v3186, 255.0
  %v3763 = vmul.f32 %v3187, 255.0
  %v3764 = vmul.f32 %v3188, 255.0
  %v3765 = vmul.f32 %v3189, 255.0
  %v3766 = vmul.f32 %v3190, 255.0
  %v3767 = vmul.f32 %v3191, 255.0
  %v3768 = vmul.f32 %v3192, 255.0
  %v3769 = vmul.f32 %v3193, 255.0
  %v3770 = vmul.f32 %v3194, 255.0
  %v3771 = vmul.f32 %v3195, 255.0
  %v3772 = vmul.f32 %v3196, 255.0
  %v3773 = vmul.f32 %v3197, 255.0
  %v3774 = vmul.f32 %v3198, 255.0
  %v3775 = vmul.f32 %v3199, 255.0
  %v3776 = vmul.f32 %v3200, 255.0
  %v3777 = vmul.f32 %v3201, 255.0
  %v3778 = vmul.f32 %v3202, 255.0
  %v3779 = vmul.f32 %v3203, 255.0
  %v3780 = vmul.f32 %v3204, 255.0
  %v3781 = vmul.f32 %v3205, 255.0
  %v3782 = vmul.f32 %v3206, 255.0
  %v3783 = vmul.f32 %v3207, 255.0
  %v3784 = vmul.f32 %v3208, 255.0
  %v3785 = vmul.f32 %v3209, 255.0
  %v3786 = vmul.f32 %v3210, 255.0
  %v3787 = vmul.f32 %v3211, 255.0
  %v3788 = vmul.f32 %v3212, 255.0
  %v3789 = vmul.f32 %v3213, 255.0
  %v3790 = vmul.f32 %v3214, 255.0
  %v3791 = vmul.f32 %v3215, 255.0
  %v3792 = vmul.f32 %v3216, 255.0
  %v3793 = vmul.f32 %v3217, 255.0
  %v3794 = vmul.f32 %v3218, 255.0
  %v3795 = vmul.f32 %v3219, 255.0
  %v3796 = vmul.f32 %v3220, 255.0
  %v3797 = vmul.f32 %v3221, 255.0
  %v3798 = vmul.f32 %v3222, 255.0
  %v3799 = vmul.f32 %v3223, 255.0
  %v3800 = vmul.f32 %v3224, 255.0
  %v3801 = vmul.f32 %v3225, 255.0
  %v3802 = vmul.f32 %v3226, 255.0
  %v3803 = vmul.f32 %v3227, 255.0
  %v3804 = vmul.f32 %v3228, 255.0
  %v3805 = vmul.f32 %v3229, 255.0
  %v3806 = vmul.f32 %v3230, 255.0
  %v3807 = vmul.f32 %v3231, 255.0
  %v3808 = vmul.f32 %v3232, 255.0
  %v3809 = vmul.f32 %v3233, 255.0
  %v3810 = vmul.f32 %v3234, 255.0
  %v3811 = vmul.f32 %v3235, 255.0
  %v3812 = vmul.f32 %v3236, 255.0
  %v3813 = vmul.f32 %v3237, 255.0
  %v3814 = vmul.f32 %v3238, 255.0
  %v3815 = vmul.f32 %v3239, 255.0
  %v3816 = vmul.f32 %v3240, 255.0
  %v3817 = vmul.f32 %v3241, 255.0
  %v3818 = vmul.f32 %v3242, 255.0
  %v3819 = vmul.f32 %v3243, 255.0
  %v3820 = vmul.f32 %v3244, 255.0
  %v3821 = vmul.f32 %v3245, 255.0
  %v3822 = vmul.f32 %v3246, 255.0
  %v3823 = vmul.f32 %v3247, 255.0
  %v3824 = vmul.f32 %v3248, 255.0
  %v3825 = vmul.f32 %v3249, 255.0
  %v3826 = vmul.f32 %v3250, 255.0
  %v3827 = vmul.f32 %v3251, 255.0
  %v3828 = vmul.f32 %v3252, 255.0
  %v3829 = vmul.f32 %v3253, 255.0
  %v3830 = vmul.f32 %v3254, 255.0
  %v3831 = vmul.f32 %v3255, 255.0
  %v3832 = vmul.f32 %v3256, 255.0
  %v3833 = vmul.f32 %v3257, 255.0
  %v3834 = vmul.f32 %v3258, 255.0
  %v3835 = vmul.f32 %v3259, 255.0
  %v3836 = vmul.f32 %v3260, 255.0
  %v3837 = vmul.f32 %v3261, 255.0
  %v3838 = vmul.f32 %v3262, 255.0
  %v3839 = vmul.f32 %v3263, 255.0
  %v3840 = vmul.f32 %v3264, 255.0
  %v3841 = vmul.f32 %v3265, 255.0
  %v3842 = vmul.f32 %v3266, 255.0
  %v3843 = vmul.f32 %v3267, 255.0
  %v3844 = vmul.f32 %v3268, 255.0
  %v3845 = vmul.f32 %v3269, 255.0
  %v3846 = vmul.f32 %v3270, 255.0
  %v3847 = vmul.f32 %v3271, 255.0
  %v3848 = vmul.f32 %v3272, 255.0
  %v3849 = vmul.f32 %v3273, 255.0
  %v3850 = vmul.f32 %v3274, 255.0
  %v3851 = vmul.f32 %v3275, 255.0
  %v3852 = vmul.f32 %v3276, 255.0
  %v3853 = vmul.f32 %v3277, 255.0
  %v3854 = vmul.f32 %v3278, 255.0
  %v3855 = vmul.f32 %v3279, 255.0
  %v3856 = vmul.f32 %v3280, 255.0
  %v3857 = vmul.f32 %v3281, 255.0
  %v3858 = vmul.f32 %v3282, 255.0
  %v3859 = vmul.f32 %v3283, 255.0
  %v3860 = vmul.f32 %v3284, 255.0
  %v3861 = vmul.f32 %v3285, 255.0
  %v3862 = vmul.f32 %v3286, 255.0
  %v3863 = vmul.f32 %v3287, 255.0
  %v3864 = vmul.f32 %v3288, 255.0
  %v3865 = vmul.f32 %v3289, 255.0
  %v3866 = vmul.f32 %v3290, 255.0
  %v3867 = vmul.f32 %v3291, 255.0
  %v3868 = vmul.f32 %v3292, 255.0
  %v3869 = vmul.f32 %v3293, 255.0
  %v3870 = vmul.f32 %v3294, 255.0
  %v3871 = vmul.f32 %v3295, 255.0
  %v3872 = vmul.f32 %v3296, 255.0
  %v3873 = vmul.f32 %v3297, 255.0
  %v3874 = vmul.f32 %v3298, 255.0
  %v3875 = vmul.f32 %v3299, 255.0
  %v3876 = vmul.f32 %v3300, 255.0
  %v3877 = vmul.f32 %v3301, 255.0
  %v3878 = vmul.f32 %v3302, 255.0
  %v3879 = vmul.f32 %v3303, 255.0
  %v3880 = vmul.f32 %v3304, 255.0
  %v3881 = vmul.f32 %v3305, 255.0
  %v3882 = vmul.f32 %v3306, 255.0
  %v3883 = vmul.f32 %v3307, 255.0
  %v3884 = vmul.f32 %v3308, 255.0
  %v3885 = vmul.f32 %v3309, 255.0
  %v3886 = vmul.f32 %v3310, 255.0
  %v3887 = vmul.f32 %v3311, 255.0
  %v3888 = vmul.f32 %v3312, 255.0
  %v3889 = vmul.f32 %v3313, 255.0
  %v3890 = vmul.f32 %v3314, 255.0
  %v3891 = vmul.f32 %v3315, 255.0
  %v3892 = vmul.f32 %v3316, 255.0
  %v3893 = vmul.f32 %v3317, 255.0
  %v3894 = vmul.f32 %v3318, 255.0
  %v3895 = vmul.f32 %v3319, 255.0
  %v3896 = vmul.f32 %v3320, 255.0
  %v3897 = vmul.f32 %v3321, 255.0
  %v3898 = vmul.f32 %v3322, 255.0
  %v3899 = vmul.f32 %v3323, 255.0
  %v3900 = vmul.f32 %v3324, 255.0
  %v3901 = vmul.f32 %v3325, 255.0
  %v3902 = vmul.f32 %v3326, 255.0
  %v3903 = vmul.f32 %v3327, 255.0
  %v3904 = vmul.f32 %v3328, 255.0
  %v3905 = vmul.f32 %v3329, 255.0
  %v3906 = vmul.f32 %v3330, 255.0
  %v3907 = vmul.f32 %v3331, 255.0
  %v3908 = vmul.f32 %v3332, 255.0
  %v3909 = vmul.f32 %v3333, 255.0
  %v3910 = vmul.f32 %v3334, 255.0
  %v3911 = vmul.f32 %v3335, 255.0
  %v3912 = vmul.f32 %v3336, 255.0
  %v3913 = vmul.f32 %v3337, 255.0
  %v3914 = vmul.f32 %v3338, 255.0
  %v3915 = vmul.f32 %v3339, 255.0
  %v3916 = vmul.f32 %v3340, 255.0
  %v3917 = vmul.f32 %v3341, 255.0
  %v3918 = vmul.f32 %v3342, 255.0
  %v3919 = vmul.f32 %v3343, 255.0
  %v3920 = vmul.f32 %v3344, 255.0
  %v3921 = vmul.f32 %v3345, 255.0
  %v3922 = vmul.f32 %v3346, 255.0
  %v3923 = vmul.f32 %v3347, 255.0
  %v3924 = vmul.f32 %v3348, 255.0
  %v3925 = vmul.f32 %v3349, 255.0
  %v3926 = vmul.f32 %v3350, 255.0
  %v3927 = vmul.f32 %v3351, 255.0
  %v3928 = vmul.f32 %v3352, 255.0
  %v3929 = vmul.f32 %v3353, 255.0
  %v3930 = vmul.f32 %v3354, 255.0
  %v3931 = vmul.f32 %v3355, 255.0
  %v3932 = vmul.f32 %v3356, 255.0
  %v3933 = vmul.f32 %v3357, 255.0
  %v3934 = vmul.f32 %v3358, 255.0
  %v3935 = vmul.f32 %v3359, 255.0
  %v3936 = vmul.f32 %v3360, 255.0
  %v3937 = vmul.f32 %v3361, 255.0
  %v3938 = vmul.f32 %v3362, 255.0
  %v3939 = vmul.f32 %v3363, 255.0
  %v3940 = vmul.f32 %v3364, 255.0
  %v3941 = vmul.f32 %v3365, 255.0
  %v3942 = vmul.f32 %v3366, 255.0
  %v3943 = vmul.f32 %v3367, 255.0
  %v3944 = vmul.f32 %v3368, 255.0
  %v3945 = vmul.f32 %v3369, 255.0
  %v3946 = vmul.f32 %v3370, 255.0
  %v3947 = vmul.f32 %v3371, 255.0
  %v3948 = vmul.f32 %v3372, 255.0
  %v3949 = vmul.f32 %v3373, 255.0
  %v3950 = vmul.f32 %v3374, 255.0
  %v3951 = vmul.f32 %v3375, 255.0
  %v3952 = vmul.f32 %v3376, 255.0
  %v3953 = vmul.f32 %v3377, 255.0
  %v3954 = vmul.f32 %v3378, 255.0
  %v3955 = vmul.f32 %v3379, 255.0
  %v3956 = vmul.f32 %v3380, 255.0
  %v3957 = vmul.f32 %v3381, 255.0
  %v3958 = vmul.f32 %v3382, 255.0
  %v3959 = vmul.f32 %v3383, 255.0
  %v3960 = vmul.f32 %v3384, 255.0
  %v3961 = vmul.f32 %v3385, 255.0
  %v3962 = vmul.f32 %v3386, 255.0
  %v3963 = vmul.f32 %v3387, 255.0
  %v3964 = vmul.f32 %v3388, 255.0
  %v3965 = vmul.f32 %v3389, 255.0
  %v3966 = vmul.f32 %v3390, 255.0
  %v3967 = vmul.f32 %v3391, 255.0
  %v3968 = vmul.f32 %v3392, 255.0
  %v3969 = vmul.f32 %v3393, 255.0
  %v3970 = vmul.f32 %v3394, 255.0
  %v3971 = vmul.f32 %v3395, 255.0
  %v3972 = vmul.f32 %v3396, 255.0
  %v3973 = vmul.f32 %v3397, 255.0
  %v3974 = vmul.f32 %v3398, 255.0
  %v3975 = vmul.f32 %v3399, 255.0
  %v3976 = vmul.f32 %v3400, 255.0
  %v3977 = vmul.f32 %v3401, 255.0
  %v3978 = vmul.f32 %v3402, 255.0
  %v3979 = vmul.f32 %v3403, 255.0
  %v3980 = vmul.f32 %v3404, 255.0
  %v3981 = vmul.f32 %v3405, 255.0
  %v3982 = vmul.f32 %v3406, 255.0
  %v3983 = vmul.f32 %v3407, 255.0
  %v3984 = vmul.f32 %v3408, 255.0
  %v3985 = vmul.f32 %v3409, 255.0
  %v3986 = vmul.f32 %v3410, 255.0
  %v3987 = vmul.f32 %v3411, 255.0
  %v3988 = vmul.f32 %v3412, 255.0
  %v3989 = vmul.f32 %v3413, 255.0
  %v3990 = vmul.f32 %v3414, 255.0
  %v3991 = vmul.f32 %v3415, 255.0
  %v3992 = vmul.f32 %v3416, 255.0
  %v3993 = vmul.f32 %v3417, 255.0
  %v3994 = vmul.f32 %v3418, 255.0
  %v3995 = vmul.f32 %v3419, 255.0
  %v3996 = vmul.f32 %v3420, 255.0
  %v3997 = vmul.f32 %v3421, 255.0
  %v3998 = vmul.f32 %v3422, 255.0
  %v3999 = vmul.f32 %v3423, 255.0
  %v4000 = vmul.f32 %v3424, 255.0
  %v4001 = vmul.f32 %v3425, 255.0
  %v4002 = vmul.f32 %v3426, 255.0
  %v4003 = vmul.f32 %v3427, 255.0
  %v4004 = vmul.f32 %v3428, 255.0
  %v4005 = vmul.f32 %v3429, 255.0
  %v4006 = vmul.f32 %v3430, 255.0
  %v4007 = vmul.f32 %v3431, 255.0
  %v4008 = vmul.f32 %v3432, 255.0
  %v4009 = vmul.f32 %v3433, 255.0
  %v4010 = vmul.f32 %v3434, 255.0
  %v4011 = vmul.f32 %v3435, 255.0
  %v4012 = vmul.f32 %v3436, 255.0
  %v4013 = vmul.f32 %v3437, 255.0
  %v4014 = vmul.f32 %v3438, 255.0
  %v4015 = vmul.f32 %v3439, 255.0
  %v4016 = vmul.f32 %v3440, 255.0
  %v4017 = vmul.f32 %v3441, 255.0
  %v4018 = vmul.f32 %v3442, 255.0
  %v4019 = vmul.f32 %v3443, 255.0
  %v4020 = vmul.f32 %v3444, 255.0
  %v4021 = vmul.f32 %v3445, 255.0
  %v4022 = vmul.f32 %v3446, 255.0
  %v4023 = vmul.f32 %v3447, 255.0
  %v4024 = vmul.f32 %v3448, 255.0
  %v4025 = vmul.f32 %v3449, 255.0
  %v4026 = vmul.f32 %v3450, 255.0
  %v4027 = vmul.f32 %v3451, 255.0
  %v4028 = vmul.f32 %v3452, 255.0
  %v4029 = vmul.f32 %v3453, 255.0
  %v4030 = vmul.f32 %v3454, 255.0
  %v4031 = vmul.f32 %v3455, 255.0
  %v4032 = vmul.f32 %v3456, 255.0
  %v4033 = vmul.f32 %v3457, 255.0
  %v4034 = vmul.f32 %v3458, 255.0
  %v4035 = vmul.f32 %v3459, 255.0
  %v4036 = vmul.f32 %v3460, 255.0
  %v4037 = vmul.f32 %v3461, 255.0
  %v4038 = vmul.f32 %v3462, 255.0
  %v4039 = vmul.f32 %v3463, 255.0
  %v4040 = vmul.f32 %v3464, 255.0
  %v4041 = vmul.f32 %v3465, 255.0
  %v4042 = vmul.f32 %v3466, 255.0
  %v4043 = vmul.f32 %v3467, 255.0
  %v4044 = vmul.f32 %v3468, 255.0
  %v4045 = vmul.f32 %v3469, 255.0
  %v4046 = vmul.f32 %v3470, 255.0
  %v4047 = vmul.f32 %v3471, 255.0
  %v4048 = vmul.f32 %v3472, 255.0
  %v4049 = vmul.f32 %v3473, 255.0
  %v4050 = vmul.f32 %v3474, 255.0
  %v4051 = vmul.f32 %v3475, 255.0
  %v4052 = vmul.f32 %v3476, 255.0
  %v4053 = vmul.f32 %v3477, 255.0
  %v4054 = vmul.f32 %v3478, 255.0
  %v4055 = vmul.f32 %v3479, 255.0
  %v4056 = vround.ne.pseudo %v3480
  %v4057 = vround.ne.pseudo %v3481
  %v4058 = vround.ne.pseudo %v3482
  %v4059 = vround.ne.pseudo %v3483
  %v4060 = vround.ne.pseudo %v3484
  %v4061 = vround.ne.pseudo %v3485
  %v4062 = vround.ne.pseudo %v3486
  %v4063 = vround.ne.pseudo %v3487
  %v4064 = vround.ne.pseudo %v3488
  %v4065 = vround.ne.pseudo %v3489
  %v4066 = vround.ne.pseudo %v3490
  %v4067 = vround.ne.pseudo %v3491
  %v4068 = vround.ne.pseudo %v3492
  %v4069 = vround.ne.pseudo %v3493
  %v4070 = vround.ne.pseudo %v3494
  %v4071 = vround.ne.pseudo %v3495
  %v4072 = vround.ne.pseudo %v3496
  %v4073 = vround.ne.pseudo %v3497
  %v4074 = vround.ne.pseudo %v3498
  %v4075 = vround.ne.pseudo %v3499
  %v4076 = vround.ne.pseudo %v3500
  %v4077 = vround.ne.pseudo %v3501
  %v4078 = vround.ne.pseudo %v3502
  %v4079 = vround.ne.pseudo %v3503
  %v4080 = vround.ne.pseudo %v3504
  %v4081 = vround.ne.pseudo %v3505
  %v4082 = vround.ne.pseudo %v3506
  %v4083 = vround.ne.pseudo %v3507
  %v4084 = vround.ne.pseudo %v3508
  %v4085 = vround.ne.pseudo %v3509
  %v4086 = vround.ne.pseudo %v3510
  %v4087 = vround.ne.pseudo %v3511
  %v4088 = vround.ne.pseudo %v3512
  %v4089 = vround.ne.pseudo %v3513
  %v4090 = vround.ne.pseudo %v3514
  %v4091 = vround.ne.pseudo %v3515
  %v4092 = vround.ne.pseudo %v3516
  %v4093 = vround.ne.pseudo %v3517
  %v4094 = vround.ne.pseudo %v3518
  %v4095 = vround.ne.pseudo %v3519
  %v4096 = vround.ne.pseudo %v3520
  %v4097 = vround.ne.pseudo %v3521
  %v4098 = vround.ne.pseudo %v3522
  %v4099 = vround.ne.pseudo %v3523
  %v4100 = vround.ne.pseudo %v3524
  %v4101 = vround.ne.pseudo %v3525
  %v4102 = vround.ne.pseudo %v3526
  %v4103 = vround.ne.pseudo %v3527
  %v4104 = vround.ne.pseudo %v3528
  %v4105 = vround.ne.pseudo %v3529
  %v4106 = vround.ne.pseudo %v3530
  %v4107 = vround.ne.pseudo %v3531
  %v4108 = vround.ne.pseudo %v3532
  %v4109 = vround.ne.pseudo %v3533
  %v4110 = vround.ne.pseudo %v3534
  %v4111 = vround.ne.pseudo %v3535
  %v4112 = vround.ne.pseudo %v3536
  %v4113 = vround.ne.pseudo %v3537
  %v4114 = vround.ne.pseudo %v3538
  %v4115 = vround.ne.pseudo %v3539
  %v4116 = vround.ne.pseudo %v3540
  %v4117 = vround.ne.pseudo %v3541
  %v4118 = vround.ne.pseudo %v3542
  %v4119 = vround.ne.pseudo %v3543
  %v4120 = vround.ne.pseudo %v3544
  %v4121 = vround.ne.pseudo %v3545
  %v4122 = vround.ne.pseudo %v3546
  %v4123 = vround.ne.pseudo %v3547
  %v4124 = vround.ne.pseudo %v3548
  %v4125 = vround.ne.pseudo %v3549
  %v4126 = vround.ne.pseudo %v3550
  %v4127 = vround.ne.pseudo %v3551
  %v4128 = vround.ne.pseudo %v3552
  %v4129 = vround.ne.pseudo %v3553
  %v4130 = vround.ne.pseudo %v3554
  %v4131 = vround.ne.pseudo %v3555
  %v4132 = vround.ne.pseudo %v3556
  %v4133 = vround.ne.pseudo %v3557
  %v4134 = vround.ne.pseudo %v3558
  %v4135 = vround.ne.pseudo %v3559
  %v4136 = vround.ne.pseudo %v3560
  %v4137 = vround.ne.pseudo %v3561
  %v4138 = vround.ne.pseudo %v3562
  %v4139 = vround.ne.pseudo %v3563
  %v4140 = vround.ne.pseudo %v3564
  %v4141 = vround.ne.pseudo %v3565
  %v4142 = vround.ne.pseudo %v3566
  %v4143 = vround.ne.pseudo %v3567
  %v4144 = vround.ne.pseudo %v3568
  %v4145 = vround.ne.pseudo %v3569
  %v4146 = vround.ne.pseudo %v3570
  %v4147 = vround.ne.pseudo %v3571
  %v4148 = vround.ne.pseudo %v3572
  %v4149 = vround.ne.pseudo %v3573
  %v4150 = vround.ne.pseudo %v3574
  %v4151 = vround.ne.pseudo %v3575
  %v4152 = vround.ne.pseudo %v3576
  %v4153 = vround.ne.pseudo %v3577
  %v4154 = vround.ne.pseudo %v3578
  %v4155 = vround.ne.pseudo %v3579
  %v4156 = vround.ne.pseudo %v3580
  %v4157 = vround.ne.pseudo %v3581
  %v4158 = vround.ne.pseudo %v3582
  %v4159 = vround.ne.pseudo %v3583
  %v4160 = vround.ne.pseudo %v3584
  %v4161 = vround.ne.pseudo %v3585
  %v4162 = vround.ne.pseudo %v3586
  %v4163 = vround.ne.pseudo %v3587
  %v4164 = vround.ne.pseudo %v3588
  %v4165 = vround.ne.pseudo %v3589
  %v4166 = vround.ne.pseudo %v3590
  %v4167 = vround.ne.pseudo %v3591
  %v4168 = vround.ne.pseudo %v3592
  %v4169 = vround.ne.pseudo %v3593
  %v4170 = vround.ne.pseudo %v3594
  %v4171 = vround.ne.pseudo %v3595
  %v4172 = vround.ne.pseudo %v3596
  %v4173 = vround.ne.pseudo %v3597
  %v4174 = vround.ne.pseudo %v3598
  %v4175 = vround.ne.pseudo %v3599
  %v4176 = vround.ne.pseudo %v3600
  %v4177 = vround.ne.pseudo %v3601
  %v4178 = vround.ne.pseudo %v3602
  %v4179 = vround.ne.pseudo %v3603
  %v4180 = vround.ne.pseudo %v3604
  %v4181 = vround.ne.pseudo %v3605
  %v4182 = vround.ne.pseudo %v3606
  %v4183 = vround.ne.pseudo %v3607
  %v4184 = vround.ne.pseudo %v3608
  %v4185 = vround.ne.pseudo %v3609
  %v4186 = vround.ne.pseudo %v3610
  %v4187 = vround.ne.pseudo %v3611
  %v4188 = vround.ne.pseudo %v3612
  %v4189 = vround.ne.pseudo %v3613
  %v4190 = vround.ne.pseudo %v3614
  %v4191 = vround.ne.pseudo %v3615
  %v4192 = vround.ne.pseudo %v3616
  %v4193 = vround.ne.pseudo %v3617
  %v4194 = vround.ne.pseudo %v3618
  %v4195 = vround.ne.pseudo %v3619
  %v4196 = vround.ne.pseudo %v3620
  %v4197 = vround.ne.pseudo %v3621
  %v4198 = vround.ne.pseudo %v3622
  %v4199 = vround.ne.pseudo %v3623
  %v4200 = vround.ne.pseudo %v3624
  %v4201 = vround.ne.pseudo %v3625
  %v4202 = vround.ne.pseudo %v3626
  %v4203 = vround.ne.pseudo %v3627
  %v4204 = vround.ne.pseudo %v3628
  %v4205 = vround.ne.pseudo %v3629
  %v4206 = vround.ne.pseudo %v3630
  %v4207 = vround.ne.pseudo %v3631
  %v4208 = vround.ne.pseudo %v3632
  %v4209 = vround.ne.pseudo %v3633
  %v4210 = vround.ne.pseudo %v3634
  %v4211 = vround.ne.pseudo %v3635
  %v4212 = vround.ne.pseudo %v3636
  %v4213 = vround.ne.pseudo %v3637
  %v4214 = vround.ne.pseudo %v3638
  %v4215 = vround.ne.pseudo %v3639
  %v4216 = vround.ne.pseudo %v3640
  %v4217 = vround.ne.pseudo %v3641
  %v4218 = vround.ne.pseudo %v3642
  %v4219 = vround.ne.pseudo %v3643
  %v4220 = vround.ne.pseudo %v3644
  %v4221 = vround.ne.pseudo %v3645
  %v4222 = vround.ne.pseudo %v3646
  %v4223 = vround.ne.pseudo %v3647
  %v4224 = vround.ne.pseudo %v3648
  %v4225 = vround.ne.pseudo %v3649
  %v4226 = vround.ne.pseudo %v3650
  %v4227 = vround.ne.pseudo %v3651
  %v4228 = vround.ne.pseudo %v3652
  %v4229 = vround.ne.pseudo %v3653
  %v4230 = vround.ne.pseudo %v3654
  %v4231 = vround.ne.pseudo %v3655
  %v4232 = vround.ne.pseudo %v3656
  %v4233 = vround.ne.pseudo %v3657
  %v4234 = vround.ne.pseudo %v3658
  %v4235 = vround.ne.pseudo %v3659
  %v4236 = vround.ne.pseudo %v3660
  %v4237 = vround.ne.pseudo %v3661
  %v4238 = vround.ne.pseudo %v3662
  %v4239 = vround.ne.pseudo %v3663
  %v4240 = vround.ne.pseudo %v3664
  %v4241 = vround.ne.pseudo %v3665
  %v4242 = vround.ne.pseudo %v3666
  %v4243 = vround.ne.pseudo %v3667
  %v4244 = vround.ne.pseudo %v3668
  %v4245 = vround.ne.pseudo %v3669
  %v4246 = vround.ne.pseudo %v3670
  %v4247 = vround.ne.pseudo %v3671
  %v4248 = vround.ne.pseudo %v3672
  %v4249 = vround.ne.pseudo %v3673
  %v4250 = vround.ne.pseudo %v3674
  %v4251 = vround.ne.pseudo %v3675
  %v4252 = vround.ne.pseudo %v3676
  %v4253 = vround.ne.pseudo %v3677
  %v4254 = vround.ne.pseudo %v3678
  %v4255 = vround.ne.pseudo %v3679
  %v4256 = vround.ne.pseudo %v3680
  %v4257 = vround.ne.pseudo %v3681
  %v4258 = vround.ne.pseudo %v3682
  %v4259 = vround.ne.pseudo %v3683
  %v4260 = vround.ne.pseudo %v3684
  %v4261 = vround.ne.pseudo %v3685
  %v4262 = vround.ne.pseudo %v3686
  %v4263 = vround.ne.pseudo %v3687
  %v4264 = vround.ne.pseudo %v3688
  %v4265 = vround.ne.pseudo %v3689
  %v4266 = vround.ne.pseudo %v3690
  %v4267 = vround.ne.pseudo %v3691
  %v4268 = vround.ne.pseudo %v3692
  %v4269 = vround.ne.pseudo %v3693
  %v4270 = vround.ne.pseudo %v3694
  %v4271 = vround.ne.pseudo %v3695
  %v4272 = vround.ne.pseudo %v3696
  %v4273 = vround.ne.pseudo %v3697
  %v4274 = vround.ne.pseudo %v3698
  %v4275 = vround.ne.pseudo %v3699
  %v4276 = vround.ne.pseudo %v3700
  %v4277 = vround.ne.pseudo %v3701
  %v4278 = vround.ne.pseudo %v3702
  %v4279 = vround.ne.pseudo %v3703
  %v4280 = vround.ne.pseudo %v3704
  %v4281 = vround.ne.pseudo %v3705
  %v4282 = vround.ne.pseudo %v3706
  %v4283 = vround.ne.pseudo %v3707
  %v4284 = vround.ne.pseudo %v3708
  %v4285 = vround.ne.pseudo %v3709
  %v4286 = vround.ne.pseudo %v3710
  %v4287 = vround.ne.pseudo %v3711
  %v4288 = vround.ne.pseudo %v3712
  %v4289 = vround.ne.pseudo %v3713
  %v4290 = vround.ne.pseudo %v3714
  %v4291 = vround.ne.pseudo %v3715
  %v4292 = vround.ne.pseudo %v3716
  %v4293 = vround.ne.pseudo %v3717
  %v4294 = vround.ne.pseudo %v3718
  %v4295 = vround.ne.pseudo %v3719
  %v4296 = vround.ne.pseudo %v3720
  %v4297 = vround.ne.pseudo %v3721
  %v4298 = vround.ne.pseudo %v3722
  %v4299 = vround.ne.pseudo %v3723
  %v4300 = vround.ne.pseudo %v3724
  %v4301 = vround.ne.pseudo %v3725
  %v4302 = vround.ne.pseudo %v3726
  %v4303 = vround.ne.pseudo %v3727
  %v4304 = vround.ne.pseudo %v3728
  %v4305 = vround.ne.pseudo %v3729
  %v4306 = vround.ne.pseudo %v3730
  %v4307 = vround.ne.pseudo %v3731
  %v4308 = vround.ne.pseudo %v3732
  %v4309 = vround.ne.pseudo %v3733
  %v4310 = vround.ne.pseudo %v3734
  %v4311 = vround.ne.pseudo %v3735
  %v4312 = vround.ne.pseudo %v3736
  %v4313 = vround.ne.pseudo %v3737
  %v4314 = vround.ne.pseudo %v3738
  %v4315 = vround.ne.pseudo %v3739
  %v4316 = vround.ne.pseudo %v3740
  %v4317 = vround.ne.pseudo %v3741
  %v4318 = vround.ne.pseudo %v3742
  %v4319 = vround.ne.pseudo %v3743
  %v4320 = vround.ne.pseudo %v3744
  %v4321 = vround.ne.pseudo %v3745
  %v4322 = vround.ne.pseudo %v3746
  %v4323 = vround.ne.pseudo %v3747
  %v4324 = vround.ne.pseudo %v3748
  %v4325 = vround.ne.pseudo %v3749
  %v4326 = vround.ne.pseudo %v3750
  %v4327 = vround.ne.pseudo %v3751
  %v4328 = vround.ne.pseudo %v3752
  %v4329 = vround.ne.pseudo %v3753
  %v4330 = vround.ne.pseudo %v3754
  %v4331 = vround.ne.pseudo %v3755
  %v4332 = vround.ne.pseudo %v3756
  %v4333 = vround.ne.pseudo %v3757
  %v4334 = vround.ne.pseudo %v3758
  %v4335 = vround.ne.pseudo %v3759
  %v4336 = vround.ne.pseudo %v3760
  %v4337 = vround.ne.pseudo %v3761
  %v4338 = vround.ne.pseudo %v3762
  %v4339 = vround.ne.pseudo %v3763
  %v4340 = vround.ne.pseudo %v3764
  %v4341 = vround.ne.pseudo %v3765
  %v4342 = vround.ne.pseudo %v3766
  %v4343 = vround.ne.pseudo %v3767
  %v4344 = vround.ne.pseudo %v3768
  %v4345 = vround.ne.pseudo %v3769
  %v4346 = vround.ne.pseudo %v3770
  %v4347 = vround.ne.pseudo %v3771
  %v4348 = vround.ne.pseudo %v3772
  %v4349 = vround.ne.pseudo %v3773
  %v4350 = vround.ne.pseudo %v3774
  %v4351 = vround.ne.pseudo %v3775
  %v4352 = vround.ne.pseudo %v3776
  %v4353 = vround.ne.pseudo %v3777
  %v4354 = vround.ne.pseudo %v3778
  %v4355 = vround.ne.pseudo %v3779
  %v4356 = vround.ne.pseudo %v3780
  %v4357 = vround.ne.pseudo %v3781
  %v4358 = vround.ne.pseudo %v3782
  %v4359 = vround.ne.pseudo %v3783
  %v4360 = vround.ne.pseudo %v3784
  %v4361 = vround.ne.pseudo %v3785
  %v4362 = vround.ne.pseudo %v3786
  %v4363 = vround.ne.pseudo %v3787
  %v4364 = vround.ne.pseudo %v3788
  %v4365 = vround.ne.pseudo %v3789
  %v4366 = vround.ne.pseudo %v3790
  %v4367 = vround.ne.pseudo %v3791
  %v4368 = vround.ne.pseudo %v3792
  %v4369 = vround.ne.pseudo %v3793
  %v4370 = vround.ne.pseudo %v3794
  %v4371 = vround.ne.pseudo %v3795
  %v4372 = vround.ne.pseudo %v3796
  %v4373 = vround.ne.pseudo %v3797
  %v4374 = vround.ne.pseudo %v3798
  %v4375 = vround.ne.pseudo %v3799
  %v4376 = vround.ne.pseudo %v3800
  %v4377 = vround.ne.pseudo %v3801
  %v4378 = vround.ne.pseudo %v3802
  %v4379 = vround.ne.pseudo %v3803
  %v4380 = vround.ne.pseudo %v3804
  %v4381 = vround.ne.pseudo %v3805
  %v4382 = vround.ne.pseudo %v3806
  %v4383 = vround.ne.pseudo %v3807
  %v4384 = vround.ne.pseudo %v3808
  %v4385 = vround.ne.pseudo %v3809
  %v4386 = vround.ne.pseudo %v3810
  %v4387 = vround.ne.pseudo %v3811
  %v4388 = vround.ne.pseudo %v3812
  %v4389 = vround.ne.pseudo %v3813
  %v4390 = vround.ne.pseudo %v3814
  %v4391 = vround.ne.pseudo %v3815
  %v4392 = vround.ne.pseudo %v3816
  %v4393 = vround.ne.pseudo %v3817
  %v4394 = vround.ne.pseudo %v3818
  %v4395 = vround.ne.pseudo %v3819
  %v4396 = vround.ne.pseudo %v3820
  %v4397 = vround.ne.pseudo %v3821
  %v4398 = vround.ne.pseudo %v3822
  %v4399 = vround.ne.pseudo %v3823
  %v4400 = vround.ne.pseudo %v3824
  %v4401 = vround.ne.pseudo %v3825
  %v4402 = vround.ne.pseudo %v3826
  %v4403 = vround.ne.pseudo %v3827
  %v4404 = vround.ne.pseudo %v3828
  %v4405 = vround.ne.pseudo %v3829
  %v4406 = vround.ne.pseudo %v3830
  %v4407 = vround.ne.pseudo %v3831
  %v4408 = vround.ne.pseudo %v3832
  %v4409 = vround.ne.pseudo %v3833
  %v4410 = vround.ne.pseudo %v3834
  %v4411 = vround.ne.pseudo %v3835
  %v4412 = vround.ne.pseudo %v3836
  %v4413 = vround.ne.pseudo %v3837
  %v4414 = vround.ne.pseudo %v3838
  %v4415 = vround.ne.pseudo %v3839
  %v4416 = vround.ne.pseudo %v3840
  %v4417 = vround.ne.pseudo %v3841
  %v4418 = vround.ne.pseudo %v3842
  %v4419 = vround.ne.pseudo %v3843
  %v4420 = vround.ne.pseudo %v3844
  %v4421 = vround.ne.pseudo %v3845
  %v4422 = vround.ne.pseudo %v3846
  %v4423 = vround.ne.pseudo %v3847
  %v4424 = vround.ne.pseudo %v3848
  %v4425 = vround.ne.pseudo %v3849
  %v4426 = vround.ne.pseudo %v3850
  %v4427 = vround.ne.pseudo %v3851
  %v4428 = vround.ne.pseudo %v3852
  %v4429 = vround.ne.pseudo %v3853
  %v4430 = vround.ne.pseudo %v3854
  %v4431 = vround.ne.pseudo %v3855
  %v4432 = vround.ne.pseudo %v3856
  %v4433 = vround.ne.pseudo %v3857
  %v4434 = vround.ne.pseudo %v3858
  %v4435 = vround.ne.pseudo %v3859
  %v4436 = vround.ne.pseudo %v3860
  %v4437 = vround.ne.pseudo %v3861
  %v4438 = vround.ne.pseudo %v3862
  %v4439 = vround.ne.pseudo %v3863
  %v4440 = vround.ne.pseudo %v3864
  %v4441 = vround.ne.pseudo %v3865
  %v4442 = vround.ne.pseudo %v3866
  %v4443 = vround.ne.pseudo %v3867
  %v4444 = vround.ne.pseudo %v3868
  %v4445 = vround.ne.pseudo %v3869
  %v4446 = vround.ne.pseudo %v3870
  %v4447 = vround.ne.pseudo %v3871
  %v4448 = vround.ne.pseudo %v3872
  %v4449 = vround.ne.pseudo %v3873
  %v4450 = vround.ne.pseudo %v3874
  %v4451 = vround.ne.pseudo %v3875
  %v4452 = vround.ne.pseudo %v3876
  %v4453 = vround.ne.pseudo %v3877
  %v4454 = vround.ne.pseudo %v3878
  %v4455 = vround.ne.pseudo %v3879
  %v4456 = vround.ne.pseudo %v3880
  %v4457 = vround.ne.pseudo %v3881
  %v4458 = vround.ne.pseudo %v3882
  %v4459 = vround.ne.pseudo %v3883
  %v4460 = vround.ne.pseudo %v3884
  %v4461 = vround.ne.pseudo %v3885
  %v4462 = vround.ne.pseudo %v3886
  %v4463 = vround.ne.pseudo %v3887
  %v4464 = vround.ne.pseudo %v3888
  %v4465 = vround.ne.pseudo %v3889
  %v4466 = vround.ne.pseudo %v3890
  %v4467 = vround.ne.pseudo %v3891
  %v4468 = vround.ne.pseudo %v3892
  %v4469 = vround.ne.pseudo %v3893
  %v4470 = vround.ne.pseudo %v3894
  %v4471 = vround.ne.pseudo %v3895
  %v4472 = vround.ne.pseudo %v3896
  %v4473 = vround.ne.pseudo %v3897
  %v4474 = vround.ne.pseudo %v3898
  %v4475 = vround.ne.pseudo %v3899
  %v4476 = vround.ne.pseudo %v3900
  %v4477 = vround.ne.pseudo %v3901
  %v4478 = vround.ne.pseudo %v3902
  %v4479 = vround.ne.pseudo %v3903
  %v4480 = vround.ne.pseudo %v3904
  %v4481 = vround.ne.pseudo %v3905
  %v4482 = vround.ne.pseudo %v3906
  %v4483 = vround.ne.pseudo %v3907
  %v4484 = vround.ne.pseudo %v3908
  %v4485 = vround.ne.pseudo %v3909
  %v4486 = vround.ne.pseudo %v3910
  %v4487 = vround.ne.pseudo %v3911
  %v4488 = vround.ne.pseudo %v3912
  %v4489 = vround.ne.pseudo %v3913
  %v4490 = vround.ne.pseudo %v3914
  %v4491 = vround.ne.pseudo %v3915
  %v4492 = vround.ne.pseudo %v3916
  %v4493 = vround.ne.pseudo %v3917
  %v4494 = vround.ne.pseudo %v3918
  %v4495 = vround.ne.pseudo %v3919
  %v4496 = vround.ne.pseudo %v3920
  %v4497 = vround.ne.pseudo %v3921
  %v4498 = vround.ne.pseudo %v3922
  %v4499 = vround.ne.pseudo %v3923
  %v4500 = vround.ne.pseudo %v3924
  %v4501 = vround.ne.pseudo %v3925
  %v4502 = vround.ne.pseudo %v3926
  %v4503 = vround.ne.pseudo %v3927
  %v4504 = vround.ne.pseudo %v3928
  %v4505 = vround.ne.pseudo %v3929
  %v4506 = vround.ne.pseudo %v3930
  %v4507 = vround.ne.pseudo %v3931
  %v4508 = vround.ne.pseudo %v3932
  %v4509 = vround.ne.pseudo %v3933
  %v4510 = vround.ne.pseudo %v3934
  %v4511 = vround.ne.pseudo %v3935
  %v4512 = vround.ne.pseudo %v3936
  %v4513 = vround.ne.pseudo %v3937
  %v4514 = vround.ne.pseudo %v3938
  %v4515 = vround.ne.pseudo %v3939
  %v4516 = vround.ne.pseudo %v3940
  %v4517 = vround.ne.pseudo %v3941
  %v4518 = vround.ne.pseudo %v3942
  %v4519 = vround.ne.pseudo %v3943
  %v4520 = vround.ne.pseudo %v3944
  %v4521 = vround.ne.pseudo %v3945
  %v4522 = vround.ne.pseudo %v3946
  %v4523 = vround.ne.pseudo %v3947
  %v4524 = vround.ne.pseudo %v3948
  %v4525 = vround.ne.pseudo %v3949
  %v4526 = vround.ne.pseudo %v3950
  %v4527 = vround.ne.pseudo %v3951
  %v4528 = vround.ne.pseudo %v3952
  %v4529 = vround.ne.pseudo %v3953
  %v4530 = vround.ne.pseudo %v3954
  %v4531 = vround.ne.pseudo %v3955
  %v4532 = vround.ne.pseudo %v3956
  %v4533 = vround.ne.pseudo %v3957
  %v4534 = vround.ne.pseudo %v3958
  %v4535 = vround.ne.pseudo %v3959
  %v4536 = vround.ne.pseudo %v3960
  %v4537 = vround.ne.pseudo %v3961
  %v4538 = vround.ne.pseudo %v3962
  %v4539 = vround.ne.pseudo %v3963
  %v4540 = vround.ne.pseudo %v3964
  %v4541 = vround.ne.pseudo %v3965
  %v4542 = vround.ne.pseudo %v3966
  %v4543 = vround.ne.pseudo %v3967
  %v4544 = vround.ne.pseudo %v3968
  %v4545 = vround.ne.pseudo %v3969
  %v4546 = vround.ne.pseudo %v3970
  %v4547 = vround.ne.pseudo %v3971
  %v4548 = vround.ne.pseudo %v3972
  %v4549 = vround.ne.pseudo %v3973
  %v4550 = vround.ne.pseudo %v3974
  %v4551 = vround.ne.pseudo %v3975
  %v4552 = vround.ne.pseudo %v3976
  %v4553 = vround.ne.pseudo %v3977
  %v4554 = vround.ne.pseudo %v3978
  %v4555 = vround.ne.pseudo %v3979
  %v4556 = vround.ne.pseudo %v3980
  %v4557 = vround.ne.pseudo %v3981
  %v4558 = vround.ne.pseudo %v3982
  %v4559 = vround.ne.pseudo %v3983
  %v4560 = vround.ne.pseudo %v3984
  %v4561 = vround.ne.pseudo %v3985
  %v4562 = vround.ne.pseudo %v3986
  %v4563 = vround.ne.pseudo %v3987
  %v4564 = vround.ne.pseudo %v3988
  %v4565 = vround.ne.pseudo %v3989
  %v4566 = vround.ne.pseudo %v3990
  %v4567 = vround.ne.pseudo %v3991
  %v4568 = vround.ne.pseudo %v3992
  %v4569 = vround.ne.pseudo %v3993
  %v4570 = vround.ne.pseudo %v3994
  %v4571 = vround.ne.pseudo %v3995
  %v4572 = vround.ne.pseudo %v3996
  %v4573 = vround.ne.pseudo %v3997
  %v4574 = vround.ne.pseudo %v3998
  %v4575 = vround.ne.pseudo %v3999
  %v4576 = vround.ne.pseudo %v4000
  %v4577 = vround.ne.pseudo %v4001
  %v4578 = vround.ne.pseudo %v4002
  %v4579 = vround.ne.pseudo %v4003
  %v4580 = vround.ne.pseudo %v4004
  %v4581 = vround.ne.pseudo %v4005
  %v4582 = vround.ne.pseudo %v4006
  %v4583 = vround.ne.pseudo %v4007
  %v4584 = vround.ne.pseudo %v4008
  %v4585 = vround.ne.pseudo %v4009
  %v4586 = vround.ne.pseudo %v4010
  %v4587 = vround.ne.pseudo %v4011
  %v4588 = vround.ne.pseudo %v4012
  %v4589 = vround.ne.pseudo %v4013
  %v4590 = vround.ne.pseudo %v4014
  %v4591 = vround.ne.pseudo %v4015
  %v4592 = vround.ne.pseudo %v4016
  %v4593 = vround.ne.pseudo %v4017
  %v4594 = vround.ne.pseudo %v4018
  %v4595 = vround.ne.pseudo %v4019
  %v4596 = vround.ne.pseudo %v4020
  %v4597 = vround.ne.pseudo %v4021
  %v4598 = vround.ne.pseudo %v4022
  %v4599 = vround.ne.pseudo %v4023
  %v4600 = vround.ne.pseudo %v4024
  %v4601 = vround.ne.pseudo %v4025
  %v4602 = vround.ne.pseudo %v4026
  %v4603 = vround.ne.pseudo %v4027
  %v4604 = vround.ne.pseudo %v4028
  %v4605 = vround.ne.pseudo %v4029
  %v4606 = vround.ne.pseudo %v4030
  %v4607 = vround.ne.pseudo %v4031
  %v4608 = vround.ne.pseudo %v4032
  %v4609 = vround.ne.pseudo %v4033
  %v4610 = vround.ne.pseudo %v4034
  %v4611 = vround.ne.pseudo %v4035
  %v4612 = vround.ne.pseudo %v4036
  %v4613 = vround.ne.pseudo %v4037
  %v4614 = vround.ne.pseudo %v4038
  %v4615 = vround.ne.pseudo %v4039
  %v4616 = vround.ne.pseudo %v4040
  %v4617 = vround.ne.pseudo %v4041
  %v4618 = vround.ne.pseudo %v4042
  %v4619 = vround.ne.pseudo %v4043
  %v4620 = vround.ne.pseudo %v4044
  %v4621 = vround.ne.pseudo %v4045
  %v4622 = vround.ne.pseudo %v4046
  %v4623 = vround.ne.pseudo %v4047
  %v4624 = vround.ne.pseudo %v4048
  %v4625 = vround.ne.pseudo %v4049
  %v4626 = vround.ne.pseudo %v4050
  %v4627 = vround.ne.pseudo %v4051
  %v4628 = vround.ne.pseudo %v4052
  %v4629 = vround.ne.pseudo %v4053
  %v4630 = vround.ne.pseudo %v4054
  %v4631 = vround.ne.pseudo %v4055
  %v4632 = vmul.f32 %v4056, 0.007843138
  %v4633 = vmul.f32 %v4057, 0.007843138
  %v4634 = vmul.f32 %v4058, 0.007843138
  %v4635 = vmul.f32 %v4059, 0.007843138
  %v4636 = vmul.f32 %v4060, 0.007843138
  %v4637 = vmul.f32 %v4061, 0.007843138
  %v4638 = vmul.f32 %v4062, 0.007843138
  %v4639 = vmul.f32 %v4063, 0.007843138
  %v4640 = vmul.f32 %v4064, 0.007843138
  %v4641 = vmul.f32 %v4065, 0.007843138
  %v4642 = vmul.f32 %v4066, 0.007843138
  %v4643 = vmul.f32 %v4067, 0.007843138
  %v4644 = vmul.f32 %v4068, 0.007843138
  %v4645 = vmul.f32 %v4069, 0.007843138
  %v4646 = vmul.f32 %v4070, 0.007843138
  %v4647 = vmul.f32 %v4071, 0.007843138
  %v4648 = vmul.f32 %v4072, 0.007843138
  %v4649 = vmul.f32 %v4073, 0.007843138
  %v4650 = vmul.f32 %v4074, 0.007843138
  %v4651 = vmul.f32 %v4075, 0.007843138
  %v4652 = vmul.f32 %v4076, 0.007843138
  %v4653 = vmul.f32 %v4077, 0.007843138
  %v4654 = vmul.f32 %v4078, 0.007843138
  %v4655 = vmul.f32 %v4079, 0.007843138
  %v4656 = vmul.f32 %v4080, 0.007843138
  %v4657 = vmul.f32 %v4081, 0.007843138
  %v4658 = vmul.f32 %v4082, 0.007843138
  %v4659 = vmul.f32 %v4083, 0.007843138
  %v4660 = vmul.f32 %v4084, 0.007843138
  %v4661 = vmul.f32 %v4085, 0.007843138
  %v4662 = vmul.f32 %v4086, 0.007843138
  %v4663 = vmul.f32 %v4087, 0.007843138
  %v4664 = vmul.f32 %v4088, 0.007843138
  %v4665 = vmul.f32 %v4089, 0.007843138
  %v4666 = vmul.f32 %v4090, 0.007843138
  %v4667 = vmul.f32 %v4091, 0.007843138
  %v4668 = vmul.f32 %v4092, 0.007843138
  %v4669 = vmul.f32 %v4093, 0.007843138
  %v4670 = vmul.f32 %v4094, 0.007843138
  %v4671 = vmul.f32 %v4095, 0.007843138
  %v4672 = vmul.f32 %v4096, 0.007843138
  %v4673 = vmul.f32 %v4097, 0.007843138
  %v4674 = vmul.f32 %v4098, 0.007843138
  %v4675 = vmul.f32 %v4099, 0.007843138
  %v4676 = vmul.f32 %v4100, 0.007843138
  %v4677 = vmul.f32 %v4101, 0.007843138
  %v4678 = vmul.f32 %v4102, 0.007843138
  %v4679 = vmul.f32 %v4103, 0.007843138
  %v4680 = vmul.f32 %v4104, 0.007843138
  %v4681 = vmul.f32 %v4105, 0.007843138
  %v4682 = vmul.f32 %v4106, 0.007843138
  %v4683 = vmul.f32 %v4107, 0.007843138
  %v4684 = vmul.f32 %v4108, 0.007843138
  %v4685 = vmul.f32 %v4109, 0.007843138
  %v4686 = vmul.f32 %v4110, 0.007843138
  %v4687 = vmul.f32 %v4111, 0.007843138
  %v4688 = vmul.f32 %v4112, 0.007843138
  %v4689 = vmul.f32 %v4113, 0.007843138
  %v4690 = vmul.f32 %v4114, 0.007843138
  %v4691 = vmul.f32 %v4115, 0.007843138
  %v4692 = vmul.f32 %v4116, 0.007843138
  %v4693 = vmul.f32 %v4117, 0.007843138
  %v4694 = vmul.f32 %v4118, 0.007843138
  %v4695 = vmul.f32 %v4119, 0.007843138
  %v4696 = vmul.f32 %v4120, 0.007843138
  %v4697 = vmul.f32 %v4121, 0.007843138
  %v4698 = vmul.f32 %v4122, 0.007843138
  %v4699 = vmul.f32 %v4123, 0.007843138
  %v4700 = vmul.f32 %v4124, 0.007843138
  %v4701 = vmul.f32 %v4125, 0.007843138
  %v4702 = vmul.f32 %v4126, 0.007843138
  %v4703 = vmul.f32 %v4127, 0.007843138
  %v4704 = vmul.f32 %v4128, 0.007843138
  %v4705 = vmul.f32 %v4129, 0.007843138
  %v4706 = vmul.f32 %v4130, 0.007843138
  %v4707 = vmul.f32 %v4131, 0.007843138
  %v4708 = vmul.f32 %v4132, 0.007843138
  %v4709 = vmul.f32 %v4133, 0.007843138
  %v4710 = vmul.f32 %v4134, 0.007843138
  %v4711 = vmul.f32 %v4135, 0.007843138
  %v4712 = vmul.f32 %v4136, 0.007843138
  %v4713 = vmul.f32 %v4137, 0.007843138
  %v4714 = vmul.f32 %v4138, 0.007843138
  %v4715 = vmul.f32 %v4139, 0.007843138
  %v4716 = vmul.f32 %v4140, 0.007843138
  %v4717 = vmul.f32 %v4141, 0.007843138
  %v4718 = vmul.f32 %v4142, 0.007843138
  %v4719 = vmul.f32 %v4143, 0.007843138
  %v4720 = vmul.f32 %v4144, 0.007843138
  %v4721 = vmul.f32 %v4145, 0.007843138
  %v4722 = vmul.f32 %v4146, 0.007843138
  %v4723 = vmul.f32 %v4147, 0.007843138
  %v4724 = vmul.f32 %v4148, 0.007843138
  %v4725 = vmul.f32 %v4149, 0.007843138
  %v4726 = vmul.f32 %v4150, 0.007843138
  %v4727 = vmul.f32 %v4151, 0.007843138
  %v4728 = vmul.f32 %v4152, 0.007843138
  %v4729 = vmul.f32 %v4153, 0.007843138
  %v4730 = vmul.f32 %v4154, 0.007843138
  %v4731 = vmul.f32 %v4155, 0.007843138
  %v4732 = vmul.f32 %v4156, 0.007843138
  %v4733 = vmul.f32 %v4157, 0.007843138
  %v4734 = vmul.f32 %v4158, 0.007843138
  %v4735 = vmul.f32 %v4159, 0.007843138
  %v4736 = vmul.f32 %v4160, 0.007843138
  %v4737 = vmul.f32 %v4161, 0.007843138
  %v4738 = vmul.f32 %v4162, 0.007843138
  %v4739 = vmul.f32 %v4163, 0.007843138
  %v4740 = vmul.f32 %v4164, 0.007843138
  %v4741 = vmul.f32 %v4165, 0.007843138
  %v4742 = vmul.f32 %v4166, 0.007843138
  %v4743 = vmul.f32 %v4167, 0.007843138
  %v4744 = vmul.f32 %v4168, 0.007843138
  %v4745 = vmul.f32 %v4169, 0.007843138
  %v4746 = vmul.f32 %v4170, 0.007843138
  %v4747 = vmul.f32 %v4171, 0.007843138
  %v4748 = vmul.f32 %v4172, 0.007843138
  %v4749 = vmul.f32 %v4173, 0.007843138
  %v4750 = vmul.f32 %v4174, 0.007843138
  %v4751 = vmul.f32 %v4175, 0.007843138
  %v4752 = vmul.f32 %v4176, 0.007843138
  %v4753 = vmul.f32 %v4177, 0.007843138
  %v4754 = vmul.f32 %v4178, 0.007843138
  %v4755 = vmul.f32 %v4179, 0.007843138
  %v4756 = vmul.f32 %v4180, 0.007843138
  %v4757 = vmul.f32 %v4181, 0.007843138
  %v4758 = vmul.f32 %v4182, 0.007843138
  %v4759 = vmul.f32 %v4183, 0.007843138
  %v4760 = vmul.f32 %v4184, 0.007843138
  %v4761 = vmul.f32 %v4185, 0.007843138
  %v4762 = vmul.f32 %v4186, 0.007843138
  %v4763 = vmul.f32 %v4187, 0.007843138
  %v4764 = vmul.f32 %v4188, 0.007843138
  %v4765 = vmul.f32 %v4189, 0.007843138
  %v4766 = vmul.f32 %v4190, 0.007843138
  %v4767 = vmul.f32 %v4191, 0.007843138
  %v4768 = vmul.f32 %v4192, 0.007843138
  %v4769 = vmul.f32 %v4193, 0.007843138
  %v4770 = vmul.f32 %v4194, 0.007843138
  %v4771 = vmul.f32 %v4195, 0.007843138
  %v4772 = vmul.f32 %v4196, 0.007843138
  %v4773 = vmul.f32 %v4197, 0.007843138
  %v4774 = vmul.f32 %v4198, 0.007843138
  %v4775 = vmul.f32 %v4199, 0.007843138
  %v4776 = vmul.f32 %v4200, 0.007843138
  %v4777 = vmul.f32 %v4201, 0.007843138
  %v4778 = vmul.f32 %v4202, 0.007843138
  %v4779 = vmul.f32 %v4203, 0.007843138
  %v4780 = vmul.f32 %v4204, 0.007843138
  %v4781 = vmul.f32 %v4205, 0.007843138
  %v4782 = vmul.f32 %v4206, 0.007843138
  %v4783 = vmul.f32 %v4207, 0.007843138
  %v4784 = vmul.f32 %v4208, 0.007843138
  %v4785 = vmul.f32 %v4209, 0.007843138
  %v4786 = vmul.f32 %v4210, 0.007843138
  %v4787 = vmul.f32 %v4211, 0.007843138
  %v4788 = vmul.f32 %v4212, 0.007843138
  %v4789 = vmul.f32 %v4213, 0.007843138
  %v4790 = vmul.f32 %v4214, 0.007843138
  %v4791 = vmul.f32 %v4215, 0.007843138
  %v4792 = vmul.f32 %v4216, 0.007843138
  %v4793 = vmul.f32 %v4217, 0.007843138
  %v4794 = vmul.f32 %v4218, 0.007843138
  %v4795 = vmul.f32 %v4219, 0.007843138
  %v4796 = vmul.f32 %v4220, 0.007843138
  %v4797 = vmul.f32 %v4221, 0.007843138
  %v4798 = vmul.f32 %v4222, 0.007843138
  %v4799 = vmul.f32 %v4223, 0.007843138
  %v4800 = vmul.f32 %v4224, 0.007843138
  %v4801 = vmul.f32 %v4225, 0.007843138
  %v4802 = vmul.f32 %v4226, 0.007843138
  %v4803 = vmul.f32 %v4227, 0.007843138
  %v4804 = vmul.f32 %v4228, 0.007843138
  %v4805 = vmul.f32 %v4229, 0.007843138
  %v4806 = vmul.f32 %v4230, 0.007843138
  %v4807 = vmul.f32 %v4231, 0.007843138
  %v4808 = vmul.f32 %v4232, 0.007843138
  %v4809 = vmul.f32 %v4233, 0.007843138
  %v4810 = vmul.f32 %v4234, 0.007843138
  %v4811 = vmul.f32 %v4235, 0.007843138
  %v4812 = vmul.f32 %v4236, 0.007843138
  %v4813 = vmul.f32 %v4237, 0.007843138
  %v4814 = vmul.f32 %v4238, 0.007843138
  %v4815 = vmul.f32 %v4239, 0.007843138
  %v4816 = vmul.f32 %v4240, 0.007843138
  %v4817 = vmul.f32 %v4241, 0.007843138
  %v4818 = vmul.f32 %v4242, 0.007843138
  %v4819 = vmul.f32 %v4243, 0.007843138
  %v4820 = vmul.f32 %v4244, 0.007843138
  %v4821 = vmul.f32 %v4245, 0.007843138
  %v4822 = vmul.f32 %v4246, 0.007843138
  %v4823 = vmul.f32 %v4247, 0.007843138
  %v4824 = vmul.f32 %v4248, 0.007843138
  %v4825 = vmul.f32 %v4249, 0.007843138
  %v4826 = vmul.f32 %v4250, 0.007843138
  %v4827 = vmul.f32 %v4251, 0.007843138
  %v4828 = vmul.f32 %v4252, 0.007843138
  %v4829 = vmul.f32 %v4253, 0.007843138
  %v4830 = vmul.f32 %v4254, 0.007843138
  %v4831 = vmul.f32 %v4255, 0.007843138
  %v4832 = vmul.f32 %v4256, 0.007843138
  %v4833 = vmul.f32 %v4257, 0.007843138
  %v4834 = vmul.f32 %v4258, 0.007843138
  %v4835 = vmul.f32 %v4259, 0.007843138
  %v4836 = vmul.f32 %v4260, 0.007843138
  %v4837 = vmul.f32 %v4261, 0.007843138
  %v4838 = vmul.f32 %v4262, 0.007843138
  %v4839 = vmul.f32 %v4263, 0.007843138
  %v4840 = vmul.f32 %v4264, 0.007843138
  %v4841 = vmul.f32 %v4265, 0.007843138
  %v4842 = vmul.f32 %v4266, 0.007843138
  %v4843 = vmul.f32 %v4267, 0.007843138
  %v4844 = vmul.f32 %v4268, 0.007843138
  %v4845 = vmul.f32 %v4269, 0.007843138
  %v4846 = vmul.f32 %v4270, 0.007843138
  %v4847 = vmul.f32 %v4271, 0.007843138
  %v4848 = vmul.f32 %v4272, 0.007843138
  %v4849 = vmul.f32 %v4273, 0.007843138
  %v4850 = vmul.f32 %v4274, 0.007843138
  %v4851 = vmul.f32 %v4275, 0.007843138
  %v4852 = vmul.f32 %v4276, 0.007843138
  %v4853 = vmul.f32 %v4277, 0.007843138
  %v4854 = vmul.f32 %v4278, 0.007843138
  %v4855 = vmul.f32 %v4279, 0.007843138
  %v4856 = vmul.f32 %v4280, 0.007843138
  %v4857 = vmul.f32 %v4281, 0.007843138
  %v4858 = vmul.f32 %v4282, 0.007843138
  %v4859 = vmul.f32 %v4283, 0.007843138
  %v4860 = vmul.f32 %v4284, 0.007843138
  %v4861 = vmul.f32 %v4285, 0.007843138
  %v4862 = vmul.f32 %v4286, 0.007843138
  %v4863 = vmul.f32 %v4287, 0.007843138
  %v4864 = vmul.f32 %v4288, 0.007843138
  %v4865 = vmul.f32 %v4289, 0.007843138
  %v4866 = vmul.f32 %v4290, 0.007843138
  %v4867 = vmul.f32 %v4291, 0.007843138
  %v4868 = vmul.f32 %v4292, 0.007843138
  %v4869 = vmul.f32 %v4293, 0.007843138
  %v4870 = vmul.f32 %v4294, 0.007843138
  %v4871 = vmul.f32 %v4295, 0.007843138
  %v4872 = vmul.f32 %v4296, 0.007843138
  %v4873 = vmul.f32 %v4297, 0.007843138
  %v4874 = vmul.f32 %v4298, 0.007843138
  %v4875 = vmul.f32 %v4299, 0.007843138
  %v4876 = vmul.f32 %v4300, 0.007843138
  %v4877 = vmul.f32 %v4301, 0.007843138
  %v4878 = vmul.f32 %v4302, 0.007843138
  %v4879 = vmul.f32 %v4303, 0.007843138
  %v4880 = vmul.f32 %v4304, 0.007843138
  %v4881 = vmul.f32 %v4305, 0.007843138
  %v4882 = vmul.f32 %v4306, 0.007843138
  %v4883 = vmul.f32 %v4307, 0.007843138
  %v4884 = vmul.f32 %v4308, 0.007843138
  %v4885 = vmul.f32 %v4309, 0.007843138
  %v4886 = vmul.f32 %v4310, 0.007843138
  %v4887 = vmul.f32 %v4311, 0.007843138
  %v4888 = vmul.f32 %v4312, 0.007843138
  %v4889 = vmul.f32 %v4313, 0.007843138
  %v4890 = vmul.f32 %v4314, 0.007843138
  %v4891 = vmul.f32 %v4315, 0.007843138
  %v4892 = vmul.f32 %v4316, 0.007843138
  %v4893 = vmul.f32 %v4317, 0.007843138
  %v4894 = vmul.f32 %v4318, 0.007843138
  %v4895 = vmul.f32 %v4319, 0.007843138
  %v4896 = vmul.f32 %v4320, 0.007843138
  %v4897 = vmul.f32 %v4321, 0.007843138
  %v4898 = vmul.f32 %v4322, 0.007843138
  %v4899 = vmul.f32 %v4323, 0.007843138
  %v4900 = vmul.f32 %v4324, 0.007843138
  %v4901 = vmul.f32 %v4325, 0.007843138
  %v4902 = vmul.f32 %v4326, 0.007843138
  %v4903 = vmul.f32 %v4327, 0.007843138
  %v4904 = vmul.f32 %v4328, 0.007843138
  %v4905 = vmul.f32 %v4329, 0.007843138
  %v4906 = vmul.f32 %v4330, 0.007843138
  %v4907 = vmul.f32 %v4331, 0.007843138
  %v4908 = vmul.f32 %v4332, 0.007843138
  %v4909 = vmul.f32 %v4333, 0.007843138
  %v4910 = vmul.f32 %v4334, 0.007843138
  %v4911 = vmul.f32 %v4335, 0.007843138
  %v4912 = vmul.f32 %v4336, 0.007843138
  %v4913 = vmul.f32 %v4337, 0.007843138
  %v4914 = vmul.f32 %v4338, 0.007843138
  %v4915 = vmul.f32 %v4339, 0.007843138
  %v4916 = vmul.f32 %v4340, 0.007843138
  %v4917 = vmul.f32 %v4341, 0.007843138
  %v4918 = vmul.f32 %v4342, 0.007843138
  %v4919 = vmul.f32 %v4343, 0.007843138
  %v4920 = vmul.f32 %v4344, 0.007843138
  %v4921 = vmul.f32 %v4345, 0.007843138
  %v4922 = vmul.f32 %v4346, 0.007843138
  %v4923 = vmul.f32 %v4347, 0.007843138
  %v4924 = vmul.f32 %v4348, 0.007843138
  %v4925 = vmul.f32 %v4349, 0.007843138
  %v4926 = vmul.f32 %v4350, 0.007843138
  %v4927 = vmul.f32 %v4351, 0.007843138
  %v4928 = vmul.f32 %v4352, 0.007843138
  %v4929 = vmul.f32 %v4353, 0.007843138
  %v4930 = vmul.f32 %v4354, 0.007843138
  %v4931 = vmul.f32 %v4355, 0.007843138
  %v4932 = vmul.f32 %v4356, 0.007843138
  %v4933 = vmul.f32 %v4357, 0.007843138
  %v4934 = vmul.f32 %v4358, 0.007843138
  %v4935 = vmul.f32 %v4359, 0.007843138
  %v4936 = vmul.f32 %v4360, 0.007843138
  %v4937 = vmul.f32 %v4361, 0.007843138
  %v4938 = vmul.f32 %v4362, 0.007843138
  %v4939 = vmul.f32 %v4363, 0.007843138
  %v4940 = vmul.f32 %v4364, 0.007843138
  %v4941 = vmul.f32 %v4365, 0.007843138
  %v4942 = vmul.f32 %v4366, 0.007843138
  %v4943 = vmul.f32 %v4367, 0.007843138
  %v4944 = vmul.f32 %v4368, 0.007843138
  %v4945 = vmul.f32 %v4369, 0.007843138
  %v4946 = vmul.f32 %v4370, 0.007843138
  %v4947 = vmul.f32 %v4371, 0.007843138
  %v4948 = vmul.f32 %v4372, 0.007843138
  %v4949 = vmul.f32 %v4373, 0.007843138
  %v4950 = vmul.f32 %v4374, 0.007843138
  %v4951 = vmul.f32 %v4375, 0.007843138
  %v4952 = vmul.f32 %v4376, 0.007843138
  %v4953 = vmul.f32 %v4377, 0.007843138
  %v4954 = vmul.f32 %v4378, 0.007843138
  %v4955 = vmul.f32 %v4379, 0.007843138
  %v4956 = vmul.f32 %v4380, 0.007843138
  %v4957 = vmul.f32 %v4381, 0.007843138
  %v4958 = vmul.f32 %v4382, 0.007843138
  %v4959 = vmul.f32 %v4383, 0.007843138
  %v4960 = vmul.f32 %v4384, 0.007843138
  %v4961 = vmul.f32 %v4385, 0.007843138
  %v4962 = vmul.f32 %v4386, 0.007843138
  %v4963 = vmul.f32 %v4387, 0.007843138
  %v4964 = vmul.f32 %v4388, 0.007843138
  %v4965 = vmul.f32 %v4389, 0.007843138
  %v4966 = vmul.f32 %v4390, 0.007843138
  %v4967 = vmul.f32 %v4391, 0.007843138
  %v4968 = vmul.f32 %v4392, 0.007843138
  %v4969 = vmul.f32 %v4393, 0.007843138
  %v4970 = vmul.f32 %v4394, 0.007843138
  %v4971 = vmul.f32 %v4395, 0.007843138
  %v4972 = vmul.f32 %v4396, 0.007843138
  %v4973 = vmul.f32 %v4397, 0.007843138
  %v4974 = vmul.f32 %v4398, 0.007843138
  %v4975 = vmul.f32 %v4399, 0.007843138
  %v4976 = vmul.f32 %v4400, 0.007843138
  %v4977 = vmul.f32 %v4401, 0.007843138
  %v4978 = vmul.f32 %v4402, 0.007843138
  %v4979 = vmul.f32 %v4403, 0.007843138
  %v4980 = vmul.f32 %v4404, 0.007843138
  %v4981 = vmul.f32 %v4405, 0.007843138
  %v4982 = vmul.f32 %v4406, 0.007843138
  %v4983 = vmul.f32 %v4407, 0.007843138
  %v4984 = vmul.f32 %v4408, 0.007843138
  %v4985 = vmul.f32 %v4409, 0.007843138
  %v4986 = vmul.f32 %v4410, 0.007843138
  %v4987 = vmul.f32 %v4411, 0.007843138
  %v4988 = vmul.f32 %v4412, 0.007843138
  %v4989 = vmul.f32 %v4413, 0.007843138
  %v4990 = vmul.f32 %v4414, 0.007843138
  %v4991 = vmul.f32 %v4415, 0.007843138
  %v4992 = vmul.f32 %v4416, 0.007843138
  %v4993 = vmul.f32 %v4417, 0.007843138
  %v4994 = vmul.f32 %v4418, 0.007843138
  %v4995 = vmul.f32 %v4419, 0.007843138
  %v4996 = vmul.f32 %v4420, 0.007843138
  %v4997 = vmul.f32 %v4421, 0.007843138
  %v4998 = vmul.f32 %v4422, 0.007843138
  %v4999 = vmul.f32 %v4423, 0.007843138
  %v5000 = vmul.f32 %v4424, 0.007843138
  %v5001 = vmul.f32 %v4425, 0.007843138
  %v5002 = vmul.f32 %v4426, 0.007843138
  %v5003 = vmul.f32 %v4427, 0.007843138
  %v5004 = vmul.f32 %v4428, 0.007843138
  %v5005 = vmul.f32 %v4429, 0.007843138
  %v5006 = vmul.f32 %v4430, 0.007843138
  %v5007 = vmul.f32 %v4431, 0.007843138
  %v5008 = vmul.f32 %v4432, 0.007843138
  %v5009 = vmul.f32 %v4433, 0.007843138
  %v5010 = vmul.f32 %v4434, 0.007843138
  %v5011 = vmul.f32 %v4435, 0.007843138
  %v5012 = vmul.f32 %v4436, 0.007843138
  %v5013 = vmul.f32 %v4437, 0.007843138
  %v5014 = vmul.f32 %v4438, 0.007843138
  %v5015 = vmul.f32 %v4439, 0.007843138
  %v5016 = vmul.f32 %v4440, 0.007843138
  %v5017 = vmul.f32 %v4441, 0.007843138
  %v5018 = vmul.f32 %v4442, 0.007843138
  %v5019 = vmul.f32 %v4443, 0.007843138
  %v5020 = vmul.f32 %v4444, 0.007843138
  %v5021 = vmul.f32 %v4445, 0.007843138
  %v5022 = vmul.f32 %v4446, 0.007843138
  %v5023 = vmul.f32 %v4447, 0.007843138
  %v5024 = vmul.f32 %v4448, 0.007843138
  %v5025 = vmul.f32 %v4449, 0.007843138
  %v5026 = vmul.f32 %v4450, 0.007843138
  %v5027 = vmul.f32 %v4451, 0.007843138
  %v5028 = vmul.f32 %v4452, 0.007843138
  %v5029 = vmul.f32 %v4453, 0.007843138
  %v5030 = vmul.f32 %v4454, 0.007843138
  %v5031 = vmul.f32 %v4455, 0.007843138
  %v5032 = vmul.f32 %v4456, 0.007843138
  %v5033 = vmul.f32 %v4457, 0.007843138
  %v5034 = vmul.f32 %v4458, 0.007843138
  %v5035 = vmul.f32 %v4459, 0.007843138
  %v5036 = vmul.f32 %v4460, 0.007843138
  %v5037 = vmul.f32 %v4461, 0.007843138
  %v5038 = vmul.f32 %v4462, 0.007843138
  %v5039 = vmul.f32 %v4463, 0.007843138
  %v5040 = vmul.f32 %v4464, 0.007843138
  %v5041 = vmul.f32 %v4465, 0.007843138
  %v5042 = vmul.f32 %v4466, 0.007843138
  %v5043 = vmul.f32 %v4467, 0.007843138
  %v5044 = vmul.f32 %v4468, 0.007843138
  %v5045 = vmul.f32 %v4469, 0.007843138
  %v5046 = vmul.f32 %v4470, 0.007843138
  %v5047 = vmul.f32 %v4471, 0.007843138
  %v5048 = vmul.f32 %v4472, 0.007843138
  %v5049 = vmul.f32 %v4473, 0.007843138
  %v5050 = vmul.f32 %v4474, 0.007843138
  %v5051 = vmul.f32 %v4475, 0.007843138
  %v5052 = vmul.f32 %v4476, 0.007843138
  %v5053 = vmul.f32 %v4477, 0.007843138
  %v5054 = vmul.f32 %v4478, 0.007843138
  %v5055 = vmul.f32 %v4479, 0.007843138
  %v5056 = vmul.f32 %v4480, 0.007843138
  %v5057 = vmul.f32 %v4481, 0.007843138
  %v5058 = vmul.f32 %v4482, 0.007843138
  %v5059 = vmul.f32 %v4483, 0.007843138
  %v5060 = vmul.f32 %v4484, 0.007843138
  %v5061 = vmul.f32 %v4485, 0.007843138
  %v5062 = vmul.f32 %v4486, 0.007843138
  %v5063 = vmul.f32 %v4487, 0.007843138
  %v5064 = vmul.f32 %v4488, 0.007843138
  %v5065 = vmul.f32 %v4489, 0.007843138
  %v5066 = vmul.f32 %v4490, 0.007843138
  %v5067 = vmul.f32 %v4491, 0.007843138
  %v5068 = vmul.f32 %v4492, 0.007843138
  %v5069 = vmul.f32 %v4493, 0.007843138
  %v5070 = vmul.f32 %v4494, 0.007843138
  %v5071 = vmul.f32 %v4495, 0.007843138
  %v5072 = vmul.f32 %v4496, 0.007843138
  %v5073 = vmul.f32 %v4497, 0.007843138
  %v5074 = vmul.f32 %v4498, 0.007843138
  %v5075 = vmul.f32 %v4499, 0.007843138
  %v5076 = vmul.f32 %v4500, 0.007843138
  %v5077 = vmul.f32 %v4501, 0.007843138
  %v5078 = vmul.f32 %v4502, 0.007843138
  %v5079 = vmul.f32 %v4503, 0.007843138
  %v5080 = vmul.f32 %v4504, 0.007843138
  %v5081 = vmul.f32 %v4505, 0.007843138
  %v5082 = vmul.f32 %v4506, 0.007843138
  %v5083 = vmul.f32 %v4507, 0.007843138
  %v5084 = vmul.f32 %v4508, 0.007843138
  %v5085 = vmul.f32 %v4509, 0.007843138
  %v5086 = vmul.f32 %v4510, 0.007843138
  %v5087 = vmul.f32 %v4511, 0.007843138
  %v5088 = vmul.f32 %v4512, 0.007843138
  %v5089 = vmul.f32 %v4513, 0.007843138
  %v5090 = vmul.f32 %v4514, 0.007843138
  %v5091 = vmul.f32 %v4515, 0.007843138
  %v5092 = vmul.f32 %v4516, 0.007843138
  %v5093 = vmul.f32 %v4517, 0.007843138
  %v5094 = vmul.f32 %v4518, 0.007843138
  %v5095 = vmul.f32 %v4519, 0.007843138
  %v5096 = vmul.f32 %v4520, 0.007843138
  %v5097 = vmul.f32 %v4521, 0.007843138
  %v5098 = vmul.f32 %v4522, 0.007843138
  %v5099 = vmul.f32 %v4523, 0.007843138
  %v5100 = vmul.f32 %v4524, 0.007843138
  %v5101 = vmul.f32 %v4525, 0.007843138
  %v5102 = vmul.f32 %v4526, 0.007843138
  %v5103 = vmul.f32 %v4527, 0.007843138
  %v5104 = vmul.f32 %v4528, 0.007843138
  %v5105 = vmul.f32 %v4529, 0.007843138
  %v5106 = vmul.f32 %v4530, 0.007843138
  %v5107 = vmul.f32 %v4531, 0.007843138
  %v5108 = vmul.f32 %v4532, 0.007843138
  %v5109 = vmul.f32 %v4533, 0.007843138
  %v5110 = vmul.f32 %v4534, 0.007843138
  %v5111 = vmul.f32 %v4535, 0.007843138
  %v5112 = vmul.f32 %v4536, 0.007843138
  %v5113 = vmul.f32 %v4537, 0.007843138
  %v5114 = vmul.f32 %v4538, 0.007843138
  %v5115 = vmul.f32 %v4539, 0.007843138
  %v5116 = vmul.f32 %v4540, 0.007843138
  %v5117 = vmul.f32 %v4541, 0.007843138
  %v5118 = vmul.f32 %v4542, 0.007843138
  %v5119 = vmul.f32 %v4543, 0.007843138
  %v5120 = vmul.f32 %v4544, 0.007843138
  %v5121 = vmul.f32 %v4545, 0.007843138
  %v5122 = vmul.f32 %v4546, 0.007843138
  %v5123 = vmul.f32 %v4547, 0.007843138
  %v5124 = vmul.f32 %v4548, 0.007843138
  %v5125 = vmul.f32 %v4549, 0.007843138
  %v5126 = vmul.f32 %v4550, 0.007843138
  %v5127 = vmul.f32 %v4551, 0.007843138
  %v5128 = vmul.f32 %v4552, 0.007843138
  %v5129 = vmul.f32 %v4553, 0.007843138
  %v5130 = vmul.f32 %v4554, 0.007843138
  %v5131 = vmul.f32 %v4555, 0.007843138
  %v5132 = vmul.f32 %v4556, 0.007843138
  %v5133 = vmul.f32 %v4557, 0.007843138
  %v5134 = vmul.f32 %v4558, 0.007843138
  %v5135 = vmul.f32 %v4559, 0.007843138
  %v5136 = vmul.f32 %v4560, 0.007843138
  %v5137 = vmul.f32 %v4561, 0.007843138
  %v5138 = vmul.f32 %v4562, 0.007843138
  %v5139 = vmul.f32 %v4563, 0.007843138
  %v5140 = vmul.f32 %v4564, 0.007843138
  %v5141 = vmul.f32 %v4565, 0.007843138
  %v5142 = vmul.f32 %v4566, 0.007843138
  %v5143 = vmul.f32 %v4567, 0.007843138
  %v5144 = vmul.f32 %v4568, 0.007843138
  %v5145 = vmul.f32 %v4569, 0.007843138
  %v5146 = vmul.f32 %v4570, 0.007843138
  %v5147 = vmul.f32 %v4571, 0.007843138
  %v5148 = vmul.f32 %v4572, 0.007843138
  %v5149 = vmul.f32 %v4573, 0.007843138
  %v5150 = vmul.f32 %v4574, 0.007843138
  %v5151 = vmul.f32 %v4575, 0.007843138
  %v5152 = vmul.f32 %v4576, 0.007843138
  %v5153 = vmul.f32 %v4577, 0.007843138
  %v5154 = vmul.f32 %v4578, 0.007843138
  %v5155 = vmul.f32 %v4579, 0.007843138
  %v5156 = vmul.f32 %v4580, 0.007843138
  %v5157 = vmul.f32 %v4581, 0.007843138
  %v5158 = vmul.f32 %v4582, 0.007843138
  %v5159 = vmul.f32 %v4583, 0.007843138
  %v5160 = vmul.f32 %v4584, 0.007843138
  %v5161 = vmul.f32 %v4585, 0.007843138
  %v5162 = vmul.f32 %v4586, 0.007843138
  %v5163 = vmul.f32 %v4587, 0.007843138
  %v5164 = vmul.f32 %v4588, 0.007843138
  %v5165 = vmul.f32 %v4589, 0.007843138
  %v5166 = vmul.f32 %v4590, 0.007843138
  %v5167 = vmul.f32 %v4591, 0.007843138
  %v5168 = vmul.f32 %v4592, 0.007843138
  %v5169 = vmul.f32 %v4593, 0.007843138
  %v5170 = vmul.f32 %v4594, 0.007843138
  %v5171 = vmul.f32 %v4595, 0.007843138
  %v5172 = vmul.f32 %v4596, 0.007843138
  %v5173 = vmul.f32 %v4597, 0.007843138
  %v5174 = vmul.f32 %v4598, 0.007843138
  %v5175 = vmul.f32 %v4599, 0.007843138
  %v5176 = vmul.f32 %v4600, 0.007843138
  %v5177 = vmul.f32 %v4601, 0.007843138
  %v5178 = vmul.f32 %v4602, 0.007843138
  %v5179 = vmul.f32 %v4603, 0.007843138
  %v5180 = vmul.f32 %v4604, 0.007843138
  %v5181 = vmul.f32 %v4605, 0.007843138
  %v5182 = vmul.f32 %v4606, 0.007843138
  %v5183 = vmul.f32 %v4607, 0.007843138
  %v5184 = vmul.f32 %v4608, 0.007843138
  %v5185 = vmul.f32 %v4609, 0.007843138
  %v5186 = vmul.f32 %v4610, 0.007843138
  %v5187 = vmul.f32 %v4611, 0.007843138
  %v5188 = vmul.f32 %v4612, 0.007843138
  %v5189 = vmul.f32 %v4613, 0.007843138
  %v5190 = vmul.f32 %v4614, 0.007843138
  %v5191 = vmul.f32 %v4615, 0.007843138
  %v5192 = vmul.f32 %v4616, 0.007843138
  %v5193 = vmul.f32 %v4617, 0.007843138
  %v5194 = vmul.f32 %v4618, 0.007843138
  %v5195 = vmul.f32 %v4619, 0.007843138
  %v5196 = vmul.f32 %v4620, 0.007843138
  %v5197 = vmul.f32 %v4621, 0.007843138
  %v5198 = vmul.f32 %v4622, 0.007843138
  %v5199 = vmul.f32 %v4623, 0.007843138
  %v5200 = vmul.f32 %v4624, 0.007843138
  %v5201 = vmul.f32 %v4625, 0.007843138
  %v5202 = vmul.f32 %v4626, 0.007843138
  %v5203 = vmul.f32 %v4627, 0.007843138
  %v5204 = vmul.f32 %v4628, 0.007843138
  %v5205 = vmul.f32 %v4629, 0.007843138
  %v5206 = vmul.f32 %v4630, 0.007843138
  %v5207 = vmul.f32 %v4631, 0.007843138
  %v5208 = vsub.f32 %v4632, 1.0
  %v5209 = vsub.f32 %v4633, 1.0
  %v5210 = vsub.f32 %v4634, 1.0
  %v5211 = vsub.f32 %v4635, 1.0
  %v5212 = vsub.f32 %v4636, 1.0
  %v5213 = vsub.f32 %v4637, 1.0
  %v5214 = vsub.f32 %v4638, 1.0
  %v5215 = vsub.f32 %v4639, 1.0
  %v5216 = vsub.f32 %v4640, 1.0
  %v5217 = vsub.f32 %v4641, 1.0
  %v5218 = vsub.f32 %v4642, 1.0
  %v5219 = vsub.f32 %v4643, 1.0
  %v5220 = vsub.f32 %v4644, 1.0
  %v5221 = vsub.f32 %v4645, 1.0
  %v5222 = vsub.f32 %v4646, 1.0
  %v5223 = vsub.f32 %v4647, 1.0
  %v5224 = vsub.f32 %v4648, 1.0
  %v5225 = vsub.f32 %v4649, 1.0
  %v5226 = vsub.f32 %v4650, 1.0
  %v5227 = vsub.f32 %v4651, 1.0
  %v5228 = vsub.f32 %v4652, 1.0
  %v5229 = vsub.f32 %v4653, 1.0
  %v5230 = vsub.f32 %v4654, 1.0
  %v5231 = vsub.f32 %v4655, 1.0
  %v5232 = vsub.f32 %v4656, 1.0
  %v5233 = vsub.f32 %v4657, 1.0
  %v5234 = vsub.f32 %v4658, 1.0
  %v5235 = vsub.f32 %v4659, 1.0
  %v5236 = vsub.f32 %v4660, 1.0
  %v5237 = vsub.f32 %v4661, 1.0
  %v5238 = vsub.f32 %v4662, 1.0
  %v5239 = vsub.f32 %v4663, 1.0
  %v5240 = vsub.f32 %v4664, 1.0
  %v5241 = vsub.f32 %v4665, 1.0
  %v5242 = vsub.f32 %v4666, 1.0
  %v5243 = vsub.f32 %v4667, 1.0
  %v5244 = vsub.f32 %v4668, 1.0
  %v5245 = vsub.f32 %v4669, 1.0
  %v5246 = vsub.f32 %v4670, 1.0
  %v5247 = vsub.f32 %v4671, 1.0
  %v5248 = vsub.f32 %v4672, 1.0
  %v5249 = vsub.f32 %v4673, 1.0
  %v5250 = vsub.f32 %v4674, 1.0
  %v5251 = vsub.f32 %v4675, 1.0
  %v5252 = vsub.f32 %v4676, 1.0
  %v5253 = vsub.f32 %v4677, 1.0
  %v5254 = vsub.f32 %v4678, 1.0
  %v5255 = vsub.f32 %v4679, 1.0
  %v5256 = vsub.f32 %v4680, 1.0
  %v5257 = vsub.f32 %v4681, 1.0
  %v5258 = vsub.f32 %v4682, 1.0
  %v5259 = vsub.f32 %v4683, 1.0
  %v5260 = vsub.f32 %v4684, 1.0
  %v5261 = vsub.f32 %v4685, 1.0
  %v5262 = vsub.f32 %v4686, 1.0
  %v5263 = vsub.f32 %v4687, 1.0
  %v5264 = vsub.f32 %v4688, 1.0
  %v5265 = vsub.f32 %v4689, 1.0
  %v5266 = vsub.f32 %v4690, 1.0
  %v5267 = vsub.f32 %v4691, 1.0
  %v5268 = vsub.f32 %v4692, 1.0
  %v5269 = vsub.f32 %v4693, 1.0
  %v5270 = vsub.f32 %v4694, 1.0
  %v5271 = vsub.f32 %v4695, 1.0
  %v5272 = vsub.f32 %v4696, 1.0
  %v5273 = vsub.f32 %v4697, 1.0
  %v5274 = vsub.f32 %v4698, 1.0
  %v5275 = vsub.f32 %v4699, 1.0
  %v5276 = vsub.f32 %v4700, 1.0
  %v5277 = vsub.f32 %v4701, 1.0
  %v5278 = vsub.f32 %v4702, 1.0
  %v5279 = vsub.f32 %v4703, 1.0
  %v5280 = vsub.f32 %v4704, 1.0
  %v5281 = vsub.f32 %v4705, 1.0
  %v5282 = vsub.f32 %v4706, 1.0
  %v5283 = vsub.f32 %v4707, 1.0
  %v5284 = vsub.f32 %v4708, 1.0
  %v5285 = vsub.f32 %v4709, 1.0
  %v5286 = vsub.f32 %v4710, 1.0
  %v5287 = vsub.f32 %v4711, 1.0
  %v5288 = vsub.f32 %v4712, 1.0
  %v5289 = vsub.f32 %v4713, 1.0
  %v5290 = vsub.f32 %v4714, 1.0
  %v5291 = vsub.f32 %v4715, 1.0
  %v5292 = vsub.f32 %v4716, 1.0
  %v5293 = vsub.f32 %v4717, 1.0
  %v5294 = vsub.f32 %v4718, 1.0
  %v5295 = vsub.f32 %v4719, 1.0
  %v5296 = vsub.f32 %v4720, 1.0
  %v5297 = vsub.f32 %v4721, 1.0
  %v5298 = vsub.f32 %v4722, 1.0
  %v5299 = vsub.f32 %v4723, 1.0
  %v5300 = vsub.f32 %v4724, 1.0
  %v5301 = vsub.f32 %v4725, 1.0
  %v5302 = vsub.f32 %v4726, 1.0
  %v5303 = vsub.f32 %v4727, 1.0
  %v5304 = vsub.f32 %v4728, 1.0
  %v5305 = vsub.f32 %v4729, 1.0
  %v5306 = vsub.f32 %v4730, 1.0
  %v5307 = vsub.f32 %v4731, 1.0
  %v5308 = vsub.f32 %v4732, 1.0
  %v5309 = vsub.f32 %v4733, 1.0
  %v5310 = vsub.f32 %v4734, 1.0
  %v5311 = vsub.f32 %v4735, 1.0
  %v5312 = vsub.f32 %v4736, 1.0
  %v5313 = vsub.f32 %v4737, 1.0
  %v5314 = vsub.f32 %v4738, 1.0
  %v5315 = vsub.f32 %v4739, 1.0
  %v5316 = vsub.f32 %v4740, 1.0
  %v5317 = vsub.f32 %v4741, 1.0
  %v5318 = vsub.f32 %v4742, 1.0
  %v5319 = vsub.f32 %v4743, 1.0
  %v5320 = vsub.f32 %v4744, 1.0
  %v5321 = vsub.f32 %v4745, 1.0
  %v5322 = vsub.f32 %v4746, 1.0
  %v5323 = vsub.f32 %v4747, 1.0
  %v5324 = vsub.f32 %v4748, 1.0
  %v5325 = vsub.f32 %v4749, 1.0
  %v5326 = vsub.f32 %v4750, 1.0
  %v5327 = vsub.f32 %v4751, 1.0
  %v5328 = vsub.f32 %v4752, 1.0
  %v5329 = vsub.f32 %v4753, 1.0
  %v5330 = vsub.f32 %v4754, 1.0
  %v5331 = vsub.f32 %v4755, 1.0
  %v5332 = vsub.f32 %v4756, 1.0
  %v5333 = vsub.f32 %v4757, 1.0
  %v5334 = vsub.f32 %v4758, 1.0
  %v5335 = vsub.f32 %v4759, 1.0
  %v5336 = vsub.f32 %v4760, 1.0
  %v5337 = vsub.f32 %v4761, 1.0
  %v5338 = vsub.f32 %v4762, 1.0
  %v5339 = vsub.f32 %v4763, 1.0
  %v5340 = vsub.f32 %v4764, 1.0
  %v5341 = vsub.f32 %v4765, 1.0
  %v5342 = vsub.f32 %v4766, 1.0
  %v5343 = vsub.f32 %v4767, 1.0
  %v5344 = vsub.f32 %v4768, 1.0
  %v5345 = vsub.f32 %v4769, 1.0
  %v5346 = vsub.f32 %v4770, 1.0
  %v5347 = vsub.f32 %v4771, 1.0
  %v5348 = vsub.f32 %v4772, 1.0
  %v5349 = vsub.f32 %v4773, 1.0
  %v5350 = vsub.f32 %v4774, 1.0
  %v5351 = vsub.f32 %v4775, 1.0
  %v5352 = vsub.f32 %v4776, 1.0
  %v5353 = vsub.f32 %v4777, 1.0
  %v5354 = vsub.f32 %v4778, 1.0
  %v5355 = vsub.f32 %v4779, 1.0
  %v5356 = vsub.f32 %v4780, 1.0
  %v5357 = vsub.f32 %v4781, 1.0
  %v5358 = vsub.f32 %v4782, 1.0
  %v5359 = vsub.f32 %v4783, 1.0
  %v5360 = vsub.f32 %v4784, 1.0
  %v5361 = vsub.f32 %v4785, 1.0
  %v5362 = vsub.f32 %v4786, 1.0
  %v5363 = vsub.f32 %v4787, 1.0
  %v5364 = vsub.f32 %v4788, 1.0
  %v5365 = vsub.f32 %v4789, 1.0
  %v5366 = vsub.f32 %v4790, 1.0
  %v5367 = vsub.f32 %v4791, 1.0
  %v5368 = vsub.f32 %v4792, 1.0
  %v5369 = vsub.f32 %v4793, 1.0
  %v5370 = vsub.f32 %v4794, 1.0
  %v5371 = vsub.f32 %v4795, 1.0
  %v5372 = vsub.f32 %v4796, 1.0
  %v5373 = vsub.f32 %v4797, 1.0
  %v5374 = vsub.f32 %v4798, 1.0
  %v5375 = vsub.f32 %v4799, 1.0
  %v5376 = vsub.f32 %v4800, 1.0
  %v5377 = vsub.f32 %v4801, 1.0
  %v5378 = vsub.f32 %v4802, 1.0
  %v5379 = vsub.f32 %v4803, 1.0
  %v5380 = vsub.f32 %v4804, 1.0
  %v5381 = vsub.f32 %v4805, 1.0
  %v5382 = vsub.f32 %v4806, 1.0
  %v5383 = vsub.f32 %v4807, 1.0
  %v5384 = vsub.f32 %v4808, 1.0
  %v5385 = vsub.f32 %v4809, 1.0
  %v5386 = vsub.f32 %v4810, 1.0
  %v5387 = vsub.f32 %v4811, 1.0
  %v5388 = vsub.f32 %v4812, 1.0
  %v5389 = vsub.f32 %v4813, 1.0
  %v5390 = vsub.f32 %v4814, 1.0
  %v5391 = vsub.f32 %v4815, 1.0
  %v5392 = vsub.f32 %v4816, 1.0
  %v5393 = vsub.f32 %v4817, 1.0
  %v5394 = vsub.f32 %v4818, 1.0
  %v5395 = vsub.f32 %v4819, 1.0
  %v5396 = vsub.f32 %v4820, 1.0
  %v5397 = vsub.f32 %v4821, 1.0
  %v5398 = vsub.f32 %v4822, 1.0
  %v5399 = vsub.f32 %v4823, 1.0
  %v5400 = vsub.f32 %v4824, 1.0
  %v5401 = vsub.f32 %v4825, 1.0
  %v5402 = vsub.f32 %v4826, 1.0
  %v5403 = vsub.f32 %v4827, 1.0
  %v5404 = vsub.f32 %v4828, 1.0
  %v5405 = vsub.f32 %v4829, 1.0
  %v5406 = vsub.f32 %v4830, 1.0
  %v5407 = vsub.f32 %v4831, 1.0
  %v5408 = vsub.f32 %v4832, 1.0
  %v5409 = vsub.f32 %v4833, 1.0
  %v5410 = vsub.f32 %v4834, 1.0
  %v5411 = vsub.f32 %v4835, 1.0
  %v5412 = vsub.f32 %v4836, 1.0
  %v5413 = vsub.f32 %v4837, 1.0
  %v5414 = vsub.f32 %v4838, 1.0
  %v5415 = vsub.f32 %v4839, 1.0
  %v5416 = vsub.f32 %v4840, 1.0
  %v5417 = vsub.f32 %v4841, 1.0
  %v5418 = vsub.f32 %v4842, 1.0
  %v5419 = vsub.f32 %v4843, 1.0
  %v5420 = vsub.f32 %v4844, 1.0
  %v5421 = vsub.f32 %v4845, 1.0
  %v5422 = vsub.f32 %v4846, 1.0
  %v5423 = vsub.f32 %v4847, 1.0
  %v5424 = vsub.f32 %v4848, 1.0
  %v5425 = vsub.f32 %v4849, 1.0
  %v5426 = vsub.f32 %v4850, 1.0
  %v5427 = vsub.f32 %v4851, 1.0
  %v5428 = vsub.f32 %v4852, 1.0
  %v5429 = vsub.f32 %v4853, 1.0
  %v5430 = vsub.f32 %v4854, 1.0
  %v5431 = vsub.f32 %v4855, 1.0
  %v5432 = vsub.f32 %v4856, 1.0
  %v5433 = vsub.f32 %v4857, 1.0
  %v5434 = vsub.f32 %v4858, 1.0
  %v5435 = vsub.f32 %v4859, 1.0
  %v5436 = vsub.f32 %v4860, 1.0
  %v5437 = vsub.f32 %v4861, 1.0
  %v5438 = vsub.f32 %v4862, 1.0
  %v5439 = vsub.f32 %v4863, 1.0
  %v5440 = vsub.f32 %v4864, 1.0
  %v5441 = vsub.f32 %v4865, 1.0
  %v5442 = vsub.f32 %v4866, 1.0
  %v5443 = vsub.f32 %v4867, 1.0
  %v5444 = vsub.f32 %v4868, 1.0
  %v5445 = vsub.f32 %v4869, 1.0
  %v5446 = vsub.f32 %v4870, 1.0
  %v5447 = vsub.f32 %v4871, 1.0
  %v5448 = vsub.f32 %v4872, 1.0
  %v5449 = vsub.f32 %v4873, 1.0
  %v5450 = vsub.f32 %v4874, 1.0
  %v5451 = vsub.f32 %v4875, 1.0
  %v5452 = vsub.f32 %v4876, 1.0
  %v5453 = vsub.f32 %v4877, 1.0
  %v5454 = vsub.f32 %v4878, 1.0
  %v5455 = vsub.f32 %v4879, 1.0
  %v5456 = vsub.f32 %v4880, 1.0
  %v5457 = vsub.f32 %v4881, 1.0
  %v5458 = vsub.f32 %v4882, 1.0
  %v5459 = vsub.f32 %v4883, 1.0
  %v5460 = vsub.f32 %v4884, 1.0
  %v5461 = vsub.f32 %v4885, 1.0
  %v5462 = vsub.f32 %v4886, 1.0
  %v5463 = vsub.f32 %v4887, 1.0
  %v5464 = vsub.f32 %v4888, 1.0
  %v5465 = vsub.f32 %v4889, 1.0
  %v5466 = vsub.f32 %v4890, 1.0
  %v5467 = vsub.f32 %v4891, 1.0
  %v5468 = vsub.f32 %v4892, 1.0
  %v5469 = vsub.f32 %v4893, 1.0
  %v5470 = vsub.f32 %v4894, 1.0
  %v5471 = vsub.f32 %v4895, 1.0
  %v5472 = vsub.f32 %v4896, 1.0
  %v5473 = vsub.f32 %v4897, 1.0
  %v5474 = vsub.f32 %v4898, 1.0
  %v5475 = vsub.f32 %v4899, 1.0
  %v5476 = vsub.f32 %v4900, 1.0
  %v5477 = vsub.f32 %v4901, 1.0
  %v5478 = vsub.f32 %v4902, 1.0
  %v5479 = vsub.f32 %v4903, 1.0
  %v5480 = vsub.f32 %v4904, 1.0
  %v5481 = vsub.f32 %v4905, 1.0
  %v5482 = vsub.f32 %v4906, 1.0
  %v5483 = vsub.f32 %v4907, 1.0
  %v5484 = vsub.f32 %v4908, 1.0
  %v5485 = vsub.f32 %v4909, 1.0
  %v5486 = vsub.f32 %v4910, 1.0
  %v5487 = vsub.f32 %v4911, 1.0
  %v5488 = vsub.f32 %v4912, 1.0
  %v5489 = vsub.f32 %v4913, 1.0
  %v5490 = vsub.f32 %v4914, 1.0
  %v5491 = vsub.f32 %v4915, 1.0
  %v5492 = vsub.f32 %v4916, 1.0
  %v5493 = vsub.f32 %v4917, 1.0
  %v5494 = vsub.f32 %v4918, 1.0
  %v5495 = vsub.f32 %v4919, 1.0
  %v5496 = vsub.f32 %v4920, 1.0
  %v5497 = vsub.f32 %v4921, 1.0
  %v5498 = vsub.f32 %v4922, 1.0
  %v5499 = vsub.f32 %v4923, 1.0
  %v5500 = vsub.f32 %v4924, 1.0
  %v5501 = vsub.f32 %v4925, 1.0
  %v5502 = vsub.f32 %v4926, 1.0
  %v5503 = vsub.f32 %v4927, 1.0
  %v5504 = vsub.f32 %v4928, 1.0
  %v5505 = vsub.f32 %v4929, 1.0
  %v5506 = vsub.f32 %v4930, 1.0
  %v5507 = vsub.f32 %v4931, 1.0
  %v5508 = vsub.f32 %v4932, 1.0
  %v5509 = vsub.f32 %v4933, 1.0
  %v5510 = vsub.f32 %v4934, 1.0
  %v5511 = vsub.f32 %v4935, 1.0
  %v5512 = vsub.f32 %v4936, 1.0
  %v5513 = vsub.f32 %v4937, 1.0
  %v5514 = vsub.f32 %v4938, 1.0
  %v5515 = vsub.f32 %v4939, 1.0
  %v5516 = vsub.f32 %v4940, 1.0
  %v5517 = vsub.f32 %v4941, 1.0
  %v5518 = vsub.f32 %v4942, 1.0
  %v5519 = vsub.f32 %v4943, 1.0
  %v5520 = vsub.f32 %v4944, 1.0
  %v5521 = vsub.f32 %v4945, 1.0
  %v5522 = vsub.f32 %v4946, 1.0
  %v5523 = vsub.f32 %v4947, 1.0
  %v5524 = vsub.f32 %v4948, 1.0
  %v5525 = vsub.f32 %v4949, 1.0
  %v5526 = vsub.f32 %v4950, 1.0
  %v5527 = vsub.f32 %v4951, 1.0
  %v5528 = vsub.f32 %v4952, 1.0
  %v5529 = vsub.f32 %v4953, 1.0
  %v5530 = vsub.f32 %v4954, 1.0
  %v5531 = vsub.f32 %v4955, 1.0
  %v5532 = vsub.f32 %v4956, 1.0
  %v5533 = vsub.f32 %v4957, 1.0
  %v5534 = vsub.f32 %v4958, 1.0
  %v5535 = vsub.f32 %v4959, 1.0
  %v5536 = vsub.f32 %v4960, 1.0
  %v5537 = vsub.f32 %v4961, 1.0
  %v5538 = vsub.f32 %v4962, 1.0
  %v5539 = vsub.f32 %v4963, 1.0
  %v5540 = vsub.f32 %v4964, 1.0
  %v5541 = vsub.f32 %v4965, 1.0
  %v5542 = vsub.f32 %v4966, 1.0
  %v5543 = vsub.f32 %v4967, 1.0
  %v5544 = vsub.f32 %v4968, 1.0
  %v5545 = vsub.f32 %v4969, 1.0
  %v5546 = vsub.f32 %v4970, 1.0
  %v5547 = vsub.f32 %v4971, 1.0
  %v5548 = vsub.f32 %v4972, 1.0
  %v5549 = vsub.f32 %v4973, 1.0
  %v5550 = vsub.f32 %v4974, 1.0
  %v5551 = vsub.f32 %v4975, 1.0
  %v5552 = vsub.f32 %v4976, 1.0
  %v5553 = vsub.f32 %v4977, 1.0
  %v5554 = vsub.f32 %v4978, 1.0
  %v5555 = vsub.f32 %v4979, 1.0
  %v5556 = vsub.f32 %v4980, 1.0
  %v5557 = vsub.f32 %v4981, 1.0
  %v5558 = vsub.f32 %v4982, 1.0
  %v5559 = vsub.f32 %v4983, 1.0
  %v5560 = vsub.f32 %v4984, 1.0
  %v5561 = vsub.f32 %v4985, 1.0
  %v5562 = vsub.f32 %v4986, 1.0
  %v5563 = vsub.f32 %v4987, 1.0
  %v5564 = vsub.f32 %v4988, 1.0
  %v5565 = vsub.f32 %v4989, 1.0
  %v5566 = vsub.f32 %v4990, 1.0
  %v5567 = vsub.f32 %v4991, 1.0
  %v5568 = vsub.f32 %v4992, 1.0
  %v5569 = vsub.f32 %v4993, 1.0
  %v5570 = vsub.f32 %v4994, 1.0
  %v5571 = vsub.f32 %v4995, 1.0
  %v5572 = vsub.f32 %v4996, 1.0
  %v5573 = vsub.f32 %v4997, 1.0
  %v5574 = vsub.f32 %v4998, 1.0
  %v5575 = vsub.f32 %v4999, 1.0
  %v5576 = vsub.f32 %v5000, 1.0
  %v5577 = vsub.f32 %v5001, 1.0
  %v5578 = vsub.f32 %v5002, 1.0
  %v5579 = vsub.f32 %v5003, 1.0
  %v5580 = vsub.f32 %v5004, 1.0
  %v5581 = vsub.f32 %v5005, 1.0
  %v5582 = vsub.f32 %v5006, 1.0
  %v5583 = vsub.f32 %v5007, 1.0
  %v5584 = vsub.f32 %v5008, 1.0
  %v5585 = vsub.f32 %v5009, 1.0
  %v5586 = vsub.f32 %v5010, 1.0
  %v5587 = vsub.f32 %v5011, 1.0
  %v5588 = vsub.f32 %v5012, 1.0
  %v5589 = vsub.f32 %v5013, 1.0
  %v5590 = vsub.f32 %v5014, 1.0
  %v5591 = vsub.f32 %v5015, 1.0
  %v5592 = vsub.f32 %v5016, 1.0
  %v5593 = vsub.f32 %v5017, 1.0
  %v5594 = vsub.f32 %v5018, 1.0
  %v5595 = vsub.f32 %v5019, 1.0
  %v5596 = vsub.f32 %v5020, 1.0
  %v5597 = vsub.f32 %v5021, 1.0
  %v5598 = vsub.f32 %v5022, 1.0
  %v5599 = vsub.f32 %v5023, 1.0
  %v5600 = vsub.f32 %v5024, 1.0
  %v5601 = vsub.f32 %v5025, 1.0
  %v5602 = vsub.f32 %v5026, 1.0
  %v5603 = vsub.f32 %v5027, 1.0
  %v5604 = vsub.f32 %v5028, 1.0
  %v5605 = vsub.f32 %v5029, 1.0
  %v5606 = vsub.f32 %v5030, 1.0
  %v5607 = vsub.f32 %v5031, 1.0
  %v5608 = vsub.f32 %v5032, 1.0
  %v5609 = vsub.f32 %v5033, 1.0
  %v5610 = vsub.f32 %v5034, 1.0
  %v5611 = vsub.f32 %v5035, 1.0
  %v5612 = vsub.f32 %v5036, 1.0
  %v5613 = vsub.f32 %v5037, 1.0
  %v5614 = vsub.f32 %v5038, 1.0
  %v5615 = vsub.f32 %v5039, 1.0
  %v5616 = vsub.f32 %v5040, 1.0
  %v5617 = vsub.f32 %v5041, 1.0
  %v5618 = vsub.f32 %v5042, 1.0
  %v5619 = vsub.f32 %v5043, 1.0
  %v5620 = vsub.f32 %v5044, 1.0
  %v5621 = vsub.f32 %v5045, 1.0
  %v5622 = vsub.f32 %v5046, 1.0
  %v5623 = vsub.f32 %v5047, 1.0
  %v5624 = vsub.f32 %v5048, 1.0
  %v5625 = vsub.f32 %v5049, 1.0
  %v5626 = vsub.f32 %v5050, 1.0
  %v5627 = vsub.f32 %v5051, 1.0
  %v5628 = vsub.f32 %v5052, 1.0
  %v5629 = vsub.f32 %v5053, 1.0
  %v5630 = vsub.f32 %v5054, 1.0
  %v5631 = vsub.f32 %v5055, 1.0
  %v5632 = vsub.f32 %v5056, 1.0
  %v5633 = vsub.f32 %v5057, 1.0
  %v5634 = vsub.f32 %v5058, 1.0
  %v5635 = vsub.f32 %v5059, 1.0
  %v5636 = vsub.f32 %v5060, 1.0
  %v5637 = vsub.f32 %v5061, 1.0
  %v5638 = vsub.f32 %v5062, 1.0
  %v5639 = vsub.f32 %v5063, 1.0
  %v5640 = vsub.f32 %v5064, 1.0
  %v5641 = vsub.f32 %v5065, 1.0
  %v5642 = vsub.f32 %v5066, 1.0
  %v5643 = vsub.f32 %v5067, 1.0
  %v5644 = vsub.f32 %v5068, 1.0
  %v5645 = vsub.f32 %v5069, 1.0
  %v5646 = vsub.f32 %v5070, 1.0
  %v5647 = vsub.f32 %v5071, 1.0
  %v5648 = vsub.f32 %v5072, 1.0
  %v5649 = vsub.f32 %v5073, 1.0
  %v5650 = vsub.f32 %v5074, 1.0
  %v5651 = vsub.f32 %v5075, 1.0
  %v5652 = vsub.f32 %v5076, 1.0
  %v5653 = vsub.f32 %v5077, 1.0
  %v5654 = vsub.f32 %v5078, 1.0
  %v5655 = vsub.f32 %v5079, 1.0
  %v5656 = vsub.f32 %v5080, 1.0
  %v5657 = vsub.f32 %v5081, 1.0
  %v5658 = vsub.f32 %v5082, 1.0
  %v5659 = vsub.f32 %v5083, 1.0
  %v5660 = vsub.f32 %v5084, 1.0
  %v5661 = vsub.f32 %v5085, 1.0
  %v5662 = vsub.f32 %v5086, 1.0
  %v5663 = vsub.f32 %v5087, 1.0
  %v5664 = vsub.f32 %v5088, 1.0
  %v5665 = vsub.f32 %v5089, 1.0
  %v5666 = vsub.f32 %v5090, 1.0
  %v5667 = vsub.f32 %v5091, 1.0
  %v5668 = vsub.f32 %v5092, 1.0
  %v5669 = vsub.f32 %v5093, 1.0
  %v5670 = vsub.f32 %v5094, 1.0
  %v5671 = vsub.f32 %v5095, 1.0
  %v5672 = vsub.f32 %v5096, 1.0
  %v5673 = vsub.f32 %v5097, 1.0
  %v5674 = vsub.f32 %v5098, 1.0
  %v5675 = vsub.f32 %v5099, 1.0
  %v5676 = vsub.f32 %v5100, 1.0
  %v5677 = vsub.f32 %v5101, 1.0
  %v5678 = vsub.f32 %v5102, 1.0
  %v5679 = vsub.f32 %v5103, 1.0
  %v5680 = vsub.f32 %v5104, 1.0
  %v5681 = vsub.f32 %v5105, 1.0
  %v5682 = vsub.f32 %v5106, 1.0
  %v5683 = vsub.f32 %v5107, 1.0
  %v5684 = vsub.f32 %v5108, 1.0
  %v5685 = vsub.f32 %v5109, 1.0
  %v5686 = vsub.f32 %v5110, 1.0
  %v5687 = vsub.f32 %v5111, 1.0
  %v5688 = vsub.f32 %v5112, 1.0
  %v5689 = vsub.f32 %v5113, 1.0
  %v5690 = vsub.f32 %v5114, 1.0
  %v5691 = vsub.f32 %v5115, 1.0
  %v5692 = vsub.f32 %v5116, 1.0
  %v5693 = vsub.f32 %v5117, 1.0
  %v5694 = vsub.f32 %v5118, 1.0
  %v5695 = vsub.f32 %v5119, 1.0
  %v5696 = vsub.f32 %v5120, 1.0
  %v5697 = vsub.f32 %v5121, 1.0
  %v5698 = vsub.f32 %v5122, 1.0
  %v5699 = vsub.f32 %v5123, 1.0
  %v5700 = vsub.f32 %v5124, 1.0
  %v5701 = vsub.f32 %v5125, 1.0
  %v5702 = vsub.f32 %v5126, 1.0
  %v5703 = vsub.f32 %v5127, 1.0
  %v5704 = vsub.f32 %v5128, 1.0
  %v5705 = vsub.f32 %v5129, 1.0
  %v5706 = vsub.f32 %v5130, 1.0
  %v5707 = vsub.f32 %v5131, 1.0
  %v5708 = vsub.f32 %v5132, 1.0
  %v5709 = vsub.f32 %v5133, 1.0
  %v5710 = vsub.f32 %v5134, 1.0
  %v5711 = vsub.f32 %v5135, 1.0
  %v5712 = vsub.f32 %v5136, 1.0
  %v5713 = vsub.f32 %v5137, 1.0
  %v5714 = vsub.f32 %v5138, 1.0
  %v5715 = vsub.f32 %v5139, 1.0
  %v5716 = vsub.f32 %v5140, 1.0
  %v5717 = vsub.f32 %v5141, 1.0
  %v5718 = vsub.f32 %v5142, 1.0
  %v5719 = vsub.f32 %v5143, 1.0
  %v5720 = vsub.f32 %v5144, 1.0
  %v5721 = vsub.f32 %v5145, 1.0
  %v5722 = vsub.f32 %v5146, 1.0
  %v5723 = vsub.f32 %v5147, 1.0
  %v5724 = vsub.f32 %v5148, 1.0
  %v5725 = vsub.f32 %v5149, 1.0
  %v5726 = vsub.f32 %v5150, 1.0
  %v5727 = vsub.f32 %v5151, 1.0
  %v5728 = vsub.f32 %v5152, 1.0
  %v5729 = vsub.f32 %v5153, 1.0
  %v5730 = vsub.f32 %v5154, 1.0
  %v5731 = vsub.f32 %v5155, 1.0
  %v5732 = vsub.f32 %v5156, 1.0
  %v5733 = vsub.f32 %v5157, 1.0
  %v5734 = vsub.f32 %v5158, 1.0
  %v5735 = vsub.f32 %v5159, 1.0
  %v5736 = vsub.f32 %v5160, 1.0
  %v5737 = vsub.f32 %v5161, 1.0
  %v5738 = vsub.f32 %v5162, 1.0
  %v5739 = vsub.f32 %v5163, 1.0
  %v5740 = vsub.f32 %v5164, 1.0
  %v5741 = vsub.f32 %v5165, 1.0
  %v5742 = vsub.f32 %v5166, 1.0
  %v5743 = vsub.f32 %v5167, 1.0
  %v5744 = vsub.f32 %v5168, 1.0
  %v5745 = vsub.f32 %v5169, 1.0
  %v5746 = vsub.f32 %v5170, 1.0
  %v5747 = vsub.f32 %v5171, 1.0
  %v5748 = vsub.f32 %v5172, 1.0
  %v5749 = vsub.f32 %v5173, 1.0
  %v5750 = vsub.f32 %v5174, 1.0
  %v5751 = vsub.f32 %v5175, 1.0
  %v5752 = vsub.f32 %v5176, 1.0
  %v5753 = vsub.f32 %v5177, 1.0
  %v5754 = vsub.f32 %v5178, 1.0
  %v5755 = vsub.f32 %v5179, 1.0
  %v5756 = vsub.f32 %v5180, 1.0
  %v5757 = vsub.f32 %v5181, 1.0
  %v5758 = vsub.f32 %v5182, 1.0
  %v5759 = vsub.f32 %v5183, 1.0
  %v5760 = vsub.f32 %v5184, 1.0
  %v5761 = vsub.f32 %v5185, 1.0
  %v5762 = vsub.f32 %v5186, 1.0
  %v5763 = vsub.f32 %v5187, 1.0
  %v5764 = vsub.f32 %v5188, 1.0
  %v5765 = vsub.f32 %v5189, 1.0
  %v5766 = vsub.f32 %v5190, 1.0
  %v5767 = vsub.f32 %v5191, 1.0
  %v5768 = vsub.f32 %v5192, 1.0
  %v5769 = vsub.f32 %v5193, 1.0
  %v5770 = vsub.f32 %v5194, 1.0
  %v5771 = vsub.f32 %v5195, 1.0
  %v5772 = vsub.f32 %v5196, 1.0
  %v5773 = vsub.f32 %v5197, 1.0
  %v5774 = vsub.f32 %v5198, 1.0
  %v5775 = vsub.f32 %v5199, 1.0
  %v5776 = vsub.f32 %v5200, 1.0
  %v5777 = vsub.f32 %v5201, 1.0
  %v5778 = vsub.f32 %v5202, 1.0
  %v5779 = vsub.f32 %v5203, 1.0
  %v5780 = vsub.f32 %v5204, 1.0
  %v5781 = vsub.f32 %v5205, 1.0
  %v5782 = vsub.f32 %v5206, 1.0
  %v5783 = vsub.f32 %v5207, 1.0
  %5784 = vst [vmem:[%s1] sm:$0xff] %v5208
  %5785 = vst [vmem:[%s1 + $0x8] sm:$0xff] %v5209
  %5786 = vst [vmem:[%s1 + $0x10] sm:$0xff] %v5210
  %5787 = vst [vmem:[%s1 + $0x18] sm:$0xff] %v5211
  %5788 = vst [vmem:[%s1 + $0x20] sm:$0xff] %v5212
  %5789 = vst [vmem:[%s1 + $0x28] sm:$0xff] %v5213
  %5790 = vst [vmem:[%s1 + $0x30] sm:$0xff] %v5214
  %5791 = vst [vmem:[%s1 + $0x38] sm:$0xff] %v5215
  %5792 = vst [vmem:[%s1 + $0x40] sm:$0xff] %v5216
  %5793 = vst [vmem:[%s1 + $0x48] sm:$0xff] %v5217
  %5794 = vst [vmem:[%s1 + $0x50] sm:$0xff] %v5218
  %5795 = vst [vmem:[%s1 + $0x58] sm:$0xff] %v5219
  %5796 = vst [vmem:[%s1 + $0x60] sm:$0xff] %v5220
  %5797 = vst [vmem:[%s1 + $0x68] sm:$0xff] %v5221
  %5798 = vst [vmem:[%s1 + $0x70] sm:$0xff] %v5222
  %5799 = vst [vmem:[%s1 + $0x78] sm:$0xff] %v5223
  %5800 = vst [vmem:[%s1 + $0x80] sm:$0xff] %v5224
  %5801 = vst [vmem:[%s1 + $0x88] sm:$0xff] %v5225
  %5802 = vst [vmem:[%s1 + $0x90] sm:$0xff] %v5226
  %5803 = vst [vmem:[%s1 + $0x98] sm:$0xff] %v5227
  %5804 = vst [vmem:[%s1 + $0xa0] sm:$0xff] %v5228
  %5805 = vst [vmem:[%s1 + $0xa8] sm:$0xff] %v5229
  %5806 = vst [vmem:[%s1 + $0xb0] sm:$0xff] %v5230
  %5807 = vst [vmem:[%s1 + $0xb8] sm:$0xff] %v5231
  %5808 = vst [vmem:[%s1 + $0xc0] sm:$0xff] %v5232
  %5809 = vst [vmem:[%s1 + $0xc8] sm:$0xff] %v5233
  %5810 = vst [vmem:[%s1 + $0xd0] sm:$0xff] %v5234
  %5811 = vst [vmem:[%s1 + $0xd8] sm:$0xff] %v5235
  %5812 = vst [vmem:[%s1 + $0xe0] sm:$0xff] %v5236
  %5813 = vst [vmem:[%s1 + $0xe8] sm:$0xff] %v5237
  %5814 = vst [vmem:[%s1 + $0xf0] sm:$0xff] %v5238
  %5815 = vst [vmem:[%s1 + $0xf8] sm:$0xff] %v5239
  %5816 = vst [vmem:[%s1 + $0x100] sm:$0xff] %v5240
  %5817 = vst [vmem:[%s1 + $0x108] sm:$0xff] %v5241
  %5818 = vst [vmem:[%s1 + $0x110] sm:$0xff] %v5242
  %5819 = vst [vmem:[%s1 + $0x118] sm:$0xff] %v5243
  %5820 = vst [vmem:[%s1 + $0x120] sm:$0xff] %v5244
  %5821 = vst [vmem:[%s1 + $0x128] sm:$0xff] %v5245
  %5822 = vst [vmem:[%s1 + $0x130] sm:$0xff] %v5246
  %5823 = vst [vmem:[%s1 + $0x138] sm:$0xff] %v5247
  %5824 = vst [vmem:[%s1 + $0x140] sm:$0xff] %v5248
  %5825 = vst [vmem:[%s1 + $0x148] sm:$0xff] %v5249
  %5826 = vst [vmem:[%s1 + $0x150] sm:$0xff] %v5250
  %5827 = vst [vmem:[%s1 + $0x158] sm:$0xff] %v5251
  %5828 = vst [vmem:[%s1 + $0x160] sm:$0xff] %v5252
  %5829 = vst [vmem:[%s1 + $0x168] sm:$0xff] %v5253
  %5830 = vst [vmem:[%s1 + $0x170] sm:$0xff] %v5254
  %5831 = vst [vmem:[%s1 + $0x178] sm:$0xff] %v5255
  %5832 = vst [vmem:[%s1 + $0x180] sm:$0xff] %v5256
  %5833 = vst [vmem:[%s1 + $0x188] sm:$0xff] %v5257
  %5834 = vst [vmem:[%s1 + $0x190] sm:$0xff] %v5258
  %5835 = vst [vmem:[%s1 + $0x198] sm:$0xff] %v5259
  %5836 = vst [vmem:[%s1 + $0x1a0] sm:$0xff] %v5260
  %5837 = vst [vmem:[%s1 + $0x1a8] sm:$0xff] %v5261
  %5838 = vst [vmem:[%s1 + $0x1b0] sm:$0xff] %v5262
  %5839 = vst [vmem:[%s1 + $0x1b8] sm:$0xff] %v5263
  %5840 = vst [vmem:[%s1 + $0x1c0] sm:$0xff] %v5264
  %5841 = vst [vmem:[%s1 + $0x1c8] sm:$0xff] %v5265
  %5842 = vst [vmem:[%s1 + $0x1d0] sm:$0xff] %v5266
  %5843 = vst [vmem:[%s1 + $0x1d8] sm:$0xff] %v5267
  %5844 = vst [vmem:[%s1 + $0x1e0] sm:$0xff] %v5268
  %5845 = vst [vmem:[%s1 + $0x1e8] sm:$0xff] %v5269
  %5846 = vst [vmem:[%s1 + $0x1f0] sm:$0xff] %v5270
  %5847 = vst [vmem:[%s1 + $0x1f8] sm:$0xff] %v5271
  %5848 = vst [vmem:[%s1 + $0x200] sm:$0xff] %v5272
  %5849 = vst [vmem:[%s1 + $0x208] sm:$0xff] %v5273
  %5850 = vst [vmem:[%s1 + $0x210] sm:$0xff] %v5274
  %5851 = vst [vmem:[%s1 + $0x218] sm:$0xff] %v5275
  %5852 = vst [vmem:[%s1 + $0x220] sm:$0xff] %v5276
  %5853 = vst [vmem:[%s1 + $0x228] sm:$0xff] %v5277
  %5854 = vst [vmem:[%s1 + $0x230] sm:$0xff] %v5278
  %5855 = vst [vmem:[%s1 + $0x238] sm:$0xff] %v5279
  %5856 = vst [vmem:[%s1 + $0x240] sm:$0xff] %v5280
  %5857 = vst [vmem:[%s1 + $0x248] sm:$0xff] %v5281
  %5858 = vst [vmem:[%s1 + $0x250] sm:$0xff] %v5282
  %5859 = vst [vmem:[%s1 + $0x258] sm:$0xff] %v5283
  %5860 = vst [vmem:[%s1 + $0x260] sm:$0xff] %v5284
  %5861 = vst [vmem:[%s1 + $0x268] sm:$0xff] %v5285
  %5862 = vst [vmem:[%s1 + $0x270] sm:$0xff] %v5286
  %5863 = vst [vmem:[%s1 + $0x278] sm:$0xff] %v5287
  %5864 = vst [vmem:[%s1 + $0x280] sm:$0xff] %v5288
  %5865 = vst [vmem:[%s1 + $0x288] sm:$0xff] %v5289
  %5866 = vst [vmem:[%s1 + $0x290] sm:$0xff] %v5290
  %5867 = vst [vmem:[%s1 + $0x298] sm:$0xff] %v5291
  %5868 = vst [vmem:[%s1 + $0x2a0] sm:$0xff] %v5292
  %5869 = vst [vmem:[%s1 + $0x2a8] sm:$0xff] %v5293
  %5870 = vst [vmem:[%s1 + $0x2b0] sm:$0xff] %v5294
  %5871 = vst [vmem:[%s1 + $0x2b8] sm:$0xff] %v5295
  %5872 = vst [vmem:[%s1 + $0x2c0] sm:$0xff] %v5296
  %5873 = vst [vmem:[%s1 + $0x2c8] sm:$0xff] %v5297
  %5874 = vst [vmem:[%s1 + $0x2d0] sm:$0xff] %v5298
  %5875 = vst [vmem:[%s1 + $0x2d8] sm:$0xff] %v5299
  %5876 = vst [vmem:[%s1 + $0x2e0] sm:$0xff] %v5300
  %5877 = vst [vmem:[%s1 + $0x2e8] sm:$0xff] %v5301
  %5878 = vst [vmem:[%s1 + $0x2f0] sm:$0xff] %v5302
  %5879 = vst [vmem:[%s1 + $0x2f8] sm:$0xff] %v5303
  %5880 = vst [vmem:[%s1 + $0x300] sm:$0xff] %v5304
  %5881 = vst [vmem:[%s1 + $0x308] sm:$0xff] %v5305
  %5882 = vst [vmem:[%s1 + $0x310] sm:$0xff] %v5306
  %5883 = vst [vmem:[%s1 + $0x318] sm:$0xff] %v5307
  %5884 = vst [vmem:[%s1 + $0x320] sm:$0xff] %v5308
  %5885 = vst [vmem:[%s1 + $0x328] sm:$0xff] %v5309
  %5886 = vst [vmem:[%s1 + $0x330] sm:$0xff] %v5310
  %5887 = vst [vmem:[%s1 + $0x338] sm:$0xff] %v5311
  %5888 = vst [vmem:[%s1 + $0x340] sm:$0xff] %v5312
  %5889 = vst [vmem:[%s1 + $0x348] sm:$0xff] %v5313
  %5890 = vst [vmem:[%s1 + $0x350] sm:$0xff] %v5314
  %5891 = vst [vmem:[%s1 + $0x358] sm:$0xff] %v5315
  %5892 = vst [vmem:[%s1 + $0x360] sm:$0xff] %v5316
  %5893 = vst [vmem:[%s1 + $0x368] sm:$0xff] %v5317
  %5894 = vst [vmem:[%s1 + $0x370] sm:$0xff] %v5318
  %5895 = vst [vmem:[%s1 + $0x378] sm:$0xff] %v5319
  %5896 = vst [vmem:[%s1 + $0x380] sm:$0xff] %v5320
  %5897 = vst [vmem:[%s1 + $0x388] sm:$0xff] %v5321
  %5898 = vst [vmem:[%s1 + $0x390] sm:$0xff] %v5322
  %5899 = vst [vmem:[%s1 + $0x398] sm:$0xff] %v5323
  %5900 = vst [vmem:[%s1 + $0x3a0] sm:$0xff] %v5324
  %5901 = vst [vmem:[%s1 + $0x3a8] sm:$0xff] %v5325
  %5902 = vst [vmem:[%s1 + $0x3b0] sm:$0xff] %v5326
  %5903 = vst [vmem:[%s1 + $0x3b8] sm:$0xff] %v5327
  %5904 = vst [vmem:[%s1 + $0x3c0] sm:$0xff] %v5328
  %5905 = vst [vmem:[%s1 + $0x3c8] sm:$0xff] %v5329
  %5906 = vst [vmem:[%s1 + $0x3d0] sm:$0xff] %v5330
  %5907 = vst [vmem:[%s1 + $0x3d8] sm:$0xff] %v5331
  %5908 = vst [vmem:[%s1 + $0x3e0] sm:$0xff] %v5332
  %5909 = vst [vmem:[%s1 + $0x3e8] sm:$0xff] %v5333
  %5910 = vst [vmem:[%s1 + $0x3f0] sm:$0xff] %v5334
  %5911 = vst [vmem:[%s1 + $0x3f8] sm:$0xff] %v5335
  %5912 = vst [vmem:[%s1 + $0x400] sm:$0xff] %v5336
  %5913 = vst [vmem:[%s1 + $0x408] sm:$0xff] %v5337
  %5914 = vst [vmem:[%s1 + $0x410] sm:$0xff] %v5338
  %5915 = vst [vmem:[%s1 + $0x418] sm:$0xff] %v5339
  %5916 = vst [vmem:[%s1 + $0x420] sm:$0xff] %v5340
  %5917 = vst [vmem:[%s1 + $0x428] sm:$0xff] %v5341
  %5918 = vst [vmem:[%s1 + $0x430] sm:$0xff] %v5342
  %5919 = vst [vmem:[%s1 + $0x438] sm:$0xff] %v5343
  %5920 = vst [vmem:[%s1 + $0x440] sm:$0xff] %v5344
  %5921 = vst [vmem:[%s1 + $0x448] sm:$0xff] %v5345
  %5922 = vst [vmem:[%s1 + $0x450] sm:$0xff] %v5346
  %5923 = vst [vmem:[%s1 + $0x458] sm:$0xff] %v5347
  %5924 = vst [vmem:[%s1 + $0x460] sm:$0xff] %v5348
  %5925 = vst [vmem:[%s1 + $0x468] sm:$0xff] %v5349
  %5926 = vst [vmem:[%s1 + $0x470] sm:$0xff] %v5350
  %5927 = vst [vmem:[%s1 + $0x478] sm:$0xff] %v5351
  %5928 = vst [vmem:[%s1 + $0x480] sm:$0xff] %v5352
  %5929 = vst [vmem:[%s1 + $0x488] sm:$0xff] %v5353
  %5930 = vst [vmem:[%s1 + $0x490] sm:$0xff] %v5354
  %5931 = vst [vmem:[%s1 + $0x498] sm:$0xff] %v5355
  %5932 = vst [vmem:[%s1 + $0x4a0] sm:$0xff] %v5356
  %5933 = vst [vmem:[%s1 + $0x4a8] sm:$0xff] %v5357
  %5934 = vst [vmem:[%s1 + $0x4b0] sm:$0xff] %v5358
  %5935 = vst [vmem:[%s1 + $0x4b8] sm:$0xff] %v5359
  %5936 = vst [vmem:[%s1 + $0x4c0] sm:$0xff] %v5360
  %5937 = vst [vmem:[%s1 + $0x4c8] sm:$0xff] %v5361
  %5938 = vst [vmem:[%s1 + $0x4d0] sm:$0xff] %v5362
  %5939 = vst [vmem:[%s1 + $0x4d8] sm:$0xff] %v5363
  %5940 = vst [vmem:[%s1 + $0x4e0] sm:$0xff] %v5364
  %5941 = vst [vmem:[%s1 + $0x4e8] sm:$0xff] %v5365
  %5942 = vst [vmem:[%s1 + $0x4f0] sm:$0xff] %v5366
  %5943 = vst [vmem:[%s1 + $0x4f8] sm:$0xff] %v5367
  %5944 = vst [vmem:[%s1 + $0x500] sm:$0xff] %v5368
  %5945 = vst [vmem:[%s1 + $0x508] sm:$0xff] %v5369
  %5946 = vst [vmem:[%s1 + $0x510] sm:$0xff] %v5370
  %5947 = vst [vmem:[%s1 + $0x518] sm:$0xff] %v5371
  %5948 = vst [vmem:[%s1 + $0x520] sm:$0xff] %v5372
  %5949 = vst [vmem:[%s1 + $0x528] sm:$0xff] %v5373
  %5950 = vst [vmem:[%s1 + $0x530] sm:$0xff] %v5374
  %5951 = vst [vmem:[%s1 + $0x538] sm:$0xff] %v5375
  %5952 = vst [vmem:[%s1 + $0x540] sm:$0xff] %v5376
  %5953 = vst [vmem:[%s1 + $0x548] sm:$0xff] %v5377
  %5954 = vst [vmem:[%s1 + $0x550] sm:$0xff] %v5378
  %5955 = vst [vmem:[%s1 + $0x558] sm:$0xff] %v5379
  %5956 = vst [vmem:[%s1 + $0x560] sm:$0xff] %v5380
  %5957 = vst [vmem:[%s1 + $0x568] sm:$0xff] %v5381
  %5958 = vst [vmem:[%s1 + $0x570] sm:$0xff] %v5382
  %5959 = vst [vmem:[%s1 + $0x578] sm:$0xff] %v5383
  %5960 = vst [vmem:[%s1 + $0x580] sm:$0xff] %v5384
  %5961 = vst [vmem:[%s1 + $0x588] sm:$0xff] %v5385
  %5962 = vst [vmem:[%s1 + $0x590] sm:$0xff] %v5386
  %5963 = vst [vmem:[%s1 + $0x598] sm:$0xff] %v5387
  %5964 = vst [vmem:[%s1 + $0x5a0] sm:$0xff] %v5388
  %5965 = vst [vmem:[%s1 + $0x5a8] sm:$0xff] %v5389
  %5966 = vst [vmem:[%s1 + $0x5b0] sm:$0xff] %v5390
  %5967 = vst [vmem:[%s1 + $0x5b8] sm:$0xff] %v5391
  %5968 = vst [vmem:[%s1 + $0x5c0] sm:$0xff] %v5392
  %5969 = vst [vmem:[%s1 + $0x5c8] sm:$0xff] %v5393
  %5970 = vst [vmem:[%s1 + $0x5d0] sm:$0xff] %v5394
  %5971 = vst [vmem:[%s1 + $0x5d8] sm:$0xff] %v5395
  %5972 = vst [vmem:[%s1 + $0x5e0] sm:$0xff] %v5396
  %5973 = vst [vmem:[%s1 + $0x5e8] sm:$0xff] %v5397
  %5974 = vst [vmem:[%s1 + $0x5f0] sm:$0xff] %v5398
  %5975 = vst [vmem:[%s1 + $0x5f8] sm:$0xff] %v5399
  %5976 = vst [vmem:[%s1 + $0x600] sm:$0xff] %v5400
  %5977 = vst [vmem:[%s1 + $0x608] sm:$0xff] %v5401
  %5978 = vst [vmem:[%s1 + $0x610] sm:$0xff] %v5402
  %5979 = vst [vmem:[%s1 + $0x618] sm:$0xff] %v5403
  %5980 = vst [vmem:[%s1 + $0x620] sm:$0xff] %v5404
  %5981 = vst [vmem:[%s1 + $0x628] sm:$0xff] %v5405
  %5982 = vst [vmem:[%s1 + $0x630] sm:$0xff] %v5406
  %5983 = vst [vmem:[%s1 + $0x638] sm:$0xff] %v5407
  %5984 = vst [vmem:[%s1 + $0x640] sm:$0xff] %v5408
  %5985 = vst [vmem:[%s1 + $0x648] sm:$0xff] %v5409
  %5986 = vst [vmem:[%s1 + $0x650] sm:$0xff] %v5410
  %5987 = vst [vmem:[%s1 + $0x658] sm:$0xff] %v5411
  %5988 = vst [vmem:[%s1 + $0x660] sm:$0xff] %v5412
  %5989 = vst [vmem:[%s1 + $0x668] sm:$0xff] %v5413
  %5990 = vst [vmem:[%s1 + $0x670] sm:$0xff] %v5414
  %5991 = vst [vmem:[%s1 + $0x678] sm:$0xff] %v5415
  %5992 = vst [vmem:[%s1 + $0x680] sm:$0xff] %v5416
  %5993 = vst [vmem:[%s1 + $0x688] sm:$0xff] %v5417
  %5994 = vst [vmem:[%s1 + $0x690] sm:$0xff] %v5418
  %5995 = vst [vmem:[%s1 + $0x698] sm:$0xff] %v5419
  %5996 = vst [vmem:[%s1 + $0x6a0] sm:$0xff] %v5420
  %5997 = vst [vmem:[%s1 + $0x6a8] sm:$0xff] %v5421
  %5998 = vst [vmem:[%s1 + $0x6b0] sm:$0xff] %v5422
  %5999 = vst [vmem:[%s1 + $0x6b8] sm:$0xff] %v5423
  %6000 = vst [vmem:[%s1 + $0x6c0] sm:$0xff] %v5424
  %6001 = vst [vmem:[%s1 + $0x6c8] sm:$0xff] %v5425
  %6002 = vst [vmem:[%s1 + $0x6d0] sm:$0xff] %v5426
  %6003 = vst [vmem:[%s1 + $0x6d8] sm:$0xff] %v5427
  %6004 = vst [vmem:[%s1 + $0x6e0] sm:$0xff] %v5428
  %6005 = vst [vmem:[%s1 + $0x6e8] sm:$0xff] %v5429
  %6006 = vst [vmem:[%s1 + $0x6f0] sm:$0xff] %v5430
  %6007 = vst [vmem:[%s1 + $0x6f8] sm:$0xff] %v5431
  %6008 = vst [vmem:[%s1 + $0x700] sm:$0xff] %v5432
  %6009 = vst [vmem:[%s1 + $0x708] sm:$0xff] %v5433
  %6010 = vst [vmem:[%s1 + $0x710] sm:$0xff] %v5434
  %6011 = vst [vmem:[%s1 + $0x718] sm:$0xff] %v5435
  %6012 = vst [vmem:[%s1 + $0x720] sm:$0xff] %v5436
  %6013 = vst [vmem:[%s1 + $0x728] sm:$0xff] %v5437
  %6014 = vst [vmem:[%s1 + $0x730] sm:$0xff] %v5438
  %6015 = vst [vmem:[%s1 + $0x738] sm:$0xff] %v5439
  %6016 = vst [vmem:[%s1 + $0x740] sm:$0xff] %v5440
  %6017 = vst [vmem:[%s1 + $0x748] sm:$0xff] %v5441
  %6018 = vst [vmem:[%s1 + $0x750] sm:$0xff] %v5442
  %6019 = vst [vmem:[%s1 + $0x758] sm:$0xff] %v5443
  %6020 = vst [vmem:[%s1 + $0x760] sm:$0xff] %v5444
  %6021 = vst [vmem:[%s1 + $0x768] sm:$0xff] %v5445
  %6022 = vst [vmem:[%s1 + $0x770] sm:$0xff] %v5446
  %6023 = vst [vmem:[%s1 + $0x778] sm:$0xff] %v5447
  %6024 = vst [vmem:[%s1 + $0x780] sm:$0xff] %v5448
  %6025 = vst [vmem:[%s1 + $0x788] sm:$0xff] %v5449
  %6026 = vst [vmem:[%s1 + $0x790] sm:$0xff] %v5450
  %6027 = vst [vmem:[%s1 + $0x798] sm:$0xff] %v5451
  %6028 = vst [vmem:[%s1 + $0x7a0] sm:$0xff] %v5452
  %6029 = vst [vmem:[%s1 + $0x7a8] sm:$0xff] %v5453
  %6030 = vst [vmem:[%s1 + $0x7b0] sm:$0xff] %v5454
  %6031 = vst [vmem:[%s1 + $0x7b8] sm:$0xff] %v5455
  %6032 = vst [vmem:[%s1 + $0x7c0] sm:$0xff] %v5456
  %6033 = vst [vmem:[%s1 + $0x7c8] sm:$0xff] %v5457
  %6034 = vst [vmem:[%s1 + $0x7d0] sm:$0xff] %v5458
  %6035 = vst [vmem:[%s1 + $0x7d8] sm:$0xff] %v5459
  %6036 = vst [vmem:[%s1 + $0x7e0] sm:$0xff] %v5460
  %6037 = vst [vmem:[%s1 + $0x7e8] sm:$0xff] %v5461
  %6038 = vst [vmem:[%s1 + $0x7f0] sm:$0xff] %v5462
  %6039 = vst [vmem:[%s1 + $0x7f8] sm:$0xff] %v5463
  %6040 = vst [vmem:[%s1 + $0x800] sm:$0xff] %v5464
  %6041 = vst [vmem:[%s1 + $0x808] sm:$0xff] %v5465
  %6042 = vst [vmem:[%s1 + $0x810] sm:$0xff] %v5466
  %6043 = vst [vmem:[%s1 + $0x818] sm:$0xff] %v5467
  %6044 = vst [vmem:[%s1 + $0x820] sm:$0xff] %v5468
  %6045 = vst [vmem:[%s1 + $0x828] sm:$0xff] %v5469
  %6046 = vst [vmem:[%s1 + $0x830] sm:$0xff] %v5470
  %6047 = vst [vmem:[%s1 + $0x838] sm:$0xff] %v5471
  %6048 = vst [vmem:[%s1 + $0x840] sm:$0xff] %v5472
  %6049 = vst [vmem:[%s1 + $0x848] sm:$0xff] %v5473
  %6050 = vst [vmem:[%s1 + $0x850] sm:$0xff] %v5474
  %6051 = vst [vmem:[%s1 + $0x858] sm:$0xff] %v5475
  %6052 = vst [vmem:[%s1 + $0x860] sm:$0xff] %v5476
  %6053 = vst [vmem:[%s1 + $0x868] sm:$0xff] %v5477
  %6054 = vst [vmem:[%s1 + $0x870] sm:$0xff] %v5478
  %6055 = vst [vmem:[%s1 + $0x878] sm:$0xff] %v5479
  %6056 = vst [vmem:[%s1 + $0x880] sm:$0xff] %v5480
  %6057 = vst [vmem:[%s1 + $0x888] sm:$0xff] %v5481
  %6058 = vst [vmem:[%s1 + $0x890] sm:$0xff] %v5482
  %6059 = vst [vmem:[%s1 + $0x898] sm:$0xff] %v5483
  %6060 = vst [vmem:[%s1 + $0x8a0] sm:$0xff] %v5484
  %6061 = vst [vmem:[%s1 + $0x8a8] sm:$0xff] %v5485
  %6062 = vst [vmem:[%s1 + $0x8b0] sm:$0xff] %v5486
  %6063 = vst [vmem:[%s1 + $0x8b8] sm:$0xff] %v5487
  %6064 = vst [vmem:[%s1 + $0x8c0] sm:$0xff] %v5488
  %6065 = vst [vmem:[%s1 + $0x8c8] sm:$0xff] %v5489
  %6066 = vst [vmem:[%s1 + $0x8d0] sm:$0xff] %v5490
  %6067 = vst [vmem:[%s1 + $0x8d8] sm:$0xff] %v5491
  %6068 = vst [vmem:[%s1 + $0x8e0] sm:$0xff] %v5492
  %6069 = vst [vmem:[%s1 + $0x8e8] sm:$0xff] %v5493
  %6070 = vst [vmem:[%s1 + $0x8f0] sm:$0xff] %v5494
  %6071 = vst [vmem:[%s1 + $0x8f8] sm:$0xff] %v5495
  %6072 = vst [vmem:[%s1 + $0x900] sm:$0xff] %v5496
  %6073 = vst [vmem:[%s1 + $0x908] sm:$0xff] %v5497
  %6074 = vst [vmem:[%s1 + $0x910] sm:$0xff] %v5498
  %6075 = vst [vmem:[%s1 + $0x918] sm:$0xff] %v5499
  %6076 = vst [vmem:[%s1 + $0x920] sm:$0xff] %v5500
  %6077 = vst [vmem:[%s1 + $0x928] sm:$0xff] %v5501
  %6078 = vst [vmem:[%s1 + $0x930] sm:$0xff] %v5502
  %6079 = vst [vmem:[%s1 + $0x938] sm:$0xff] %v5503
  %6080 = vst [vmem:[%s1 + $0x940] sm:$0xff] %v5504
  %6081 = vst [vmem:[%s1 + $0x948] sm:$0xff] %v5505
  %6082 = vst [vmem:[%s1 + $0x950] sm:$0xff] %v5506
  %6083 = vst [vmem:[%s1 + $0x958] sm:$0xff] %v5507
  %6084 = vst [vmem:[%s1 + $0x960] sm:$0xff] %v5508
  %6085 = vst [vmem:[%s1 + $0x968] sm:$0xff] %v5509
  %6086 = vst [vmem:[%s1 + $0x970] sm:$0xff] %v5510
  %6087 = vst [vmem:[%s1 + $0x978] sm:$0xff] %v5511
  %6088 = vst [vmem:[%s1 + $0x980] sm:$0xff] %v5512
  %6089 = vst [vmem:[%s1 + $0x988] sm:$0xff] %v5513
  %6090 = vst [vmem:[%s1 + $0x990] sm:$0xff] %v5514
  %6091 = vst [vmem:[%s1 + $0x998] sm:$0xff] %v5515
  %6092 = vst [vmem:[%s1 + $0x9a0] sm:$0xff] %v5516
  %6093 = vst [vmem:[%s1 + $0x9a8] sm:$0xff] %v5517
  %6094 = vst [vmem:[%s1 + $0x9b0] sm:$0xff] %v5518
  %6095 = vst [vmem:[%s1 + $0x9b8] sm:$0xff] %v5519
  %6096 = vst [vmem:[%s1 + $0x9c0] sm:$0xff] %v5520
  %6097 = vst [vmem:[%s1 + $0x9c8] sm:$0xff] %v5521
  %6098 = vst [vmem:[%s1 + $0x9d0] sm:$0xff] %v5522
  %6099 = vst [vmem:[%s1 + $0x9d8] sm:$0xff] %v5523
  %6100 = vst [vmem:[%s1 + $0x9e0] sm:$0xff] %v5524
  %6101 = vst [vmem:[%s1 + $0x9e8] sm:$0xff] %v5525
  %6102 = vst [vmem:[%s1 + $0x9f0] sm:$0xff] %v5526
  %6103 = vst [vmem:[%s1 + $0x9f8] sm:$0xff] %v5527
  %6104 = vst [vmem:[%s1 + $0xa00] sm:$0xff] %v5528
  %6105 = vst [vmem:[%s1 + $0xa08] sm:$0xff] %v5529
  %6106 = vst [vmem:[%s1 + $0xa10] sm:$0xff] %v5530
  %6107 = vst [vmem:[%s1 + $0xa18] sm:$0xff] %v5531
  %6108 = vst [vmem:[%s1 + $0xa20] sm:$0xff] %v5532
  %6109 = vst [vmem:[%s1 + $0xa28] sm:$0xff] %v5533
  %6110 = vst [vmem:[%s1 + $0xa30] sm:$0xff] %v5534
  %6111 = vst [vmem:[%s1 + $0xa38] sm:$0xff] %v5535
  %6112 = vst [vmem:[%s1 + $0xa40] sm:$0xff] %v5536
  %6113 = vst [vmem:[%s1 + $0xa48] sm:$0xff] %v5537
  %6114 = vst [vmem:[%s1 + $0xa50] sm:$0xff] %v5538
  %6115 = vst [vmem:[%s1 + $0xa58] sm:$0xff] %v5539
  %6116 = vst [vmem:[%s1 + $0xa60] sm:$0xff] %v5540
  %6117 = vst [vmem:[%s1 + $0xa68] sm:$0xff] %v5541
  %6118 = vst [vmem:[%s1 + $0xa70] sm:$0xff] %v5542
  %6119 = vst [vmem:[%s1 + $0xa78] sm:$0xff] %v5543
  %6120 = vst [vmem:[%s1 + $0xa80] sm:$0xff] %v5544
  %6121 = vst [vmem:[%s1 + $0xa88] sm:$0xff] %v5545
  %6122 = vst [vmem:[%s1 + $0xa90] sm:$0xff] %v5546
  %6123 = vst [vmem:[%s1 + $0xa98] sm:$0xff] %v5547
  %6124 = vst [vmem:[%s1 + $0xaa0] sm:$0xff] %v5548
  %6125 = vst [vmem:[%s1 + $0xaa8] sm:$0xff] %v5549
  %6126 = vst [vmem:[%s1 + $0xab0] sm:$0xff] %v5550
  %6127 = vst [vmem:[%s1 + $0xab8] sm:$0xff] %v5551
  %6128 = vst [vmem:[%s1 + $0xac0] sm:$0xff] %v5552
  %6129 = vst [vmem:[%s1 + $0xac8] sm:$0xff] %v5553
  %6130 = vst [vmem:[%s1 + $0xad0] sm:$0xff] %v5554
  %6131 = vst [vmem:[%s1 + $0xad8] sm:$0xff] %v5555
  %6132 = vst [vmem:[%s1 + $0xae0] sm:$0xff] %v5556
  %6133 = vst [vmem:[%s1 + $0xae8] sm:$0xff] %v5557
  %6134 = vst [vmem:[%s1 + $0xaf0] sm:$0xff] %v5558
  %6135 = vst [vmem:[%s1 + $0xaf8] sm:$0xff] %v5559
  %6136 = vst [vmem:[%s1 + $0xb00] sm:$0xff] %v5560
  %6137 = vst [vmem:[%s1 + $0xb08] sm:$0xff] %v5561
  %6138 = vst [vmem:[%s1 + $0xb10] sm:$0xff] %v5562
  %6139 = vst [vmem:[%s1 + $0xb18] sm:$0xff] %v5563
  %6140 = vst [vmem:[%s1 + $0xb20] sm:$0xff] %v5564
  %6141 = vst [vmem:[%s1 + $0xb28] sm:$0xff] %v5565
  %6142 = vst [vmem:[%s1 + $0xb30] sm:$0xff] %v5566
  %6143 = vst [vmem:[%s1 + $0xb38] sm:$0xff] %v5567
  %6144 = vst [vmem:[%s1 + $0xb40] sm:$0xff] %v5568
  %6145 = vst [vmem:[%s1 + $0xb48] sm:$0xff] %v5569
  %6146 = vst [vmem:[%s1 + $0xb50] sm:$0xff] %v5570
  %6147 = vst [vmem:[%s1 + $0xb58] sm:$0xff] %v5571
  %6148 = vst [vmem:[%s1 + $0xb60] sm:$0xff] %v5572
  %6149 = vst [vmem:[%s1 + $0xb68] sm:$0xff] %v5573
  %6150 = vst [vmem:[%s1 + $0xb70] sm:$0xff] %v5574
  %6151 = vst [vmem:[%s1 + $0xb78] sm:$0xff] %v5575
  %6152 = vst [vmem:[%s1 + $0xb80] sm:$0xff] %v5576
  %6153 = vst [vmem:[%s1 + $0xb88] sm:$0xff] %v5577
  %6154 = vst [vmem:[%s1 + $0xb90] sm:$0xff] %v5578
  %6155 = vst [vmem:[%s1 + $0xb98] sm:$0xff] %v5579
  %6156 = vst [vmem:[%s1 + $0xba0] sm:$0xff] %v5580
  %6157 = vst [vmem:[%s1 + $0xba8] sm:$0xff] %v5581
  %6158 = vst [vmem:[%s1 + $0xbb0] sm:$0xff] %v5582
  %6159 = vst [vmem:[%s1 + $0xbb8] sm:$0xff] %v5583
  %6160 = vst [vmem:[%s1 + $0xbc0] sm:$0xff] %v5584
  %6161 = vst [vmem:[%s1 + $0xbc8] sm:$0xff] %v5585
  %6162 = vst [vmem:[%s1 + $0xbd0] sm:$0xff] %v5586
  %6163 = vst [vmem:[%s1 + $0xbd8] sm:$0xff] %v5587
  %6164 = vst [vmem:[%s1 + $0xbe0] sm:$0xff] %v5588
  %6165 = vst [vmem:[%s1 + $0xbe8] sm:$0xff] %v5589
  %6166 = vst [vmem:[%s1 + $0xbf0] sm:$0xff] %v5590
  %6167 = vst [vmem:[%s1 + $0xbf8] sm:$0xff] %v5591
  %6168 = vst [vmem:[%s1 + $0xc00] sm:$0xff] %v5592
  %6169 = vst [vmem:[%s1 + $0xc08] sm:$0xff] %v5593
  %6170 = vst [vmem:[%s1 + $0xc10] sm:$0xff] %v5594
  %6171 = vst [vmem:[%s1 + $0xc18] sm:$0xff] %v5595
  %6172 = vst [vmem:[%s1 + $0xc20] sm:$0xff] %v5596
  %6173 = vst [vmem:[%s1 + $0xc28] sm:$0xff] %v5597
  %6174 = vst [vmem:[%s1 + $0xc30] sm:$0xff] %v5598
  %6175 = vst [vmem:[%s1 + $0xc38] sm:$0xff] %v5599
  %6176 = vst [vmem:[%s1 + $0xc40] sm:$0xff] %v5600
  %6177 = vst [vmem:[%s1 + $0xc48] sm:$0xff] %v5601
  %6178 = vst [vmem:[%s1 + $0xc50] sm:$0xff] %v5602
  %6179 = vst [vmem:[%s1 + $0xc58] sm:$0xff] %v5603
  %6180 = vst [vmem:[%s1 + $0xc60] sm:$0xff] %v5604
  %6181 = vst [vmem:[%s1 + $0xc68] sm:$0xff] %v5605
  %6182 = vst [vmem:[%s1 + $0xc70] sm:$0xff] %v5606
  %6183 = vst [vmem:[%s1 + $0xc78] sm:$0xff] %v5607
  %6184 = vst [vmem:[%s1 + $0xc80] sm:$0xff] %v5608
  %6185 = vst [vmem:[%s1 + $0xc88] sm:$0xff] %v5609
  %6186 = vst [vmem:[%s1 + $0xc90] sm:$0xff] %v5610
  %6187 = vst [vmem:[%s1 + $0xc98] sm:$0xff] %v5611
  %6188 = vst [vmem:[%s1 + $0xca0] sm:$0xff] %v5612
  %6189 = vst [vmem:[%s1 + $0xca8] sm:$0xff] %v5613
  %6190 = vst [vmem:[%s1 + $0xcb0] sm:$0xff] %v5614
  %6191 = vst [vmem:[%s1 + $0xcb8] sm:$0xff] %v5615
  %6192 = vst [vmem:[%s1 + $0xcc0] sm:$0xff] %v5616
  %6193 = vst [vmem:[%s1 + $0xcc8] sm:$0xff] %v5617
  %6194 = vst [vmem:[%s1 + $0xcd0] sm:$0xff] %v5618
  %6195 = vst [vmem:[%s1 + $0xcd8] sm:$0xff] %v5619
  %6196 = vst [vmem:[%s1 + $0xce0] sm:$0xff] %v5620
  %6197 = vst [vmem:[%s1 + $0xce8] sm:$0xff] %v5621
  %6198 = vst [vmem:[%s1 + $0xcf0] sm:$0xff] %v5622
  %6199 = vst [vmem:[%s1 + $0xcf8] sm:$0xff] %v5623
  %6200 = vst [vmem:[%s1 + $0xd00] sm:$0xff] %v5624
  %6201 = vst [vmem:[%s1 + $0xd08] sm:$0xff] %v5625
  %6202 = vst [vmem:[%s1 + $0xd10] sm:$0xff] %v5626
  %6203 = vst [vmem:[%s1 + $0xd18] sm:$0xff] %v5627
  %6204 = vst [vmem:[%s1 + $0xd20] sm:$0xff] %v5628
  %6205 = vst [vmem:[%s1 + $0xd28] sm:$0xff] %v5629
  %6206 = vst [vmem:[%s1 + $0xd30] sm:$0xff] %v5630
  %6207 = vst [vmem:[%s1 + $0xd38] sm:$0xff] %v5631
  %6208 = vst [vmem:[%s1 + $0xd40] sm:$0xff] %v5632
  %6209 = vst [vmem:[%s1 + $0xd48] sm:$0xff] %v5633
  %6210 = vst [vmem:[%s1 + $0xd50] sm:$0xff] %v5634
  %6211 = vst [vmem:[%s1 + $0xd58] sm:$0xff] %v5635
  %6212 = vst [vmem:[%s1 + $0xd60] sm:$0xff] %v5636
  %6213 = vst [vmem:[%s1 + $0xd68] sm:$0xff] %v5637
  %6214 = vst [vmem:[%s1 + $0xd70] sm:$0xff] %v5638
  %6215 = vst [vmem:[%s1 + $0xd78] sm:$0xff] %v5639
  %6216 = vst [vmem:[%s1 + $0xd80] sm:$0xff] %v5640
  %6217 = vst [vmem:[%s1 + $0xd88] sm:$0xff] %v5641
  %6218 = vst [vmem:[%s1 + $0xd90] sm:$0xff] %v5642
  %6219 = vst [vmem:[%s1 + $0xd98] sm:$0xff] %v5643
  %6220 = vst [vmem:[%s1 + $0xda0] sm:$0xff] %v5644
  %6221 = vst [vmem:[%s1 + $0xda8] sm:$0xff] %v5645
  %6222 = vst [vmem:[%s1 + $0xdb0] sm:$0xff] %v5646
  %6223 = vst [vmem:[%s1 + $0xdb8] sm:$0xff] %v5647
  %6224 = vst [vmem:[%s1 + $0xdc0] sm:$0xff] %v5648
  %6225 = vst [vmem:[%s1 + $0xdc8] sm:$0xff] %v5649
  %6226 = vst [vmem:[%s1 + $0xdd0] sm:$0xff] %v5650
  %6227 = vst [vmem:[%s1 + $0xdd8] sm:$0xff] %v5651
  %6228 = vst [vmem:[%s1 + $0xde0] sm:$0xff] %v5652
  %6229 = vst [vmem:[%s1 + $0xde8] sm:$0xff] %v5653
  %6230 = vst [vmem:[%s1 + $0xdf0] sm:$0xff] %v5654
  %6231 = vst [vmem:[%s1 + $0xdf8] sm:$0xff] %v5655
  %6232 = vst [vmem:[%s1 + $0xe00] sm:$0xff] %v5656
  %6233 = vst [vmem:[%s1 + $0xe08] sm:$0xff] %v5657
  %6234 = vst [vmem:[%s1 + $0xe10] sm:$0xff] %v5658
  %6235 = vst [vmem:[%s1 + $0xe18] sm:$0xff] %v5659
  %6236 = vst [vmem:[%s1 + $0xe20] sm:$0xff] %v5660
  %6237 = vst [vmem:[%s1 + $0xe28] sm:$0xff] %v5661
  %6238 = vst [vmem:[%s1 + $0xe30] sm:$0xff] %v5662
  %6239 = vst [vmem:[%s1 + $0xe38] sm:$0xff] %v5663
  %6240 = vst [vmem:[%s1 + $0xe40] sm:$0xff] %v5664
  %6241 = vst [vmem:[%s1 + $0xe48] sm:$0xff] %v5665
  %6242 = vst [vmem:[%s1 + $0xe50] sm:$0xff] %v5666
  %6243 = vst [vmem:[%s1 + $0xe58] sm:$0xff] %v5667
  %6244 = vst [vmem:[%s1 + $0xe60] sm:$0xff] %v5668
  %6245 = vst [vmem:[%s1 + $0xe68] sm:$0xff] %v5669
  %6246 = vst [vmem:[%s1 + $0xe70] sm:$0xff] %v5670
  %6247 = vst [vmem:[%s1 + $0xe78] sm:$0xff] %v5671
  %6248 = vst [vmem:[%s1 + $0xe80] sm:$0xff] %v5672
  %6249 = vst [vmem:[%s1 + $0xe88] sm:$0xff] %v5673
  %6250 = vst [vmem:[%s1 + $0xe90] sm:$0xff] %v5674
  %6251 = vst [vmem:[%s1 + $0xe98] sm:$0xff] %v5675
  %6252 = vst [vmem:[%s1 + $0xea0] sm:$0xff] %v5676
  %6253 = vst [vmem:[%s1 + $0xea8] sm:$0xff] %v5677
  %6254 = vst [vmem:[%s1 + $0xeb0] sm:$0xff] %v5678
  %6255 = vst [vmem:[%s1 + $0xeb8] sm:$0xff] %v5679
  %6256 = vst [vmem:[%s1 + $0xec0] sm:$0xff] %v5680
  %6257 = vst [vmem:[%s1 + $0xec8] sm:$0xff] %v5681
  %6258 = vst [vmem:[%s1 + $0xed0] sm:$0xff] %v5682
  %6259 = vst [vmem:[%s1 + $0xed8] sm:$0xff] %v5683
  %6260 = vst [vmem:[%s1 + $0xee0] sm:$0xff] %v5684
  %6261 = vst [vmem:[%s1 + $0xee8] sm:$0xff] %v5685
  %6262 = vst [vmem:[%s1 + $0xef0] sm:$0xff] %v5686
  %6263 = vst [vmem:[%s1 + $0xef8] sm:$0xff] %v5687
  %6264 = vst [vmem:[%s1 + $0xf00] sm:$0xff] %v5688
  %6265 = vst [vmem:[%s1 + $0xf08] sm:$0xff] %v5689
  %6266 = vst [vmem:[%s1 + $0xf10] sm:$0xff] %v5690
  %6267 = vst [vmem:[%s1 + $0xf18] sm:$0xff] %v5691
  %6268 = vst [vmem:[%s1 + $0xf20] sm:$0xff] %v5692
  %6269 = vst [vmem:[%s1 + $0xf28] sm:$0xff] %v5693
  %6270 = vst [vmem:[%s1 + $0xf30] sm:$0xff] %v5694
  %6271 = vst [vmem:[%s1 + $0xf38] sm:$0xff] %v5695
  %6272 = vst [vmem:[%s1 + $0xf40] sm:$0xff] %v5696
  %6273 = vst [vmem:[%s1 + $0xf48] sm:$0xff] %v5697
  %6274 = vst [vmem:[%s1 + $0xf50] sm:$0xff] %v5698
  %6275 = vst [vmem:[%s1 + $0xf58] sm:$0xff] %v5699
  %6276 = vst [vmem:[%s1 + $0xf60] sm:$0xff] %v5700
  %6277 = vst [vmem:[%s1 + $0xf68] sm:$0xff] %v5701
  %6278 = vst [vmem:[%s1 + $0xf70] sm:$0xff] %v5702
  %6279 = vst [vmem:[%s1 + $0xf78] sm:$0xff] %v5703
  %6280 = vst [vmem:[%s1 + $0xf80] sm:$0xff] %v5704
  %6281 = vst [vmem:[%s1 + $0xf88] sm:$0xff] %v5705
  %6282 = vst [vmem:[%s1 + $0xf90] sm:$0xff] %v5706
  %6283 = vst [vmem:[%s1 + $0xf98] sm:$0xff] %v5707
  %6284 = vst [vmem:[%s1 + $0xfa0] sm:$0xff] %v5708
  %6285 = vst [vmem:[%s1 + $0xfa8] sm:$0xff] %v5709
  %6286 = vst [vmem:[%s1 + $0xfb0] sm:$0xff] %v5710
  %6287 = vst [vmem:[%s1 + $0xfb8] sm:$0xff] %v5711
  %6288 = vst [vmem:[%s1 + $0xfc0] sm:$0xff] %v5712
  %6289 = vst [vmem:[%s1 + $0xfc8] sm:$0xff] %v5713
  %6290 = vst [vmem:[%s1 + $0xfd0] sm:$0xff] %v5714
  %6291 = vst [vmem:[%s1 + $0xfd8] sm:$0xff] %v5715
  %6292 = vst [vmem:[%s1 + $0xfe0] sm:$0xff] %v5716
  %6293 = vst [vmem:[%s1 + $0xfe8] sm:$0xff] %v5717
  %6294 = vst [vmem:[%s1 + $0xff0] sm:$0xff] %v5718
  %6295 = vst [vmem:[%s1 + $0xff8] sm:$0xff] %v5719
  %6296 = vst [vmem:[%s1 + $0x1000] sm:$0xff] %v5720
  %6297 = vst [vmem:[%s1 + $0x1008] sm:$0xff] %v5721
  %6298 = vst [vmem:[%s1 + $0x1010] sm:$0xff] %v5722
  %6299 = vst [vmem:[%s1 + $0x1018] sm:$0xff] %v5723
  %6300 = vst [vmem:[%s1 + $0x1020] sm:$0xff] %v5724
  %6301 = vst [vmem:[%s1 + $0x1028] sm:$0xff] %v5725
  %6302 = vst [vmem:[%s1 + $0x1030] sm:$0xff] %v5726
  %6303 = vst [vmem:[%s1 + $0x1038] sm:$0xff] %v5727
  %6304 = vst [vmem:[%s1 + $0x1040] sm:$0xff] %v5728
  %6305 = vst [vmem:[%s1 + $0x1048] sm:$0xff] %v5729
  %6306 = vst [vmem:[%s1 + $0x1050] sm:$0xff] %v5730
  %6307 = vst [vmem:[%s1 + $0x1058] sm:$0xff] %v5731
  %6308 = vst [vmem:[%s1 + $0x1060] sm:$0xff] %v5732
  %6309 = vst [vmem:[%s1 + $0x1068] sm:$0xff] %v5733
  %6310 = vst [vmem:[%s1 + $0x1070] sm:$0xff] %v5734
  %6311 = vst [vmem:[%s1 + $0x1078] sm:$0xff] %v5735
  %6312 = vst [vmem:[%s1 + $0x1080] sm:$0xff] %v5736
  %6313 = vst [vmem:[%s1 + $0x1088] sm:$0xff] %v5737
  %6314 = vst [vmem:[%s1 + $0x1090] sm:$0xff] %v5738
  %6315 = vst [vmem:[%s1 + $0x1098] sm:$0xff] %v5739
  %6316 = vst [vmem:[%s1 + $0x10a0] sm:$0xff] %v5740
  %6317 = vst [vmem:[%s1 + $0x10a8] sm:$0xff] %v5741
  %6318 = vst [vmem:[%s1 + $0x10b0] sm:$0xff] %v5742
  %6319 = vst [vmem:[%s1 + $0x10b8] sm:$0xff] %v5743
  %6320 = vst [vmem:[%s1 + $0x10c0] sm:$0xff] %v5744
  %6321 = vst [vmem:[%s1 + $0x10c8] sm:$0xff] %v5745
  %6322 = vst [vmem:[%s1 + $0x10d0] sm:$0xff] %v5746
  %6323 = vst [vmem:[%s1 + $0x10d8] sm:$0xff] %v5747
  %6324 = vst [vmem:[%s1 + $0x10e0] sm:$0xff] %v5748
  %6325 = vst [vmem:[%s1 + $0x10e8] sm:$0xff] %v5749
  %6326 = vst [vmem:[%s1 + $0x10f0] sm:$0xff] %v5750
  %6327 = vst [vmem:[%s1 + $0x10f8] sm:$0xff] %v5751
  %6328 = vst [vmem:[%s1 + $0x1100] sm:$0xff] %v5752
  %6329 = vst [vmem:[%s1 + $0x1108] sm:$0xff] %v5753
  %6330 = vst [vmem:[%s1 + $0x1110] sm:$0xff] %v5754
  %6331 = vst [vmem:[%s1 + $0x1118] sm:$0xff] %v5755
  %6332 = vst [vmem:[%s1 + $0x1120] sm:$0xff] %v5756
  %6333 = vst [vmem:[%s1 + $0x1128] sm:$0xff] %v5757
  %6334 = vst [vmem:[%s1 + $0x1130] sm:$0xff] %v5758
  %6335 = vst [vmem:[%s1 + $0x1138] sm:$0xff] %v5759
  %6336 = vst [vmem:[%s1 + $0x1140] sm:$0xff] %v5760
  %6337 = vst [vmem:[%s1 + $0x1148] sm:$0xff] %v5761
  %6338 = vst [vmem:[%s1 + $0x1150] sm:$0xff] %v5762
  %6339 = vst [vmem:[%s1 + $0x1158] sm:$0xff] %v5763
  %6340 = vst [vmem:[%s1 + $0x1160] sm:$0xff] %v5764
  %6341 = vst [vmem:[%s1 + $0x1168] sm:$0xff] %v5765
  %6342 = vst [vmem:[%s1 + $0x1170] sm:$0xff] %v5766
  %6343 = vst [vmem:[%s1 + $0x1178] sm:$0xff] %v5767
  %6344 = vst [vmem:[%s1 + $0x1180] sm:$0xff] %v5768
  %6345 = vst [vmem:[%s1 + $0x1188] sm:$0xff] %v5769
  %6346 = vst [vmem:[%s1 + $0x1190] sm:$0xff] %v5770
  %6347 = vst [vmem:[%s1 + $0x1198] sm:$0xff] %v5771
  %6348 = vst [vmem:[%s1 + $0x11a0] sm:$0xff] %v5772
  %6349 = vst [vmem:[%s1 + $0x11a8] sm:$0xff] %v5773
  %6350 = vst [vmem:[%s1 + $0x11b0] sm:$0xff] %v5774
  %6351 = vst [vmem:[%s1 + $0x11b8] sm:$0xff] %v5775
  %6352 = vst [vmem:[%s1 + $0x11c0] sm:$0xff] %v5776
  %6353 = vst [vmem:[%s1 + $0x11c8] sm:$0xff] %v5777
  %6354 = vst [vmem:[%s1 + $0x11d0] sm:$0xff] %v5778
  %6355 = vst [vmem:[%s1 + $0x11d8] sm:$0xff] %v5779
  %6356 = vst [vmem:[%s1 + $0x11e0] sm:$0xff] %v5780
  %6357 = vst [vmem:[%s1 + $0x11e8] sm:$0xff] %v5781
  %6358 = vst [vmem:[%s1 + $0x11f0] sm:$0xff] %v5782
  %6359 = vst [vmem:[%s1 + $0x11f8] sm:$0xff] %v5783
  // Predicated region
  $region6: #{weight_quantize.1} parent=0 // pred_check
    _
  $region7: #{weight_quantize.1} parent=0 // pred_check_branch
    %6361 = sbr.rel (0) target = $region9
  $region8: #{weight_quantize.1} parent=0 // pred_region
    _
  $region9: #{weight_quantize.1} parent=0 // pred_fallthru
    _
  // Predicated region
  $region10: #{weight_quantize.1} parent=0 // pred_check
    _
  $region11: #{weight_quantize.1} parent=0 // pred_check_branch
    %6363 = sbr.rel (0) target = $region13
  $region12: #{weight_quantize.1} parent=0 // pred_region
    _
  $region13: #{weight_quantize.1} parent=0 // pred_fallthru
    _

</llo_original>
